<compile_context>
chip_gen: v5e
topology: v5e:2x2
jax: 0.10.0
libtpu: 0.0.40
codegen_flags: <defaults>
</compile_context>

<pallas_src>
import functools

import jax
import jax.numpy as jnp
from jax.experimental import pallas as pl
from jax.experimental.pallas import tpu as pltpu

C1, C2, C3 = 64, 128, 256  # conv channel widths fixed by the module


def _round_up(x, m):
    return ((x + m - 1) // m) * m


def _conv3x3_bn_relu(pad_ref, b, h, w, w_ref, s_ref, b_ref):
    """3x3 / stride-1 conv + folded BatchNorm + ReLU over a zero-bordered input.

    pad_ref: (b, h+2, >=w+2, cin) ref; the logical window [0:h+2, 0:w+2] holds the padded image
             (interior data, zero border); any extra padded columns are never read.
    w_ref:   (9*cin, cout) bf16 im2col weights, rows in (ky, kx, cin) order.
    s_ref, b_ref: (1, cout) f32 folded BN scale / bias (conv bias folded in).
    returns  (b*h*w, cout) f32, rows in (b, y, x) order.
    """
    cin = pad_ref.shape[-1]
    cols = []
    for dy in range(3):
        for dx in range(3):
            cols.append(pad_ref[:, dy:dy + h, dx:dx + w, :].reshape(b * h * w, cin))
    patches = jnp.concatenate(cols, axis=-1).astype(jnp.bfloat16)        # (b*h*w, 9*cin)
    y = jnp.dot(patches, w_ref[...], preferred_element_type=jnp.float32)
    return jnp.maximum(y * s_ref[...] + b_ref[...], 0.0)                 # (b*h*w, cout) f32


def _maxpool2x2(y, b, h, w, c):
    """2x2 / stride-2 max pool fused into the conv epilogue.
    y: (b*h*w, c), rows in (b, y, x) order -> (b, h//2, w//2, c).
    Only lane-preserving reshapes (minor dim c is never regrouped)."""
    y = y.reshape(b, h // 2, 2, w, c)
    y = jnp.maximum(y[:, :, 0], y[:, :, 1])            # vertical pairs   -> (b, h//2, w, c)
    y = y.reshape(b, h // 2, w // 2, 2, c)
    return jnp.maximum(y[:, :, :, 0], y[:, :, :, 1])   # horizontal pairs -> (b, h//2, w//2, c)


def _write_halo(pad_ref, a, b, h, w):
    """Store activation `a` (b, h, w, c) into pad_ref's interior and zero ONLY the 1-wide
    border of the logical (h+2, w+2) window (perimeter work, not area).  Extra padded columns
    beyond w+1 are never read.  Done every grid step so it is megacore-safe."""
    c = a.shape[-1]
    wp = pad_ref.shape[2]
    zrow = jnp.zeros((b, 1, wp, c), jnp.float32)
    zcol = jnp.zeros((b, h, 1, c), jnp.float32)
    pad_ref[:, 0:1, :, :] = zrow                       # top border row
    pad_ref[:, h + 1:h + 2, :, :] = zrow               # bottom border row
    pad_ref[:, 1:h + 1, 0:1, :] = zcol                 # left border column
    pad_ref[:, 1:h + 1, w + 1:w + 2, :] = zcol         # right border column
    pad_ref[:, 1:h + 1, 1:w + 1, :] = a                # interior (fully overwritten)


def _cnn_kernel(x_ref,
                w1_ref, s1_ref, b1_ref,
                w2_ref, s2_ref, b2_ref,
                w3_ref, s3_ref, b3_ref,
                fc1_ref, fb1_ref, fc2_ref, fb2_ref,
                o_ref,
                pad2_ref, pad3_ref,
                *, B, H, W):
    H2, W2, H4, W4 = H // 2, W // 2, H // 4, W // 4

    # conv1 + BN + ReLU + MaxPool2 (input arrives pre-padded from the wrapper)
    y1 = _conv3x3_bn_relu(x_ref, B, H, W, w1_ref, s1_ref, b1_ref)        # (B*H*W, 64)
    a1 = _maxpool2x2(y1, B, H, W, C1)                                    # (B, H/2, W/2, 64)

    # conv2 + BN + ReLU + MaxPool2
    _write_halo(pad2_ref, a1, B, H2, W2)
    y2 = _conv3x3_bn_relu(pad2_ref, B, H2, W2, w2_ref, s2_ref, b2_ref)   # (B*H2*W2, 128)
    a2 = _maxpool2x2(y2, B, H2, W2, C2)                                  # (B, H/4, W/4, 128)

    # conv3 + BN + ReLU
    _write_halo(pad3_ref, a2, B, H4, W4)
    y3 = _conv3x3_bn_relu(pad3_ref, B, H4, W4, w3_ref, s3_ref, b3_ref)   # (B*H4*W4, 256)

    # Flatten in NHWC order (fc1 rows pre-permuted at init): ONE reshape, no slice+concat.
    feat = y3.reshape(B, H4 * W4 * C3).astype(jnp.bfloat16)              # (B, 4096)

    # MLP head; Dropout(0.3)/Dropout(0.2) are identity in eval mode.
    # TODO(synk): training-mode Dropout masking and BatchNorm batch statistics not implemented.
    h1 = jnp.dot(feat, fc1_ref[...], preferred_element_type=jnp.float32) + fb1_ref[...]
    h1 = jnp.maximum(h1, 0.0).astype(jnp.bfloat16)                       # (B, 256)
    out = jnp.dot(h1, fc2_ref[...], preferred_element_type=jnp.float32) + fb2_ref[...]
    o_ref[0] = out.astype(o_ref.dtype)                                   # (B, 128) lane-dense


def cnn_forward(x_nchw, params, batch_per_step=None):
    N, Cin, H, W = x_nchw.shape
    assert H % 4 == 0 and W % 4 == 0, "two MaxPool2d(2) layers require H, W divisible by 4"
    H2, W2, H4, W4 = H // 2, W // 2, H // 4, W // 4

    # NHWC once (channels -> lanes), then build conv1's zero halo once in HBM:
    # removes the in-kernel (H+2, W+2, Cin) scratch, its per-step zeroing and its padded layout.
    x = jnp.transpose(x_nchw, (0, 2, 3, 1))
    x = jnp.pad(x, ((0, 0), (1, 1), (1, 1), (0, 0)))

    # Images per grid step: batch as much as is useful, but keep grid >= 2 (when N allows) so
    # ("parallel",) can still feed the second TensorCore on v7x.
    if batch_per_step is None:
        batch_per_step = max(1, min(8, N // 2))
    B = int(batch_per_step)
    G = -(-N // B)
    if G * B != N:                                   # pad batch to whole grid steps
        x = jnp.pad(x, ((0, G * B - N), (0, 0), (0, 0), (0, 0)))

    # Halo scratches: sublane-align the second-to-last dim (multiple of 8); only the logical
    # (h+2, w+2) window is indexed in the kernel.
    wp2 = _round_up(W2 + 2, 8)
    wp4 = _round_up(W4 + 2, 8)

    def full(arr):   # whole weight/bias resident in VMEM, constant block index across steps
        return pl.BlockSpec(arr.shape, lambda g, _nd=arr.ndim: (0,) * _nd)

    kernel = functools.partial(_cnn_kernel, B=B, H=H, W=W)
    out = pl.pallas_call(
        kernel,
        out_shape=jax.ShapeDtypeStruct((G, B, 128), jnp.float32),
        grid_spec=pltpu.PrefetchScalarGridSpec(
            num_scalar_prefetch=0,
            grid=(G,),
            in_specs=[
                pl.BlockSpec((B, H + 2, W + 2, Cin), lambda g: (g, 0, 0, 0)),
                full(params["w1"]), full(params["s1"]), full(params["b1"]),
                full(params["w2"]), full(params["s2"]), full(params["b2"]),
                full(params["w3"]), full(params["s3"]), full(params["b3"]),
                full(params["fc1_w"]), full(params["fc1_b"]),
                full(params["fc2_w"]), full(params["fc2_b"]),
            ],
            out_specs=pl.BlockSpec((1, B, 128), lambda g: (g, 0, 0)),
            scratch_shapes=[
                pltpu.VMEM((B, H2 + 2, wp2, C1), jnp.float32),   # conv2 halo
                pltpu.VMEM((B, H4 + 2, wp4, C2), jnp.float32),   # conv3 halo
            ],
        ),
        compiler_params=pltpu.CompilerParams(
            dimension_semantics=("parallel",),        # batch-parallel grid steps
            vmem_limit_bytes=32 * 1024 * 1024,        # above v5e's 16 MiB scoped default
        ),
    )(x,
      params["w1"], params["s1"], params["b1"],
      params["w2"], params["s2"], params["b2"],
      params["w3"], params["s3"], params["b3"],
      params["fc1_w"], params["fc1_b"], params["fc2_w"], params["fc2_b"])
    return out.reshape(G * B, 128)[:N]


# ----------------------------------------------------------------------------
# Deterministic synthetic parameters (eval-mode BN folded, weights pre-laid-out for the kernel).
# ----------------------------------------------------------------------------
def init_params(key, in_channels, H, W, eps=1e-5):
    H4, W4 = H // 4, W // 4
    feature_dim = C3 * H4 * W4
    keys = jax.random.split(key, 16)

    def conv_block(kw, kb, kg, kbt, cin, cout):
        w = jax.random.normal(kw, (3, 3, cin, cout), jnp.float32) / jnp.sqrt(9.0 * cin)
        conv_b = 0.01 * jax.random.normal(kb, (cout,), jnp.float32)
        gamma = 1.0 + 0.1 * jax.random.normal(kg, (cout,), jnp.float32)
        beta = 0.1 * jax.random.normal(kbt, (cout,), jnp.float32)
        running_mean = jnp.zeros((cout,), jnp.float32)
        running_var = jnp.ones((cout,), jnp.float32)
        scale = gamma / jnp.sqrt(running_var + eps)
        bias = beta + scale * (conv_b - running_mean)               # conv bias + BN folded
        w_im2col = w.reshape(9 * cin, cout).astype(jnp.bfloat16)    # rows in (ky, kx, ci) order
        return w_im2col, scale.reshape(1, cout), bias.reshape(1, cout)

    p = {}
    p["w1"], p["s1"], p["b1"] = conv_block(keys[0], keys[1], keys[2], keys[3], in_channels, C1)
    p["w2"], p["s2"], p["b2"] = conv_block(keys[4], keys[5], keys[6], keys[7], C1, C2)
    p["w3"], p["s3"], p["b3"] = conv_block(keys[8], keys[9], keys[10], keys[11], C2, C3)

    # fc1 is defined (like torch) over the NCHW flatten order (c, h, w); permute its rows once
    # at init to the kernel's NHWC flatten order (h, w, c) -> no runtime transpose needed.
    fc1 = jax.random.normal(keys[12], (feature_dim, 256), jnp.float32) / jnp.sqrt(float(feature_dim))
    fc1 = fc1.reshape(C3, H4, W4, 256).transpose(1, 2, 0, 3).reshape(feature_dim, 256)
    p["fc1_w"] = fc1.astype(jnp.bfloat16)
    p["fc1_b"] = (0.01 * jax.random.normal(keys[13], (256,), jnp.float32)).reshape(1, 256)
    fc2 = jax.random.normal(keys[14], (256, 128), jnp.float32) / jnp.sqrt(256.0)
    p["fc2_w"] = fc2.astype(jnp.bfloat16)
    p["fc2_b"] = (0.01 * jax.random.normal(keys[15], (128,), jnp.float32)).reshape(1, 128)
    return p


if __name__ == "__main__":
    key = jax.random.PRNGKey(0)
    k_x, k_p = jax.random.split(key)

    N, Cin, H, W = 2, 4, 16, 16
    x = jax.random.normal(k_x, (N, Cin, H, W), jnp.float32)
    params = init_params(k_p, Cin, H, W)

    out = cnn_forward(x, params)
    out = jax.block_until_ready(out)
    assert out.shape == (N, 128), out.shape
    assert bool(jnp.all(jnp.isfinite(out)))
    print("KERNEL_OK")
</pallas_src>

<mosaic_0001>
module attributes {stable_mosaic.version = 11 : i64} {
  func.func @_cnn_kernel(%arg0: i32, %arg1: memref<1x18x18x4xf32, #tpu.memory_space<vmem>>, %arg2: memref<36x64xbf16, #tpu.memory_space<vmem>>, %arg3: memref<1x64xf32, #tpu.memory_space<vmem>>, %arg4: memref<1x64xf32, #tpu.memory_space<vmem>>, %arg5: memref<576x128xbf16, #tpu.memory_space<vmem>>, %arg6: memref<1x128xf32, #tpu.memory_space<vmem>>, %arg7: memref<1x128xf32, #tpu.memory_space<vmem>>, %arg8: memref<1152x256xbf16, #tpu.memory_space<vmem>>, %arg9: memref<1x256xf32, #tpu.memory_space<vmem>>, %arg10: memref<1x256xf32, #tpu.memory_space<vmem>>, %arg11: memref<4096x256xbf16, #tpu.memory_space<vmem>>, %arg12: memref<1x256xf32, #tpu.memory_space<vmem>>, %arg13: memref<256x128xbf16, #tpu.memory_space<vmem>>, %arg14: memref<1x128xf32, #tpu.memory_space<vmem>>, %arg15: memref<1x1x128xf32, #tpu.memory_space<vmem>>, %arg16: memref<1x10x16x64xf32, #tpu.memory_space<vmem>>, %arg17: memref<1x6x8x128xf32, #tpu.memory_space<vmem>>) attributes {dimension_semantics = [#tpu.dimension_semantics<parallel>], iteration_bounds = array<i64: 2>, scalar_prefetch = 0 : i64, scratch_operands = 2 : i64, tpu.core_type = #tpu.core_type<tc>, window_params = [{transform_indices = @transform_0, window_bounds = array<i64: 1, 18, 18, 4>}, {pipeline_mode = #tpu.pipeline_mode<synchronous>, transform_indices = @transform_1, window_bounds = array<i64: 36, 64>}, {pipeline_mode = #tpu.pipeline_mode<synchronous>, transform_indices = @transform_2, window_bounds = array<i64: 1, 64>}, {pipeline_mode = #tpu.pipeline_mode<synchronous>, transform_indices = @transform_3, window_bounds = array<i64: 1, 64>}, {pipeline_mode = #tpu.pipeline_mode<synchronous>, transform_indices = @transform_4, window_bounds = array<i64: 576, 128>}, {pipeline_mode = #tpu.pipeline_mode<synchronous>, transform_indices = @transform_5, window_bounds = array<i64: 1, 128>}, {pipeline_mode = #tpu.pipeline_mode<synchronous>, transform_indices = @transform_6, window_bounds = array<i64: 1, 128>}, {pipeline_mode = #tpu.pipeline_mode<synchronous>, transform_indices = @transform_7, window_bounds = array<i64: 1152, 256>}, {pipeline_mode = #tpu.pipeline_mode<synchronous>, transform_indices = @transform_8, window_bounds = array<i64: 1, 256>}, {pipeline_mode = #tpu.pipeline_mode<synchronous>, transform_indices = @transform_9, window_bounds = array<i64: 1, 256>}, {pipeline_mode = #tpu.pipeline_mode<synchronous>, transform_indices = @transform_10, window_bounds = array<i64: 4096, 256>}, {pipeline_mode = #tpu.pipeline_mode<synchronous>, transform_indices = @transform_11, window_bounds = array<i64: 1, 256>}, {pipeline_mode = #tpu.pipeline_mode<synchronous>, transform_indices = @transform_12, window_bounds = array<i64: 256, 128>}, {pipeline_mode = #tpu.pipeline_mode<synchronous>, transform_indices = @transform_13, window_bounds = array<i64: 1, 128>}, {transform_indices = @transform_14, window_bounds = array<i64: 1, 1, 128>}]} {
    %c0 = arith.constant 0 : index
    %c0_0 = arith.constant 0 : index
    %c0_1 = arith.constant 0 : index
    %c0_2 = arith.constant 0 : index
    %0 = vector.load %arg1[%c0, %c0_0, %c0_1, %c0_2] : memref<1x18x18x4xf32, #tpu.memory_space<vmem>>, vector<1x16x16x4xf32>
    %1 = vector.shape_cast %0 : vector<1x16x16x4xf32> to vector<256x4xf32>
    %c0_3 = arith.constant 0 : index
    %c0_4 = arith.constant 0 : index
    %c1 = arith.constant 1 : index
    %c0_5 = arith.constant 0 : index
    %2 = vector.load %arg1[%c0_3, %c0_4, %c1, %c0_5] : memref<1x18x18x4xf32, #tpu.memory_space<vmem>>, vector<1x16x16x4xf32>
    %3 = vector.shape_cast %2 : vector<1x16x16x4xf32> to vector<256x4xf32>
    %c0_6 = arith.constant 0 : index
    %c0_7 = arith.constant 0 : index
    %c2 = arith.constant 2 : index
    %c0_8 = arith.constant 0 : index
    %4 = vector.load %arg1[%c0_6, %c0_7, %c2, %c0_8] : memref<1x18x18x4xf32, #tpu.memory_space<vmem>>, vector<1x16x16x4xf32>
    %5 = vector.shape_cast %4 : vector<1x16x16x4xf32> to vector<256x4xf32>
    %c0_9 = arith.constant 0 : index
    %c1_10 = arith.constant 1 : index
    %c0_11 = arith.constant 0 : index
    %c0_12 = arith.constant 0 : index
    %6 = vector.load %arg1[%c0_9, %c1_10, %c0_11, %c0_12] : memref<1x18x18x4xf32, #tpu.memory_space<vmem>>, vector<1x16x16x4xf32>
    %7 = vector.shape_cast %6 : vector<1x16x16x4xf32> to vector<256x4xf32>
    %c0_13 = arith.constant 0 : index
    %c1_14 = arith.constant 1 : index
    %c1_15 = arith.constant 1 : index
    %c0_16 = arith.constant 0 : index
    %8 = vector.load %arg1[%c0_13, %c1_14, %c1_15, %c0_16] : memref<1x18x18x4xf32, #tpu.memory_space<vmem>>, vector<1x16x16x4xf32>
    %9 = vector.shape_cast %8 : vector<1x16x16x4xf32> to vector<256x4xf32>
    %c0_17 = arith.constant 0 : index
    %c1_18 = arith.constant 1 : index
    %c2_19 = arith.constant 2 : index
    %c0_20 = arith.constant 0 : index
    %10 = vector.load %arg1[%c0_17, %c1_18, %c2_19, %c0_20] : memref<1x18x18x4xf32, #tpu.memory_space<vmem>>, vector<1x16x16x4xf32>
    %11 = vector.shape_cast %10 : vector<1x16x16x4xf32> to vector<256x4xf32>
    %c0_21 = arith.constant 0 : index
    %c2_22 = arith.constant 2 : index
    %c0_23 = arith.constant 0 : index
    %c0_24 = arith.constant 0 : index
    %12 = vector.load %arg1[%c0_21, %c2_22, %c0_23, %c0_24] : memref<1x18x18x4xf32, #tpu.memory_space<vmem>>, vector<1x16x16x4xf32>
    %13 = vector.shape_cast %12 : vector<1x16x16x4xf32> to vector<256x4xf32>
    %c0_25 = arith.constant 0 : index
    %c2_26 = arith.constant 2 : index
    %c1_27 = arith.constant 1 : index
    %c0_28 = arith.constant 0 : index
    %14 = vector.load %arg1[%c0_25, %c2_26, %c1_27, %c0_28] : memref<1x18x18x4xf32, #tpu.memory_space<vmem>>, vector<1x16x16x4xf32>
    %15 = vector.shape_cast %14 : vector<1x16x16x4xf32> to vector<256x4xf32>
    %c0_29 = arith.constant 0 : index
    %c2_30 = arith.constant 2 : index
    %c2_31 = arith.constant 2 : index
    %c0_32 = arith.constant 0 : index
    %16 = vector.load %arg1[%c0_29, %c2_30, %c2_31, %c0_32] : memref<1x18x18x4xf32, #tpu.memory_space<vmem>>, vector<1x16x16x4xf32>
    %17 = vector.shape_cast %16 : vector<1x16x16x4xf32> to vector<256x4xf32>
    %18 = tpu.concatenate %1, %3, %5, %7, %9, %11, %13, %15, %17 in 1 : vector<256x4xf32>, vector<256x4xf32>, vector<256x4xf32>, vector<256x4xf32>, vector<256x4xf32>, vector<256x4xf32>, vector<256x4xf32>, vector<256x4xf32>, vector<256x4xf32> -> vector<256x36xf32>
    %19 = arith.truncf %18 : vector<256x36xf32> to vector<256x36xbf16>
    %c0_33 = arith.constant 0 : index
    %c0_34 = arith.constant 0 : index
    %20 = vector.load %arg2[%c0_33, %c0_34] : memref<36x64xbf16, #tpu.memory_space<vmem>>, vector<36x64xbf16>
    %cst = arith.constant dense<0.000000e+00> : vector<256x64xf32>
    %21 = tpu.matmul %19, %20, %cst {dimension_numbers = #tpu.dot_dimension_numbers<[1], [0], [0], [1], [0, 0, 1, 1], [], []>} : vector<256x36xbf16>, vector<36x64xbf16>, vector<256x64xf32> -> vector<256x64xf32>
    %c0_35 = arith.constant 0 : index
    %c0_36 = arith.constant 0 : index
    %22 = vector.load %arg3[%c0_35, %c0_36] : memref<1x64xf32, #tpu.memory_space<vmem>>, vector<1x64xf32>
    %23 = vector.broadcast %22 : vector<1x64xf32> to vector<256x64xf32>
    %24 = arith.mulf %21, %23 : vector<256x64xf32>
    %c0_37 = arith.constant 0 : index
    %c0_38 = arith.constant 0 : index
    %25 = vector.load %arg4[%c0_37, %c0_38] : memref<1x64xf32, #tpu.memory_space<vmem>>, vector<1x64xf32>
    %26 = vector.broadcast %25 : vector<1x64xf32> to vector<256x64xf32>
    %27 = arith.addf %24, %26 : vector<256x64xf32>
    %cst_39 = arith.constant 0.000000e+00 : f32
    %28 = vector.broadcast %cst_39 : f32 to vector<256x64xf32>
    %29 = arith.maximumf %27, %28 : vector<256x64xf32>
    %30 = vector.shape_cast %29 : vector<256x64xf32> to vector<1x8x2x16x64xf32>
    %31 = vector.extract_strided_slice %30 {offsets = [0, 0, 0, 0, 0], sizes = [1, 8, 1, 16, 64], strides = [1, 1, 1, 1, 1]} : vector<1x8x2x16x64xf32> to vector<1x8x1x16x64xf32>
    %32 = vector.shape_cast %31 : vector<1x8x1x16x64xf32> to vector<1x8x16x64xf32>
    %33 = vector.extract_strided_slice %30 {offsets = [0, 0, 1, 0, 0], sizes = [1, 8, 1, 16, 64], strides = [1, 1, 1, 1, 1]} : vector<1x8x2x16x64xf32> to vector<1x8x1x16x64xf32>
    %34 = vector.shape_cast %33 : vector<1x8x1x16x64xf32> to vector<1x8x16x64xf32>
    %35 = arith.maximumf %32, %34 : vector<1x8x16x64xf32>
    %36 = vector.shape_cast %35 : vector<1x8x16x64xf32> to vector<1x8x8x2x64xf32>
    %37 = vector.extract_strided_slice %36 {offsets = [0, 0, 0, 0, 0], sizes = [1, 8, 8, 1, 64], strides = [1, 1, 1, 1, 1]} : vector<1x8x8x2x64xf32> to vector<1x8x8x1x64xf32>
    %38 = vector.shape_cast %37 : vector<1x8x8x1x64xf32> to vector<1x8x8x64xf32>
    %39 = vector.extract_strided_slice %36 {offsets = [0, 0, 0, 1, 0], sizes = [1, 8, 8, 1, 64], strides = [1, 1, 1, 1, 1]} : vector<1x8x8x2x64xf32> to vector<1x8x8x1x64xf32>
    %40 = vector.shape_cast %39 : vector<1x8x8x1x64xf32> to vector<1x8x8x64xf32>
    %41 = arith.maximumf %38, %40 : vector<1x8x8x64xf32>
    %cst_40 = arith.constant 0.000000e+00 : f32
    %42 = vector.broadcast %cst_40 : f32 to vector<1x1x16x64xf32>
    %cst_41 = arith.constant 0.000000e+00 : f32
    %43 = vector.broadcast %cst_41 : f32 to vector<1x8x1x64xf32>
    %c0_42 = arith.constant 0 : index
    %c0_43 = arith.constant 0 : index
    %c0_44 = arith.constant 0 : index
    %c0_45 = arith.constant 0 : index
    %44 = vector.load %arg16[%c0_42, %c0_43, %c0_44, %c0_45] : memref<1x10x16x64xf32, #tpu.memory_space<vmem>>, vector<1x1x16x64xf32>
    tpu.vector_store %arg16[%c0_42, %c0_43, %c0_44, %c0_45], %42 {strides = array<i32>} : memref<1x10x16x64xf32, #tpu.memory_space<vmem>>, vector<1x1x16x64xf32>,
    %c0_46 = arith.constant 0 : index
    %c9 = arith.constant 9 : index
    %c0_47 = arith.constant 0 : index
    %c0_48 = arith.constant 0 : index
    %45 = vector.load %arg16[%c0_46, %c9, %c0_47, %c0_48] : memref<1x10x16x64xf32, #tpu.memory_space<vmem>>, vector<1x1x16x64xf32>
    tpu.vector_store %arg16[%c0_46, %c9, %c0_47, %c0_48], %42 {strides = array<i32>} : memref<1x10x16x64xf32, #tpu.memory_space<vmem>>, vector<1x1x16x64xf32>,
    %c0_49 = arith.constant 0 : index
    %c1_50 = arith.constant 1 : index
    %c0_51 = arith.constant 0 : index
    %c0_52 = arith.constant 0 : index
    %46 = vector.load %arg16[%c0_49, %c1_50, %c0_51, %c0_52] : memref<1x10x16x64xf32, #tpu.memory_space<vmem>>, vector<1x8x1x64xf32>
    tpu.vector_store %arg16[%c0_49, %c1_50, %c0_51, %c0_52], %43 {strides = array<i32>} : memref<1x10x16x64xf32, #tpu.memory_space<vmem>>, vector<1x8x1x64xf32>,
    %c0_53 = arith.constant 0 : index
    %c1_54 = arith.constant 1 : index
    %c9_55 = arith.constant 9 : index
    %c0_56 = arith.constant 0 : index
    %47 = vector.load %arg16[%c0_53, %c1_54, %c9_55, %c0_56] : memref<1x10x16x64xf32, #tpu.memory_space<vmem>>, vector<1x8x1x64xf32>
    tpu.vector_store %arg16[%c0_53, %c1_54, %c9_55, %c0_56], %43 {strides = array<i32>} : memref<1x10x16x64xf32, #tpu.memory_space<vmem>>, vector<1x8x1x64xf32>,
    %c0_57 = arith.constant 0 : index
    %c1_58 = arith.constant 1 : index
    %c1_59 = arith.constant 1 : index
    %c0_60 = arith.constant 0 : index
    %48 = vector.load %arg16[%c0_57, %c1_58, %c1_59, %c0_60] : memref<1x10x16x64xf32, #tpu.memory_space<vmem>>, vector<1x8x8x64xf32>
    tpu.vector_store %arg16[%c0_57, %c1_58, %c1_59, %c0_60], %41 {strides = array<i32>} : memref<1x10x16x64xf32, #tpu.memory_space<vmem>>, vector<1x8x8x64xf32>,
    %c0_61 = arith.constant 0 : index
    %c0_62 = arith.constant 0 : index
    %c0_63 = arith.constant 0 : index
    %c0_64 = arith.constant 0 : index
    %49 = vector.load %arg16[%c0_61, %c0_62, %c0_63, %c0_64] : memref<1x10x16x64xf32, #tpu.memory_space<vmem>>, vector<1x8x8x64xf32>
    %50 = vector.shape_cast %49 : vector<1x8x8x64xf32> to vector<64x64xf32>
    %c0_65 = arith.constant 0 : index
    %c0_66 = arith.constant 0 : index
    %c1_67 = arith.constant 1 : index
    %c0_68 = arith.constant 0 : index
    %51 = vector.load %arg16[%c0_65, %c0_66, %c1_67, %c0_68] : memref<1x10x16x64xf32, #tpu.memory_space<vmem>>, vector<1x8x8x64xf32>
    %52 = vector.shape_cast %51 : vector<1x8x8x64xf32> to vector<64x64xf32>
    %c0_69 = arith.constant 0 : index
    %c0_70 = arith.constant 0 : index
    %c2_71 = arith.constant 2 : index
    %c0_72 = arith.constant 0 : index
    %53 = vector.load %arg16[%c0_69, %c0_70, %c2_71, %c0_72] : memref<1x10x16x64xf32, #tpu.memory_space<vmem>>, vector<1x8x8x64xf32>
    %54 = vector.shape_cast %53 : vector<1x8x8x64xf32> to vector<64x64xf32>
    %c0_73 = arith.constant 0 : index
    %c1_74 = arith.constant 1 : index
    %c0_75 = arith.constant 0 : index
    %c0_76 = arith.constant 0 : index
    %55 = vector.load %arg16[%c0_73, %c1_74, %c0_75, %c0_76] : memref<1x10x16x64xf32, #tpu.memory_space<vmem>>, vector<1x8x8x64xf32>
    %56 = vector.shape_cast %55 : vector<1x8x8x64xf32> to vector<64x64xf32>
    %c0_77 = arith.constant 0 : index
    %c1_78 = arith.constant 1 : index
    %c1_79 = arith.constant 1 : index
    %c0_80 = arith.constant 0 : index
    %57 = vector.load %arg16[%c0_77, %c1_78, %c1_79, %c0_80] : memref<1x10x16x64xf32, #tpu.memory_space<vmem>>, vector<1x8x8x64xf32>
    %58 = vector.shape_cast %57 : vector<1x8x8x64xf32> to vector<64x64xf32>
    %c0_81 = arith.constant 0 : index
    %c1_82 = arith.constant 1 : index
    %c2_83 = arith.constant 2 : index
    %c0_84 = arith.constant 0 : index
    %59 = vector.load %arg16[%c0_81, %c1_82, %c2_83, %c0_84] : memref<1x10x16x64xf32, #tpu.memory_space<vmem>>, vector<1x8x8x64xf32>
    %60 = vector.shape_cast %59 : vector<1x8x8x64xf32> to vector<64x64xf32>
    %c0_85 = arith.constant 0 : index
    %c2_86 = arith.constant 2 : index
    %c0_87 = arith.constant 0 : index
    %c0_88 = arith.constant 0 : index
    %61 = vector.load %arg16[%c0_85, %c2_86, %c0_87, %c0_88] : memref<1x10x16x64xf32, #tpu.memory_space<vmem>>, vector<1x8x8x64xf32>
    %62 = vector.shape_cast %61 : vector<1x8x8x64xf32> to vector<64x64xf32>
    %c0_89 = arith.constant 0 : index
    %c2_90 = arith.constant 2 : index
    %c1_91 = arith.constant 1 : index
    %c0_92 = arith.constant 0 : index
    %63 = vector.load %arg16[%c0_89, %c2_90, %c1_91, %c0_92] : memref<1x10x16x64xf32, #tpu.memory_space<vmem>>, vector<1x8x8x64xf32>
    %64 = vector.shape_cast %63 : vector<1x8x8x64xf32> to vector<64x64xf32>
    %c0_93 = arith.constant 0 : index
    %c2_94 = arith.constant 2 : index
    %c2_95 = arith.constant 2 : index
    %c0_96 = arith.constant 0 : index
    %65 = vector.load %arg16[%c0_93, %c2_94, %c2_95, %c0_96] : memref<1x10x16x64xf32, #tpu.memory_space<vmem>>, vector<1x8x8x64xf32>
    %66 = vector.shape_cast %65 : vector<1x8x8x64xf32> to vector<64x64xf32>
    %67 = tpu.concatenate %50, %52, %54, %56, %58, %60, %62, %64, %66 in 1 : vector<64x64xf32>, vector<64x64xf32>, vector<64x64xf32>, vector<64x64xf32>, vector<64x64xf32>, vector<64x64xf32>, vector<64x64xf32>, vector<64x64xf32>, vector<64x64xf32> -> vector<64x576xf32>
    %68 = arith.truncf %67 : vector<64x576xf32> to vector<64x576xbf16>
    %c0_97 = arith.constant 0 : index
    %c0_98 = arith.constant 0 : index
    %69 = vector.load %arg5[%c0_97, %c0_98] : memref<576x128xbf16, #tpu.memory_space<vmem>>, vector<576x128xbf16>
    %cst_99 = arith.constant dense<0.000000e+00> : vector<64x128xf32>
    %70 = tpu.matmul %68, %69, %cst_99 {dimension_numbers = #tpu.dot_dimension_numbers<[1], [0], [0], [1], [0, 0, 1, 1], [], []>} : vector<64x576xbf16>, vector<576x128xbf16>, vector<64x128xf32> -> vector<64x128xf32>
    %c0_100 = arith.constant 0 : index
    %c0_101 = arith.constant 0 : index
    %71 = vector.load %arg6[%c0_100, %c0_101] : memref<1x128xf32, #tpu.memory_space<vmem>>, vector<1x128xf32>
    %72 = vector.broadcast %71 : vector<1x128xf32> to vector<64x128xf32>
    %73 = arith.mulf %70, %72 : vector<64x128xf32>
    %c0_102 = arith.constant 0 : index
    %c0_103 = arith.constant 0 : index
    %74 = vector.load %arg7[%c0_102, %c0_103] : memref<1x128xf32, #tpu.memory_space<vmem>>, vector<1x128xf32>
    %75 = vector.broadcast %74 : vector<1x128xf32> to vector<64x128xf32>
    %76 = arith.addf %73, %75 : vector<64x128xf32>
    %cst_104 = arith.constant 0.000000e+00 : f32
    %77 = vector.broadcast %cst_104 : f32 to vector<64x128xf32>
    %78 = arith.maximumf %76, %77 : vector<64x128xf32>
    %79 = vector.shape_cast %78 : vector<64x128xf32> to vector<1x4x2x8x128xf32>
    %80 = vector.extract_strided_slice %79 {offsets = [0, 0, 0, 0, 0], sizes = [1, 4, 1, 8, 128], strides = [1, 1, 1, 1, 1]} : vector<1x4x2x8x128xf32> to vector<1x4x1x8x128xf32>
    %81 = vector.shape_cast %80 : vector<1x4x1x8x128xf32> to vector<1x4x8x128xf32>
    %82 = vector.extract_strided_slice %79 {offsets = [0, 0, 1, 0, 0], sizes = [1, 4, 1, 8, 128], strides = [1, 1, 1, 1, 1]} : vector<1x4x2x8x128xf32> to vector<1x4x1x8x128xf32>
    %83 = vector.shape_cast %82 : vector<1x4x1x8x128xf32> to vector<1x4x8x128xf32>
    %84 = arith.maximumf %81, %83 : vector<1x4x8x128xf32>
    %85 = vector.shape_cast %84 : vector<1x4x8x128xf32> to vector<1x4x4x2x128xf32>
    %86 = vector.extract_strided_slice %85 {offsets = [0, 0, 0, 0, 0], sizes = [1, 4, 4, 1, 128], strides = [1, 1, 1, 1, 1]} : vector<1x4x4x2x128xf32> to vector<1x4x4x1x128xf32>
    %87 = vector.shape_cast %86 : vector<1x4x4x1x128xf32> to vector<1x4x4x128xf32>
    %88 = vector.extract_strided_slice %85 {offsets = [0, 0, 0, 1, 0], sizes = [1, 4, 4, 1, 128], strides = [1, 1, 1, 1, 1]} : vector<1x4x4x2x128xf32> to vector<1x4x4x1x128xf32>
    %89 = vector.shape_cast %88 : vector<1x4x4x1x128xf32> to vector<1x4x4x128xf32>
    %90 = arith.maximumf %87, %89 : vector<1x4x4x128xf32>
    %cst_105 = arith.constant 0.000000e+00 : f32
    %91 = vector.broadcast %cst_105 : f32 to vector<1x1x8x128xf32>
    %cst_106 = arith.constant 0.000000e+00 : f32
    %92 = vector.broadcast %cst_106 : f32 to vector<1x4x1x128xf32>
    %c0_107 = arith.constant 0 : index
    %c0_108 = arith.constant 0 : index
    %c0_109 = arith.constant 0 : index
    %c0_110 = arith.constant 0 : index
    %93 = vector.load %arg17[%c0_107, %c0_108, %c0_109, %c0_110] : memref<1x6x8x128xf32, #tpu.memory_space<vmem>>, vector<1x1x8x128xf32>
    tpu.vector_store %arg17[%c0_107, %c0_108, %c0_109, %c0_110], %91 {strides = array<i32>} : memref<1x6x8x128xf32, #tpu.memory_space<vmem>>, vector<1x1x8x128xf32>,
    %c0_111 = arith.constant 0 : index
    %c5 = arith.constant 5 : index
    %c0_112 = arith.constant 0 : index
    %c0_113 = arith.constant 0 : index
    %94 = vector.load %arg17[%c0_111, %c5, %c0_112, %c0_113] : memref<1x6x8x128xf32, #tpu.memory_space<vmem>>, vector<1x1x8x128xf32>
    tpu.vector_store %arg17[%c0_111, %c5, %c0_112, %c0_113], %91 {strides = array<i32>} : memref<1x6x8x128xf32, #tpu.memory_space<vmem>>, vector<1x1x8x128xf32>,
    %c0_114 = arith.constant 0 : index
    %c1_115 = arith.constant 1 : index
    %c0_116 = arith.constant 0 : index
    %c0_117 = arith.constant 0 : index
    %95 = vector.load %arg17[%c0_114, %c1_115, %c0_116, %c0_117] : memref<1x6x8x128xf32, #tpu.memory_space<vmem>>, vector<1x4x1x128xf32>
    tpu.vector_store %arg17[%c0_114, %c1_115, %c0_116, %c0_117], %92 {strides = array<i32>} : memref<1x6x8x128xf32, #tpu.memory_space<vmem>>, vector<1x4x1x128xf32>,
    %c0_118 = arith.constant 0 : index
    %c1_119 = arith.constant 1 : index
    %c5_120 = arith.constant 5 : index
    %c0_121 = arith.constant 0 : index
    %96 = vector.load %arg17[%c0_118, %c1_119, %c5_120, %c0_121] : memref<1x6x8x128xf32, #tpu.memory_space<vmem>>, vector<1x4x1x128xf32>
    tpu.vector_store %arg17[%c0_118, %c1_119, %c5_120, %c0_121], %92 {strides = array<i32>} : memref<1x6x8x128xf32, #tpu.memory_space<vmem>>, vector<1x4x1x128xf32>,
    %c0_122 = arith.constant 0 : index
    %c1_123 = arith.constant 1 : index
    %c1_124 = arith.constant 1 : index
    %c0_125 = arith.constant 0 : index
    %97 = vector.load %arg17[%c0_122, %c1_123, %c1_124, %c0_125] : memref<1x6x8x128xf32, #tpu.memory_space<vmem>>, vector<1x4x4x128xf32>
    tpu.vector_store %arg17[%c0_122, %c1_123, %c1_124, %c0_125], %90 {strides = array<i32>} : memref<1x6x8x128xf32, #tpu.memory_space<vmem>>, vector<1x4x4x128xf32>,
    %c0_126 = arith.constant 0 : index
    %c0_127 = arith.constant 0 : index
    %c0_128 = arith.constant 0 : index
    %c0_129 = arith.constant 0 : index
    %98 = vector.load %arg17[%c0_126, %c0_127, %c0_128, %c0_129] : memref<1x6x8x128xf32, #tpu.memory_space<vmem>>, vector<1x4x4x128xf32>
    %99 = vector.shape_cast %98 : vector<1x4x4x128xf32> to vector<16x128xf32>
    %c0_130 = arith.constant 0 : index
    %c0_131 = arith.constant 0 : index
    %c1_132 = arith.constant 1 : index
    %c0_133 = arith.constant 0 : index
    %100 = vector.load %arg17[%c0_130, %c0_131, %c1_132, %c0_133] : memref<1x6x8x128xf32, #tpu.memory_space<vmem>>, vector<1x4x4x128xf32>
    %101 = vector.shape_cast %100 : vector<1x4x4x128xf32> to vector<16x128xf32>
    %c0_134 = arith.constant 0 : index
    %c0_135 = arith.constant 0 : index
    %c2_136 = arith.constant 2 : index
    %c0_137 = arith.constant 0 : index
    %102 = vector.load %arg17[%c0_134, %c0_135, %c2_136, %c0_137] : memref<1x6x8x128xf32, #tpu.memory_space<vmem>>, vector<1x4x4x128xf32>
    %103 = vector.shape_cast %102 : vector<1x4x4x128xf32> to vector<16x128xf32>
    %c0_138 = arith.constant 0 : index
    %c1_139 = arith.constant 1 : index
    %c0_140 = arith.constant 0 : index
    %c0_141 = arith.constant 0 : index
    %104 = vector.load %arg17[%c0_138, %c1_139, %c0_140, %c0_141] : memref<1x6x8x128xf32, #tpu.memory_space<vmem>>, vector<1x4x4x128xf32>
    %105 = vector.shape_cast %104 : vector<1x4x4x128xf32> to vector<16x128xf32>
    %c0_142 = arith.constant 0 : index
    %c1_143 = arith.constant 1 : index
    %c1_144 = arith.constant 1 : index
    %c0_145 = arith.constant 0 : index
    %106 = vector.load %arg17[%c0_142, %c1_143, %c1_144, %c0_145] : memref<1x6x8x128xf32, #tpu.memory_space<vmem>>, vector<1x4x4x128xf32>
    %107 = vector.shape_cast %106 : vector<1x4x4x128xf32> to vector<16x128xf32>
    %c0_146 = arith.constant 0 : index
    %c1_147 = arith.constant 1 : index
    %c2_148 = arith.constant 2 : index
    %c0_149 = arith.constant 0 : index
    %108 = vector.load %arg17[%c0_146, %c1_147, %c2_148, %c0_149] : memref<1x6x8x128xf32, #tpu.memory_space<vmem>>, vector<1x4x4x128xf32>
    %109 = vector.shape_cast %108 : vector<1x4x4x128xf32> to vector<16x128xf32>
    %c0_150 = arith.constant 0 : index
    %c2_151 = arith.constant 2 : index
    %c0_152 = arith.constant 0 : index
    %c0_153 = arith.constant 0 : index
    %110 = vector.load %arg17[%c0_150, %c2_151, %c0_152, %c0_153] : memref<1x6x8x128xf32, #tpu.memory_space<vmem>>, vector<1x4x4x128xf32>
    %111 = vector.shape_cast %110 : vector<1x4x4x128xf32> to vector<16x128xf32>
    %c0_154 = arith.constant 0 : index
    %c2_155 = arith.constant 2 : index
    %c1_156 = arith.constant 1 : index
    %c0_157 = arith.constant 0 : index
    %112 = vector.load %arg17[%c0_154, %c2_155, %c1_156, %c0_157] : memref<1x6x8x128xf32, #tpu.memory_space<vmem>>, vector<1x4x4x128xf32>
    %113 = vector.shape_cast %112 : vector<1x4x4x128xf32> to vector<16x128xf32>
    %c0_158 = arith.constant 0 : index
    %c2_159 = arith.constant 2 : index
    %c2_160 = arith.constant 2 : index
    %c0_161 = arith.constant 0 : index
    %114 = vector.load %arg17[%c0_158, %c2_159, %c2_160, %c0_161] : memref<1x6x8x128xf32, #tpu.memory_space<vmem>>, vector<1x4x4x128xf32>
    %115 = vector.shape_cast %114 : vector<1x4x4x128xf32> to vector<16x128xf32>
    %116 = tpu.concatenate %99, %101, %103, %105, %107, %109, %111, %113, %115 in 1 : vector<16x128xf32>, vector<16x128xf32>, vector<16x128xf32>, vector<16x128xf32>, vector<16x128xf32>, vector<16x128xf32>, vector<16x128xf32>, vector<16x128xf32>, vector<16x128xf32> -> vector<16x1152xf32>
    %117 = arith.truncf %116 : vector<16x1152xf32> to vector<16x1152xbf16>
    %c0_162 = arith.constant 0 : index
    %c0_163 = arith.constant 0 : index
    %118 = vector.load %arg8[%c0_162, %c0_163] : memref<1152x256xbf16, #tpu.memory_space<vmem>>, vector<1152x256xbf16>
    %cst_164 = arith.constant dense<0.000000e+00> : vector<16x256xf32>
    %119 = tpu.matmul %117, %118, %cst_164 {dimension_numbers = #tpu.dot_dimension_numbers<[1], [0], [0], [1], [0, 0, 1, 1], [], []>} : vector<16x1152xbf16>, vector<1152x256xbf16>, vector<16x256xf32> -> vector<16x256xf32>
    %c0_165 = arith.constant 0 : index
    %c0_166 = arith.constant 0 : index
    %120 = vector.load %arg9[%c0_165, %c0_166] : memref<1x256xf32, #tpu.memory_space<vmem>>, vector<1x256xf32>
    %121 = vector.broadcast %120 : vector<1x256xf32> to vector<16x256xf32>
    %122 = arith.mulf %119, %121 : vector<16x256xf32>
    %c0_167 = arith.constant 0 : index
    %c0_168 = arith.constant 0 : index
    %123 = vector.load %arg10[%c0_167, %c0_168] : memref<1x256xf32, #tpu.memory_space<vmem>>, vector<1x256xf32>
    %124 = vector.broadcast %123 : vector<1x256xf32> to vector<16x256xf32>
    %125 = arith.addf %122, %124 : vector<16x256xf32>
    %cst_169 = arith.constant 0.000000e+00 : f32
    %126 = vector.broadcast %cst_169 : f32 to vector<16x256xf32>
    %127 = arith.maximumf %125, %126 : vector<16x256xf32>
    %128 = vector.shape_cast %127 : vector<16x256xf32> to vector<1x4096xf32>
    %129 = arith.truncf %128 : vector<1x4096xf32> to vector<1x4096xbf16>
    %c0_170 = arith.constant 0 : index
    %c0_171 = arith.constant 0 : index
    %130 = vector.load %arg11[%c0_170, %c0_171] : memref<4096x256xbf16, #tpu.memory_space<vmem>>, vector<4096x256xbf16>
    %cst_172 = arith.constant dense<0.000000e+00> : vector<1x256xf32>
    %131 = tpu.matmul %129, %130, %cst_172 {dimension_numbers = #tpu.dot_dimension_numbers<[1], [0], [0], [1], [0, 0, 1, 1], [], []>} : vector<1x4096xbf16>, vector<4096x256xbf16>, vector<1x256xf32> -> vector<1x256xf32>
    %c0_173 = arith.constant 0 : index
    %c0_174 = arith.constant 0 : index
    %132 = vector.load %arg12[%c0_173, %c0_174] : memref<1x256xf32, #tpu.memory_space<vmem>>, vector<1x256xf32>
    %133 = arith.addf %131, %132 : vector<1x256xf32>
    %cst_175 = arith.constant 0.000000e+00 : f32
    %134 = vector.broadcast %cst_175 : f32 to vector<1x256xf32>
    %135 = arith.maximumf %133, %134 : vector<1x256xf32>
    %136 = arith.truncf %135 : vector<1x256xf32> to vector<1x256xbf16>
    %c0_176 = arith.constant 0 : index
    %c0_177 = arith.constant 0 : index
    %137 = vector.load %arg13[%c0_176, %c0_177] : memref<256x128xbf16, #tpu.memory_space<vmem>>, vector<256x128xbf16>
    %cst_178 = arith.constant dense<0.000000e+00> : vector<1x128xf32>
    %138 = tpu.matmul %136, %137, %cst_178 {dimension_numbers = #tpu.dot_dimension_numbers<[1], [0], [0], [1], [0, 0, 1, 1], [], []>} : vector<1x256xbf16>, vector<256x128xbf16>, vector<1x128xf32> -> vector<1x128xf32>
    %c0_179 = arith.constant 0 : index
    %c0_180 = arith.constant 0 : index
    %139 = vector.load %arg14[%c0_179, %c0_180] : memref<1x128xf32, #tpu.memory_space<vmem>>, vector<1x128xf32>
    %140 = arith.addf %138, %139 : vector<1x128xf32>
    %c0_181 = arith.constant 0 : index
    %c0_182 = arith.constant 0 : index
    %c0_183 = arith.constant 0 : index
    %141 = vector.load %arg15[%c0_181, %c0_182, %c0_183] : memref<1x1x128xf32, #tpu.memory_space<vmem>>, vector<1x1x128xf32>
    %142 = vector.shape_cast %141 : vector<1x1x128xf32> to vector<1x128xf32>
    %143 = vector.shape_cast %140 : vector<1x128xf32> to vector<1x1x128xf32>
    tpu.vector_store %arg15[%c0_181, %c0_182, %c0_183], %143 {strides = array<i32>} : memref<1x1x128xf32, #tpu.memory_space<vmem>>, vector<1x1x128xf32>,
    return
  }
  func.func @transform_0(%arg0: i32) -> (i32, i32, i32, i32) {
    %c0_i32 = arith.constant 0 : i32
    %c0_i32_0 = arith.constant 0 : i32
    %c0_i32_1 = arith.constant 0 : i32
    %c0_i32_2 = arith.constant 0 : i32
    return %arg0, %c0_i32, %c0_i32_0, %c0_i32_1 : i32, i32, i32, i32
  }
  func.func @transform_1(%arg0: i32) -> (i32, i32) {
    %c0_i32 = arith.constant 0 : i32
    %c0_i32_0 = arith.constant 0 : i32
    %c0_i32_1 = arith.constant 0 : i32
    return %c0_i32, %c0_i32_0 : i32, i32
  }
  func.func @transform_2(%arg0: i32) -> (i32, i32) {
    %c0_i32 = arith.constant 0 : i32
    %c0_i32_0 = arith.constant 0 : i32
    %c0_i32_1 = arith.constant 0 : i32
    return %c0_i32, %c0_i32_0 : i32, i32
  }
  func.func @transform_3(%arg0: i32) -> (i32, i32) {
    %c0_i32 = arith.constant 0 : i32
    %c0_i32_0 = arith.constant 0 : i32
    %c0_i32_1 = arith.constant 0 : i32
    return %c0_i32, %c0_i32_0 : i32, i32
  }
  func.func @transform_4(%arg0: i32) -> (i32, i32) {
    %c0_i32 = arith.constant 0 : i32
    %c0_i32_0 = arith.constant 0 : i32
    %c0_i32_1 = arith.constant 0 : i32
    return %c0_i32, %c0_i32_0 : i32, i32
  }
  func.func @transform_5(%arg0: i32) -> (i32, i32) {
    %c0_i32 = arith.constant 0 : i32
    %c0_i32_0 = arith.constant 0 : i32
    %c0_i32_1 = arith.constant 0 : i32
    return %c0_i32, %c0_i32_0 : i32, i32
  }
  func.func @transform_6(%arg0: i32) -> (i32, i32) {
    %c0_i32 = arith.constant 0 : i32
    %c0_i32_0 = arith.constant 0 : i32
    %c0_i32_1 = arith.constant 0 : i32
    return %c0_i32, %c0_i32_0 : i32, i32
  }
  func.func @transform_7(%arg0: i32) -> (i32, i32) {
    %c0_i32 = arith.constant 0 : i32
    %c0_i32_0 = arith.constant 0 : i32
    %c0_i32_1 = arith.constant 0 : i32
    return %c0_i32, %c0_i32_0 : i32, i32
  }
  func.func @transform_8(%arg0: i32) -> (i32, i32) {
    %c0_i32 = arith.constant 0 : i32
    %c0_i32_0 = arith.constant 0 : i32
    %c0_i32_1 = arith.constant 0 : i32
    return %c0_i32, %c0_i32_0 : i32, i32
  }
  func.func @transform_9(%arg0: i32) -> (i32, i32) {
    %c0_i32 = arith.constant 0 : i32
    %c0_i32_0 = arith.constant 0 : i32
    %c0_i32_1 = arith.constant 0 : i32
    return %c0_i32, %c0_i32_0 : i32, i32
  }
  func.func @transform_10(%arg0: i32) -> (i32, i32) {
    %c0_i32 = arith.constant 0 : i32
    %c0_i32_0 = arith.constant 0 : i32
    %c0_i32_1 = arith.constant 0 : i32
    return %c0_i32, %c0_i32_0 : i32, i32
  }
  func.func @transform_11(%arg0: i32) -> (i32, i32) {
    %c0_i32 = arith.constant 0 : i32
    %c0_i32_0 = arith.constant 0 : i32
    %c0_i32_1 = arith.constant 0 : i32
    return %c0_i32, %c0_i32_0 : i32, i32
  }
  func.func @transform_12(%arg0: i32) -> (i32, i32) {
    %c0_i32 = arith.constant 0 : i32
    %c0_i32_0 = arith.constant 0 : i32
    %c0_i32_1 = arith.constant 0 : i32
    return %c0_i32, %c0_i32_0 : i32, i32
  }
  func.func @transform_13(%arg0: i32) -> (i32, i32) {
    %c0_i32 = arith.constant 0 : i32
    %c0_i32_0 = arith.constant 0 : i32
    %c0_i32_1 = arith.constant 0 : i32
    return %c0_i32, %c0_i32_0 : i32, i32
  }
  func.func @transform_14(%arg0: i32) -> (i32, i32, i32) {
    %c0_i32 = arith.constant 0 : i32
    %c0_i32_0 = arith.constant 0 : i32
    %c0_i32_1 = arith.constant 0 : i32
    return %arg0, %c0_i32, %c0_i32_0 : i32, i32, i32
  }
}

</mosaic_0001>

<llo_original>
// kernel: tpu_custom_call.1
$region0: #{tpu_custom_call.1}
  #allocation0 [shape = 'u32[]', space=smem, size = 0x4, offset = 0x4, fixed_abs, tag = 'smem constant byte address 0x4 - core index']
  #allocation1 [shape = 'u32[72,128]{1,0:T(1,128)}', space=vmem, size = 0x9000, scoped, tag = 'internal scratch']
  #allocation2 [shape = 'f32[1,10,16,64]{3,2,1,0:T(8,128)}', space=vmem, size = 0x14000, scoped, tag = 'scratch operand']
  #allocation3 [shape = 'f32[1,6,8,128]{3,2,1,0:T(8,128)}', space=vmem, size = 0x6000, scoped, tag = 'scratch operand']
  %s0 = inlined_call_operand.vmem [shape: f32[2,18,18,4], index: 0, kind: input, shape index: {}]
  %s1 = inlined_call_operand.hbm [shape: bf16[36,64], index: 1, kind: input, shape index: {}]
  %s2 = inlined_call_operand.hbm [shape: f32[1,64], index: 2, kind: input, shape index: {}]
  %s3 = inlined_call_operand.hbm [shape: f32[1,64], index: 3, kind: input, shape index: {}]
  %s4 = inlined_call_operand.hbm [shape: bf16[576,128], index: 4, kind: input, shape index: {}]
  %s5 = inlined_call_operand.hbm [shape: f32[1,128], index: 5, kind: input, shape index: {}]
  %s6 = inlined_call_operand.hbm [shape: f32[1,128], index: 6, kind: input, shape index: {}]
  %s7 = inlined_call_operand.hbm [shape: bf16[1152,256], index: 7, kind: input, shape index: {}]
  %s8 = inlined_call_operand.hbm [shape: f32[1,256], index: 8, kind: input, shape index: {}]
  %s9 = inlined_call_operand.hbm [shape: f32[1,256], index: 9, kind: input, shape index: {}]
  %s10 = inlined_call_operand.hbm [shape: bf16[4096,256], index: 10, kind: input, shape index: {}]
  %s11 = inlined_call_operand.hbm [shape: f32[1,256], index: 11, kind: input, shape index: {}]
  %s12 = inlined_call_operand.hbm [shape: bf16[256,128], index: 12, kind: input, shape index: {}]
  %s13 = inlined_call_operand.hbm [shape: f32[1,128], index: 13, kind: input, shape index: {}]
  %s14 = inlined_call_operand.hbm [shape: f32[2,1,128], index: 14, kind: output, shape index: {}]
  %s15 = sld [smem:[#allocation0]]
  $region141: #{tpu_custom_call.1} parent=0
    _
  %s17 = ssub.s32 1, %s15
  %s18 = scalar_select 0, %s17, %s15
  $region1: #{tpu_custom_call.1} parent=0
    #allocation4 [shape = 'u8[10240]{0}', space=vmem, size = 0x2800, scoped, tag = 'input window, operand 1, single buffered']
    #allocation5 [shape = 's32[2]{0}', space=sflag, size = 0x8, scoped, tag = 'scoped memory for tpu_custom_call.1']
    #allocation6 [shape = 's32[2]{0}', space=sflag, size = 0x8, scoped, tag = 'scoped memory for tpu_custom_call.1']
    #allocation7 [shape = 'u8[512]{0}', space=vmem, size = 0x400, scoped, tag = 'input window, operand 2, single buffered']
    #allocation8 [shape = 's32[1]{0}', space=sflag, size = 0x4, scoped, tag = 'scoped memory for tpu_custom_call.1']
    #allocation9 [shape = 'u8[512]{0}', space=vmem, size = 0x400, scoped, tag = 'input window, operand 3, single buffered']
    #allocation10 [shape = 'u8[147456]{0}', space=vmem, size = 0x24000, scoped, tag = 'input window, operand 4, single buffered']
    #allocation11 [shape = 's32[1]{0}', space=sflag, size = 0x4, scoped, tag = 'scoped memory for tpu_custom_call.1']
    #allocation12 [shape = 'u8[512]{0}', space=vmem, size = 0x400, scoped, tag = 'input window, operand 5, single buffered']
    #allocation13 [shape = 'u8[512]{0}', space=vmem, size = 0x400, scoped, tag = 'input window, operand 6, single buffered']
    #allocation14 [shape = 's32[1]{0}', space=sflag, size = 0x4, scoped, tag = 'scoped memory for tpu_custom_call.1']
    #allocation15 [shape = 'u8[589824]{0}', space=vmem, size = 0x90000, scoped, tag = 'input window, operand 7, single buffered']
    #allocation16 [shape = 'u8[1024]{0}', space=vmem, size = 0x400, scoped, tag = 'input window, operand 8, single buffered']
    #allocation17 [shape = 's32[1]{0}', space=sflag, size = 0x4, scoped, tag = 'scoped memory for tpu_custom_call.1']
    #allocation18 [shape = 'u8[1024]{0}', space=vmem, size = 0x400, scoped, tag = 'input window, operand 9, single buffered']
    #allocation19 [shape = 'u8[2097152]{0}', space=vmem, size = 0x200000, scoped, tag = 'input window, operand 10, single buffered']
    #allocation20 [shape = 's32[1]{0}', space=sflag, size = 0x4, scoped, tag = 'scoped memory for tpu_custom_call.1']
    #allocation21 [shape = 'u8[1024]{0}', space=vmem, size = 0x400, scoped, tag = 'input window, operand 11, single buffered']
    #allocation22 [shape = 'u8[65536]{0}', space=vmem, size = 0x10000, scoped, tag = 'input window, operand 12, single buffered']
    #allocation23 [shape = 's32[1]{0}', space=sflag, size = 0x4, scoped, tag = 'scoped memory for tpu_custom_call.1']
    #allocation24 [shape = 'u8[512]{0}', space=vmem, size = 0x400, scoped, tag = 'input window, operand 13, single buffered']
    #allocation25 [shape = 'u8[1024]{0}', space=vmem, size = 0x400, scoped, tag = 'output window, operand 0']
    %19 = vsyncpa [#allocation5], 0
    %20 = vsyncpa [#allocation8], 0
    %21 = vsyncpa [#allocation11], 0
    %22 = vsyncpa [#allocation14], 0
    %23 = vsyncpa [#allocation17], 0
    %24 = vsyncpa [#allocation20], 0
    %25 = vsyncpa [#allocation23], 0
    %26 = vsyncpa [#allocation6], 0
    %s27 = scalar_lea.sflag [#allocation6], 1
    %28 = vsyncpa %s27, 0
    loop: start=0, step=1, limit=4
    $region2: #{tpu_custom_call.1} parent=1 // loop_pre_header
      _
    $region3: #{tpu_custom_call.1} parent=1 // loop_header
      %s30 = sphi 0, %s34
      %p31 = scmp.ge.s32.totalorder %s30, 4
      %s40 = sphi 0, %s42
      %s43 = sphi 0, %s40
      %s44 = sphi 0, %s43
      %s60 = sphi 0, %s44
      %s64 = sphi 0, %s64
      %s66 = sphi 0, %s64
      %s67 = sphi 0, %s66
      %s81 = sphi 0, %s67
      %s85 = sphi 0, %s85
      %s87 = sphi 0, %s85
      %s88 = sphi 0, %s87
      %s102 = sphi 0, %s88
      %s106 = sphi 0, %s106
      %s108 = sphi 0, %s106
      %s109 = sphi 0, %s108
      %s123 = sphi 0, %s109
      %s127 = sphi 0, %s127
      %s129 = sphi 0, %s127
      %s130 = sphi 0, %s129
      %s144 = sphi 0, %s130
      %s148 = sphi 0, %s148
      %s150 = sphi 0, %s148
      %s151 = sphi 0, %s150
      %s165 = sphi 0, %s151
      %s169 = sphi 0, %s169
      %s171 = sphi 0, %s169
      %s172 = sphi 0, %s171
      %s186 = sphi 0, %s172
      %s190 = sphi 0, %s190
      %s192 = sphi 0, %s190
      %s193 = sphi 0, %s192
      %s207 = sphi 0, %s193
      %s211 = sphi 0, %s211
      %s213 = sphi 0, %s211
      %s214 = sphi 0, %s213
      %s228 = sphi 0, %s214
      %s232 = sphi 0, %s232
      %s234 = sphi 0, %s232
      %s235 = sphi 0, %s234
      %s249 = sphi 0, %s235
      %s253 = sphi 0, %s253
      %s255 = sphi 0, %s253
      %s256 = sphi 0, %s255
      %s270 = sphi 0, %s256
      %s274 = sphi 0, %s274
      %s276 = sphi 0, %s274
      %s277 = sphi 0, %s276
      %s291 = sphi 0, %s277
      %s295 = sphi 0, %s295
      %s297 = sphi 0, %s295
      %s298 = sphi 0, %s297
      %s312 = sphi 0, %s298
      %s316 = sphi 0, %s316
      %s318 = sphi 0, %s316
      %s319 = sphi 0, %s318
      %s333 = sphi 0, %s319
      %s339 = sphi 0, %s341
      %s342 = sphi 0, %s339
      %s343 = sphi 0, %s342
      %s359 = sphi 0, %s343
    $region4: #{tpu_custom_call.1} parent=1 // loop_header_branch
      %33 = sbr.rel (%p31) target = $region8
    $region5: #{tpu_custom_call.1} parent=1 // loop_body
      %s35 = ssub.s32 %s30, 1
      %s36 = ssub.s32 %s30, 2
      %s37 = sadd.s32 %s30, 1
      %s38 = ssub.s32 %s30, %s37
      %p39 = scmp.eq.s32.totalorder %s38, 0
      %s41 = sadd.s32 %s40, 1
      %s42 = scalar_select %p39, %s40, %s41
      %p45 = pneg %p39
      %p46 = scmp.eq.s32.totalorder %s30, 1
      %p47 = por %p45, %p46
      %p48 = scmp.ne.s32.totalorder %s40, %s43
      %p49 = scmp.eq.s32.totalorder %s30, 0
      %p50 = por %p48, %p49
      %p51 = scmp.ne.s32.totalorder %s40, %s43
      %p52 = scmp.eq.s32.totalorder %s35, 1
      %p53 = por %p51, %p52
      %p54 = scmp.ne.s32.totalorder %s43, %s44
      %p55 = scmp.eq.s32.totalorder %s35, 0
      %p56 = por %p54, %p55
      %p57 = scmp.ne.s32.totalorder %s43, %s44
      %p58 = scmp.eq.s32.totalorder %s36, 1
      %p59 = por %p57, %p58
      %p61 = scmp.ne.s32.totalorder %s44, %s60
      %p62 = scmp.eq.s32.totalorder %s36, 0
      %p63 = por %p61, %p62
      %s65 = sadd.s32 %s64, 1
      %p68 = scmp.eq.s32.totalorder %s30, 1
      %p69 = scmp.ne.s32.totalorder %s64, %s66
      %p70 = scmp.eq.s32.totalorder %s30, 0
      %p71 = por %p69, %p70
      %p72 = scmp.ne.s32.totalorder %s64, %s66
      %p73 = scmp.eq.s32.totalorder %s35, 1
      %p74 = por %p72, %p73
      %p75 = scmp.ne.s32.totalorder %s66, %s67
      %p76 = scmp.eq.s32.totalorder %s35, 0
      %p77 = por %p75, %p76
      %p78 = scmp.ne.s32.totalorder %s66, %s67
      %p79 = scmp.eq.s32.totalorder %s36, 1
      %p80 = por %p78, %p79
      %p82 = scmp.ne.s32.totalorder %s67, %s81
      %p83 = scmp.eq.s32.totalorder %s36, 0
      %p84 = por %p82, %p83
      %s86 = sadd.s32 %s85, 1
      %p89 = scmp.eq.s32.totalorder %s30, 1
      %p90 = scmp.ne.s32.totalorder %s85, %s87
      %p91 = scmp.eq.s32.totalorder %s30, 0
      %p92 = por %p90, %p91
      %p93 = scmp.ne.s32.totalorder %s85, %s87
      %p94 = scmp.eq.s32.totalorder %s35, 1
      %p95 = por %p93, %p94
      %p96 = scmp.ne.s32.totalorder %s87, %s88
      %p97 = scmp.eq.s32.totalorder %s35, 0
      %p98 = por %p96, %p97
      %p99 = scmp.ne.s32.totalorder %s87, %s88
      %p100 = scmp.eq.s32.totalorder %s36, 1
      %p101 = por %p99, %p100
      %p103 = scmp.ne.s32.totalorder %s88, %s102
      %p104 = scmp.eq.s32.totalorder %s36, 0
      %p105 = por %p103, %p104
      %s107 = sadd.s32 %s106, 1
      %p110 = scmp.eq.s32.totalorder %s30, 1
      %p111 = scmp.ne.s32.totalorder %s106, %s108
      %p112 = scmp.eq.s32.totalorder %s30, 0
      %p113 = por %p111, %p112
      %p114 = scmp.ne.s32.totalorder %s106, %s108
      %p115 = scmp.eq.s32.totalorder %s35, 1
      %p116 = por %p114, %p115
      %p117 = scmp.ne.s32.totalorder %s108, %s109
      %p118 = scmp.eq.s32.totalorder %s35, 0
      %p119 = por %p117, %p118
      %p120 = scmp.ne.s32.totalorder %s108, %s109
      %p121 = scmp.eq.s32.totalorder %s36, 1
      %p122 = por %p120, %p121
      %p124 = scmp.ne.s32.totalorder %s109, %s123
      %p125 = scmp.eq.s32.totalorder %s36, 0
      %p126 = por %p124, %p125
      %s128 = sadd.s32 %s127, 1
      %p131 = scmp.eq.s32.totalorder %s30, 1
      %p132 = scmp.ne.s32.totalorder %s127, %s129
      %p133 = scmp.eq.s32.totalorder %s30, 0
      %p134 = por %p132, %p133
      %p135 = scmp.ne.s32.totalorder %s127, %s129
      %p136 = scmp.eq.s32.totalorder %s35, 1
      %p137 = por %p135, %p136
      %p138 = scmp.ne.s32.totalorder %s129, %s130
      %p139 = scmp.eq.s32.totalorder %s35, 0
      %p140 = por %p138, %p139
      %p141 = scmp.ne.s32.totalorder %s129, %s130
      %p142 = scmp.eq.s32.totalorder %s36, 1
      %p143 = por %p141, %p142
      %p145 = scmp.ne.s32.totalorder %s130, %s144
      %p146 = scmp.eq.s32.totalorder %s36, 0
      %p147 = por %p145, %p146
      %s149 = sadd.s32 %s148, 1
      %p152 = scmp.eq.s32.totalorder %s30, 1
      %p153 = scmp.ne.s32.totalorder %s148, %s150
      %p154 = scmp.eq.s32.totalorder %s30, 0
      %p155 = por %p153, %p154
      %p156 = scmp.ne.s32.totalorder %s148, %s150
      %p157 = scmp.eq.s32.totalorder %s35, 1
      %p158 = por %p156, %p157
      %p159 = scmp.ne.s32.totalorder %s150, %s151
      %p160 = scmp.eq.s32.totalorder %s35, 0
      %p161 = por %p159, %p160
      %p162 = scmp.ne.s32.totalorder %s150, %s151
      %p163 = scmp.eq.s32.totalorder %s36, 1
      %p164 = por %p162, %p163
      %p166 = scmp.ne.s32.totalorder %s151, %s165
      %p167 = scmp.eq.s32.totalorder %s36, 0
      %p168 = por %p166, %p167
      %s170 = sadd.s32 %s169, 1
      %p173 = scmp.eq.s32.totalorder %s30, 1
      %p174 = scmp.ne.s32.totalorder %s169, %s171
      %p175 = scmp.eq.s32.totalorder %s30, 0
      %p176 = por %p174, %p175
      %p177 = scmp.ne.s32.totalorder %s169, %s171
      %p178 = scmp.eq.s32.totalorder %s35, 1
      %p179 = por %p177, %p178
      %p180 = scmp.ne.s32.totalorder %s171, %s172
      %p181 = scmp.eq.s32.totalorder %s35, 0
      %p182 = por %p180, %p181
      %p183 = scmp.ne.s32.totalorder %s171, %s172
      %p184 = scmp.eq.s32.totalorder %s36, 1
      %p185 = por %p183, %p184
      %p187 = scmp.ne.s32.totalorder %s172, %s186
      %p188 = scmp.eq.s32.totalorder %s36, 0
      %p189 = por %p187, %p188
      %s191 = sadd.s32 %s190, 1
      %p194 = scmp.eq.s32.totalorder %s30, 1
      %p195 = scmp.ne.s32.totalorder %s190, %s192
      %p196 = scmp.eq.s32.totalorder %s30, 0
      %p197 = por %p195, %p196
      %p198 = scmp.ne.s32.totalorder %s190, %s192
      %p199 = scmp.eq.s32.totalorder %s35, 1
      %p200 = por %p198, %p199
      %p201 = scmp.ne.s32.totalorder %s192, %s193
      %p202 = scmp.eq.s32.totalorder %s35, 0
      %p203 = por %p201, %p202
      %p204 = scmp.ne.s32.totalorder %s192, %s193
      %p205 = scmp.eq.s32.totalorder %s36, 1
      %p206 = por %p204, %p205
      %p208 = scmp.ne.s32.totalorder %s193, %s207
      %p209 = scmp.eq.s32.totalorder %s36, 0
      %p210 = por %p208, %p209
      %s212 = sadd.s32 %s211, 1
      %p215 = scmp.eq.s32.totalorder %s30, 1
      %p216 = scmp.ne.s32.totalorder %s211, %s213
      %p217 = scmp.eq.s32.totalorder %s30, 0
      %p218 = por %p216, %p217
      %p219 = scmp.ne.s32.totalorder %s211, %s213
      %p220 = scmp.eq.s32.totalorder %s35, 1
      %p221 = por %p219, %p220
      %p222 = scmp.ne.s32.totalorder %s213, %s214
      %p223 = scmp.eq.s32.totalorder %s35, 0
      %p224 = por %p222, %p223
      %p225 = scmp.ne.s32.totalorder %s213, %s214
      %p226 = scmp.eq.s32.totalorder %s36, 1
      %p227 = por %p225, %p226
      %p229 = scmp.ne.s32.totalorder %s214, %s228
      %p230 = scmp.eq.s32.totalorder %s36, 0
      %p231 = por %p229, %p230
      %s233 = sadd.s32 %s232, 1
      %p236 = scmp.eq.s32.totalorder %s30, 1
      %p237 = scmp.ne.s32.totalorder %s232, %s234
      %p238 = scmp.eq.s32.totalorder %s30, 0
      %p239 = por %p237, %p238
      %p240 = scmp.ne.s32.totalorder %s232, %s234
      %p241 = scmp.eq.s32.totalorder %s35, 1
      %p242 = por %p240, %p241
      %p243 = scmp.ne.s32.totalorder %s234, %s235
      %p244 = scmp.eq.s32.totalorder %s35, 0
      %p245 = por %p243, %p244
      %p246 = scmp.ne.s32.totalorder %s234, %s235
      %p247 = scmp.eq.s32.totalorder %s36, 1
      %p248 = por %p246, %p247
      %p250 = scmp.ne.s32.totalorder %s235, %s249
      %p251 = scmp.eq.s32.totalorder %s36, 0
      %p252 = por %p250, %p251
      %s254 = sadd.s32 %s253, 1
      %p257 = scmp.eq.s32.totalorder %s30, 1
      %p258 = scmp.ne.s32.totalorder %s253, %s255
      %p259 = scmp.eq.s32.totalorder %s30, 0
      %p260 = por %p258, %p259
      %p261 = scmp.ne.s32.totalorder %s253, %s255
      %p262 = scmp.eq.s32.totalorder %s35, 1
      %p263 = por %p261, %p262
      %p264 = scmp.ne.s32.totalorder %s255, %s256
      %p265 = scmp.eq.s32.totalorder %s35, 0
      %p266 = por %p264, %p265
      %p267 = scmp.ne.s32.totalorder %s255, %s256
      %p268 = scmp.eq.s32.totalorder %s36, 1
      %p269 = por %p267, %p268
      %p271 = scmp.ne.s32.totalorder %s256, %s270
      %p272 = scmp.eq.s32.totalorder %s36, 0
      %p273 = por %p271, %p272
      %s275 = sadd.s32 %s274, 1
      %p278 = scmp.eq.s32.totalorder %s30, 1
      %p279 = scmp.ne.s32.totalorder %s274, %s276
      %p280 = scmp.eq.s32.totalorder %s30, 0
      %p281 = por %p279, %p280
      %p282 = scmp.ne.s32.totalorder %s274, %s276
      %p283 = scmp.eq.s32.totalorder %s35, 1
      %p284 = por %p282, %p283
      %p285 = scmp.ne.s32.totalorder %s276, %s277
      %p286 = scmp.eq.s32.totalorder %s35, 0
      %p287 = por %p285, %p286
      %p288 = scmp.ne.s32.totalorder %s276, %s277
      %p289 = scmp.eq.s32.totalorder %s36, 1
      %p290 = por %p288, %p289
      %p292 = scmp.ne.s32.totalorder %s277, %s291
      %p293 = scmp.eq.s32.totalorder %s36, 0
      %p294 = por %p292, %p293
      %s296 = sadd.s32 %s295, 1
      %p299 = scmp.eq.s32.totalorder %s30, 1
      %p300 = scmp.ne.s32.totalorder %s295, %s297
      %p301 = scmp.eq.s32.totalorder %s30, 0
      %p302 = por %p300, %p301
      %p303 = scmp.ne.s32.totalorder %s295, %s297
      %p304 = scmp.eq.s32.totalorder %s35, 1
      %p305 = por %p303, %p304
      %p306 = scmp.ne.s32.totalorder %s297, %s298
      %p307 = scmp.eq.s32.totalorder %s35, 0
      %p308 = por %p306, %p307
      %p309 = scmp.ne.s32.totalorder %s297, %s298
      %p310 = scmp.eq.s32.totalorder %s36, 1
      %p311 = por %p309, %p310
      %p313 = scmp.ne.s32.totalorder %s298, %s312
      %p314 = scmp.eq.s32.totalorder %s36, 0
      %p315 = por %p313, %p314
      %s317 = sadd.s32 %s316, 1
      %p320 = scmp.eq.s32.totalorder %s30, 1
      %p321 = scmp.ne.s32.totalorder %s316, %s318
      %p322 = scmp.eq.s32.totalorder %s30, 0
      %p323 = por %p321, %p322
      %p324 = scmp.ne.s32.totalorder %s316, %s318
      %p325 = scmp.eq.s32.totalorder %s35, 1
      %p326 = por %p324, %p325
      %p327 = scmp.ne.s32.totalorder %s318, %s319
      %p328 = scmp.eq.s32.totalorder %s35, 0
      %p329 = por %p327, %p328
      %p330 = scmp.ne.s32.totalorder %s318, %s319
      %p331 = scmp.eq.s32.totalorder %s36, 1
      %p332 = por %p330, %p331
      %p334 = scmp.ne.s32.totalorder %s319, %s333
      %p335 = scmp.eq.s32.totalorder %s36, 0
      %p336 = por %p334, %p335
      %s337 = ssub.s32 %s30, %s37
      %p338 = scmp.eq.s32.totalorder %s337, 0
      %s340 = sadd.s32 %s339, 1
      %s341 = scalar_select %p338, %s339, %s340
      %p344 = pneg %p338
      %p345 = scmp.eq.s32.totalorder %s30, 1
      %p346 = por %p344, %p345
      %p347 = scmp.ne.s32.totalorder %s339, %s342
      %p348 = scmp.eq.s32.totalorder %s30, 0
      %p349 = por %p347, %p348
      %p350 = scmp.ne.s32.totalorder %s339, %s342
      %p351 = scmp.eq.s32.totalorder %s35, 1
      %p352 = por %p350, %p351
      %p353 = scmp.ne.s32.totalorder %s342, %s343
      %p354 = scmp.eq.s32.totalorder %s35, 0
      %p355 = por %p353, %p354
      %p356 = scmp.ne.s32.totalorder %s342, %s343
      %p357 = scmp.eq.s32.totalorder %s36, 1
      %p358 = por %p356, %p357
      %p360 = scmp.ne.s32.totalorder %s343, %s359
      %p361 = scmp.eq.s32.totalorder %s36, 0
      %p362 = por %p360, %p361
      %p363 = scmp.le.s32.totalorder 1, %s30
      %p364 = scmp.lt.s32.totalorder %s30, 3
      %p365 = pnand %p363, %p364
      %p366 = pneg %p365
      // Predicated region
      $region9: #{tpu_custom_call.1} parent=5 // pred_check
        _
      $region10: #{tpu_custom_call.1} parent=5 // pred_check_branch
        %368 = sbr.rel (%p365) target = $region12
      $region11: #{tpu_custom_call.1} parent=5 // pred_region
        %s369 = ssub.s32 %s30, 1
        // Predicated region
        $region13: #{tpu_custom_call.1} parent=11 // pred_check
          %p370 = pneg %p77
        $region14: #{tpu_custom_call.1} parent=11 // pred_check_branch
          %372 = sbr.rel (%p370) target = $region16
        $region15: #{tpu_custom_call.1} parent=11 // pred_region
          %374 = vsyncadd [#allocation5], 0
          %s375 = sshll.u32 %s1, 4
          %s376 = int_to_ptr.hbm [resolvable:$true] %s375
          %s377 = sshll.u32 [#allocation4], 4
          %s378 = int_to_ptr.vmem [resolvable:$true] %s377
          %383 = dma.hbm_to_vmem [thread:$0]  %s376, 320, %s378, [#allocation5], 64, 64, 4
        $region16: #{tpu_custom_call.1} parent=11 // pred_fallthru
          _
        // Predicated region
        $region17: #{tpu_custom_call.1} parent=11 // pred_check
          %p384 = pneg %p98
        $region18: #{tpu_custom_call.1} parent=11 // pred_check_branch
          %386 = sbr.rel (%p384) target = $region20
        $region19: #{tpu_custom_call.1} parent=11 // pred_region
          %388 = vsyncadd [#allocation8], 0
          %s390 = sshll.u32 %s2, 4
          %s391 = int_to_ptr.hbm [resolvable:$true] %s390
          %s392 = sshll.u32 [#allocation7], 4
          %s393 = int_to_ptr.vmem [resolvable:$true] %s392
          %395 = dma.hbm_to_vmem [thread:$0]  %s391, 16, %s393, [#allocation8]
        $region20: #{tpu_custom_call.1} parent=11 // pred_fallthru
          _
        // Predicated region
        $region21: #{tpu_custom_call.1} parent=11 // pred_check
          %p396 = pneg %p119
        $region22: #{tpu_custom_call.1} parent=11 // pred_check_branch
          %398 = sbr.rel (%p396) target = $region24
        $region23: #{tpu_custom_call.1} parent=11 // pred_region
          %400 = vsyncadd [#allocation8], 0
          %s402 = sshll.u32 %s3, 4
          %s403 = int_to_ptr.hbm [resolvable:$true] %s402
          %s404 = sshll.u32 [#allocation9], 4
          %s405 = int_to_ptr.vmem [resolvable:$true] %s404
          %407 = dma.hbm_to_vmem [thread:$0]  %s403, 16, %s405, [#allocation8]
        $region24: #{tpu_custom_call.1} parent=11 // pred_fallthru
          _
        // Predicated region
        $region25: #{tpu_custom_call.1} parent=11 // pred_check
          %p408 = pneg %p140
        $region26: #{tpu_custom_call.1} parent=11 // pred_check_branch
          %410 = sbr.rel (%p408) target = $region28
        $region27: #{tpu_custom_call.1} parent=11 // pred_region
          %412 = vsyncadd [#allocation11], 0
          %s413 = sshll.u32 %s4, 4
          %s414 = int_to_ptr.hbm [resolvable:$true] %s413
          %s415 = sshll.u32 [#allocation10], 4
          %s416 = int_to_ptr.vmem [resolvable:$true] %s415
          %421 = dma.hbm_to_vmem [thread:$0]  %s414, 4608, %s416, [#allocation11], 64, 64, 4
        $region28: #{tpu_custom_call.1} parent=11 // pred_fallthru
          _
        // Predicated region
        $region29: #{tpu_custom_call.1} parent=11 // pred_check
          %p422 = pneg %p161
        $region30: #{tpu_custom_call.1} parent=11 // pred_check_branch
          %424 = sbr.rel (%p422) target = $region32
        $region31: #{tpu_custom_call.1} parent=11 // pred_region
          %426 = vsyncadd [#allocation11], 0
          %s428 = sshll.u32 %s5, 4
          %s429 = int_to_ptr.hbm [resolvable:$true] %s428
          %s430 = sshll.u32 [#allocation12], 4
          %s431 = int_to_ptr.vmem [resolvable:$true] %s430
          %433 = dma.hbm_to_vmem [thread:$0]  %s429, 16, %s431, [#allocation11]
        $region32: #{tpu_custom_call.1} parent=11 // pred_fallthru
          _
        // Predicated region
        $region33: #{tpu_custom_call.1} parent=11 // pred_check
          %p434 = pneg %p182
        $region34: #{tpu_custom_call.1} parent=11 // pred_check_branch
          %436 = sbr.rel (%p434) target = $region36
        $region35: #{tpu_custom_call.1} parent=11 // pred_region
          %438 = vsyncadd [#allocation14], 0
          %s440 = sshll.u32 %s6, 4
          %s441 = int_to_ptr.hbm [resolvable:$true] %s440
          %s442 = sshll.u32 [#allocation13], 4
          %s443 = int_to_ptr.vmem [resolvable:$true] %s442
          %445 = dma.hbm_to_vmem [thread:$0]  %s441, 16, %s443, [#allocation14]
        $region36: #{tpu_custom_call.1} parent=11 // pred_fallthru
          _
        // Predicated region
        $region37: #{tpu_custom_call.1} parent=11 // pred_check
          %p446 = pneg %p203
        $region38: #{tpu_custom_call.1} parent=11 // pred_check_branch
          %448 = sbr.rel (%p446) target = $region40
        $region39: #{tpu_custom_call.1} parent=11 // pred_region
          %450 = vsyncadd [#allocation14], 0
          %s451 = sshll.u32 %s7, 4
          %s452 = int_to_ptr.hbm [resolvable:$true] %s451
          %s453 = sshll.u32 [#allocation15], 4
          %s454 = int_to_ptr.vmem [resolvable:$true] %s453
          %459 = dma.hbm_to_vmem [thread:$0]  %s452, 18432, %s454, [#allocation14], 128, 128, 8
        $region40: #{tpu_custom_call.1} parent=11 // pred_fallthru
          _
        // Predicated region
        $region41: #{tpu_custom_call.1} parent=11 // pred_check
          %p460 = pneg %p224
        $region42: #{tpu_custom_call.1} parent=11 // pred_check_branch
          %462 = sbr.rel (%p460) target = $region44
        $region43: #{tpu_custom_call.1} parent=11 // pred_region
          %464 = vsyncadd [#allocation17], 0
          %s466 = sshll.u32 %s8, 4
          %s467 = int_to_ptr.hbm [resolvable:$true] %s466
          %s468 = sshll.u32 [#allocation16], 4
          %s469 = int_to_ptr.vmem [resolvable:$true] %s468
          %471 = dma.hbm_to_vmem [thread:$0]  %s467, 32, %s469, [#allocation17]
        $region44: #{tpu_custom_call.1} parent=11 // pred_fallthru
          _
        // Predicated region
        $region45: #{tpu_custom_call.1} parent=11 // pred_check
          %p472 = pneg %p245
        $region46: #{tpu_custom_call.1} parent=11 // pred_check_branch
          %474 = sbr.rel (%p472) target = $region48
        $region47: #{tpu_custom_call.1} parent=11 // pred_region
          %476 = vsyncadd [#allocation17], 0
          %s478 = sshll.u32 %s9, 4
          %s479 = int_to_ptr.hbm [resolvable:$true] %s478
          %s480 = sshll.u32 [#allocation18], 4
          %s481 = int_to_ptr.vmem [resolvable:$true] %s480
          %483 = dma.hbm_to_vmem [thread:$0]  %s479, 32, %s481, [#allocation17]
        $region48: #{tpu_custom_call.1} parent=11 // pred_fallthru
          _
        // Predicated region
        $region49: #{tpu_custom_call.1} parent=11 // pred_check
          %p484 = pneg %p266
        $region50: #{tpu_custom_call.1} parent=11 // pred_check_branch
          %486 = sbr.rel (%p484) target = $region52
        $region51: #{tpu_custom_call.1} parent=11 // pred_region
          %488 = vsyncadd [#allocation20], 0
          %s489 = sshll.u32 %s10, 4
          %s490 = int_to_ptr.hbm [resolvable:$true] %s489
          %s491 = sshll.u32 [#allocation19], 4
          %s492 = int_to_ptr.vmem [resolvable:$true] %s491
          %497 = dma.hbm_to_vmem [thread:$0]  %s490, 65536, %s492, [#allocation20], 128, 128, 8
        $region52: #{tpu_custom_call.1} parent=11 // pred_fallthru
          _
        // Predicated region
        $region53: #{tpu_custom_call.1} parent=11 // pred_check
          %p498 = pneg %p287
        $region54: #{tpu_custom_call.1} parent=11 // pred_check_branch
          %500 = sbr.rel (%p498) target = $region56
        $region55: #{tpu_custom_call.1} parent=11 // pred_region
          %502 = vsyncadd [#allocation20], 0
          %s504 = sshll.u32 %s11, 4
          %s505 = int_to_ptr.hbm [resolvable:$true] %s504
          %s506 = sshll.u32 [#allocation21], 4
          %s507 = int_to_ptr.vmem [resolvable:$true] %s506
          %509 = dma.hbm_to_vmem [thread:$0]  %s505, 32, %s507, [#allocation20]
        $region56: #{tpu_custom_call.1} parent=11 // pred_fallthru
          _
        // Predicated region
        $region57: #{tpu_custom_call.1} parent=11 // pred_check
          %p510 = pneg %p308
        $region58: #{tpu_custom_call.1} parent=11 // pred_check_branch
          %512 = sbr.rel (%p510) target = $region60
        $region59: #{tpu_custom_call.1} parent=11 // pred_region
          %514 = vsyncadd [#allocation23], 0
          %s515 = sshll.u32 %s12, 4
          %s516 = int_to_ptr.hbm [resolvable:$true] %s515
          %s517 = sshll.u32 [#allocation22], 4
          %s518 = int_to_ptr.vmem [resolvable:$true] %s517
          %523 = dma.hbm_to_vmem [thread:$0]  %s516, 2048, %s518, [#allocation23], 64, 64, 4
        $region60: #{tpu_custom_call.1} parent=11 // pred_fallthru
          _
        // Predicated region
        $region61: #{tpu_custom_call.1} parent=11 // pred_check
          %p524 = pneg %p329
        $region62: #{tpu_custom_call.1} parent=11 // pred_check_branch
          %526 = sbr.rel (%p524) target = $region64
        $region63: #{tpu_custom_call.1} parent=11 // pred_region
          %528 = vsyncadd [#allocation23], 0
          %s530 = sshll.u32 %s13, 4
          %s531 = int_to_ptr.hbm [resolvable:$true] %s530
          %s532 = sshll.u32 [#allocation24], 4
          %s533 = int_to_ptr.vmem [resolvable:$true] %s532
          %535 = dma.hbm_to_vmem [thread:$0]  %s531, 16, %s533, [#allocation23]
        $region64: #{tpu_custom_call.1} parent=11 // pred_fallthru
          _
      $region12: #{tpu_custom_call.1} parent=5 // pred_fallthru
        _
      %p536 = scmp.lt.s32.totalorder %s30, 2
      // Predicated region
      $region65: #{tpu_custom_call.1} parent=5 // pred_check
        %p537 = pneg %p536
      $region66: #{tpu_custom_call.1} parent=5 // pred_check_branch
        %539 = sbr.rel (%p537) target = $region68
      $region67: #{tpu_custom_call.1} parent=5 // pred_region
        // Predicated region
        $region69: #{tpu_custom_call.1} parent=67 // pred_check
          %p540 = pneg %p50
        $region70: #{tpu_custom_call.1} parent=67 // pred_check_branch
          %542 = sbr.rel (%p540) target = $region72
        $region71: #{tpu_custom_call.1} parent=67 // pred_region
          %p543 = scmp.lt.s32.totalorder %s30, 1
          %s544 = scalar_select %p543, %s30, 1
          %s545 = smul.addr %s544, 54
          %s546 = smul.addr %s545, 8
          %s547 = scalar_lea.vmem %s0, %s546
        $region72: #{tpu_custom_call.1} parent=67 // pred_fallthru
          _
      $region68: #{tpu_custom_call.1} parent=5 // pred_fallthru
        _
      %p548 = scmp.le.s32.totalorder 1, %s30
      %p549 = scmp.lt.s32.totalorder %s30, 3
      %p550 = pnand %p548, %p549
      %p551 = pneg %p550
      // Predicated region
      $region73: #{tpu_custom_call.1} parent=5 // pred_check
        _
      $region74: #{tpu_custom_call.1} parent=5 // pred_check_branch
        %553 = sbr.rel (%p550) target = $region76
      $region75: #{tpu_custom_call.1} parent=5 // pred_region
        %s554 = ssub.s32 %s30, 1
        // Predicated region
        $region77: #{tpu_custom_call.1} parent=75 // pred_check
          %p555 = pneg %p77
        $region78: #{tpu_custom_call.1} parent=75 // pred_check_branch
          %557 = sbr.rel (%p555) target = $region80
        $region79: #{tpu_custom_call.1} parent=75 // pred_region
          %559 = dma.done [#allocation5], 320
        $region80: #{tpu_custom_call.1} parent=75 // pred_fallthru
          _
        // Predicated region
        $region81: #{tpu_custom_call.1} parent=75 // pred_check
          %p560 = pneg %p98
        $region82: #{tpu_custom_call.1} parent=75 // pred_check_branch
          %562 = sbr.rel (%p560) target = $region84
        $region83: #{tpu_custom_call.1} parent=75 // pred_region
          %564 = dma.done [#allocation8], 16
        $region84: #{tpu_custom_call.1} parent=75 // pred_fallthru
          _
        // Predicated region
        $region85: #{tpu_custom_call.1} parent=75 // pred_check
          %p565 = pneg %p119
        $region86: #{tpu_custom_call.1} parent=75 // pred_check_branch
          %567 = sbr.rel (%p565) target = $region88
        $region87: #{tpu_custom_call.1} parent=75 // pred_region
          %569 = dma.done [#allocation8], 16
        $region88: #{tpu_custom_call.1} parent=75 // pred_fallthru
          _
        // Predicated region
        $region89: #{tpu_custom_call.1} parent=75 // pred_check
          %p570 = pneg %p140
        $region90: #{tpu_custom_call.1} parent=75 // pred_check_branch
          %572 = sbr.rel (%p570) target = $region92
        $region91: #{tpu_custom_call.1} parent=75 // pred_region
          %574 = dma.done [#allocation11], 4608
        $region92: #{tpu_custom_call.1} parent=75 // pred_fallthru
          _
        // Predicated region
        $region93: #{tpu_custom_call.1} parent=75 // pred_check
          %p575 = pneg %p161
        $region94: #{tpu_custom_call.1} parent=75 // pred_check_branch
          %577 = sbr.rel (%p575) target = $region96
        $region95: #{tpu_custom_call.1} parent=75 // pred_region
          %579 = dma.done [#allocation11], 16
        $region96: #{tpu_custom_call.1} parent=75 // pred_fallthru
          _
        // Predicated region
        $region97: #{tpu_custom_call.1} parent=75 // pred_check
          %p580 = pneg %p182
        $region98: #{tpu_custom_call.1} parent=75 // pred_check_branch
          %582 = sbr.rel (%p580) target = $region100
        $region99: #{tpu_custom_call.1} parent=75 // pred_region
          %584 = dma.done [#allocation14], 16
        $region100: #{tpu_custom_call.1} parent=75 // pred_fallthru
          _
        // Predicated region
        $region101: #{tpu_custom_call.1} parent=75 // pred_check
          %p585 = pneg %p203
        $region102: #{tpu_custom_call.1} parent=75 // pred_check_branch
          %587 = sbr.rel (%p585) target = $region104
        $region103: #{tpu_custom_call.1} parent=75 // pred_region
          %589 = dma.done [#allocation14], 18432
        $region104: #{tpu_custom_call.1} parent=75 // pred_fallthru
          _
        // Predicated region
        $region105: #{tpu_custom_call.1} parent=75 // pred_check
          %p590 = pneg %p224
        $region106: #{tpu_custom_call.1} parent=75 // pred_check_branch
          %592 = sbr.rel (%p590) target = $region108
        $region107: #{tpu_custom_call.1} parent=75 // pred_region
          %594 = dma.done [#allocation17], 32
        $region108: #{tpu_custom_call.1} parent=75 // pred_fallthru
          _
        // Predicated region
        $region109: #{tpu_custom_call.1} parent=75 // pred_check
          %p595 = pneg %p245
        $region110: #{tpu_custom_call.1} parent=75 // pred_check_branch
          %597 = sbr.rel (%p595) target = $region112
        $region111: #{tpu_custom_call.1} parent=75 // pred_region
          %599 = dma.done [#allocation17], 32
        $region112: #{tpu_custom_call.1} parent=75 // pred_fallthru
          _
        // Predicated region
        $region113: #{tpu_custom_call.1} parent=75 // pred_check
          %p600 = pneg %p266
        $region114: #{tpu_custom_call.1} parent=75 // pred_check_branch
          %602 = sbr.rel (%p600) target = $region116
        $region115: #{tpu_custom_call.1} parent=75 // pred_region
          %604 = dma.done [#allocation20], 65536
        $region116: #{tpu_custom_call.1} parent=75 // pred_fallthru
          _
        // Predicated region
        $region117: #{tpu_custom_call.1} parent=75 // pred_check
          %p605 = pneg %p287
        $region118: #{tpu_custom_call.1} parent=75 // pred_check_branch
          %607 = sbr.rel (%p605) target = $region120
        $region119: #{tpu_custom_call.1} parent=75 // pred_region
          %609 = dma.done [#allocation20], 32
        $region120: #{tpu_custom_call.1} parent=75 // pred_fallthru
          _
        // Predicated region
        $region121: #{tpu_custom_call.1} parent=75 // pred_check
          %p610 = pneg %p308
        $region122: #{tpu_custom_call.1} parent=75 // pred_check_branch
          %612 = sbr.rel (%p610) target = $region124
        $region123: #{tpu_custom_call.1} parent=75 // pred_region
          %614 = dma.done [#allocation23], 2048
        $region124: #{tpu_custom_call.1} parent=75 // pred_fallthru
          _
        // Predicated region
        $region125: #{tpu_custom_call.1} parent=75 // pred_check
          %p615 = pneg %p329
        $region126: #{tpu_custom_call.1} parent=75 // pred_check_branch
          %617 = sbr.rel (%p615) target = $region128
        $region127: #{tpu_custom_call.1} parent=75 // pred_region
          %619 = dma.done [#allocation23], 16
        $region128: #{tpu_custom_call.1} parent=75 // pred_fallthru
          _
        %p620 = scmp.lt.s32.totalorder %s35, 1
        %s621 = scalar_select %p620, %s35, 1
        %s622 = smul.addr %s621, 54
        %s623 = smul.addr %s622, 8
        %s624 = scalar_lea.vmem %s0, %s623
        %p625 = pneg %p56
        %p626 = pneg %p53
        %p627 = pneg %p77
        %p628 = pneg %p74
        %p629 = pneg %p98
        %p630 = pneg %p95
        %p631 = pneg %p119
        %p632 = pneg %p116
        %p633 = pneg %p140
        %p634 = pneg %p137
        %p635 = pneg %p161
        %p636 = pneg %p158
        %p637 = pneg %p182
        %p638 = pneg %p179
        %p639 = pneg %p203
        %p640 = pneg %p200
        %p641 = pneg %p224
        %p642 = pneg %p221
        %p643 = pneg %p245
        %p644 = pneg %p242
        %p645 = pneg %p266
        %p646 = pneg %p263
        %p647 = pneg %p287
        %p648 = pneg %p284
        %p649 = pneg %p308
        %p650 = pneg %p305
        %p651 = pneg %p329
        %p652 = pneg %p326
        %p653 = pneg %p355
        %p654 = pneg %p352
        %s655 = sand.u32 %s342, 1
        %s656 = scalar_lea.sflag [#allocation6], %s655
        %s657 = sand.u32 %s342, 1
        %s658 = scalar_lea.vmem [#allocation25], %s657
        %p659 = scmp.lt.s32.totalorder %s35, 1
        %s660 = scalar_select %p659, %s35, 1
        %s661 = smul.addr %s660, 54
        %s662 = smul.addr %s661, 8
        %s663 = scalar_lea.vmem %s0, %s662
        %v665 = vld [vmem:[%s663] sm:$0xff]
        %v666 = vld [vmem:[%s663 + $0x8] sm:$0xff]
        %v667 = vld [vmem:[%s663 + $0x18] sm:$0xff]
        %v668 = vld [vmem:[%s663 + $0x20] sm:$0xff]
        %v669 = vld [vmem:[%s663 + $0x30] sm:$0xff]
        %v670 = vld [vmem:[%s663 + $0x38] sm:$0xff]
        %v671 = vld [vmem:[%s663 + $0x48] sm:$0xff]
        %v672 = vld [vmem:[%s663 + $0x50] sm:$0xff]
        %v673 = vld [vmem:[%s663 + $0x60] sm:$0xff]
        %v674 = vld [vmem:[%s663 + $0x68] sm:$0xff]
        %v675 = vld [vmem:[%s663 + $0x78] sm:$0xff]
        %v676 = vld [vmem:[%s663 + $0x80] sm:$0xff]
        %v677 = vld [vmem:[%s663 + $0x90] sm:$0xff]
        %v678 = vld [vmem:[%s663 + $0x98] sm:$0xff]
        %v679 = vld [vmem:[%s663 + $0xa8] sm:$0xff]
        %v680 = vld [vmem:[%s663 + $0xb0] sm:$0xff]
        %v681 = vld [vmem:[%s663 + $0xc0] sm:$0xff]
        %v682 = vld [vmem:[%s663 + $0xc8] sm:$0xff]
        %v683 = vld [vmem:[%s663 + $0xd8] sm:$0xff]
        %v684 = vld [vmem:[%s663 + $0xe0] sm:$0xff]
        %v685 = vld [vmem:[%s663 + $0xf0] sm:$0xff]
        %v686 = vld [vmem:[%s663 + $0xf8] sm:$0xff]
        %v687 = vld [vmem:[%s663 + $0x108] sm:$0xff]
        %v688 = vld [vmem:[%s663 + $0x110] sm:$0xff]
        %v689 = vld [vmem:[%s663 + $0x120] sm:$0xff]
        %v690 = vld [vmem:[%s663 + $0x128] sm:$0xff]
        %v691 = vld [vmem:[%s663 + $0x138] sm:$0xff]
        %v692 = vld [vmem:[%s663 + $0x140] sm:$0xff]
        %v693 = vld [vmem:[%s663 + $0x150] sm:$0xff]
        %v694 = vld [vmem:[%s663 + $0x158] sm:$0xff]
        %v695 = vld [vmem:[%s663 + $0x168] sm:$0xff]
        %v696 = vld [vmem:[%s663 + $0x170] sm:$0xff]
        %v697 = vld [vmem:[%s663 + $0x1] sm:$0xff]
        %v698 = vld [vmem:[%s663 + $0x9] sm:$0xff]
        %v699 = vld [vmem:[%s663 + $0x19] sm:$0xff]
        %v700 = vld [vmem:[%s663 + $0x21] sm:$0xff]
        %v701 = vld [vmem:[%s663 + $0x31] sm:$0xff]
        %v702 = vld [vmem:[%s663 + $0x39] sm:$0xff]
        %v703 = vld [vmem:[%s663 + $0x49] sm:$0xff]
        %v704 = vld [vmem:[%s663 + $0x51] sm:$0xff]
        %v705 = vld [vmem:[%s663 + $0x61] sm:$0xff]
        %v706 = vld [vmem:[%s663 + $0x69] sm:$0xff]
        %v707 = vld [vmem:[%s663 + $0x79] sm:$0xff]
        %v708 = vld [vmem:[%s663 + $0x81] sm:$0xff]
        %v709 = vld [vmem:[%s663 + $0x91] sm:$0xff]
        %v710 = vld [vmem:[%s663 + $0x99] sm:$0xff]
        %v711 = vld [vmem:[%s663 + $0xa9] sm:$0xff]
        %v712 = vld [vmem:[%s663 + $0xb1] sm:$0xff]
        %v713 = vld [vmem:[%s663 + $0xc1] sm:$0xff]
        %v714 = vld [vmem:[%s663 + $0xc9] sm:$0xff]
        %v715 = vld [vmem:[%s663 + $0xd9] sm:$0xff]
        %v716 = vld [vmem:[%s663 + $0xe1] sm:$0xff]
        %v717 = vld [vmem:[%s663 + $0xf1] sm:$0xff]
        %v718 = vld [vmem:[%s663 + $0xf9] sm:$0xff]
        %v719 = vld [vmem:[%s663 + $0x109] sm:$0xff]
        %v720 = vld [vmem:[%s663 + $0x111] sm:$0xff]
        %v721 = vld [vmem:[%s663 + $0x121] sm:$0xff]
        %v722 = vld [vmem:[%s663 + $0x129] sm:$0xff]
        %v723 = vld [vmem:[%s663 + $0x139] sm:$0xff]
        %v724 = vld [vmem:[%s663 + $0x141] sm:$0xff]
        %v725 = vld [vmem:[%s663 + $0x151] sm:$0xff]
        %v726 = vld [vmem:[%s663 + $0x159] sm:$0xff]
        %v727 = vld [vmem:[%s663 + $0x169] sm:$0xff]
        %v728 = vld [vmem:[%s663 + $0x171] sm:$0xff]
        %v729 = vld [vmem:[%s663 + $0x2] sm:$0xff]
        %v730 = vld [vmem:[%s663 + $0xa] sm:$0xff]
        %v731 = vld [vmem:[%s663 + $0x1a] sm:$0xff]
        %v732 = vld [vmem:[%s663 + $0x22] sm:$0xff]
        %v733 = vld [vmem:[%s663 + $0x32] sm:$0xff]
        %v734 = vld [vmem:[%s663 + $0x3a] sm:$0xff]
        %v735 = vld [vmem:[%s663 + $0x4a] sm:$0xff]
        %v736 = vld [vmem:[%s663 + $0x52] sm:$0xff]
        %v737 = vld [vmem:[%s663 + $0x62] sm:$0xff]
        %v738 = vld [vmem:[%s663 + $0x6a] sm:$0xff]
        %v739 = vld [vmem:[%s663 + $0x7a] sm:$0xff]
        %v740 = vld [vmem:[%s663 + $0x82] sm:$0xff]
        %v741 = vld [vmem:[%s663 + $0x92] sm:$0xff]
        %v742 = vld [vmem:[%s663 + $0x9a] sm:$0xff]
        %v743 = vld [vmem:[%s663 + $0xaa] sm:$0xff]
        %v744 = vld [vmem:[%s663 + $0xb2] sm:$0xff]
        %v745 = vld [vmem:[%s663 + $0xc2] sm:$0xff]
        %v746 = vld [vmem:[%s663 + $0xca] sm:$0xff]
        %v747 = vld [vmem:[%s663 + $0xda] sm:$0xff]
        %v748 = vld [vmem:[%s663 + $0xe2] sm:$0xff]
        %v749 = vld [vmem:[%s663 + $0xf2] sm:$0xff]
        %v750 = vld [vmem:[%s663 + $0xfa] sm:$0xff]
        %v751 = vld [vmem:[%s663 + $0x10a] sm:$0xff]
        %v752 = vld [vmem:[%s663 + $0x112] sm:$0xff]
        %v753 = vld [vmem:[%s663 + $0x122] sm:$0xff]
        %v754 = vld [vmem:[%s663 + $0x12a] sm:$0xff]
        %v755 = vld [vmem:[%s663 + $0x13a] sm:$0xff]
        %v756 = vld [vmem:[%s663 + $0x142] sm:$0xff]
        %v757 = vld [vmem:[%s663 + $0x152] sm:$0xff]
        %v758 = vld [vmem:[%s663 + $0x15a] sm:$0xff]
        %v759 = vld [vmem:[%s663 + $0x16a] sm:$0xff]
        %v760 = vld [vmem:[%s663 + $0x172] sm:$0xff]
        %s761 = scalar_lea.vmem %s663, 24
        %v762 = vld [vmem:[%s761] sm:$0xff]
        %v763 = vld [vmem:[%s761 + $0x8] sm:$0xff]
        %v764 = vld [vmem:[%s761 + $0x18] sm:$0xff]
        %v765 = vld [vmem:[%s761 + $0x20] sm:$0xff]
        %v766 = vld [vmem:[%s761 + $0x30] sm:$0xff]
        %v767 = vld [vmem:[%s761 + $0x38] sm:$0xff]
        %v768 = vld [vmem:[%s761 + $0x48] sm:$0xff]
        %v769 = vld [vmem:[%s761 + $0x50] sm:$0xff]
        %v770 = vld [vmem:[%s761 + $0x60] sm:$0xff]
        %v771 = vld [vmem:[%s761 + $0x68] sm:$0xff]
        %v772 = vld [vmem:[%s761 + $0x78] sm:$0xff]
        %v773 = vld [vmem:[%s761 + $0x80] sm:$0xff]
        %v774 = vld [vmem:[%s761 + $0x90] sm:$0xff]
        %v775 = vld [vmem:[%s761 + $0x98] sm:$0xff]
        %v776 = vld [vmem:[%s761 + $0xa8] sm:$0xff]
        %v777 = vld [vmem:[%s761 + $0xb0] sm:$0xff]
        %v778 = vld [vmem:[%s761 + $0xc0] sm:$0xff]
        %v779 = vld [vmem:[%s761 + $0xc8] sm:$0xff]
        %v780 = vld [vmem:[%s761 + $0xd8] sm:$0xff]
        %v781 = vld [vmem:[%s761 + $0xe0] sm:$0xff]
        %v782 = vld [vmem:[%s761 + $0xf0] sm:$0xff]
        %v783 = vld [vmem:[%s761 + $0xf8] sm:$0xff]
        %v784 = vld [vmem:[%s761 + $0x108] sm:$0xff]
        %v785 = vld [vmem:[%s761 + $0x110] sm:$0xff]
        %v786 = vld [vmem:[%s761 + $0x120] sm:$0xff]
        %v787 = vld [vmem:[%s761 + $0x128] sm:$0xff]
        %v788 = vld [vmem:[%s761 + $0x138] sm:$0xff]
        %v789 = vld [vmem:[%s761 + $0x140] sm:$0xff]
        %v790 = vld [vmem:[%s761 + $0x150] sm:$0xff]
        %v791 = vld [vmem:[%s761 + $0x158] sm:$0xff]
        %v792 = vld [vmem:[%s761 + $0x168] sm:$0xff]
        %v793 = vld [vmem:[%s761 + $0x170] sm:$0xff]
        %v794 = vld [vmem:[%s761 + $0x1] sm:$0xff]
        %v795 = vld [vmem:[%s761 + $0x9] sm:$0xff]
        %v796 = vld [vmem:[%s761 + $0x19] sm:$0xff]
        %v797 = vld [vmem:[%s761 + $0x21] sm:$0xff]
        %v798 = vld [vmem:[%s761 + $0x31] sm:$0xff]
        %v799 = vld [vmem:[%s761 + $0x39] sm:$0xff]
        %v800 = vld [vmem:[%s761 + $0x49] sm:$0xff]
        %v801 = vld [vmem:[%s761 + $0x51] sm:$0xff]
        %v802 = vld [vmem:[%s761 + $0x61] sm:$0xff]
        %v803 = vld [vmem:[%s761 + $0x69] sm:$0xff]
        %v804 = vld [vmem:[%s761 + $0x79] sm:$0xff]
        %v805 = vld [vmem:[%s761 + $0x81] sm:$0xff]
        %v806 = vld [vmem:[%s761 + $0x91] sm:$0xff]
        %v807 = vld [vmem:[%s761 + $0x99] sm:$0xff]
        %v808 = vld [vmem:[%s761 + $0xa9] sm:$0xff]
        %v809 = vld [vmem:[%s761 + $0xb1] sm:$0xff]
        %v810 = vld [vmem:[%s761 + $0xc1] sm:$0xff]
        %v811 = vld [vmem:[%s761 + $0xc9] sm:$0xff]
        %v812 = vld [vmem:[%s761 + $0xd9] sm:$0xff]
        %v813 = vld [vmem:[%s761 + $0xe1] sm:$0xff]
        %v814 = vld [vmem:[%s761 + $0xf1] sm:$0xff]
        %v815 = vld [vmem:[%s761 + $0xf9] sm:$0xff]
        %v816 = vld [vmem:[%s761 + $0x109] sm:$0xff]
        %v817 = vld [vmem:[%s761 + $0x111] sm:$0xff]
        %v818 = vld [vmem:[%s761 + $0x121] sm:$0xff]
        %v819 = vld [vmem:[%s761 + $0x129] sm:$0xff]
        %v820 = vld [vmem:[%s761 + $0x139] sm:$0xff]
        %v821 = vld [vmem:[%s761 + $0x141] sm:$0xff]
        %v822 = vld [vmem:[%s761 + $0x151] sm:$0xff]
        %v823 = vld [vmem:[%s761 + $0x159] sm:$0xff]
        %v824 = vld [vmem:[%s761 + $0x169] sm:$0xff]
        %v825 = vld [vmem:[%s761 + $0x171] sm:$0xff]
        %v826 = vld [vmem:[%s761 + $0x2] sm:$0xff]
        %v827 = vld [vmem:[%s761 + $0xa] sm:$0xff]
        %v828 = vld [vmem:[%s761 + $0x1a] sm:$0xff]
        %v829 = vld [vmem:[%s761 + $0x22] sm:$0xff]
        %v830 = vld [vmem:[%s761 + $0x32] sm:$0xff]
        %v831 = vld [vmem:[%s761 + $0x3a] sm:$0xff]
        %v832 = vld [vmem:[%s761 + $0x4a] sm:$0xff]
        %v833 = vld [vmem:[%s761 + $0x52] sm:$0xff]
        %v834 = vld [vmem:[%s761 + $0x62] sm:$0xff]
        %v835 = vld [vmem:[%s761 + $0x6a] sm:$0xff]
        %v836 = vld [vmem:[%s761 + $0x7a] sm:$0xff]
        %v837 = vld [vmem:[%s761 + $0x82] sm:$0xff]
        %v838 = vld [vmem:[%s761 + $0x92] sm:$0xff]
        %v839 = vld [vmem:[%s761 + $0x9a] sm:$0xff]
        %v840 = vld [vmem:[%s761 + $0xaa] sm:$0xff]
        %v841 = vld [vmem:[%s761 + $0xb2] sm:$0xff]
        %v842 = vld [vmem:[%s761 + $0xc2] sm:$0xff]
        %v843 = vld [vmem:[%s761 + $0xca] sm:$0xff]
        %v844 = vld [vmem:[%s761 + $0xda] sm:$0xff]
        %v845 = vld [vmem:[%s761 + $0xe2] sm:$0xff]
        %v846 = vld [vmem:[%s761 + $0xf2] sm:$0xff]
        %v847 = vld [vmem:[%s761 + $0xfa] sm:$0xff]
        %v848 = vld [vmem:[%s761 + $0x10a] sm:$0xff]
        %v849 = vld [vmem:[%s761 + $0x112] sm:$0xff]
        %v850 = vld [vmem:[%s761 + $0x122] sm:$0xff]
        %v851 = vld [vmem:[%s761 + $0x12a] sm:$0xff]
        %v852 = vld [vmem:[%s761 + $0x13a] sm:$0xff]
        %v853 = vld [vmem:[%s761 + $0x142] sm:$0xff]
        %v854 = vld [vmem:[%s761 + $0x152] sm:$0xff]
        %v855 = vld [vmem:[%s761 + $0x15a] sm:$0xff]
        %v856 = vld [vmem:[%s761 + $0x16a] sm:$0xff]
        %v857 = vld [vmem:[%s761 + $0x172] sm:$0xff]
        %s858 = scalar_lea.vmem %s663, 48
        %v859 = vld [vmem:[%s858] sm:$0xff]
        %v860 = vld [vmem:[%s858 + $0x8] sm:$0xff]
        %v861 = vld [vmem:[%s858 + $0x18] sm:$0xff]
        %v862 = vld [vmem:[%s858 + $0x20] sm:$0xff]
        %v863 = vld [vmem:[%s858 + $0x30] sm:$0xff]
        %v864 = vld [vmem:[%s858 + $0x38] sm:$0xff]
        %v865 = vld [vmem:[%s858 + $0x48] sm:$0xff]
        %v866 = vld [vmem:[%s858 + $0x50] sm:$0xff]
        %v867 = vld [vmem:[%s858 + $0x60] sm:$0xff]
        %v868 = vld [vmem:[%s858 + $0x68] sm:$0xff]
        %v869 = vld [vmem:[%s858 + $0x78] sm:$0xff]
        %v870 = vld [vmem:[%s858 + $0x80] sm:$0xff]
        %v871 = vld [vmem:[%s858 + $0x90] sm:$0xff]
        %v872 = vld [vmem:[%s858 + $0x98] sm:$0xff]
        %v873 = vld [vmem:[%s858 + $0xa8] sm:$0xff]
        %v874 = vld [vmem:[%s858 + $0xb0] sm:$0xff]
        %v875 = vld [vmem:[%s858 + $0xc0] sm:$0xff]
        %v876 = vld [vmem:[%s858 + $0xc8] sm:$0xff]
        %v877 = vld [vmem:[%s858 + $0xd8] sm:$0xff]
        %v878 = vld [vmem:[%s858 + $0xe0] sm:$0xff]
        %v879 = vld [vmem:[%s858 + $0xf0] sm:$0xff]
        %v880 = vld [vmem:[%s858 + $0xf8] sm:$0xff]
        %v881 = vld [vmem:[%s858 + $0x108] sm:$0xff]
        %v882 = vld [vmem:[%s858 + $0x110] sm:$0xff]
        %v883 = vld [vmem:[%s858 + $0x120] sm:$0xff]
        %v884 = vld [vmem:[%s858 + $0x128] sm:$0xff]
        %v885 = vld [vmem:[%s858 + $0x138] sm:$0xff]
        %v886 = vld [vmem:[%s858 + $0x140] sm:$0xff]
        %v887 = vld [vmem:[%s858 + $0x150] sm:$0xff]
        %v888 = vld [vmem:[%s858 + $0x158] sm:$0xff]
        %v889 = vld [vmem:[%s858 + $0x168] sm:$0xff]
        %v890 = vld [vmem:[%s858 + $0x170] sm:$0xff]
        %v891 = vld [vmem:[%s858 + $0x1] sm:$0xff]
        %v892 = vld [vmem:[%s858 + $0x9] sm:$0xff]
        %v893 = vld [vmem:[%s858 + $0x19] sm:$0xff]
        %v894 = vld [vmem:[%s858 + $0x21] sm:$0xff]
        %v895 = vld [vmem:[%s858 + $0x31] sm:$0xff]
        %v896 = vld [vmem:[%s858 + $0x39] sm:$0xff]
        %v897 = vld [vmem:[%s858 + $0x49] sm:$0xff]
        %v898 = vld [vmem:[%s858 + $0x51] sm:$0xff]
        %v899 = vld [vmem:[%s858 + $0x61] sm:$0xff]
        %v900 = vld [vmem:[%s858 + $0x69] sm:$0xff]
        %v901 = vld [vmem:[%s858 + $0x79] sm:$0xff]
        %v902 = vld [vmem:[%s858 + $0x81] sm:$0xff]
        %v903 = vld [vmem:[%s858 + $0x91] sm:$0xff]
        %v904 = vld [vmem:[%s858 + $0x99] sm:$0xff]
        %v905 = vld [vmem:[%s858 + $0xa9] sm:$0xff]
        %v906 = vld [vmem:[%s858 + $0xb1] sm:$0xff]
        %v907 = vld [vmem:[%s858 + $0xc1] sm:$0xff]
        %v908 = vld [vmem:[%s858 + $0xc9] sm:$0xff]
        %v909 = vld [vmem:[%s858 + $0xd9] sm:$0xff]
        %v910 = vld [vmem:[%s858 + $0xe1] sm:$0xff]
        %v911 = vld [vmem:[%s858 + $0xf1] sm:$0xff]
        %v912 = vld [vmem:[%s858 + $0xf9] sm:$0xff]
        %v913 = vld [vmem:[%s858 + $0x109] sm:$0xff]
        %v914 = vld [vmem:[%s858 + $0x111] sm:$0xff]
        %v915 = vld [vmem:[%s858 + $0x121] sm:$0xff]
        %v916 = vld [vmem:[%s858 + $0x129] sm:$0xff]
        %v917 = vld [vmem:[%s858 + $0x139] sm:$0xff]
        %v918 = vld [vmem:[%s858 + $0x141] sm:$0xff]
        %v919 = vld [vmem:[%s858 + $0x151] sm:$0xff]
        %v920 = vld [vmem:[%s858 + $0x159] sm:$0xff]
        %v921 = vld [vmem:[%s858 + $0x169] sm:$0xff]
        %v922 = vld [vmem:[%s858 + $0x171] sm:$0xff]
        %v923 = vld [vmem:[%s858 + $0x2] sm:$0xff]
        %v924 = vld [vmem:[%s858 + $0xa] sm:$0xff]
        %v925 = vld [vmem:[%s858 + $0x1a] sm:$0xff]
        %v926 = vld [vmem:[%s858 + $0x22] sm:$0xff]
        %v927 = vld [vmem:[%s858 + $0x32] sm:$0xff]
        %v928 = vld [vmem:[%s858 + $0x3a] sm:$0xff]
        %v929 = vld [vmem:[%s858 + $0x4a] sm:$0xff]
        %v930 = vld [vmem:[%s858 + $0x52] sm:$0xff]
        %v931 = vld [vmem:[%s858 + $0x62] sm:$0xff]
        %v932 = vld [vmem:[%s858 + $0x6a] sm:$0xff]
        %v933 = vld [vmem:[%s858 + $0x7a] sm:$0xff]
        %v934 = vld [vmem:[%s858 + $0x82] sm:$0xff]
        %v935 = vld [vmem:[%s858 + $0x92] sm:$0xff]
        %v936 = vld [vmem:[%s858 + $0x9a] sm:$0xff]
        %v937 = vld [vmem:[%s858 + $0xaa] sm:$0xff]
        %v938 = vld [vmem:[%s858 + $0xb2] sm:$0xff]
        %v939 = vld [vmem:[%s858 + $0xc2] sm:$0xff]
        %v940 = vld [vmem:[%s858 + $0xca] sm:$0xff]
        %v941 = vld [vmem:[%s858 + $0xda] sm:$0xff]
        %v942 = vld [vmem:[%s858 + $0xe2] sm:$0xff]
        %v943 = vld [vmem:[%s858 + $0xf2] sm:$0xff]
        %v944 = vld [vmem:[%s858 + $0xfa] sm:$0xff]
        %v945 = vld [vmem:[%s858 + $0x10a] sm:$0xff]
        %v946 = vld [vmem:[%s858 + $0x112] sm:$0xff]
        %v947 = vld [vmem:[%s858 + $0x122] sm:$0xff]
        %v948 = vld [vmem:[%s858 + $0x12a] sm:$0xff]
        %v949 = vld [vmem:[%s858 + $0x13a] sm:$0xff]
        %v950 = vld [vmem:[%s858 + $0x142] sm:$0xff]
        %v951 = vld [vmem:[%s858 + $0x152] sm:$0xff]
        %v952 = vld [vmem:[%s858 + $0x15a] sm:$0xff]
        %v953 = vld [vmem:[%s858 + $0x16a] sm:$0xff]
        %v954 = vld [vmem:[%s858 + $0x172] sm:$0xff]
        %987 = vrot.lane.b32.xlu0 %v697, 4
        %v988 = vpop.permute.xlu0 %987
        %989 = vrot.lane.b32.xlu0 %v698, 4
        %v990 = vpop.permute.xlu0 %989
        %991 = vrot.lane.b32.xlu0 %v699, 4
        %v992 = vpop.permute.xlu0 %991
        %993 = vrot.lane.b32.xlu0 %v700, 4
        %v994 = vpop.permute.xlu0 %993
        %995 = vrot.lane.b32.xlu0 %v701, 4
        %v996 = vpop.permute.xlu0 %995
        %997 = vrot.lane.b32.xlu0 %v702, 4
        %v998 = vpop.permute.xlu0 %997
        %999 = vrot.lane.b32.xlu0 %v703, 4
        %v1000 = vpop.permute.xlu0 %999
        %1001 = vrot.lane.b32.xlu0 %v704, 4
        %v1002 = vpop.permute.xlu0 %1001
        %1003 = vrot.lane.b32.xlu0 %v705, 4
        %v1004 = vpop.permute.xlu0 %1003
        %1005 = vrot.lane.b32.xlu0 %v706, 4
        %v1006 = vpop.permute.xlu0 %1005
        %1007 = vrot.lane.b32.xlu0 %v707, 4
        %v1008 = vpop.permute.xlu0 %1007
        %1009 = vrot.lane.b32.xlu0 %v708, 4
        %v1010 = vpop.permute.xlu0 %1009
        %1011 = vrot.lane.b32.xlu0 %v709, 4
        %v1012 = vpop.permute.xlu0 %1011
        %1013 = vrot.lane.b32.xlu0 %v710, 4
        %v1014 = vpop.permute.xlu0 %1013
        %1015 = vrot.lane.b32.xlu0 %v711, 4
        %v1016 = vpop.permute.xlu0 %1015
        %1017 = vrot.lane.b32.xlu0 %v712, 4
        %v1018 = vpop.permute.xlu0 %1017
        %1019 = vrot.lane.b32.xlu0 %v713, 4
        %v1020 = vpop.permute.xlu0 %1019
        %1021 = vrot.lane.b32.xlu0 %v714, 4
        %v1022 = vpop.permute.xlu0 %1021
        %1023 = vrot.lane.b32.xlu0 %v715, 4
        %v1024 = vpop.permute.xlu0 %1023
        %1025 = vrot.lane.b32.xlu0 %v716, 4
        %v1026 = vpop.permute.xlu0 %1025
        %1027 = vrot.lane.b32.xlu0 %v717, 4
        %v1028 = vpop.permute.xlu0 %1027
        %1029 = vrot.lane.b32.xlu0 %v718, 4
        %v1030 = vpop.permute.xlu0 %1029
        %1031 = vrot.lane.b32.xlu0 %v719, 4
        %v1032 = vpop.permute.xlu0 %1031
        %1033 = vrot.lane.b32.xlu0 %v720, 4
        %v1034 = vpop.permute.xlu0 %1033
        %1035 = vrot.lane.b32.xlu0 %v721, 4
        %v1036 = vpop.permute.xlu0 %1035
        %1037 = vrot.lane.b32.xlu0 %v722, 4
        %v1038 = vpop.permute.xlu0 %1037
        %1039 = vrot.lane.b32.xlu0 %v723, 4
        %v1040 = vpop.permute.xlu0 %1039
        %1041 = vrot.lane.b32.xlu0 %v724, 4
        %v1042 = vpop.permute.xlu0 %1041
        %1043 = vrot.lane.b32.xlu0 %v725, 4
        %v1044 = vpop.permute.xlu0 %1043
        %1045 = vrot.lane.b32.xlu0 %v726, 4
        %v1046 = vpop.permute.xlu0 %1045
        %1047 = vrot.lane.b32.xlu0 %v727, 4
        %v1048 = vpop.permute.xlu0 %1047
        %1049 = vrot.lane.b32.xlu0 %v728, 4
        %v1050 = vpop.permute.xlu0 %1049
        %1115 = vrot.lane.b32.xlu0 %v729, 8
        %v1116 = vpop.permute.xlu0 %1115
        %1117 = vrot.lane.b32.xlu0 %v730, 8
        %v1118 = vpop.permute.xlu0 %1117
        %1119 = vrot.lane.b32.xlu0 %v731, 8
        %v1120 = vpop.permute.xlu0 %1119
        %1121 = vrot.lane.b32.xlu0 %v732, 8
        %v1122 = vpop.permute.xlu0 %1121
        %1123 = vrot.lane.b32.xlu0 %v733, 8
        %v1124 = vpop.permute.xlu0 %1123
        %1125 = vrot.lane.b32.xlu0 %v734, 8
        %v1126 = vpop.permute.xlu0 %1125
        %1127 = vrot.lane.b32.xlu0 %v735, 8
        %v1128 = vpop.permute.xlu0 %1127
        %1129 = vrot.lane.b32.xlu0 %v736, 8
        %v1130 = vpop.permute.xlu0 %1129
        %1131 = vrot.lane.b32.xlu0 %v737, 8
        %v1132 = vpop.permute.xlu0 %1131
        %1133 = vrot.lane.b32.xlu0 %v738, 8
        %v1134 = vpop.permute.xlu0 %1133
        %1135 = vrot.lane.b32.xlu0 %v739, 8
        %v1136 = vpop.permute.xlu0 %1135
        %1137 = vrot.lane.b32.xlu0 %v740, 8
        %v1138 = vpop.permute.xlu0 %1137
        %1139 = vrot.lane.b32.xlu0 %v741, 8
        %v1140 = vpop.permute.xlu0 %1139
        %1141 = vrot.lane.b32.xlu0 %v742, 8
        %v1142 = vpop.permute.xlu0 %1141
        %1143 = vrot.lane.b32.xlu0 %v743, 8
        %v1144 = vpop.permute.xlu0 %1143
        %1145 = vrot.lane.b32.xlu0 %v744, 8
        %v1146 = vpop.permute.xlu0 %1145
        %1147 = vrot.lane.b32.xlu0 %v745, 8
        %v1148 = vpop.permute.xlu0 %1147
        %1149 = vrot.lane.b32.xlu0 %v746, 8
        %v1150 = vpop.permute.xlu0 %1149
        %1151 = vrot.lane.b32.xlu0 %v747, 8
        %v1152 = vpop.permute.xlu0 %1151
        %1153 = vrot.lane.b32.xlu0 %v748, 8
        %v1154 = vpop.permute.xlu0 %1153
        %1155 = vrot.lane.b32.xlu0 %v749, 8
        %v1156 = vpop.permute.xlu0 %1155
        %1157 = vrot.lane.b32.xlu0 %v750, 8
        %v1158 = vpop.permute.xlu0 %1157
        %1159 = vrot.lane.b32.xlu0 %v751, 8
        %v1160 = vpop.permute.xlu0 %1159
        %1161 = vrot.lane.b32.xlu0 %v752, 8
        %v1162 = vpop.permute.xlu0 %1161
        %1163 = vrot.lane.b32.xlu0 %v753, 8
        %v1164 = vpop.permute.xlu0 %1163
        %1165 = vrot.lane.b32.xlu0 %v754, 8
        %v1166 = vpop.permute.xlu0 %1165
        %1167 = vrot.lane.b32.xlu0 %v755, 8
        %v1168 = vpop.permute.xlu0 %1167
        %1169 = vrot.lane.b32.xlu0 %v756, 8
        %v1170 = vpop.permute.xlu0 %1169
        %1171 = vrot.lane.b32.xlu0 %v757, 8
        %v1172 = vpop.permute.xlu0 %1171
        %1173 = vrot.lane.b32.xlu0 %v758, 8
        %v1174 = vpop.permute.xlu0 %1173
        %1175 = vrot.lane.b32.xlu0 %v759, 8
        %v1176 = vpop.permute.xlu0 %1175
        %1177 = vrot.lane.b32.xlu0 %v760, 8
        %v1178 = vpop.permute.xlu0 %1177
        %1243 = vrot.lane.b32.xlu0 %v762, 12
        %v1244 = vpop.permute.xlu0 %1243
        %1245 = vrot.lane.b32.xlu0 %v763, 12
        %v1246 = vpop.permute.xlu0 %1245
        %1247 = vrot.lane.b32.xlu0 %v764, 12
        %v1248 = vpop.permute.xlu0 %1247
        %1249 = vrot.lane.b32.xlu0 %v765, 12
        %v1250 = vpop.permute.xlu0 %1249
        %1251 = vrot.lane.b32.xlu0 %v766, 12
        %v1252 = vpop.permute.xlu0 %1251
        %1253 = vrot.lane.b32.xlu0 %v767, 12
        %v1254 = vpop.permute.xlu0 %1253
        %1255 = vrot.lane.b32.xlu0 %v768, 12
        %v1256 = vpop.permute.xlu0 %1255
        %1257 = vrot.lane.b32.xlu0 %v769, 12
        %v1258 = vpop.permute.xlu0 %1257
        %1259 = vrot.lane.b32.xlu0 %v770, 12
        %v1260 = vpop.permute.xlu0 %1259
        %1261 = vrot.lane.b32.xlu0 %v771, 12
        %v1262 = vpop.permute.xlu0 %1261
        %1263 = vrot.lane.b32.xlu0 %v772, 12
        %v1264 = vpop.permute.xlu0 %1263
        %1265 = vrot.lane.b32.xlu0 %v773, 12
        %v1266 = vpop.permute.xlu0 %1265
        %1267 = vrot.lane.b32.xlu0 %v774, 12
        %v1268 = vpop.permute.xlu0 %1267
        %1269 = vrot.lane.b32.xlu0 %v775, 12
        %v1270 = vpop.permute.xlu0 %1269
        %1271 = vrot.lane.b32.xlu0 %v776, 12
        %v1272 = vpop.permute.xlu0 %1271
        %1273 = vrot.lane.b32.xlu0 %v777, 12
        %v1274 = vpop.permute.xlu0 %1273
        %1275 = vrot.lane.b32.xlu0 %v778, 12
        %v1276 = vpop.permute.xlu0 %1275
        %1277 = vrot.lane.b32.xlu0 %v779, 12
        %v1278 = vpop.permute.xlu0 %1277
        %1279 = vrot.lane.b32.xlu0 %v780, 12
        %v1280 = vpop.permute.xlu0 %1279
        %1281 = vrot.lane.b32.xlu0 %v781, 12
        %v1282 = vpop.permute.xlu0 %1281
        %1283 = vrot.lane.b32.xlu0 %v782, 12
        %v1284 = vpop.permute.xlu0 %1283
        %1285 = vrot.lane.b32.xlu0 %v783, 12
        %v1286 = vpop.permute.xlu0 %1285
        %1287 = vrot.lane.b32.xlu0 %v784, 12
        %v1288 = vpop.permute.xlu0 %1287
        %1289 = vrot.lane.b32.xlu0 %v785, 12
        %v1290 = vpop.permute.xlu0 %1289
        %1291 = vrot.lane.b32.xlu0 %v786, 12
        %v1292 = vpop.permute.xlu0 %1291
        %1293 = vrot.lane.b32.xlu0 %v787, 12
        %v1294 = vpop.permute.xlu0 %1293
        %1295 = vrot.lane.b32.xlu0 %v788, 12
        %v1296 = vpop.permute.xlu0 %1295
        %1297 = vrot.lane.b32.xlu0 %v789, 12
        %v1298 = vpop.permute.xlu0 %1297
        %1299 = vrot.lane.b32.xlu0 %v790, 12
        %v1300 = vpop.permute.xlu0 %1299
        %1301 = vrot.lane.b32.xlu0 %v791, 12
        %v1302 = vpop.permute.xlu0 %1301
        %1303 = vrot.lane.b32.xlu0 %v792, 12
        %v1304 = vpop.permute.xlu0 %1303
        %1305 = vrot.lane.b32.xlu0 %v793, 12
        %v1306 = vpop.permute.xlu0 %1305
        %1371 = vrot.lane.b32.xlu0 %v794, 16
        %v1372 = vpop.permute.xlu0 %1371
        %1373 = vrot.lane.b32.xlu0 %v795, 16
        %v1374 = vpop.permute.xlu0 %1373
        %1375 = vrot.lane.b32.xlu0 %v796, 16
        %v1376 = vpop.permute.xlu0 %1375
        %1377 = vrot.lane.b32.xlu0 %v797, 16
        %v1378 = vpop.permute.xlu0 %1377
        %1379 = vrot.lane.b32.xlu0 %v798, 16
        %v1380 = vpop.permute.xlu0 %1379
        %1381 = vrot.lane.b32.xlu0 %v799, 16
        %v1382 = vpop.permute.xlu0 %1381
        %1383 = vrot.lane.b32.xlu0 %v800, 16
        %v1384 = vpop.permute.xlu0 %1383
        %1385 = vrot.lane.b32.xlu0 %v801, 16
        %v1386 = vpop.permute.xlu0 %1385
        %1387 = vrot.lane.b32.xlu0 %v802, 16
        %v1388 = vpop.permute.xlu0 %1387
        %1389 = vrot.lane.b32.xlu0 %v803, 16
        %v1390 = vpop.permute.xlu0 %1389
        %1391 = vrot.lane.b32.xlu0 %v804, 16
        %v1392 = vpop.permute.xlu0 %1391
        %1393 = vrot.lane.b32.xlu0 %v805, 16
        %v1394 = vpop.permute.xlu0 %1393
        %1395 = vrot.lane.b32.xlu0 %v806, 16
        %v1396 = vpop.permute.xlu0 %1395
        %1397 = vrot.lane.b32.xlu0 %v807, 16
        %v1398 = vpop.permute.xlu0 %1397
        %1399 = vrot.lane.b32.xlu0 %v808, 16
        %v1400 = vpop.permute.xlu0 %1399
        %1401 = vrot.lane.b32.xlu0 %v809, 16
        %v1402 = vpop.permute.xlu0 %1401
        %1403 = vrot.lane.b32.xlu0 %v810, 16
        %v1404 = vpop.permute.xlu0 %1403
        %1405 = vrot.lane.b32.xlu0 %v811, 16
        %v1406 = vpop.permute.xlu0 %1405
        %1407 = vrot.lane.b32.xlu0 %v812, 16
        %v1408 = vpop.permute.xlu0 %1407
        %1409 = vrot.lane.b32.xlu0 %v813, 16
        %v1410 = vpop.permute.xlu0 %1409
        %1411 = vrot.lane.b32.xlu0 %v814, 16
        %v1412 = vpop.permute.xlu0 %1411
        %1413 = vrot.lane.b32.xlu0 %v815, 16
        %v1414 = vpop.permute.xlu0 %1413
        %1415 = vrot.lane.b32.xlu0 %v816, 16
        %v1416 = vpop.permute.xlu0 %1415
        %1417 = vrot.lane.b32.xlu0 %v817, 16
        %v1418 = vpop.permute.xlu0 %1417
        %1419 = vrot.lane.b32.xlu0 %v818, 16
        %v1420 = vpop.permute.xlu0 %1419
        %1421 = vrot.lane.b32.xlu0 %v819, 16
        %v1422 = vpop.permute.xlu0 %1421
        %1423 = vrot.lane.b32.xlu0 %v820, 16
        %v1424 = vpop.permute.xlu0 %1423
        %1425 = vrot.lane.b32.xlu0 %v821, 16
        %v1426 = vpop.permute.xlu0 %1425
        %1427 = vrot.lane.b32.xlu0 %v822, 16
        %v1428 = vpop.permute.xlu0 %1427
        %1429 = vrot.lane.b32.xlu0 %v823, 16
        %v1430 = vpop.permute.xlu0 %1429
        %1431 = vrot.lane.b32.xlu0 %v824, 16
        %v1432 = vpop.permute.xlu0 %1431
        %1433 = vrot.lane.b32.xlu0 %v825, 16
        %v1434 = vpop.permute.xlu0 %1433
        %1499 = vrot.lane.b32.xlu0 %v826, 20
        %v1500 = vpop.permute.xlu0 %1499
        %1501 = vrot.lane.b32.xlu0 %v827, 20
        %v1502 = vpop.permute.xlu0 %1501
        %1503 = vrot.lane.b32.xlu0 %v828, 20
        %v1504 = vpop.permute.xlu0 %1503
        %1505 = vrot.lane.b32.xlu0 %v829, 20
        %v1506 = vpop.permute.xlu0 %1505
        %1507 = vrot.lane.b32.xlu0 %v830, 20
        %v1508 = vpop.permute.xlu0 %1507
        %1509 = vrot.lane.b32.xlu0 %v831, 20
        %v1510 = vpop.permute.xlu0 %1509
        %1511 = vrot.lane.b32.xlu0 %v832, 20
        %v1512 = vpop.permute.xlu0 %1511
        %1513 = vrot.lane.b32.xlu0 %v833, 20
        %v1514 = vpop.permute.xlu0 %1513
        %1515 = vrot.lane.b32.xlu0 %v834, 20
        %v1516 = vpop.permute.xlu0 %1515
        %1517 = vrot.lane.b32.xlu0 %v835, 20
        %v1518 = vpop.permute.xlu0 %1517
        %1519 = vrot.lane.b32.xlu0 %v836, 20
        %v1520 = vpop.permute.xlu0 %1519
        %1521 = vrot.lane.b32.xlu0 %v837, 20
        %v1522 = vpop.permute.xlu0 %1521
        %1523 = vrot.lane.b32.xlu0 %v838, 20
        %v1524 = vpop.permute.xlu0 %1523
        %1525 = vrot.lane.b32.xlu0 %v839, 20
        %v1526 = vpop.permute.xlu0 %1525
        %1527 = vrot.lane.b32.xlu0 %v840, 20
        %v1528 = vpop.permute.xlu0 %1527
        %1529 = vrot.lane.b32.xlu0 %v841, 20
        %v1530 = vpop.permute.xlu0 %1529
        %1531 = vrot.lane.b32.xlu0 %v842, 20
        %v1532 = vpop.permute.xlu0 %1531
        %1533 = vrot.lane.b32.xlu0 %v843, 20
        %v1534 = vpop.permute.xlu0 %1533
        %1535 = vrot.lane.b32.xlu0 %v844, 20
        %v1536 = vpop.permute.xlu0 %1535
        %1537 = vrot.lane.b32.xlu0 %v845, 20
        %v1538 = vpop.permute.xlu0 %1537
        %1539 = vrot.lane.b32.xlu0 %v846, 20
        %v1540 = vpop.permute.xlu0 %1539
        %1541 = vrot.lane.b32.xlu0 %v847, 20
        %v1542 = vpop.permute.xlu0 %1541
        %1543 = vrot.lane.b32.xlu0 %v848, 20
        %v1544 = vpop.permute.xlu0 %1543
        %1545 = vrot.lane.b32.xlu0 %v849, 20
        %v1546 = vpop.permute.xlu0 %1545
        %1547 = vrot.lane.b32.xlu0 %v850, 20
        %v1548 = vpop.permute.xlu0 %1547
        %1549 = vrot.lane.b32.xlu0 %v851, 20
        %v1550 = vpop.permute.xlu0 %1549
        %1551 = vrot.lane.b32.xlu0 %v852, 20
        %v1552 = vpop.permute.xlu0 %1551
        %1553 = vrot.lane.b32.xlu0 %v853, 20
        %v1554 = vpop.permute.xlu0 %1553
        %1555 = vrot.lane.b32.xlu0 %v854, 20
        %v1556 = vpop.permute.xlu0 %1555
        %1557 = vrot.lane.b32.xlu0 %v855, 20
        %v1558 = vpop.permute.xlu0 %1557
        %1559 = vrot.lane.b32.xlu0 %v856, 20
        %v1560 = vpop.permute.xlu0 %1559
        %1561 = vrot.lane.b32.xlu0 %v857, 20
        %v1562 = vpop.permute.xlu0 %1561
        %1627 = vrot.lane.b32.xlu0 %v859, 24
        %v1628 = vpop.permute.xlu0 %1627
        %1629 = vrot.lane.b32.xlu0 %v860, 24
        %v1630 = vpop.permute.xlu0 %1629
        %1631 = vrot.lane.b32.xlu0 %v861, 24
        %v1632 = vpop.permute.xlu0 %1631
        %1633 = vrot.lane.b32.xlu0 %v862, 24
        %v1634 = vpop.permute.xlu0 %1633
        %1635 = vrot.lane.b32.xlu0 %v863, 24
        %v1636 = vpop.permute.xlu0 %1635
        %1637 = vrot.lane.b32.xlu0 %v864, 24
        %v1638 = vpop.permute.xlu0 %1637
        %1639 = vrot.lane.b32.xlu0 %v865, 24
        %v1640 = vpop.permute.xlu0 %1639
        %1641 = vrot.lane.b32.xlu0 %v866, 24
        %v1642 = vpop.permute.xlu0 %1641
        %1643 = vrot.lane.b32.xlu0 %v867, 24
        %v1644 = vpop.permute.xlu0 %1643
        %1645 = vrot.lane.b32.xlu0 %v868, 24
        %v1646 = vpop.permute.xlu0 %1645
        %1647 = vrot.lane.b32.xlu0 %v869, 24
        %v1648 = vpop.permute.xlu0 %1647
        %1649 = vrot.lane.b32.xlu0 %v870, 24
        %v1650 = vpop.permute.xlu0 %1649
        %1651 = vrot.lane.b32.xlu0 %v871, 24
        %v1652 = vpop.permute.xlu0 %1651
        %1653 = vrot.lane.b32.xlu0 %v872, 24
        %v1654 = vpop.permute.xlu0 %1653
        %1655 = vrot.lane.b32.xlu0 %v873, 24
        %v1656 = vpop.permute.xlu0 %1655
        %1657 = vrot.lane.b32.xlu0 %v874, 24
        %v1658 = vpop.permute.xlu0 %1657
        %1659 = vrot.lane.b32.xlu0 %v875, 24
        %v1660 = vpop.permute.xlu0 %1659
        %1661 = vrot.lane.b32.xlu0 %v876, 24
        %v1662 = vpop.permute.xlu0 %1661
        %1663 = vrot.lane.b32.xlu0 %v877, 24
        %v1664 = vpop.permute.xlu0 %1663
        %1665 = vrot.lane.b32.xlu0 %v878, 24
        %v1666 = vpop.permute.xlu0 %1665
        %1667 = vrot.lane.b32.xlu0 %v879, 24
        %v1668 = vpop.permute.xlu0 %1667
        %1669 = vrot.lane.b32.xlu0 %v880, 24
        %v1670 = vpop.permute.xlu0 %1669
        %1671 = vrot.lane.b32.xlu0 %v881, 24
        %v1672 = vpop.permute.xlu0 %1671
        %1673 = vrot.lane.b32.xlu0 %v882, 24
        %v1674 = vpop.permute.xlu0 %1673
        %1675 = vrot.lane.b32.xlu0 %v883, 24
        %v1676 = vpop.permute.xlu0 %1675
        %1677 = vrot.lane.b32.xlu0 %v884, 24
        %v1678 = vpop.permute.xlu0 %1677
        %1679 = vrot.lane.b32.xlu0 %v885, 24
        %v1680 = vpop.permute.xlu0 %1679
        %1681 = vrot.lane.b32.xlu0 %v886, 24
        %v1682 = vpop.permute.xlu0 %1681
        %1683 = vrot.lane.b32.xlu0 %v887, 24
        %v1684 = vpop.permute.xlu0 %1683
        %1685 = vrot.lane.b32.xlu0 %v888, 24
        %v1686 = vpop.permute.xlu0 %1685
        %1687 = vrot.lane.b32.xlu0 %v889, 24
        %v1688 = vpop.permute.xlu0 %1687
        %1689 = vrot.lane.b32.xlu0 %v890, 24
        %v1690 = vpop.permute.xlu0 %1689
        %1755 = vrot.lane.b32.xlu0 %v891, 28
        %v1756 = vpop.permute.xlu0 %1755
        %1757 = vrot.lane.b32.xlu0 %v892, 28
        %v1758 = vpop.permute.xlu0 %1757
        %1759 = vrot.lane.b32.xlu0 %v893, 28
        %v1760 = vpop.permute.xlu0 %1759
        %1761 = vrot.lane.b32.xlu0 %v894, 28
        %v1762 = vpop.permute.xlu0 %1761
        %1763 = vrot.lane.b32.xlu0 %v895, 28
        %v1764 = vpop.permute.xlu0 %1763
        %1765 = vrot.lane.b32.xlu0 %v896, 28
        %v1766 = vpop.permute.xlu0 %1765
        %1767 = vrot.lane.b32.xlu0 %v897, 28
        %v1768 = vpop.permute.xlu0 %1767
        %1769 = vrot.lane.b32.xlu0 %v898, 28
        %v1770 = vpop.permute.xlu0 %1769
        %1771 = vrot.lane.b32.xlu0 %v899, 28
        %v1772 = vpop.permute.xlu0 %1771
        %1773 = vrot.lane.b32.xlu0 %v900, 28
        %v1774 = vpop.permute.xlu0 %1773
        %1775 = vrot.lane.b32.xlu0 %v901, 28
        %v1776 = vpop.permute.xlu0 %1775
        %1777 = vrot.lane.b32.xlu0 %v902, 28
        %v1778 = vpop.permute.xlu0 %1777
        %1779 = vrot.lane.b32.xlu0 %v903, 28
        %v1780 = vpop.permute.xlu0 %1779
        %1781 = vrot.lane.b32.xlu0 %v904, 28
        %v1782 = vpop.permute.xlu0 %1781
        %1783 = vrot.lane.b32.xlu0 %v905, 28
        %v1784 = vpop.permute.xlu0 %1783
        %1785 = vrot.lane.b32.xlu0 %v906, 28
        %v1786 = vpop.permute.xlu0 %1785
        %1787 = vrot.lane.b32.xlu0 %v907, 28
        %v1788 = vpop.permute.xlu0 %1787
        %1789 = vrot.lane.b32.xlu0 %v908, 28
        %v1790 = vpop.permute.xlu0 %1789
        %1791 = vrot.lane.b32.xlu0 %v909, 28
        %v1792 = vpop.permute.xlu0 %1791
        %1793 = vrot.lane.b32.xlu0 %v910, 28
        %v1794 = vpop.permute.xlu0 %1793
        %1795 = vrot.lane.b32.xlu0 %v911, 28
        %v1796 = vpop.permute.xlu0 %1795
        %1797 = vrot.lane.b32.xlu0 %v912, 28
        %v1798 = vpop.permute.xlu0 %1797
        %1799 = vrot.lane.b32.xlu0 %v913, 28
        %v1800 = vpop.permute.xlu0 %1799
        %1801 = vrot.lane.b32.xlu0 %v914, 28
        %v1802 = vpop.permute.xlu0 %1801
        %1803 = vrot.lane.b32.xlu0 %v915, 28
        %v1804 = vpop.permute.xlu0 %1803
        %1805 = vrot.lane.b32.xlu0 %v916, 28
        %v1806 = vpop.permute.xlu0 %1805
        %1807 = vrot.lane.b32.xlu0 %v917, 28
        %v1808 = vpop.permute.xlu0 %1807
        %1809 = vrot.lane.b32.xlu0 %v918, 28
        %v1810 = vpop.permute.xlu0 %1809
        %1811 = vrot.lane.b32.xlu0 %v919, 28
        %v1812 = vpop.permute.xlu0 %1811
        %1813 = vrot.lane.b32.xlu0 %v920, 28
        %v1814 = vpop.permute.xlu0 %1813
        %1815 = vrot.lane.b32.xlu0 %v921, 28
        %v1816 = vpop.permute.xlu0 %1815
        %1817 = vrot.lane.b32.xlu0 %v922, 28
        %v1818 = vpop.permute.xlu0 %1817
        %1883 = vrot.lane.b32.xlu0 %v923, 32
        %v1884 = vpop.permute.xlu0 %1883
        %1885 = vrot.lane.b32.xlu0 %v924, 32
        %v1886 = vpop.permute.xlu0 %1885
        %1887 = vrot.lane.b32.xlu0 %v925, 32
        %v1888 = vpop.permute.xlu0 %1887
        %1889 = vrot.lane.b32.xlu0 %v926, 32
        %v1890 = vpop.permute.xlu0 %1889
        %1891 = vrot.lane.b32.xlu0 %v927, 32
        %v1892 = vpop.permute.xlu0 %1891
        %1893 = vrot.lane.b32.xlu0 %v928, 32
        %v1894 = vpop.permute.xlu0 %1893
        %1895 = vrot.lane.b32.xlu0 %v929, 32
        %v1896 = vpop.permute.xlu0 %1895
        %1897 = vrot.lane.b32.xlu0 %v930, 32
        %v1898 = vpop.permute.xlu0 %1897
        %1899 = vrot.lane.b32.xlu0 %v931, 32
        %v1900 = vpop.permute.xlu0 %1899
        %1901 = vrot.lane.b32.xlu0 %v932, 32
        %v1902 = vpop.permute.xlu0 %1901
        %1903 = vrot.lane.b32.xlu0 %v933, 32
        %v1904 = vpop.permute.xlu0 %1903
        %1905 = vrot.lane.b32.xlu0 %v934, 32
        %v1906 = vpop.permute.xlu0 %1905
        %1907 = vrot.lane.b32.xlu0 %v935, 32
        %v1908 = vpop.permute.xlu0 %1907
        %1909 = vrot.lane.b32.xlu0 %v936, 32
        %v1910 = vpop.permute.xlu0 %1909
        %1911 = vrot.lane.b32.xlu0 %v937, 32
        %v1912 = vpop.permute.xlu0 %1911
        %1913 = vrot.lane.b32.xlu0 %v938, 32
        %v1914 = vpop.permute.xlu0 %1913
        %1915 = vrot.lane.b32.xlu0 %v939, 32
        %v1916 = vpop.permute.xlu0 %1915
        %1917 = vrot.lane.b32.xlu0 %v940, 32
        %v1918 = vpop.permute.xlu0 %1917
        %1919 = vrot.lane.b32.xlu0 %v941, 32
        %v1920 = vpop.permute.xlu0 %1919
        %1921 = vrot.lane.b32.xlu0 %v942, 32
        %v1922 = vpop.permute.xlu0 %1921
        %1923 = vrot.lane.b32.xlu0 %v943, 32
        %v1924 = vpop.permute.xlu0 %1923
        %1925 = vrot.lane.b32.xlu0 %v944, 32
        %v1926 = vpop.permute.xlu0 %1925
        %1927 = vrot.lane.b32.xlu0 %v945, 32
        %v1928 = vpop.permute.xlu0 %1927
        %1929 = vrot.lane.b32.xlu0 %v946, 32
        %v1930 = vpop.permute.xlu0 %1929
        %1931 = vrot.lane.b32.xlu0 %v947, 32
        %v1932 = vpop.permute.xlu0 %1931
        %1933 = vrot.lane.b32.xlu0 %v948, 32
        %v1934 = vpop.permute.xlu0 %1933
        %1935 = vrot.lane.b32.xlu0 %v949, 32
        %v1936 = vpop.permute.xlu0 %1935
        %1937 = vrot.lane.b32.xlu0 %v950, 32
        %v1938 = vpop.permute.xlu0 %1937
        %1939 = vrot.lane.b32.xlu0 %v951, 32
        %v1940 = vpop.permute.xlu0 %1939
        %1941 = vrot.lane.b32.xlu0 %v952, 32
        %v1942 = vpop.permute.xlu0 %1941
        %1943 = vrot.lane.b32.xlu0 %v953, 32
        %v1944 = vpop.permute.xlu0 %1943
        %1945 = vrot.lane.b32.xlu0 %v954, 32
        %v1946 = vpop.permute.xlu0 %1945
        %vm1979 = vcmask 31744
        %v1980 = vsel %vm1979, %v665, %v988
        %v1981 = vsel %vm1979, %v666, %v990
        %v1982 = vsel %vm1979, %v667, %v992
        %v1983 = vsel %vm1979, %v668, %v994
        %v1984 = vsel %vm1979, %v669, %v996
        %v1985 = vsel %vm1979, %v670, %v998
        %v1986 = vsel %vm1979, %v671, %v1000
        %v1987 = vsel %vm1979, %v672, %v1002
        %v1988 = vsel %vm1979, %v673, %v1004
        %v1989 = vsel %vm1979, %v674, %v1006
        %v1990 = vsel %vm1979, %v675, %v1008
        %v1991 = vsel %vm1979, %v676, %v1010
        %v1992 = vsel %vm1979, %v677, %v1012
        %v1993 = vsel %vm1979, %v678, %v1014
        %v1994 = vsel %vm1979, %v679, %v1016
        %v1995 = vsel %vm1979, %v680, %v1018
        %v1996 = vsel %vm1979, %v681, %v1020
        %v1997 = vsel %vm1979, %v682, %v1022
        %v1998 = vsel %vm1979, %v683, %v1024
        %v1999 = vsel %vm1979, %v684, %v1026
        %v2000 = vsel %vm1979, %v685, %v1028
        %v2001 = vsel %vm1979, %v686, %v1030
        %v2002 = vsel %vm1979, %v687, %v1032
        %v2003 = vsel %vm1979, %v688, %v1034
        %v2004 = vsel %vm1979, %v689, %v1036
        %v2005 = vsel %vm1979, %v690, %v1038
        %v2006 = vsel %vm1979, %v691, %v1040
        %v2007 = vsel %vm1979, %v692, %v1042
        %v2008 = vsel %vm1979, %v693, %v1044
        %v2009 = vsel %vm1979, %v694, %v1046
        %v2010 = vsel %vm1979, %v695, %v1048
        %v2011 = vsel %vm1979, %v696, %v1050
        %vm2012 = vcmask 64512
        %v2013 = vsel %vm2012, %v1980, %v1116
        %v2014 = vsel %vm2012, %v1981, %v1118
        %v2015 = vsel %vm2012, %v1982, %v1120
        %v2016 = vsel %vm2012, %v1983, %v1122
        %v2017 = vsel %vm2012, %v1984, %v1124
        %v2018 = vsel %vm2012, %v1985, %v1126
        %v2019 = vsel %vm2012, %v1986, %v1128
        %v2020 = vsel %vm2012, %v1987, %v1130
        %v2021 = vsel %vm2012, %v1988, %v1132
        %v2022 = vsel %vm2012, %v1989, %v1134
        %v2023 = vsel %vm2012, %v1990, %v1136
        %v2024 = vsel %vm2012, %v1991, %v1138
        %v2025 = vsel %vm2012, %v1992, %v1140
        %v2026 = vsel %vm2012, %v1993, %v1142
        %v2027 = vsel %vm2012, %v1994, %v1144
        %v2028 = vsel %vm2012, %v1995, %v1146
        %v2029 = vsel %vm2012, %v1996, %v1148
        %v2030 = vsel %vm2012, %v1997, %v1150
        %v2031 = vsel %vm2012, %v1998, %v1152
        %v2032 = vsel %vm2012, %v1999, %v1154
        %v2033 = vsel %vm2012, %v2000, %v1156
        %v2034 = vsel %vm2012, %v2001, %v1158
        %v2035 = vsel %vm2012, %v2002, %v1160
        %v2036 = vsel %vm2012, %v2003, %v1162
        %v2037 = vsel %vm2012, %v2004, %v1164
        %v2038 = vsel %vm2012, %v2005, %v1166
        %v2039 = vsel %vm2012, %v2006, %v1168
        %v2040 = vsel %vm2012, %v2007, %v1170
        %v2041 = vsel %vm2012, %v2008, %v1172
        %v2042 = vsel %vm2012, %v2009, %v1174
        %v2043 = vsel %vm2012, %v2010, %v1176
        %v2044 = vsel %vm2012, %v2011, %v1178
        %vm2045 = vcmask 97280
        %v2046 = vsel %vm2045, %v2013, %v1244
        %v2047 = vsel %vm2045, %v2014, %v1246
        %v2048 = vsel %vm2045, %v2015, %v1248
        %v2049 = vsel %vm2045, %v2016, %v1250
        %v2050 = vsel %vm2045, %v2017, %v1252
        %v2051 = vsel %vm2045, %v2018, %v1254
        %v2052 = vsel %vm2045, %v2019, %v1256
        %v2053 = vsel %vm2045, %v2020, %v1258
        %v2054 = vsel %vm2045, %v2021, %v1260
        %v2055 = vsel %vm2045, %v2022, %v1262
        %v2056 = vsel %vm2045, %v2023, %v1264
        %v2057 = vsel %vm2045, %v2024, %v1266
        %v2058 = vsel %vm2045, %v2025, %v1268
        %v2059 = vsel %vm2045, %v2026, %v1270
        %v2060 = vsel %vm2045, %v2027, %v1272
        %v2061 = vsel %vm2045, %v2028, %v1274
        %v2062 = vsel %vm2045, %v2029, %v1276
        %v2063 = vsel %vm2045, %v2030, %v1278
        %v2064 = vsel %vm2045, %v2031, %v1280
        %v2065 = vsel %vm2045, %v2032, %v1282
        %v2066 = vsel %vm2045, %v2033, %v1284
        %v2067 = vsel %vm2045, %v2034, %v1286
        %v2068 = vsel %vm2045, %v2035, %v1288
        %v2069 = vsel %vm2045, %v2036, %v1290
        %v2070 = vsel %vm2045, %v2037, %v1292
        %v2071 = vsel %vm2045, %v2038, %v1294
        %v2072 = vsel %vm2045, %v2039, %v1296
        %v2073 = vsel %vm2045, %v2040, %v1298
        %v2074 = vsel %vm2045, %v2041, %v1300
        %v2075 = vsel %vm2045, %v2042, %v1302
        %v2076 = vsel %vm2045, %v2043, %v1304
        %v2077 = vsel %vm2045, %v2044, %v1306
        %vm2078 = vcmask 130048
        %v2079 = vsel %vm2078, %v2046, %v1372
        %v2080 = vsel %vm2078, %v2047, %v1374
        %v2081 = vsel %vm2078, %v2048, %v1376
        %v2082 = vsel %vm2078, %v2049, %v1378
        %v2083 = vsel %vm2078, %v2050, %v1380
        %v2084 = vsel %vm2078, %v2051, %v1382
        %v2085 = vsel %vm2078, %v2052, %v1384
        %v2086 = vsel %vm2078, %v2053, %v1386
        %v2087 = vsel %vm2078, %v2054, %v1388
        %v2088 = vsel %vm2078, %v2055, %v1390
        %v2089 = vsel %vm2078, %v2056, %v1392
        %v2090 = vsel %vm2078, %v2057, %v1394
        %v2091 = vsel %vm2078, %v2058, %v1396
        %v2092 = vsel %vm2078, %v2059, %v1398
        %v2093 = vsel %vm2078, %v2060, %v1400
        %v2094 = vsel %vm2078, %v2061, %v1402
        %v2095 = vsel %vm2078, %v2062, %v1404
        %v2096 = vsel %vm2078, %v2063, %v1406
        %v2097 = vsel %vm2078, %v2064, %v1408
        %v2098 = vsel %vm2078, %v2065, %v1410
        %v2099 = vsel %vm2078, %v2066, %v1412
        %v2100 = vsel %vm2078, %v2067, %v1414
        %v2101 = vsel %vm2078, %v2068, %v1416
        %v2102 = vsel %vm2078, %v2069, %v1418
        %v2103 = vsel %vm2078, %v2070, %v1420
        %v2104 = vsel %vm2078, %v2071, %v1422
        %v2105 = vsel %vm2078, %v2072, %v1424
        %v2106 = vsel %vm2078, %v2073, %v1426
        %v2107 = vsel %vm2078, %v2074, %v1428
        %v2108 = vsel %vm2078, %v2075, %v1430
        %v2109 = vsel %vm2078, %v2076, %v1432
        %v2110 = vsel %vm2078, %v2077, %v1434
        %vm2111 = vcmask 162816
        %v2112 = vsel %vm2111, %v2079, %v1500
        %v2113 = vsel %vm2111, %v2080, %v1502
        %v2114 = vsel %vm2111, %v2081, %v1504
        %v2115 = vsel %vm2111, %v2082, %v1506
        %v2116 = vsel %vm2111, %v2083, %v1508
        %v2117 = vsel %vm2111, %v2084, %v1510
        %v2118 = vsel %vm2111, %v2085, %v1512
        %v2119 = vsel %vm2111, %v2086, %v1514
        %v2120 = vsel %vm2111, %v2087, %v1516
        %v2121 = vsel %vm2111, %v2088, %v1518
        %v2122 = vsel %vm2111, %v2089, %v1520
        %v2123 = vsel %vm2111, %v2090, %v1522
        %v2124 = vsel %vm2111, %v2091, %v1524
        %v2125 = vsel %vm2111, %v2092, %v1526
        %v2126 = vsel %vm2111, %v2093, %v1528
        %v2127 = vsel %vm2111, %v2094, %v1530
        %v2128 = vsel %vm2111, %v2095, %v1532
        %v2129 = vsel %vm2111, %v2096, %v1534
        %v2130 = vsel %vm2111, %v2097, %v1536
        %v2131 = vsel %vm2111, %v2098, %v1538
        %v2132 = vsel %vm2111, %v2099, %v1540
        %v2133 = vsel %vm2111, %v2100, %v1542
        %v2134 = vsel %vm2111, %v2101, %v1544
        %v2135 = vsel %vm2111, %v2102, %v1546
        %v2136 = vsel %vm2111, %v2103, %v1548
        %v2137 = vsel %vm2111, %v2104, %v1550
        %v2138 = vsel %vm2111, %v2105, %v1552
        %v2139 = vsel %vm2111, %v2106, %v1554
        %v2140 = vsel %vm2111, %v2107, %v1556
        %v2141 = vsel %vm2111, %v2108, %v1558
        %v2142 = vsel %vm2111, %v2109, %v1560
        %v2143 = vsel %vm2111, %v2110, %v1562
        %vm2144 = vcmask 195584
        %v2145 = vsel %vm2144, %v2112, %v1628
        %v2146 = vsel %vm2144, %v2113, %v1630
        %v2147 = vsel %vm2144, %v2114, %v1632
        %v2148 = vsel %vm2144, %v2115, %v1634
        %v2149 = vsel %vm2144, %v2116, %v1636
        %v2150 = vsel %vm2144, %v2117, %v1638
        %v2151 = vsel %vm2144, %v2118, %v1640
        %v2152 = vsel %vm2144, %v2119, %v1642
        %v2153 = vsel %vm2144, %v2120, %v1644
        %v2154 = vsel %vm2144, %v2121, %v1646
        %v2155 = vsel %vm2144, %v2122, %v1648
        %v2156 = vsel %vm2144, %v2123, %v1650
        %v2157 = vsel %vm2144, %v2124, %v1652
        %v2158 = vsel %vm2144, %v2125, %v1654
        %v2159 = vsel %vm2144, %v2126, %v1656
        %v2160 = vsel %vm2144, %v2127, %v1658
        %v2161 = vsel %vm2144, %v2128, %v1660
        %v2162 = vsel %vm2144, %v2129, %v1662
        %v2163 = vsel %vm2144, %v2130, %v1664
        %v2164 = vsel %vm2144, %v2131, %v1666
        %v2165 = vsel %vm2144, %v2132, %v1668
        %v2166 = vsel %vm2144, %v2133, %v1670
        %v2167 = vsel %vm2144, %v2134, %v1672
        %v2168 = vsel %vm2144, %v2135, %v1674
        %v2169 = vsel %vm2144, %v2136, %v1676
        %v2170 = vsel %vm2144, %v2137, %v1678
        %v2171 = vsel %vm2144, %v2138, %v1680
        %v2172 = vsel %vm2144, %v2139, %v1682
        %v2173 = vsel %vm2144, %v2140, %v1684
        %v2174 = vsel %vm2144, %v2141, %v1686
        %v2175 = vsel %vm2144, %v2142, %v1688
        %v2176 = vsel %vm2144, %v2143, %v1690
        %vm2177 = vcmask 228352
        %v2178 = vsel %vm2177, %v2145, %v1756
        %v2179 = vsel %vm2177, %v2146, %v1758
        %v2180 = vsel %vm2177, %v2147, %v1760
        %v2181 = vsel %vm2177, %v2148, %v1762
        %v2182 = vsel %vm2177, %v2149, %v1764
        %v2183 = vsel %vm2177, %v2150, %v1766
        %v2184 = vsel %vm2177, %v2151, %v1768
        %v2185 = vsel %vm2177, %v2152, %v1770
        %v2186 = vsel %vm2177, %v2153, %v1772
        %v2187 = vsel %vm2177, %v2154, %v1774
        %v2188 = vsel %vm2177, %v2155, %v1776
        %v2189 = vsel %vm2177, %v2156, %v1778
        %v2190 = vsel %vm2177, %v2157, %v1780
        %v2191 = vsel %vm2177, %v2158, %v1782
        %v2192 = vsel %vm2177, %v2159, %v1784
        %v2193 = vsel %vm2177, %v2160, %v1786
        %v2194 = vsel %vm2177, %v2161, %v1788
        %v2195 = vsel %vm2177, %v2162, %v1790
        %v2196 = vsel %vm2177, %v2163, %v1792
        %v2197 = vsel %vm2177, %v2164, %v1794
        %v2198 = vsel %vm2177, %v2165, %v1796
        %v2199 = vsel %vm2177, %v2166, %v1798
        %v2200 = vsel %vm2177, %v2167, %v1800
        %v2201 = vsel %vm2177, %v2168, %v1802
        %v2202 = vsel %vm2177, %v2169, %v1804
        %v2203 = vsel %vm2177, %v2170, %v1806
        %v2204 = vsel %vm2177, %v2171, %v1808
        %v2205 = vsel %vm2177, %v2172, %v1810
        %v2206 = vsel %vm2177, %v2173, %v1812
        %v2207 = vsel %vm2177, %v2174, %v1814
        %v2208 = vsel %vm2177, %v2175, %v1816
        %v2209 = vsel %vm2177, %v2176, %v1818
        %vm2210 = vcmask 261120
        %v2211 = vsel %vm2210, %v2178, %v1884
        %v2212 = vsel %vm2210, %v2179, %v1886
        %v2213 = vsel %vm2210, %v2180, %v1888
        %v2214 = vsel %vm2210, %v2181, %v1890
        %v2215 = vsel %vm2210, %v2182, %v1892
        %v2216 = vsel %vm2210, %v2183, %v1894
        %v2217 = vsel %vm2210, %v2184, %v1896
        %v2218 = vsel %vm2210, %v2185, %v1898
        %v2219 = vsel %vm2210, %v2186, %v1900
        %v2220 = vsel %vm2210, %v2187, %v1902
        %v2221 = vsel %vm2210, %v2188, %v1904
        %v2222 = vsel %vm2210, %v2189, %v1906
        %v2223 = vsel %vm2210, %v2190, %v1908
        %v2224 = vsel %vm2210, %v2191, %v1910
        %v2225 = vsel %vm2210, %v2192, %v1912
        %v2226 = vsel %vm2210, %v2193, %v1914
        %v2227 = vsel %vm2210, %v2194, %v1916
        %v2228 = vsel %vm2210, %v2195, %v1918
        %v2229 = vsel %vm2210, %v2196, %v1920
        %v2230 = vsel %vm2210, %v2197, %v1922
        %v2231 = vsel %vm2210, %v2198, %v1924
        %v2232 = vsel %vm2210, %v2199, %v1926
        %v2233 = vsel %vm2210, %v2200, %v1928
        %v2234 = vsel %vm2210, %v2201, %v1930
        %v2235 = vsel %vm2210, %v2202, %v1932
        %v2236 = vsel %vm2210, %v2203, %v1934
        %v2237 = vsel %vm2210, %v2204, %v1936
        %v2238 = vsel %vm2210, %v2205, %v1938
        %v2239 = vsel %vm2210, %v2206, %v1940
        %v2240 = vsel %vm2210, %v2207, %v1942
        %v2241 = vsel %vm2210, %v2208, %v1944
        %v2242 = vsel %vm2210, %v2209, %v1946
        %v2243 = vpack.c.bf16 %v2212, %v2211
        %v2244 = vpack.c.bf16 %v2214, %v2213
        %v2245 = vpack.c.bf16 %v2216, %v2215
        %v2246 = vpack.c.bf16 %v2218, %v2217
        %v2247 = vpack.c.bf16 %v2220, %v2219
        %v2248 = vpack.c.bf16 %v2222, %v2221
        %v2249 = vpack.c.bf16 %v2224, %v2223
        %v2250 = vpack.c.bf16 %v2226, %v2225
        %v2251 = vpack.c.bf16 %v2228, %v2227
        %v2252 = vpack.c.bf16 %v2230, %v2229
        %v2253 = vpack.c.bf16 %v2232, %v2231
        %v2254 = vpack.c.bf16 %v2234, %v2233
        %v2255 = vpack.c.bf16 %v2236, %v2235
        %v2256 = vpack.c.bf16 %v2238, %v2237
        %v2257 = vpack.c.bf16 %v2240, %v2239
        %v2258 = vpack.c.bf16 %v2242, %v2241
        %v2259 = vld [vmem:[#allocation4] sm:$0xf]
        %v2260 = vld [vmem:[#allocation4 + $0x4] sm:$0xf]
        %v2261 = vld [vmem:[#allocation4 + $0x8] sm:$0xf]
        %v2262 = vld [vmem:[#allocation4 + $0xc] sm:$0xf]
        %v2263 = vld [vmem:[#allocation4 + $0x10] sm:$0x3]
        %v2269 = vunpack.c.l.b16 %v2259
        %v2270 = vunpack.c.l.b16 %v2260
        %v2271 = vunpack.c.l.b16 %v2261
        %v2272 = vunpack.c.l.b16 %v2262
        %v2273 = vunpack.c.l.b16 %v2263
        %v2274 = vpack.c.b16 %v2270, %v2269
        %v2275 = vpack.c.b16 %v2272, %v2271
        %v2276 = vpack.c.b16 %v2273, %v2273
        %vm2279 = vcmask 293888
        %v2281 = vsel %vm2279, %v2243, 0
        %v2284 = vsel %vm2279, %v2244, 0
        %v2287 = vsel %vm2279, %v2245, 0
        %v2290 = vsel %vm2279, %v2246, 0
        %v2293 = vsel %vm2279, %v2247, 0
        %v2296 = vsel %vm2279, %v2248, 0
        %v2299 = vsel %vm2279, %v2249, 0
        %v2302 = vsel %vm2279, %v2250, 0
        %v2305 = vsel %vm2279, %v2251, 0
        %v2308 = vsel %vm2279, %v2252, 0
        %v2311 = vsel %vm2279, %v2253, 0
        %v2314 = vsel %vm2279, %v2254, 0
        %v2317 = vsel %vm2279, %v2255, 0
        %v2320 = vsel %vm2279, %v2256, 0
        %v2323 = vsel %vm2279, %v2257, 0
        %v2326 = vsel %vm2279, %v2258, 0
        %vm2328 = vcmask 1041408
        %v2330 = vsel %vm2328, %v2276, 0
        %2332 = vmatpush.bf16.msra.mxu0 0
        %2333 = vmatpush.bf16.msra.mxu0 0
        %2334 = vmatpush.bf16.msra.mxu0 0
        %2335 = vmatpush.bf16.msra.mxu0 0
        %2336 = vmatpush.bf16.msra.mxu0 0
        %2337 = vmatpush.bf16.msra.mxu0 %v2330
        %2338 = vmatpush.bf16.msra.mxu0 %v2275
        %2339 = vmatpush.bf16.msra.mxu0 %v2274
        %2340 = vmatmul.bf16.gmra.mxu0 %v2281
        %v2341 = vpop.f32.mrf.mxu0
        %v2342 = vadd.f32 0.0, %v2341
        %v2343 = vpop.f32.mrf.mxu0
        %v2344 = vadd.f32 0.0, %v2343
        %2345 = vmatmul.bf16.gmra.mxu0 %v2284
        %v2346 = vpop.f32.mrf.mxu0
        %v2347 = vadd.f32 0.0, %v2346
        %v2348 = vpop.f32.mrf.mxu0
        %v2349 = vadd.f32 0.0, %v2348
        %2350 = vmatmul.bf16.gmra.mxu0 %v2287
        %v2351 = vpop.f32.mrf.mxu0
        %v2352 = vadd.f32 0.0, %v2351
        %v2353 = vpop.f32.mrf.mxu0
        %v2354 = vadd.f32 0.0, %v2353
        %2355 = vmatmul.bf16.gmra.mxu0 %v2290
        %v2356 = vpop.f32.mrf.mxu0
        %v2357 = vadd.f32 0.0, %v2356
        %v2358 = vpop.f32.mrf.mxu0
        %v2359 = vadd.f32 0.0, %v2358
        %2360 = vmatmul.bf16.gmra.mxu0 %v2293
        %v2361 = vpop.f32.mrf.mxu0
        %v2362 = vadd.f32 0.0, %v2361
        %v2363 = vpop.f32.mrf.mxu0
        %v2364 = vadd.f32 0.0, %v2363
        %2365 = vmatmul.bf16.gmra.mxu0 %v2296
        %v2366 = vpop.f32.mrf.mxu0
        %v2367 = vadd.f32 0.0, %v2366
        %v2368 = vpop.f32.mrf.mxu0
        %v2369 = vadd.f32 0.0, %v2368
        %2370 = vmatmul.bf16.gmra.mxu0 %v2299
        %v2371 = vpop.f32.mrf.mxu0
        %v2372 = vadd.f32 0.0, %v2371
        %v2373 = vpop.f32.mrf.mxu0
        %v2374 = vadd.f32 0.0, %v2373
        %2375 = vmatmul.bf16.gmra.mxu0 %v2302
        %v2376 = vpop.f32.mrf.mxu0
        %v2377 = vadd.f32 0.0, %v2376
        %v2378 = vpop.f32.mrf.mxu0
        %v2379 = vadd.f32 0.0, %v2378
        %2380 = vmatmul.bf16.gmra.mxu0 %v2305
        %v2381 = vpop.f32.mrf.mxu0
        %v2382 = vadd.f32 0.0, %v2381
        %v2383 = vpop.f32.mrf.mxu0
        %v2384 = vadd.f32 0.0, %v2383
        %2385 = vmatmul.bf16.gmra.mxu0 %v2308
        %v2386 = vpop.f32.mrf.mxu0
        %v2387 = vadd.f32 0.0, %v2386
        %v2388 = vpop.f32.mrf.mxu0
        %v2389 = vadd.f32 0.0, %v2388
        %2390 = vmatmul.bf16.gmra.mxu0 %v2311
        %v2391 = vpop.f32.mrf.mxu0
        %v2392 = vadd.f32 0.0, %v2391
        %v2393 = vpop.f32.mrf.mxu0
        %v2394 = vadd.f32 0.0, %v2393
        %2395 = vmatmul.bf16.gmra.mxu0 %v2314
        %v2396 = vpop.f32.mrf.mxu0
        %v2397 = vadd.f32 0.0, %v2396
        %v2398 = vpop.f32.mrf.mxu0
        %v2399 = vadd.f32 0.0, %v2398
        %2400 = vmatmul.bf16.gmra.mxu0 %v2317
        %v2401 = vpop.f32.mrf.mxu0
        %v2402 = vadd.f32 0.0, %v2401
        %v2403 = vpop.f32.mrf.mxu0
        %v2404 = vadd.f32 0.0, %v2403
        %2405 = vmatmul.bf16.gmra.mxu0 %v2320
        %v2406 = vpop.f32.mrf.mxu0
        %v2407 = vadd.f32 0.0, %v2406
        %v2408 = vpop.f32.mrf.mxu0
        %v2409 = vadd.f32 0.0, %v2408
        %2410 = vmatmul.bf16.gmra.mxu0 %v2323
        %v2411 = vpop.f32.mrf.mxu0
        %v2412 = vadd.f32 0.0, %v2411
        %v2413 = vpop.f32.mrf.mxu0
        %v2414 = vadd.f32 0.0, %v2413
        %2415 = vmatmul.bf16.gmra.mxu0 %v2326
        %v2416 = vpop.f32.mrf.mxu0
        %v2417 = vadd.f32 0.0, %v2416
        %v2418 = vpop.f32.mrf.mxu0
        %v2419 = vadd.f32 0.0, %v2418
        %2420 = vdwg.mxu0
        %v2421 = vld [vmem:[#allocation7] sm:$0x1]
        %v2423 = vperm.slane %v2421, 0
        %v2425 = vmul.f32 %v2342, %v2423
        %v2426 = vmul.f32 %v2344, %v2423
        %v2427 = vmul.f32 %v2347, %v2423
        %v2428 = vmul.f32 %v2349, %v2423
        %v2429 = vmul.f32 %v2352, %v2423
        %v2430 = vmul.f32 %v2354, %v2423
        %v2431 = vmul.f32 %v2357, %v2423
        %v2432 = vmul.f32 %v2359, %v2423
        %v2433 = vmul.f32 %v2362, %v2423
        %v2434 = vmul.f32 %v2364, %v2423
        %v2435 = vmul.f32 %v2367, %v2423
        %v2436 = vmul.f32 %v2369, %v2423
        %v2437 = vmul.f32 %v2372, %v2423
        %v2438 = vmul.f32 %v2374, %v2423
        %v2439 = vmul.f32 %v2377, %v2423
        %v2440 = vmul.f32 %v2379, %v2423
        %v2441 = vmul.f32 %v2382, %v2423
        %v2442 = vmul.f32 %v2384, %v2423
        %v2443 = vmul.f32 %v2387, %v2423
        %v2444 = vmul.f32 %v2389, %v2423
        %v2445 = vmul.f32 %v2392, %v2423
        %v2446 = vmul.f32 %v2394, %v2423
        %v2447 = vmul.f32 %v2397, %v2423
        %v2448 = vmul.f32 %v2399, %v2423
        %v2449 = vmul.f32 %v2402, %v2423
        %v2450 = vmul.f32 %v2404, %v2423
        %v2451 = vmul.f32 %v2407, %v2423
        %v2452 = vmul.f32 %v2409, %v2423
        %v2453 = vmul.f32 %v2412, %v2423
        %v2454 = vmul.f32 %v2414, %v2423
        %v2455 = vmul.f32 %v2417, %v2423
        %v2456 = vmul.f32 %v2419, %v2423
        %v2457 = vld [vmem:[#allocation9] sm:$0x1]
        %v2459 = vperm.slane %v2457, 0
        %v2461 = vadd.f32 %v2425, %v2459
        %v2462 = vadd.f32 %v2426, %v2459
        %v2463 = vadd.f32 %v2427, %v2459
        %v2464 = vadd.f32 %v2428, %v2459
        %v2465 = vadd.f32 %v2429, %v2459
        %v2466 = vadd.f32 %v2430, %v2459
        %v2467 = vadd.f32 %v2431, %v2459
        %v2468 = vadd.f32 %v2432, %v2459
        %v2469 = vadd.f32 %v2433, %v2459
        %v2470 = vadd.f32 %v2434, %v2459
        %v2471 = vadd.f32 %v2435, %v2459
        %v2472 = vadd.f32 %v2436, %v2459
        %v2473 = vadd.f32 %v2437, %v2459
        %v2474 = vadd.f32 %v2438, %v2459
        %v2475 = vadd.f32 %v2439, %v2459
        %v2476 = vadd.f32 %v2440, %v2459
        %v2477 = vadd.f32 %v2441, %v2459
        %v2478 = vadd.f32 %v2442, %v2459
        %v2479 = vadd.f32 %v2443, %v2459
        %v2480 = vadd.f32 %v2444, %v2459
        %v2481 = vadd.f32 %v2445, %v2459
        %v2482 = vadd.f32 %v2446, %v2459
        %v2483 = vadd.f32 %v2447, %v2459
        %v2484 = vadd.f32 %v2448, %v2459
        %v2485 = vadd.f32 %v2449, %v2459
        %v2486 = vadd.f32 %v2450, %v2459
        %v2487 = vadd.f32 %v2451, %v2459
        %v2488 = vadd.f32 %v2452, %v2459
        %v2489 = vadd.f32 %v2453, %v2459
        %v2490 = vadd.f32 %v2454, %v2459
        %v2491 = vadd.f32 %v2455, %v2459
        %v2492 = vadd.f32 %v2456, %v2459
        %v2493 = vmax.f32 %v2461, 0.0
        %v2494 = vmax.f32 %v2462, 0.0
        %v2495 = vmax.f32 %v2463, 0.0
        %v2496 = vmax.f32 %v2464, 0.0
        %v2497 = vmax.f32 %v2465, 0.0
        %v2498 = vmax.f32 %v2466, 0.0
        %v2499 = vmax.f32 %v2467, 0.0
        %v2500 = vmax.f32 %v2468, 0.0
        %v2501 = vmax.f32 %v2469, 0.0
        %v2502 = vmax.f32 %v2470, 0.0
        %v2503 = vmax.f32 %v2471, 0.0
        %v2504 = vmax.f32 %v2472, 0.0
        %v2505 = vmax.f32 %v2473, 0.0
        %v2506 = vmax.f32 %v2474, 0.0
        %v2507 = vmax.f32 %v2475, 0.0
        %v2508 = vmax.f32 %v2476, 0.0
        %v2509 = vmax.f32 %v2477, 0.0
        %v2510 = vmax.f32 %v2478, 0.0
        %v2511 = vmax.f32 %v2479, 0.0
        %v2512 = vmax.f32 %v2480, 0.0
        %v2513 = vmax.f32 %v2481, 0.0
        %v2514 = vmax.f32 %v2482, 0.0
        %v2515 = vmax.f32 %v2483, 0.0
        %v2516 = vmax.f32 %v2484, 0.0
        %v2517 = vmax.f32 %v2485, 0.0
        %v2518 = vmax.f32 %v2486, 0.0
        %v2519 = vmax.f32 %v2487, 0.0
        %v2520 = vmax.f32 %v2488, 0.0
        %v2521 = vmax.f32 %v2489, 0.0
        %v2522 = vmax.f32 %v2490, 0.0
        %v2523 = vmax.f32 %v2491, 0.0
        %v2524 = vmax.f32 %v2492, 0.0
        %v2525 = vmax.f32 %v2493, %v2495
        %v2526 = vmax.f32 %v2494, %v2496
        %v2527 = vmax.f32 %v2497, %v2499
        %v2528 = vmax.f32 %v2498, %v2500
        %v2529 = vmax.f32 %v2501, %v2503
        %v2530 = vmax.f32 %v2502, %v2504
        %v2531 = vmax.f32 %v2505, %v2507
        %v2532 = vmax.f32 %v2506, %v2508
        %v2533 = vmax.f32 %v2509, %v2511
        %v2534 = vmax.f32 %v2510, %v2512
        %v2535 = vmax.f32 %v2513, %v2515
        %v2536 = vmax.f32 %v2514, %v2516
        %v2537 = vmax.f32 %v2517, %v2519
        %v2538 = vmax.f32 %v2518, %v2520
        %v2539 = vmax.f32 %v2521, %v2523
        %v2540 = vmax.f32 %v2522, %v2524
        %v2557 = vrot.slane %v2525, 2
        %v2558 = vrot.slane %v2525, 4
        %v2559 = vrot.slane %v2525, 6
        %v2560 = vrot.slane %v2526, 2
        %v2561 = vrot.slane %v2526, 4
        %v2562 = vrot.slane %v2526, 6
        %v2563 = vrot.slane %v2527, 2
        %v2564 = vrot.slane %v2527, 4
        %v2565 = vrot.slane %v2527, 6
        %v2566 = vrot.slane %v2528, 2
        %v2567 = vrot.slane %v2528, 4
        %v2568 = vrot.slane %v2528, 6
        %v2569 = vrot.slane %v2529, 2
        %v2570 = vrot.slane %v2529, 4
        %v2571 = vrot.slane %v2529, 6
        %v2572 = vrot.slane %v2530, 2
        %v2573 = vrot.slane %v2530, 4
        %v2574 = vrot.slane %v2530, 6
        %v2575 = vrot.slane %v2531, 2
        %v2576 = vrot.slane %v2531, 4
        %v2577 = vrot.slane %v2531, 6
        %v2578 = vrot.slane %v2532, 2
        %v2579 = vrot.slane %v2532, 4
        %v2580 = vrot.slane %v2532, 6
        %v2581 = vrot.slane %v2533, 2
        %v2582 = vrot.slane %v2533, 4
        %v2583 = vrot.slane %v2533, 6
        %v2584 = vrot.slane %v2534, 2
        %v2585 = vrot.slane %v2534, 4
        %v2586 = vrot.slane %v2534, 6
        %v2587 = vrot.slane %v2535, 2
        %v2588 = vrot.slane %v2535, 4
        %v2589 = vrot.slane %v2535, 6
        %v2590 = vrot.slane %v2536, 2
        %v2591 = vrot.slane %v2536, 4
        %v2592 = vrot.slane %v2536, 6
        %v2593 = vrot.slane %v2537, 2
        %v2594 = vrot.slane %v2537, 4
        %v2595 = vrot.slane %v2537, 6
        %v2596 = vrot.slane %v2538, 2
        %v2597 = vrot.slane %v2538, 4
        %v2598 = vrot.slane %v2538, 6
        %v2599 = vrot.slane %v2539, 2
        %v2600 = vrot.slane %v2539, 4
        %v2601 = vrot.slane %v2539, 6
        %v2602 = vrot.slane %v2540, 2
        %v2603 = vrot.slane %v2540, 4
        %v2604 = vrot.slane %v2540, 6
        %v2653 = vrot.slane %v2525, 7
        %v2654 = vrot.slane %v2653, 2
        %v2655 = vrot.slane %v2557, 7
        %v2656 = vrot.slane %v2655, 2
        %v2657 = vrot.slane %v2558, 7
        %v2658 = vrot.slane %v2657, 2
        %v2659 = vrot.slane %v2559, 7
        %v2660 = vrot.slane %v2659, 2
        %v2661 = vrot.slane %v2526, 7
        %v2662 = vrot.slane %v2661, 2
        %v2663 = vrot.slane %v2560, 7
        %v2664 = vrot.slane %v2663, 2
        %v2665 = vrot.slane %v2561, 7
        %v2666 = vrot.slane %v2665, 2
        %v2667 = vrot.slane %v2562, 7
        %v2668 = vrot.slane %v2667, 2
        %v2669 = vrot.slane %v2527, 7
        %v2670 = vrot.slane %v2669, 2
        %v2671 = vrot.slane %v2563, 7
        %v2672 = vrot.slane %v2671, 2
        %v2673 = vrot.slane %v2564, 7
        %v2674 = vrot.slane %v2673, 2
        %v2675 = vrot.slane %v2565, 7
        %v2676 = vrot.slane %v2675, 2
        %v2677 = vrot.slane %v2528, 7
        %v2678 = vrot.slane %v2677, 2
        %v2679 = vrot.slane %v2566, 7
        %v2680 = vrot.slane %v2679, 2
        %v2681 = vrot.slane %v2567, 7
        %v2682 = vrot.slane %v2681, 2
        %v2683 = vrot.slane %v2568, 7
        %v2684 = vrot.slane %v2683, 2
        %v2685 = vrot.slane %v2529, 7
        %v2686 = vrot.slane %v2685, 2
        %v2687 = vrot.slane %v2569, 7
        %v2688 = vrot.slane %v2687, 2
        %v2689 = vrot.slane %v2570, 7
        %v2690 = vrot.slane %v2689, 2
        %v2691 = vrot.slane %v2571, 7
        %v2692 = vrot.slane %v2691, 2
        %v2693 = vrot.slane %v2530, 7
        %v2694 = vrot.slane %v2693, 2
        %v2695 = vrot.slane %v2572, 7
        %v2696 = vrot.slane %v2695, 2
        %v2697 = vrot.slane %v2573, 7
        %v2698 = vrot.slane %v2697, 2
        %v2699 = vrot.slane %v2574, 7
        %v2700 = vrot.slane %v2699, 2
        %v2701 = vrot.slane %v2531, 7
        %v2702 = vrot.slane %v2701, 2
        %v2703 = vrot.slane %v2575, 7
        %v2704 = vrot.slane %v2703, 2
        %v2705 = vrot.slane %v2576, 7
        %v2706 = vrot.slane %v2705, 2
        %v2707 = vrot.slane %v2577, 7
        %v2708 = vrot.slane %v2707, 2
        %v2709 = vrot.slane %v2532, 7
        %v2710 = vrot.slane %v2709, 2
        %v2711 = vrot.slane %v2578, 7
        %v2712 = vrot.slane %v2711, 2
        %v2713 = vrot.slane %v2579, 7
        %v2714 = vrot.slane %v2713, 2
        %v2715 = vrot.slane %v2580, 7
        %v2716 = vrot.slane %v2715, 2
        %v2717 = vrot.slane %v2533, 7
        %v2718 = vrot.slane %v2717, 2
        %v2719 = vrot.slane %v2581, 7
        %v2720 = vrot.slane %v2719, 2
        %v2721 = vrot.slane %v2582, 7
        %v2722 = vrot.slane %v2721, 2
        %v2723 = vrot.slane %v2583, 7
        %v2724 = vrot.slane %v2723, 2
        %v2725 = vrot.slane %v2534, 7
        %v2726 = vrot.slane %v2725, 2
        %v2727 = vrot.slane %v2584, 7
        %v2728 = vrot.slane %v2727, 2
        %v2729 = vrot.slane %v2585, 7
        %v2730 = vrot.slane %v2729, 2
        %v2731 = vrot.slane %v2586, 7
        %v2732 = vrot.slane %v2731, 2
        %v2733 = vrot.slane %v2535, 7
        %v2734 = vrot.slane %v2733, 2
        %v2735 = vrot.slane %v2587, 7
        %v2736 = vrot.slane %v2735, 2
        %v2737 = vrot.slane %v2588, 7
        %v2738 = vrot.slane %v2737, 2
        %v2739 = vrot.slane %v2589, 7
        %v2740 = vrot.slane %v2739, 2
        %v2741 = vrot.slane %v2536, 7
        %v2742 = vrot.slane %v2741, 2
        %v2743 = vrot.slane %v2590, 7
        %v2744 = vrot.slane %v2743, 2
        %v2745 = vrot.slane %v2591, 7
        %v2746 = vrot.slane %v2745, 2
        %v2747 = vrot.slane %v2592, 7
        %v2748 = vrot.slane %v2747, 2
        %v2749 = vrot.slane %v2537, 7
        %v2750 = vrot.slane %v2749, 2
        %v2751 = vrot.slane %v2593, 7
        %v2752 = vrot.slane %v2751, 2
        %v2753 = vrot.slane %v2594, 7
        %v2754 = vrot.slane %v2753, 2
        %v2755 = vrot.slane %v2595, 7
        %v2756 = vrot.slane %v2755, 2
        %v2757 = vrot.slane %v2538, 7
        %v2758 = vrot.slane %v2757, 2
        %v2759 = vrot.slane %v2596, 7
        %v2760 = vrot.slane %v2759, 2
        %v2761 = vrot.slane %v2597, 7
        %v2762 = vrot.slane %v2761, 2
        %v2763 = vrot.slane %v2598, 7
        %v2764 = vrot.slane %v2763, 2
        %v2765 = vrot.slane %v2539, 7
        %v2766 = vrot.slane %v2765, 2
        %v2767 = vrot.slane %v2599, 7
        %v2768 = vrot.slane %v2767, 2
        %v2769 = vrot.slane %v2600, 7
        %v2770 = vrot.slane %v2769, 2
        %v2771 = vrot.slane %v2601, 7
        %v2772 = vrot.slane %v2771, 2
        %v2773 = vrot.slane %v2540, 7
        %v2774 = vrot.slane %v2773, 2
        %v2775 = vrot.slane %v2602, 7
        %v2776 = vrot.slane %v2775, 2
        %v2777 = vrot.slane %v2603, 7
        %v2778 = vrot.slane %v2777, 2
        %v2779 = vrot.slane %v2604, 7
        %v2780 = vrot.slane %v2779, 2
        %v2845 = vmax.f32 %v2525, %v2654
        %v2846 = vmax.f32 %v2557, %v2656
        %v2847 = vmax.f32 %v2558, %v2658
        %v2848 = vmax.f32 %v2559, %v2660
        %v2849 = vmax.f32 %v2526, %v2662
        %v2850 = vmax.f32 %v2560, %v2664
        %v2851 = vmax.f32 %v2561, %v2666
        %v2852 = vmax.f32 %v2562, %v2668
        %v2853 = vmax.f32 %v2527, %v2670
        %v2854 = vmax.f32 %v2563, %v2672
        %v2855 = vmax.f32 %v2564, %v2674
        %v2856 = vmax.f32 %v2565, %v2676
        %v2857 = vmax.f32 %v2528, %v2678
        %v2858 = vmax.f32 %v2566, %v2680
        %v2859 = vmax.f32 %v2567, %v2682
        %v2860 = vmax.f32 %v2568, %v2684
        %v2861 = vmax.f32 %v2529, %v2686
        %v2862 = vmax.f32 %v2569, %v2688
        %v2863 = vmax.f32 %v2570, %v2690
        %v2864 = vmax.f32 %v2571, %v2692
        %v2865 = vmax.f32 %v2530, %v2694
        %v2866 = vmax.f32 %v2572, %v2696
        %v2867 = vmax.f32 %v2573, %v2698
        %v2868 = vmax.f32 %v2574, %v2700
        %v2869 = vmax.f32 %v2531, %v2702
        %v2870 = vmax.f32 %v2575, %v2704
        %v2871 = vmax.f32 %v2576, %v2706
        %v2872 = vmax.f32 %v2577, %v2708
        %v2873 = vmax.f32 %v2532, %v2710
        %v2874 = vmax.f32 %v2578, %v2712
        %v2875 = vmax.f32 %v2579, %v2714
        %v2876 = vmax.f32 %v2580, %v2716
        %v2877 = vmax.f32 %v2533, %v2718
        %v2878 = vmax.f32 %v2581, %v2720
        %v2879 = vmax.f32 %v2582, %v2722
        %v2880 = vmax.f32 %v2583, %v2724
        %v2881 = vmax.f32 %v2534, %v2726
        %v2882 = vmax.f32 %v2584, %v2728
        %v2883 = vmax.f32 %v2585, %v2730
        %v2884 = vmax.f32 %v2586, %v2732
        %v2885 = vmax.f32 %v2535, %v2734
        %v2886 = vmax.f32 %v2587, %v2736
        %v2887 = vmax.f32 %v2588, %v2738
        %v2888 = vmax.f32 %v2589, %v2740
        %v2889 = vmax.f32 %v2536, %v2742
        %v2890 = vmax.f32 %v2590, %v2744
        %v2891 = vmax.f32 %v2591, %v2746
        %v2892 = vmax.f32 %v2592, %v2748
        %v2893 = vmax.f32 %v2537, %v2750
        %v2894 = vmax.f32 %v2593, %v2752
        %v2895 = vmax.f32 %v2594, %v2754
        %v2896 = vmax.f32 %v2595, %v2756
        %v2897 = vmax.f32 %v2538, %v2758
        %v2898 = vmax.f32 %v2596, %v2760
        %v2899 = vmax.f32 %v2597, %v2762
        %v2900 = vmax.f32 %v2598, %v2764
        %v2901 = vmax.f32 %v2539, %v2766
        %v2902 = vmax.f32 %v2599, %v2768
        %v2903 = vmax.f32 %v2600, %v2770
        %v2904 = vmax.f32 %v2601, %v2772
        %v2905 = vmax.f32 %v2540, %v2774
        %v2906 = vmax.f32 %v2602, %v2776
        %v2907 = vmax.f32 %v2603, %v2778
        %v2908 = vmax.f32 %v2604, %v2780
        %vm2909 = vcmask 523264
        %2910 = vst.msk [vmem:[#allocation2] sm:$0xff] %vm2909, 0.0
        %2911 = vst.msk [vmem:[#allocation2 + $0x8] sm:$0xff] %vm2909, 0.0
        %s2912 = scalar_lea.vmem [#allocation2], 144
        %2913 = vst.msk [vmem:[%s2912] sm:$0xff] %vm2909, 0.0
        %2914 = vst.msk [vmem:[%s2912 + $0x8] sm:$0xff] %vm2909, 0.0
        %s2915 = scalar_lea.vmem [#allocation2], 16
        %vm2916 = vcmask 516096
        %2917 = vst.msk [vmem:[%s2915] sm:$0x1] %vm2916, 0.0
        %2918 = vst.msk [vmem:[%s2915 + $0x10] sm:$0x1] %vm2916, 0.0
        %2919 = vst.msk [vmem:[%s2915 + $0x20] sm:$0x1] %vm2916, 0.0
        %2920 = vst.msk [vmem:[%s2915 + $0x30] sm:$0x1] %vm2916, 0.0
        %2921 = vst.msk [vmem:[%s2915 + $0x40] sm:$0x1] %vm2916, 0.0
        %2922 = vst.msk [vmem:[%s2915 + $0x50] sm:$0x1] %vm2916, 0.0
        %2923 = vst.msk [vmem:[%s2915 + $0x60] sm:$0x1] %vm2916, 0.0
        %2924 = vst.msk [vmem:[%s2915 + $0x70] sm:$0x1] %vm2916, 0.0
        %2925 = vst.msk [vmem:[%s2915 + $0x9] sm:$0x1] %vm2916, 0.0
        %2926 = vst.msk [vmem:[%s2915 + $0x19] sm:$0x1] %vm2916, 0.0
        %2927 = vst.msk [vmem:[%s2915 + $0x29] sm:$0x1] %vm2916, 0.0
        %2928 = vst.msk [vmem:[%s2915 + $0x39] sm:$0x1] %vm2916, 0.0
        %2929 = vst.msk [vmem:[%s2915 + $0x49] sm:$0x1] %vm2916, 0.0
        %2930 = vst.msk [vmem:[%s2915 + $0x59] sm:$0x1] %vm2916, 0.0
        %2931 = vst.msk [vmem:[%s2915 + $0x69] sm:$0x1] %vm2916, 0.0
        %2932 = vst.msk [vmem:[%s2915 + $0x79] sm:$0x1] %vm2916, 0.0
        %v2997 = vperm.slane %v2845, 0
        %v2998 = vperm.slane %v2846, 0
        %v2999 = vperm.slane %v2847, 0
        %v3000 = vperm.slane %v2848, 0
        %v3001 = vperm.slane %v2849, 0
        %v3002 = vperm.slane %v2850, 0
        %v3003 = vperm.slane %v2851, 0
        %v3004 = vperm.slane %v2852, 0
        %v3005 = vperm.slane %v2853, 0
        %v3006 = vperm.slane %v2854, 0
        %v3007 = vperm.slane %v2855, 0
        %v3008 = vperm.slane %v2856, 0
        %v3009 = vperm.slane %v2857, 0
        %v3010 = vperm.slane %v2858, 0
        %v3011 = vperm.slane %v2859, 0
        %v3012 = vperm.slane %v2860, 0
        %v3013 = vperm.slane %v2861, 0
        %v3014 = vperm.slane %v2862, 0
        %v3015 = vperm.slane %v2863, 0
        %v3016 = vperm.slane %v2864, 0
        %v3017 = vperm.slane %v2865, 0
        %v3018 = vperm.slane %v2866, 0
        %v3019 = vperm.slane %v2867, 0
        %v3020 = vperm.slane %v2868, 0
        %v3021 = vperm.slane %v2869, 0
        %v3022 = vperm.slane %v2870, 0
        %v3023 = vperm.slane %v2871, 0
        %v3024 = vperm.slane %v2872, 0
        %v3025 = vperm.slane %v2873, 0
        %v3026 = vperm.slane %v2874, 0
        %v3027 = vperm.slane %v2875, 0
        %v3028 = vperm.slane %v2876, 0
        %v3029 = vperm.slane %v2877, 0
        %v3030 = vperm.slane %v2878, 0
        %v3031 = vperm.slane %v2879, 0
        %v3032 = vperm.slane %v2880, 0
        %v3033 = vperm.slane %v2881, 0
        %v3034 = vperm.slane %v2882, 0
        %v3035 = vperm.slane %v2883, 0
        %v3036 = vperm.slane %v2884, 0
        %v3037 = vperm.slane %v2885, 0
        %v3038 = vperm.slane %v2886, 0
        %v3039 = vperm.slane %v2887, 0
        %v3040 = vperm.slane %v2888, 0
        %v3041 = vperm.slane %v2889, 0
        %v3042 = vperm.slane %v2890, 0
        %v3043 = vperm.slane %v2891, 0
        %v3044 = vperm.slane %v2892, 0
        %v3045 = vperm.slane %v2893, 0
        %v3046 = vperm.slane %v2894, 0
        %v3047 = vperm.slane %v2895, 0
        %v3048 = vperm.slane %v2896, 0
        %v3049 = vperm.slane %v2897, 0
        %v3050 = vperm.slane %v2898, 0
        %v3051 = vperm.slane %v2899, 0
        %v3052 = vperm.slane %v2900, 0
        %v3053 = vperm.slane %v2901, 0
        %v3054 = vperm.slane %v2902, 0
        %v3055 = vperm.slane %v2903, 0
        %v3056 = vperm.slane %v2904, 0
        %v3057 = vperm.slane %v2905, 0
        %v3058 = vperm.slane %v2906, 0
        %v3059 = vperm.slane %v2907, 0
        %v3060 = vperm.slane %v2908, 0
        %vm3061 = vcmask 1041409
        %v3062 = vsel %vm3061, %v2998, %v2997
        %vm3063 = vcmask 1042434
        %v3064 = vsel %vm3063, %v2999, %v3062
        %vm3065 = vcmask 1043459
        %v3066 = vsel %vm3065, %v3000, %v3064
        %vm3067 = vcmask 1044484
        %v3068 = vsel %vm3067, %v3001, %v3066
        %vm3069 = vcmask 1045509
        %v3070 = vsel %vm3069, %v3002, %v3068
        %vm3071 = vcmask 1046534
        %v3072 = vsel %vm3071, %v3003, %v3070
        %vm3073 = vcmask 1047559
        %v3074 = vsel %vm3073, %v3004, %v3072
        %v3075 = vsel %vm3061, %v3006, %v3005
        %v3076 = vsel %vm3063, %v3007, %v3075
        %v3077 = vsel %vm3065, %v3008, %v3076
        %v3078 = vsel %vm3067, %v3009, %v3077
        %v3079 = vsel %vm3069, %v3010, %v3078
        %v3080 = vsel %vm3071, %v3011, %v3079
        %v3081 = vsel %vm3073, %v3012, %v3080
        %v3082 = vsel %vm3061, %v3014, %v3013
        %v3083 = vsel %vm3063, %v3015, %v3082
        %v3084 = vsel %vm3065, %v3016, %v3083
        %v3085 = vsel %vm3067, %v3017, %v3084
        %v3086 = vsel %vm3069, %v3018, %v3085
        %v3087 = vsel %vm3071, %v3019, %v3086
        %v3088 = vsel %vm3073, %v3020, %v3087
        %v3089 = vsel %vm3061, %v3022, %v3021
        %v3090 = vsel %vm3063, %v3023, %v3089
        %v3091 = vsel %vm3065, %v3024, %v3090
        %v3092 = vsel %vm3067, %v3025, %v3091
        %v3093 = vsel %vm3069, %v3026, %v3092
        %v3094 = vsel %vm3071, %v3027, %v3093
        %v3095 = vsel %vm3073, %v3028, %v3094
        %v3096 = vsel %vm3061, %v3030, %v3029
        %v3097 = vsel %vm3063, %v3031, %v3096
        %v3098 = vsel %vm3065, %v3032, %v3097
        %v3099 = vsel %vm3067, %v3033, %v3098
        %v3100 = vsel %vm3069, %v3034, %v3099
        %v3101 = vsel %vm3071, %v3035, %v3100
        %v3102 = vsel %vm3073, %v3036, %v3101
        %v3103 = vsel %vm3061, %v3038, %v3037
        %v3104 = vsel %vm3063, %v3039, %v3103
        %v3105 = vsel %vm3065, %v3040, %v3104
        %v3106 = vsel %vm3067, %v3041, %v3105
        %v3107 = vsel %vm3069, %v3042, %v3106
        %v3108 = vsel %vm3071, %v3043, %v3107
        %v3109 = vsel %vm3073, %v3044, %v3108
        %v3110 = vsel %vm3061, %v3046, %v3045
        %v3111 = vsel %vm3063, %v3047, %v3110
        %v3112 = vsel %vm3065, %v3048, %v3111
        %v3113 = vsel %vm3067, %v3049, %v3112
        %v3114 = vsel %vm3069, %v3050, %v3113
        %v3115 = vsel %vm3071, %v3051, %v3114
        %v3116 = vsel %vm3073, %v3052, %v3115
        %v3117 = vsel %vm3061, %v3054, %v3053
        %v3118 = vsel %vm3063, %v3055, %v3117
        %v3119 = vsel %vm3065, %v3056, %v3118
        %v3120 = vsel %vm3067, %v3057, %v3119
        %v3121 = vsel %vm3069, %v3058, %v3120
        %v3122 = vsel %vm3071, %v3059, %v3121
        %v3123 = vsel %vm3073, %v3060, %v3122
        %3132 = vst.msk [vmem:[%s2915 + $0x1] sm:$0xff] %vm2909, %v3074
        %3133 = vst.msk [vmem:[%s2915 + $0x11] sm:$0xff] %vm2909, %v3081
        %3134 = vst.msk [vmem:[%s2915 + $0x21] sm:$0xff] %vm2909, %v3088
        %3135 = vst.msk [vmem:[%s2915 + $0x31] sm:$0xff] %vm2909, %v3095
        %3136 = vst.msk [vmem:[%s2915 + $0x41] sm:$0xff] %vm2909, %v3102
        %3137 = vst.msk [vmem:[%s2915 + $0x51] sm:$0xff] %vm2909, %v3109
        %3138 = vst.msk [vmem:[%s2915 + $0x61] sm:$0xff] %vm2909, %v3116
        %3139 = vst.msk [vmem:[%s2915 + $0x71] sm:$0xff] %vm2909, %v3123
        %v3140 = vld [vmem:[#allocation2] sm:$0xff]
        %v3141 = vld [vmem:[#allocation2 + $0x10] sm:$0xff]
        %v3142 = vld [vmem:[#allocation2 + $0x20] sm:$0xff]
        %v3143 = vld [vmem:[#allocation2 + $0x30] sm:$0xff]
        %v3144 = vld [vmem:[#allocation2 + $0x40] sm:$0xff]
        %v3145 = vld [vmem:[#allocation2 + $0x50] sm:$0xff]
        %v3146 = vld [vmem:[#allocation2 + $0x60] sm:$0xff]
        %v3147 = vld [vmem:[#allocation2 + $0x70] sm:$0xff]
        %v3148 = vld [vmem:[#allocation2 + $0x1] sm:$0xff]
        %v3149 = vld [vmem:[#allocation2 + $0x11] sm:$0xff]
        %v3150 = vld [vmem:[#allocation2 + $0x21] sm:$0xff]
        %v3151 = vld [vmem:[#allocation2 + $0x31] sm:$0xff]
        %v3152 = vld [vmem:[#allocation2 + $0x41] sm:$0xff]
        %v3153 = vld [vmem:[#allocation2 + $0x51] sm:$0xff]
        %v3154 = vld [vmem:[#allocation2 + $0x61] sm:$0xff]
        %v3155 = vld [vmem:[#allocation2 + $0x71] sm:$0xff]
        %v3156 = vld [vmem:[#allocation2 + $0x2] sm:$0xff]
        %v3157 = vld [vmem:[#allocation2 + $0x12] sm:$0xff]
        %v3158 = vld [vmem:[#allocation2 + $0x22] sm:$0xff]
        %v3159 = vld [vmem:[#allocation2 + $0x32] sm:$0xff]
        %v3160 = vld [vmem:[#allocation2 + $0x42] sm:$0xff]
        %v3161 = vld [vmem:[#allocation2 + $0x52] sm:$0xff]
        %v3162 = vld [vmem:[#allocation2 + $0x62] sm:$0xff]
        %v3163 = vld [vmem:[#allocation2 + $0x72] sm:$0xff]
        %v3164 = vld [vmem:[%s2915] sm:$0xff]
        %v3165 = vld [vmem:[%s2915 + $0x10] sm:$0xff]
        %v3166 = vld [vmem:[%s2915 + $0x20] sm:$0xff]
        %v3167 = vld [vmem:[%s2915 + $0x30] sm:$0xff]
        %v3168 = vld [vmem:[%s2915 + $0x40] sm:$0xff]
        %v3169 = vld [vmem:[%s2915 + $0x50] sm:$0xff]
        %v3170 = vld [vmem:[%s2915 + $0x60] sm:$0xff]
        %v3171 = vld [vmem:[%s2915 + $0x70] sm:$0xff]
        %v3172 = vld [vmem:[%s2915 + $0x1] sm:$0xff]
        %v3173 = vld [vmem:[%s2915 + $0x11] sm:$0xff]
        %v3174 = vld [vmem:[%s2915 + $0x21] sm:$0xff]
        %v3175 = vld [vmem:[%s2915 + $0x31] sm:$0xff]
        %v3176 = vld [vmem:[%s2915 + $0x41] sm:$0xff]
        %v3177 = vld [vmem:[%s2915 + $0x51] sm:$0xff]
        %v3178 = vld [vmem:[%s2915 + $0x61] sm:$0xff]
        %v3179 = vld [vmem:[%s2915 + $0x71] sm:$0xff]
        %v3180 = vld [vmem:[%s2915 + $0x2] sm:$0xff]
        %v3181 = vld [vmem:[%s2915 + $0x12] sm:$0xff]
        %v3182 = vld [vmem:[%s2915 + $0x22] sm:$0xff]
        %v3183 = vld [vmem:[%s2915 + $0x32] sm:$0xff]
        %v3184 = vld [vmem:[%s2915 + $0x42] sm:$0xff]
        %v3185 = vld [vmem:[%s2915 + $0x52] sm:$0xff]
        %v3186 = vld [vmem:[%s2915 + $0x62] sm:$0xff]
        %v3187 = vld [vmem:[%s2915 + $0x72] sm:$0xff]
        %s3188 = scalar_lea.vmem [#allocation2], 32
        %v3189 = vld [vmem:[%s3188] sm:$0xff]
        %v3190 = vld [vmem:[%s3188 + $0x10] sm:$0xff]
        %v3191 = vld [vmem:[%s3188 + $0x20] sm:$0xff]
        %v3192 = vld [vmem:[%s3188 + $0x30] sm:$0xff]
        %v3193 = vld [vmem:[%s3188 + $0x40] sm:$0xff]
        %v3194 = vld [vmem:[%s3188 + $0x50] sm:$0xff]
        %v3195 = vld [vmem:[%s3188 + $0x60] sm:$0xff]
        %v3196 = vld [vmem:[%s3188 + $0x70] sm:$0xff]
        %v3197 = vld [vmem:[%s3188 + $0x1] sm:$0xff]
        %v3198 = vld [vmem:[%s3188 + $0x11] sm:$0xff]
        %v3199 = vld [vmem:[%s3188 + $0x21] sm:$0xff]
        %v3200 = vld [vmem:[%s3188 + $0x31] sm:$0xff]
        %v3201 = vld [vmem:[%s3188 + $0x41] sm:$0xff]
        %v3202 = vld [vmem:[%s3188 + $0x51] sm:$0xff]
        %v3203 = vld [vmem:[%s3188 + $0x61] sm:$0xff]
        %v3204 = vld [vmem:[%s3188 + $0x71] sm:$0xff]
        %v3205 = vld [vmem:[%s3188 + $0x2] sm:$0xff]
        %v3206 = vld [vmem:[%s3188 + $0x12] sm:$0xff]
        %v3207 = vld [vmem:[%s3188 + $0x22] sm:$0xff]
        %v3208 = vld [vmem:[%s3188 + $0x32] sm:$0xff]
        %v3209 = vld [vmem:[%s3188 + $0x42] sm:$0xff]
        %v3210 = vld [vmem:[%s3188 + $0x52] sm:$0xff]
        %v3211 = vld [vmem:[%s3188 + $0x62] sm:$0xff]
        %v3212 = vld [vmem:[%s3188 + $0x72] sm:$0xff]
        %3221 = vrot.lane.b32.xlu0 %v3148, 64
        %v3222 = vpop.permute.xlu0 %3221
        %3223 = vrot.lane.b32.xlu0 %v3149, 64
        %v3224 = vpop.permute.xlu0 %3223
        %3225 = vrot.lane.b32.xlu0 %v3150, 64
        %v3226 = vpop.permute.xlu0 %3225
        %3227 = vrot.lane.b32.xlu0 %v3151, 64
        %v3228 = vpop.permute.xlu0 %3227
        %3229 = vrot.lane.b32.xlu0 %v3152, 64
        %v3230 = vpop.permute.xlu0 %3229
        %3231 = vrot.lane.b32.xlu0 %v3153, 64
        %v3232 = vpop.permute.xlu0 %3231
        %3233 = vrot.lane.b32.xlu0 %v3154, 64
        %v3234 = vpop.permute.xlu0 %3233
        %3235 = vrot.lane.b32.xlu0 %v3155, 64
        %v3236 = vpop.permute.xlu0 %3235
        %3253 = vrot.lane.b32.xlu0 %v3164, 64
        %v3254 = vpop.permute.xlu0 %3253
        %3255 = vrot.lane.b32.xlu0 %v3165, 64
        %v3256 = vpop.permute.xlu0 %3255
        %3257 = vrot.lane.b32.xlu0 %v3166, 64
        %v3258 = vpop.permute.xlu0 %3257
        %3259 = vrot.lane.b32.xlu0 %v3167, 64
        %v3260 = vpop.permute.xlu0 %3259
        %3261 = vrot.lane.b32.xlu0 %v3168, 64
        %v3262 = vpop.permute.xlu0 %3261
        %3263 = vrot.lane.b32.xlu0 %v3169, 64
        %v3264 = vpop.permute.xlu0 %3263
        %3265 = vrot.lane.b32.xlu0 %v3170, 64
        %v3266 = vpop.permute.xlu0 %3265
        %3267 = vrot.lane.b32.xlu0 %v3171, 64
        %v3268 = vpop.permute.xlu0 %3267
        %3285 = vrot.lane.b32.xlu0 %v3180, 64
        %v3286 = vpop.permute.xlu0 %3285
        %3287 = vrot.lane.b32.xlu0 %v3181, 64
        %v3288 = vpop.permute.xlu0 %3287
        %3289 = vrot.lane.b32.xlu0 %v3182, 64
        %v3290 = vpop.permute.xlu0 %3289
        %3291 = vrot.lane.b32.xlu0 %v3183, 64
        %v3292 = vpop.permute.xlu0 %3291
        %3293 = vrot.lane.b32.xlu0 %v3184, 64
        %v3294 = vpop.permute.xlu0 %3293
        %3295 = vrot.lane.b32.xlu0 %v3185, 64
        %v3296 = vpop.permute.xlu0 %3295
        %3297 = vrot.lane.b32.xlu0 %v3186, 64
        %v3298 = vpop.permute.xlu0 %3297
        %3299 = vrot.lane.b32.xlu0 %v3187, 64
        %v3300 = vpop.permute.xlu0 %3299
        %3317 = vrot.lane.b32.xlu0 %v3197, 64
        %v3318 = vpop.permute.xlu0 %3317
        %3319 = vrot.lane.b32.xlu0 %v3198, 64
        %v3320 = vpop.permute.xlu0 %3319
        %3321 = vrot.lane.b32.xlu0 %v3199, 64
        %v3322 = vpop.permute.xlu0 %3321
        %3323 = vrot.lane.b32.xlu0 %v3200, 64
        %v3324 = vpop.permute.xlu0 %3323
        %3325 = vrot.lane.b32.xlu0 %v3201, 64
        %v3326 = vpop.permute.xlu0 %3325
        %3327 = vrot.lane.b32.xlu0 %v3202, 64
        %v3328 = vpop.permute.xlu0 %3327
        %3329 = vrot.lane.b32.xlu0 %v3203, 64
        %v3330 = vpop.permute.xlu0 %3329
        %3331 = vrot.lane.b32.xlu0 %v3204, 64
        %v3332 = vpop.permute.xlu0 %3331
        %v3341 = vsel %vm2909, %v3140, %v3222
        %v3342 = vsel %vm2909, %v3141, %v3224
        %v3343 = vsel %vm2909, %v3142, %v3226
        %v3344 = vsel %vm2909, %v3143, %v3228
        %v3345 = vsel %vm2909, %v3144, %v3230
        %v3346 = vsel %vm2909, %v3145, %v3232
        %v3347 = vsel %vm2909, %v3146, %v3234
        %v3348 = vsel %vm2909, %v3147, %v3236
        %v3349 = vsel %vm2909, %v3156, %v3254
        %v3350 = vsel %vm2909, %v3157, %v3256
        %v3351 = vsel %vm2909, %v3158, %v3258
        %v3352 = vsel %vm2909, %v3159, %v3260
        %v3353 = vsel %vm2909, %v3160, %v3262
        %v3354 = vsel %vm2909, %v3161, %v3264
        %v3355 = vsel %vm2909, %v3162, %v3266
        %v3356 = vsel %vm2909, %v3163, %v3268
        %v3357 = vsel %vm2909, %v3172, %v3286
        %v3358 = vsel %vm2909, %v3173, %v3288
        %v3359 = vsel %vm2909, %v3174, %v3290
        %v3360 = vsel %vm2909, %v3175, %v3292
        %v3361 = vsel %vm2909, %v3176, %v3294
        %v3362 = vsel %vm2909, %v3177, %v3296
        %v3363 = vsel %vm2909, %v3178, %v3298
        %v3364 = vsel %vm2909, %v3179, %v3300
        %v3365 = vsel %vm2909, %v3189, %v3318
        %v3366 = vsel %vm2909, %v3190, %v3320
        %v3367 = vsel %vm2909, %v3191, %v3322
        %v3368 = vsel %vm2909, %v3192, %v3324
        %v3369 = vsel %vm2909, %v3193, %v3326
        %v3370 = vsel %vm2909, %v3194, %v3328
        %v3371 = vsel %vm2909, %v3195, %v3330
        %v3372 = vsel %vm2909, %v3196, %v3332
        %v3373 = vpack.c.bf16 %v3342, %v3341
        %v3374 = vpack.c.bf16 %v3350, %v3349
        %v3375 = vpack.c.bf16 %v3358, %v3357
        %v3376 = vpack.c.bf16 %v3366, %v3365
        %v3377 = vpack.c.bf16 %v3206, %v3205
        %v3378 = vpack.c.bf16 %v3344, %v3343
        %v3379 = vpack.c.bf16 %v3352, %v3351
        %v3380 = vpack.c.bf16 %v3360, %v3359
        %v3381 = vpack.c.bf16 %v3368, %v3367
        %v3382 = vpack.c.bf16 %v3208, %v3207
        %v3383 = vpack.c.bf16 %v3346, %v3345
        %v3384 = vpack.c.bf16 %v3354, %v3353
        %v3385 = vpack.c.bf16 %v3362, %v3361
        %v3386 = vpack.c.bf16 %v3370, %v3369
        %v3387 = vpack.c.bf16 %v3210, %v3209
        %v3388 = vpack.c.bf16 %v3348, %v3347
        %v3389 = vpack.c.bf16 %v3356, %v3355
        %v3390 = vpack.c.bf16 %v3364, %v3363
        %v3391 = vpack.c.bf16 %v3372, %v3371
        %v3392 = vpack.c.bf16 %v3212, %v3211
        %v3393 = vld [vmem:[#allocation10] sm:$0xf]
        %v3394 = vld [vmem:[#allocation10 + $0x4] sm:$0xf]
        %v3395 = vld [vmem:[#allocation10 + $0x8] sm:$0xf]
        %v3396 = vld [vmem:[#allocation10 + $0xc] sm:$0xf]
        %v3397 = vld [vmem:[#allocation10 + $0x10] sm:$0xf]
        %v3398 = vld [vmem:[#allocation10 + $0x14] sm:$0xf]
        %v3399 = vld [vmem:[#allocation10 + $0x18] sm:$0xf]
        %v3400 = vld [vmem:[#allocation10 + $0x1c] sm:$0xf]
        %v3401 = vld [vmem:[#allocation10 + $0x20] sm:$0xf]
        %v3402 = vld [vmem:[#allocation10 + $0x24] sm:$0xf]
        %v3403 = vld [vmem:[#allocation10 + $0x28] sm:$0xf]
        %v3404 = vld [vmem:[#allocation10 + $0x2c] sm:$0xf]
        %v3405 = vld [vmem:[#allocation10 + $0x30] sm:$0xf]
        %v3406 = vld [vmem:[#allocation10 + $0x34] sm:$0xf]
        %v3407 = vld [vmem:[#allocation10 + $0x38] sm:$0xf]
        %v3408 = vld [vmem:[#allocation10 + $0x3c] sm:$0xf]
        %v3409 = vld [vmem:[#allocation10 + $0x40] sm:$0xf]
        %v3410 = vld [vmem:[#allocation10 + $0x44] sm:$0xf]
        %v3411 = vld [vmem:[#allocation10 + $0x48] sm:$0xf]
        %v3412 = vld [vmem:[#allocation10 + $0x4c] sm:$0xf]
        %v3413 = vld [vmem:[#allocation10 + $0x50] sm:$0xf]
        %v3414 = vld [vmem:[#allocation10 + $0x54] sm:$0xf]
        %v3415 = vld [vmem:[#allocation10 + $0x58] sm:$0xf]
        %v3416 = vld [vmem:[#allocation10 + $0x5c] sm:$0xf]
        %v3417 = vld [vmem:[#allocation10 + $0x60] sm:$0xf]
        %v3418 = vld [vmem:[#allocation10 + $0x64] sm:$0xf]
        %v3419 = vld [vmem:[#allocation10 + $0x68] sm:$0xf]
        %v3420 = vld [vmem:[#allocation10 + $0x6c] sm:$0xf]
        %v3421 = vld [vmem:[#allocation10 + $0x70] sm:$0xf]
        %v3422 = vld [vmem:[#allocation10 + $0x74] sm:$0xf]
        %v3423 = vld [vmem:[#allocation10 + $0x78] sm:$0xf]
        %v3424 = vld [vmem:[#allocation10 + $0x7c] sm:$0xf]
        %v3425 = vld [vmem:[#allocation10 + $0x80] sm:$0xf]
        %v3426 = vld [vmem:[#allocation10 + $0x84] sm:$0xf]
        %v3427 = vld [vmem:[#allocation10 + $0x88] sm:$0xf]
        %v3428 = vld [vmem:[#allocation10 + $0x8c] sm:$0xf]
        %v3429 = vld [vmem:[#allocation10 + $0x90] sm:$0xf]
        %v3430 = vld [vmem:[#allocation10 + $0x94] sm:$0xf]
        %v3431 = vld [vmem:[#allocation10 + $0x98] sm:$0xf]
        %v3432 = vld [vmem:[#allocation10 + $0x9c] sm:$0xf]
        %v3433 = vld [vmem:[#allocation10 + $0xa0] sm:$0xf]
        %v3434 = vld [vmem:[#allocation10 + $0xa4] sm:$0xf]
        %v3435 = vld [vmem:[#allocation10 + $0xa8] sm:$0xf]
        %v3436 = vld [vmem:[#allocation10 + $0xac] sm:$0xf]
        %v3437 = vld [vmem:[#allocation10 + $0xb0] sm:$0xf]
        %v3438 = vld [vmem:[#allocation10 + $0xb4] sm:$0xf]
        %v3439 = vld [vmem:[#allocation10 + $0xb8] sm:$0xf]
        %v3440 = vld [vmem:[#allocation10 + $0xbc] sm:$0xf]
        %v3441 = vld [vmem:[#allocation10 + $0xc0] sm:$0xf]
        %v3442 = vld [vmem:[#allocation10 + $0xc4] sm:$0xf]
        %v3443 = vld [vmem:[#allocation10 + $0xc8] sm:$0xf]
        %v3444 = vld [vmem:[#allocation10 + $0xcc] sm:$0xf]
        %v3445 = vld [vmem:[#allocation10 + $0xd0] sm:$0xf]
        %v3446 = vld [vmem:[#allocation10 + $0xd4] sm:$0xf]
        %v3447 = vld [vmem:[#allocation10 + $0xd8] sm:$0xf]
        %v3448 = vld [vmem:[#allocation10 + $0xdc] sm:$0xf]
        %v3449 = vld [vmem:[#allocation10 + $0xe0] sm:$0xf]
        %v3450 = vld [vmem:[#allocation10 + $0xe4] sm:$0xf]
        %v3451 = vld [vmem:[#allocation10 + $0xe8] sm:$0xf]
        %v3452 = vld [vmem:[#allocation10 + $0xec] sm:$0xf]
        %v3453 = vld [vmem:[#allocation10 + $0xf0] sm:$0xf]
        %v3454 = vld [vmem:[#allocation10 + $0xf4] sm:$0xf]
        %v3455 = vld [vmem:[#allocation10 + $0xf8] sm:$0xf]
        %v3456 = vld [vmem:[#allocation10 + $0xfc] sm:$0xf]
        %v3457 = vld [vmem:[#allocation10 + $0x100] sm:$0xf]
        %v3458 = vld [vmem:[#allocation10 + $0x104] sm:$0xf]
        %v3459 = vld [vmem:[#allocation10 + $0x108] sm:$0xf]
        %v3460 = vld [vmem:[#allocation10 + $0x10c] sm:$0xf]
        %v3461 = vld [vmem:[#allocation10 + $0x110] sm:$0xf]
        %v3462 = vld [vmem:[#allocation10 + $0x114] sm:$0xf]
        %v3463 = vld [vmem:[#allocation10 + $0x118] sm:$0xf]
        %v3464 = vld [vmem:[#allocation10 + $0x11c] sm:$0xf]
        %v3537 = vunpack.c.l.b16 %v3393
        %v3538 = vunpack.c.l.b16 %v3394
        %v3539 = vunpack.c.l.b16 %v3395
        %v3540 = vunpack.c.l.b16 %v3396
        %v3541 = vunpack.c.l.b16 %v3397
        %v3542 = vunpack.c.l.b16 %v3398
        %v3543 = vunpack.c.l.b16 %v3399
        %v3544 = vunpack.c.l.b16 %v3400
        %v3545 = vunpack.c.l.b16 %v3401
        %v3546 = vunpack.c.l.b16 %v3402
        %v3547 = vunpack.c.l.b16 %v3403
        %v3548 = vunpack.c.l.b16 %v3404
        %v3549 = vunpack.c.l.b16 %v3405
        %v3550 = vunpack.c.l.b16 %v3406
        %v3551 = vunpack.c.l.b16 %v3407
        %v3552 = vunpack.c.l.b16 %v3408
        %v3553 = vunpack.c.l.b16 %v3409
        %v3554 = vunpack.c.l.b16 %v3410
        %v3555 = vunpack.c.l.b16 %v3411
        %v3556 = vunpack.c.l.b16 %v3412
        %v3557 = vunpack.c.l.b16 %v3413
        %v3558 = vunpack.c.l.b16 %v3414
        %v3559 = vunpack.c.l.b16 %v3415
        %v3560 = vunpack.c.l.b16 %v3416
        %v3561 = vunpack.c.l.b16 %v3417
        %v3562 = vunpack.c.l.b16 %v3418
        %v3563 = vunpack.c.l.b16 %v3419
        %v3564 = vunpack.c.l.b16 %v3420
        %v3565 = vunpack.c.l.b16 %v3421
        %v3566 = vunpack.c.l.b16 %v3422
        %v3567 = vunpack.c.l.b16 %v3423
        %v3568 = vunpack.c.l.b16 %v3424
        %v3569 = vunpack.c.l.b16 %v3425
        %v3570 = vunpack.c.l.b16 %v3426
        %v3571 = vunpack.c.l.b16 %v3427
        %v3572 = vunpack.c.l.b16 %v3428
        %v3573 = vunpack.c.l.b16 %v3429
        %v3574 = vunpack.c.l.b16 %v3430
        %v3575 = vunpack.c.l.b16 %v3431
        %v3576 = vunpack.c.l.b16 %v3432
        %v3577 = vunpack.c.l.b16 %v3433
        %v3578 = vunpack.c.l.b16 %v3434
        %v3579 = vunpack.c.l.b16 %v3435
        %v3580 = vunpack.c.l.b16 %v3436
        %v3581 = vunpack.c.l.b16 %v3437
        %v3582 = vunpack.c.l.b16 %v3438
        %v3583 = vunpack.c.l.b16 %v3439
        %v3584 = vunpack.c.l.b16 %v3440
        %v3585 = vunpack.c.l.b16 %v3441
        %v3586 = vunpack.c.l.b16 %v3442
        %v3587 = vunpack.c.l.b16 %v3443
        %v3588 = vunpack.c.l.b16 %v3444
        %v3589 = vunpack.c.l.b16 %v3445
        %v3590 = vunpack.c.l.b16 %v3446
        %v3591 = vunpack.c.l.b16 %v3447
        %v3592 = vunpack.c.l.b16 %v3448
        %v3593 = vunpack.c.l.b16 %v3449
        %v3594 = vunpack.c.l.b16 %v3450
        %v3595 = vunpack.c.l.b16 %v3451
        %v3596 = vunpack.c.l.b16 %v3452
        %v3597 = vunpack.c.l.b16 %v3453
        %v3598 = vunpack.c.l.b16 %v3454
        %v3599 = vunpack.c.l.b16 %v3455
        %v3600 = vunpack.c.l.b16 %v3456
        %v3601 = vunpack.c.l.b16 %v3457
        %v3602 = vunpack.c.l.b16 %v3458
        %v3603 = vunpack.c.l.b16 %v3459
        %v3604 = vunpack.c.l.b16 %v3460
        %v3605 = vunpack.c.l.b16 %v3461
        %v3606 = vunpack.c.l.b16 %v3462
        %v3607 = vunpack.c.l.b16 %v3463
        %v3608 = vunpack.c.l.b16 %v3464
        %v3609 = vpack.c.b16 %v3538, %v3537
        %v3610 = vpack.c.b16 %v3540, %v3539
        %v3611 = vpack.c.b16 %v3542, %v3541
        %v3612 = vpack.c.b16 %v3544, %v3543
        %v3613 = vpack.c.b16 %v3546, %v3545
        %v3614 = vpack.c.b16 %v3548, %v3547
        %v3615 = vpack.c.b16 %v3550, %v3549
        %v3616 = vpack.c.b16 %v3552, %v3551
        %v3617 = vpack.c.b16 %v3554, %v3553
        %v3618 = vpack.c.b16 %v3556, %v3555
        %v3619 = vpack.c.b16 %v3558, %v3557
        %v3620 = vpack.c.b16 %v3560, %v3559
        %v3621 = vpack.c.b16 %v3562, %v3561
        %v3622 = vpack.c.b16 %v3564, %v3563
        %v3623 = vpack.c.b16 %v3566, %v3565
        %v3624 = vpack.c.b16 %v3568, %v3567
        %v3625 = vpack.c.b16 %v3570, %v3569
        %v3626 = vpack.c.b16 %v3572, %v3571
        %v3627 = vpack.c.b16 %v3574, %v3573
        %v3628 = vpack.c.b16 %v3576, %v3575
        %v3629 = vpack.c.b16 %v3578, %v3577
        %v3630 = vpack.c.b16 %v3580, %v3579
        %v3631 = vpack.c.b16 %v3582, %v3581
        %v3632 = vpack.c.b16 %v3584, %v3583
        %v3633 = vpack.c.b16 %v3586, %v3585
        %v3634 = vpack.c.b16 %v3588, %v3587
        %v3635 = vpack.c.b16 %v3590, %v3589
        %v3636 = vpack.c.b16 %v3592, %v3591
        %v3637 = vpack.c.b16 %v3594, %v3593
        %v3638 = vpack.c.b16 %v3596, %v3595
        %v3639 = vpack.c.b16 %v3598, %v3597
        %v3640 = vpack.c.b16 %v3600, %v3599
        %v3641 = vpack.c.b16 %v3602, %v3601
        %v3642 = vpack.c.b16 %v3604, %v3603
        %v3643 = vpack.c.b16 %v3606, %v3605
        %v3644 = vpack.c.b16 %v3608, %v3607
        %v3682 = vsel %vm2909, %v3377, 0
        %v3685 = vsel %vm2909, %v3382, 0
        %v3688 = vsel %vm2909, %v3387, 0
        %v3691 = vsel %vm2909, %v3392, 0
        %3693 = vmatpush.bf16.msra.mxu0 %v3616
        %3694 = vmatpush.bf16.msra.mxu0 %v3615
        %3695 = vmatpush.bf16.msra.mxu0 %v3614
        %3696 = vmatpush.bf16.msra.mxu0 %v3613
        %3697 = vmatpush.bf16.msra.mxu0 %v3612
        %3698 = vmatpush.bf16.msra.mxu0 %v3611
        %3699 = vmatpush.bf16.msra.mxu0 %v3610
        %3700 = vmatpush.bf16.msra.mxu0 %v3609
        %3701 = vmatmul.bf16.gmra.mxu0 %v3373
        %v3702 = vpop.f32.mrf.mxu0
        %v3703 = vadd.f32 0.0, %v3702
        %v3704 = vpop.f32.mrf.mxu0
        %v3705 = vadd.f32 0.0, %v3704
        %3706 = vmatmul.bf16.gmra.mxu0 %v3378
        %v3707 = vpop.f32.mrf.mxu0
        %v3708 = vadd.f32 0.0, %v3707
        %v3709 = vpop.f32.mrf.mxu0
        %v3710 = vadd.f32 0.0, %v3709
        %3711 = vmatmul.bf16.gmra.mxu0 %v3383
        %v3712 = vpop.f32.mrf.mxu0
        %v3713 = vadd.f32 0.0, %v3712
        %v3714 = vpop.f32.mrf.mxu0
        %v3715 = vadd.f32 0.0, %v3714
        %3716 = vmatmul.bf16.gmra.mxu0 %v3388
        %v3717 = vpop.f32.mrf.mxu0
        %v3718 = vadd.f32 0.0, %v3717
        %v3719 = vpop.f32.mrf.mxu0
        %v3720 = vadd.f32 0.0, %v3719
        %3721 = vdwg.mxu0
        %3722 = vmatpush.bf16.msra.mxu0 %v3624
        %3723 = vmatpush.bf16.msra.mxu0 %v3623
        %3724 = vmatpush.bf16.msra.mxu0 %v3622
        %3725 = vmatpush.bf16.msra.mxu0 %v3621
        %3726 = vmatpush.bf16.msra.mxu0 %v3620
        %3727 = vmatpush.bf16.msra.mxu0 %v3619
        %3728 = vmatpush.bf16.msra.mxu0 %v3618
        %3729 = vmatpush.bf16.msra.mxu0 %v3617
        %3730 = vmatmul.bf16.gmra.mxu0 %v3374
        %v3731 = vpop.f32.mrf.mxu0
        %v3732 = vadd.f32 %v3703, %v3731
        %v3733 = vpop.f32.mrf.mxu0
        %v3734 = vadd.f32 %v3705, %v3733
        %3735 = vmatmul.bf16.gmra.mxu0 %v3379
        %v3736 = vpop.f32.mrf.mxu0
        %v3737 = vadd.f32 %v3708, %v3736
        %v3738 = vpop.f32.mrf.mxu0
        %v3739 = vadd.f32 %v3710, %v3738
        %3740 = vmatmul.bf16.gmra.mxu0 %v3384
        %v3741 = vpop.f32.mrf.mxu0
        %v3742 = vadd.f32 %v3713, %v3741
        %v3743 = vpop.f32.mrf.mxu0
        %v3744 = vadd.f32 %v3715, %v3743
        %3745 = vmatmul.bf16.gmra.mxu0 %v3389
        %v3746 = vpop.f32.mrf.mxu0
        %v3747 = vadd.f32 %v3718, %v3746
        %v3748 = vpop.f32.mrf.mxu0
        %v3749 = vadd.f32 %v3720, %v3748
        %3750 = vdwg.mxu0
        %3751 = vmatpush.bf16.msra.mxu0 %v3632
        %3752 = vmatpush.bf16.msra.mxu0 %v3631
        %3753 = vmatpush.bf16.msra.mxu0 %v3630
        %3754 = vmatpush.bf16.msra.mxu0 %v3629
        %3755 = vmatpush.bf16.msra.mxu0 %v3628
        %3756 = vmatpush.bf16.msra.mxu0 %v3627
        %3757 = vmatpush.bf16.msra.mxu0 %v3626
        %3758 = vmatpush.bf16.msra.mxu0 %v3625
        %3759 = vmatmul.bf16.gmra.mxu0 %v3375
        %v3760 = vpop.f32.mrf.mxu0
        %v3761 = vadd.f32 %v3732, %v3760
        %v3762 = vpop.f32.mrf.mxu0
        %v3763 = vadd.f32 %v3734, %v3762
        %3764 = vmatmul.bf16.gmra.mxu0 %v3380
        %v3765 = vpop.f32.mrf.mxu0
        %v3766 = vadd.f32 %v3737, %v3765
        %v3767 = vpop.f32.mrf.mxu0
        %v3768 = vadd.f32 %v3739, %v3767
        %3769 = vmatmul.bf16.gmra.mxu0 %v3385
        %v3770 = vpop.f32.mrf.mxu0
        %v3771 = vadd.f32 %v3742, %v3770
        %v3772 = vpop.f32.mrf.mxu0
        %v3773 = vadd.f32 %v3744, %v3772
        %3774 = vmatmul.bf16.gmra.mxu0 %v3390
        %v3775 = vpop.f32.mrf.mxu0
        %v3776 = vadd.f32 %v3747, %v3775
        %v3777 = vpop.f32.mrf.mxu0
        %v3778 = vadd.f32 %v3749, %v3777
        %3779 = vdwg.mxu0
        %3780 = vmatpush.bf16.msra.mxu0 %v3640
        %3781 = vmatpush.bf16.msra.mxu0 %v3639
        %3782 = vmatpush.bf16.msra.mxu0 %v3638
        %3783 = vmatpush.bf16.msra.mxu0 %v3637
        %3784 = vmatpush.bf16.msra.mxu0 %v3636
        %3785 = vmatpush.bf16.msra.mxu0 %v3635
        %3786 = vmatpush.bf16.msra.mxu0 %v3634
        %3787 = vmatpush.bf16.msra.mxu0 %v3633
        %3788 = vmatmul.bf16.gmra.mxu0 %v3376
        %v3789 = vpop.f32.mrf.mxu0
        %v3790 = vadd.f32 %v3761, %v3789
        %v3791 = vpop.f32.mrf.mxu0
        %v3792 = vadd.f32 %v3763, %v3791
        %3793 = vmatmul.bf16.gmra.mxu0 %v3381
        %v3794 = vpop.f32.mrf.mxu0
        %v3795 = vadd.f32 %v3766, %v3794
        %v3796 = vpop.f32.mrf.mxu0
        %v3797 = vadd.f32 %v3768, %v3796
        %3798 = vmatmul.bf16.gmra.mxu0 %v3386
        %v3799 = vpop.f32.mrf.mxu0
        %v3800 = vadd.f32 %v3771, %v3799
        %v3801 = vpop.f32.mrf.mxu0
        %v3802 = vadd.f32 %v3773, %v3801
        %3803 = vmatmul.bf16.gmra.mxu0 %v3391
        %v3804 = vpop.f32.mrf.mxu0
        %v3805 = vadd.f32 %v3776, %v3804
        %v3806 = vpop.f32.mrf.mxu0
        %v3807 = vadd.f32 %v3778, %v3806
        %3808 = vdwg.mxu0
        %3809 = vmatpush.bf16.msra.mxu0 0
        %3810 = vmatpush.bf16.msra.mxu0 0
        %3811 = vmatpush.bf16.msra.mxu0 0
        %3812 = vmatpush.bf16.msra.mxu0 0
        %3813 = vmatpush.bf16.msra.mxu0 %v3644
        %3814 = vmatpush.bf16.msra.mxu0 %v3643
        %3815 = vmatpush.bf16.msra.mxu0 %v3642
        %3816 = vmatpush.bf16.msra.mxu0 %v3641
        %3817 = vmatmul.bf16.gmra.mxu0 %v3682
        %v3818 = vpop.f32.mrf.mxu0
        %v3819 = vadd.f32 %v3790, %v3818
        %v3820 = vpop.f32.mrf.mxu0
        %v3821 = vadd.f32 %v3792, %v3820
        %3822 = vmatmul.bf16.gmra.mxu0 %v3685
        %v3823 = vpop.f32.mrf.mxu0
        %v3824 = vadd.f32 %v3795, %v3823
        %v3825 = vpop.f32.mrf.mxu0
        %v3826 = vadd.f32 %v3797, %v3825
        %3827 = vmatmul.bf16.gmra.mxu0 %v3688
        %v3828 = vpop.f32.mrf.mxu0
        %v3829 = vadd.f32 %v3800, %v3828
        %v3830 = vpop.f32.mrf.mxu0
        %v3831 = vadd.f32 %v3802, %v3830
        %3832 = vmatmul.bf16.gmra.mxu0 %v3691
        %v3833 = vpop.f32.mrf.mxu0
        %v3834 = vadd.f32 %v3805, %v3833
        %v3835 = vpop.f32.mrf.mxu0
        %v3836 = vadd.f32 %v3807, %v3835
        %3837 = vdwg.mxu0
        %v3838 = vld [vmem:[#allocation12] sm:$0x1]
        %v3840 = vperm.slane %v3838, 0
        %v3842 = vmul.f32 %v3819, %v3840
        %v3843 = vmul.f32 %v3821, %v3840
        %v3844 = vmul.f32 %v3824, %v3840
        %v3845 = vmul.f32 %v3826, %v3840
        %v3846 = vmul.f32 %v3829, %v3840
        %v3847 = vmul.f32 %v3831, %v3840
        %v3848 = vmul.f32 %v3834, %v3840
        %v3849 = vmul.f32 %v3836, %v3840
        %v3850 = vld [vmem:[#allocation13] sm:$0x1]
        %v3852 = vperm.slane %v3850, 0
        %v3854 = vadd.f32 %v3842, %v3852
        %v3855 = vadd.f32 %v3843, %v3852
        %v3856 = vadd.f32 %v3844, %v3852
        %v3857 = vadd.f32 %v3845, %v3852
        %v3858 = vadd.f32 %v3846, %v3852
        %v3859 = vadd.f32 %v3847, %v3852
        %v3860 = vadd.f32 %v3848, %v3852
        %v3861 = vadd.f32 %v3849, %v3852
        %v3862 = vmax.f32 %v3854, 0.0
        %v3863 = vmax.f32 %v3855, 0.0
        %v3864 = vmax.f32 %v3856, 0.0
        %v3865 = vmax.f32 %v3857, 0.0
        %v3866 = vmax.f32 %v3858, 0.0
        %v3867 = vmax.f32 %v3859, 0.0
        %v3868 = vmax.f32 %v3860, 0.0
        %v3869 = vmax.f32 %v3861, 0.0
        %v3870 = vmax.f32 %v3862, %v3863
        %v3871 = vmax.f32 %v3864, %v3865
        %v3872 = vmax.f32 %v3866, %v3867
        %v3873 = vmax.f32 %v3868, %v3869
        %v3878 = vrot.slane %v3870, 2
        %v3879 = vrot.slane %v3870, 4
        %v3880 = vrot.slane %v3870, 6
        %v3881 = vrot.slane %v3871, 2
        %v3882 = vrot.slane %v3871, 4
        %v3883 = vrot.slane %v3871, 6
        %v3884 = vrot.slane %v3872, 2
        %v3885 = vrot.slane %v3872, 4
        %v3886 = vrot.slane %v3872, 6
        %v3887 = vrot.slane %v3873, 2
        %v3888 = vrot.slane %v3873, 4
        %v3889 = vrot.slane %v3873, 6
        %v3902 = vrot.slane %v3870, 7
        %v3903 = vrot.slane %v3902, 2
        %v3904 = vrot.slane %v3878, 7
        %v3905 = vrot.slane %v3904, 2
        %v3906 = vrot.slane %v3879, 7
        %v3907 = vrot.slane %v3906, 2
        %v3908 = vrot.slane %v3880, 7
        %v3909 = vrot.slane %v3908, 2
        %v3910 = vrot.slane %v3871, 7
        %v3911 = vrot.slane %v3910, 2
        %v3912 = vrot.slane %v3881, 7
        %v3913 = vrot.slane %v3912, 2
        %v3914 = vrot.slane %v3882, 7
        %v3915 = vrot.slane %v3914, 2
        %v3916 = vrot.slane %v3883, 7
        %v3917 = vrot.slane %v3916, 2
        %v3918 = vrot.slane %v3872, 7
        %v3919 = vrot.slane %v3918, 2
        %v3920 = vrot.slane %v3884, 7
        %v3921 = vrot.slane %v3920, 2
        %v3922 = vrot.slane %v3885, 7
        %v3923 = vrot.slane %v3922, 2
        %v3924 = vrot.slane %v3886, 7
        %v3925 = vrot.slane %v3924, 2
        %v3926 = vrot.slane %v3873, 7
        %v3927 = vrot.slane %v3926, 2
        %v3928 = vrot.slane %v3887, 7
        %v3929 = vrot.slane %v3928, 2
        %v3930 = vrot.slane %v3888, 7
        %v3931 = vrot.slane %v3930, 2
        %v3932 = vrot.slane %v3889, 7
        %v3933 = vrot.slane %v3932, 2
        %v3950 = vmax.f32 %v3870, %v3903
        %v3951 = vmax.f32 %v3878, %v3905
        %v3952 = vmax.f32 %v3879, %v3907
        %v3953 = vmax.f32 %v3880, %v3909
        %v3954 = vmax.f32 %v3871, %v3911
        %v3955 = vmax.f32 %v3881, %v3913
        %v3956 = vmax.f32 %v3882, %v3915
        %v3957 = vmax.f32 %v3883, %v3917
        %v3958 = vmax.f32 %v3872, %v3919
        %v3959 = vmax.f32 %v3884, %v3921
        %v3960 = vmax.f32 %v3885, %v3923
        %v3961 = vmax.f32 %v3886, %v3925
        %v3962 = vmax.f32 %v3873, %v3927
        %v3963 = vmax.f32 %v3887, %v3929
        %v3964 = vmax.f32 %v3888, %v3931
        %v3965 = vmax.f32 %v3889, %v3933
        %3966 = vst [vmem:[#allocation3] sm:$0xff] 0.0
        %s3967 = scalar_lea.vmem [#allocation3], 40
        %3968 = vst [vmem:[%s3967] sm:$0xff] 0.0
        %s3969 = scalar_lea.vmem [#allocation3], 8
        %3970 = vst [vmem:[%s3969] sm:$0x1] 0.0
        %3971 = vst [vmem:[%s3969 + $0x8] sm:$0x1] 0.0
        %3972 = vst [vmem:[%s3969 + $0x10] sm:$0x1] 0.0
        %3973 = vst [vmem:[%s3969 + $0x18] sm:$0x1] 0.0
        %3974 = vst [vmem:[%s3969 + $0x5] sm:$0x1] 0.0
        %3975 = vst [vmem:[%s3969 + $0xd] sm:$0x1] 0.0
        %3976 = vst [vmem:[%s3969 + $0x15] sm:$0x1] 0.0
        %3977 = vst [vmem:[%s3969 + $0x1d] sm:$0x1] 0.0
        %v3994 = vperm.slane %v3950, 0
        %v3995 = vperm.slane %v3951, 0
        %v3996 = vperm.slane %v3952, 0
        %v3997 = vperm.slane %v3953, 0
        %v3998 = vperm.slane %v3954, 0
        %v3999 = vperm.slane %v3955, 0
        %v4000 = vperm.slane %v3956, 0
        %v4001 = vperm.slane %v3957, 0
        %v4002 = vperm.slane %v3958, 0
        %v4003 = vperm.slane %v3959, 0
        %v4004 = vperm.slane %v3960, 0
        %v4005 = vperm.slane %v3961, 0
        %v4006 = vperm.slane %v3962, 0
        %v4007 = vperm.slane %v3963, 0
        %v4008 = vperm.slane %v3964, 0
        %v4009 = vperm.slane %v3965, 0
        %v4010 = vsel %vm3061, %v3995, %v3994
        %v4011 = vsel %vm3063, %v3996, %v4010
        %v4012 = vsel %vm3065, %v3997, %v4011
        %v4013 = vsel %vm3061, %v3999, %v3998
        %v4014 = vsel %vm3063, %v4000, %v4013
        %v4015 = vsel %vm3065, %v4001, %v4014
        %v4016 = vsel %vm3061, %v4003, %v4002
        %v4017 = vsel %vm3063, %v4004, %v4016
        %v4018 = vsel %vm3065, %v4005, %v4017
        %v4019 = vsel %vm3061, %v4007, %v4006
        %v4020 = vsel %vm3063, %v4008, %v4019
        %v4021 = vsel %vm3065, %v4009, %v4020
        %4026 = vst [vmem:[%s3969 + $0x1] sm:$0xf] %v4012
        %4027 = vst [vmem:[%s3969 + $0x9] sm:$0xf] %v4015
        %4028 = vst [vmem:[%s3969 + $0x11] sm:$0xf] %v4018
        %4029 = vst [vmem:[%s3969 + $0x19] sm:$0xf] %v4021
        %v4030 = vld [vmem:[#allocation3] sm:$0xf]
        %v4031 = vld [vmem:[#allocation3 + $0x8] sm:$0xf]
        %v4032 = vld [vmem:[#allocation3 + $0x10] sm:$0xf]
        %v4033 = vld [vmem:[#allocation3 + $0x18] sm:$0xf]
        %v4034 = vld [vmem:[#allocation3 + $0x1] sm:$0xf]
        %v4035 = vld [vmem:[#allocation3 + $0x9] sm:$0xf]
        %v4036 = vld [vmem:[#allocation3 + $0x11] sm:$0xf]
        %v4037 = vld [vmem:[#allocation3 + $0x19] sm:$0xf]
        %v4038 = vld [vmem:[#allocation3 + $0x2] sm:$0xf]
        %v4039 = vld [vmem:[#allocation3 + $0xa] sm:$0xf]
        %v4040 = vld [vmem:[#allocation3 + $0x12] sm:$0xf]
        %v4041 = vld [vmem:[#allocation3 + $0x1a] sm:$0xf]
        %v4042 = vld [vmem:[%s3969] sm:$0xf]
        %v4043 = vld [vmem:[%s3969 + $0x8] sm:$0xf]
        %v4044 = vld [vmem:[%s3969 + $0x10] sm:$0xf]
        %v4045 = vld [vmem:[%s3969 + $0x18] sm:$0xf]
        %v4046 = vld [vmem:[%s3969 + $0x1] sm:$0xf]
        %v4047 = vld [vmem:[%s3969 + $0x9] sm:$0xf]
        %v4048 = vld [vmem:[%s3969 + $0x11] sm:$0xf]
        %v4049 = vld [vmem:[%s3969 + $0x19] sm:$0xf]
        %v4050 = vld [vmem:[%s3969 + $0x2] sm:$0xf]
        %v4051 = vld [vmem:[%s3969 + $0xa] sm:$0xf]
        %v4052 = vld [vmem:[%s3969 + $0x12] sm:$0xf]
        %v4053 = vld [vmem:[%s3969 + $0x1a] sm:$0xf]
        %s4054 = scalar_lea.vmem [#allocation3], 16
        %v4055 = vld [vmem:[%s4054] sm:$0xf]
        %v4056 = vld [vmem:[%s4054 + $0x8] sm:$0xf]
        %v4057 = vld [vmem:[%s4054 + $0x10] sm:$0xf]
        %v4058 = vld [vmem:[%s4054 + $0x18] sm:$0xf]
        %v4059 = vld [vmem:[%s4054 + $0x1] sm:$0xf]
        %v4060 = vld [vmem:[%s4054 + $0x9] sm:$0xf]
        %v4061 = vld [vmem:[%s4054 + $0x11] sm:$0xf]
        %v4062 = vld [vmem:[%s4054 + $0x19] sm:$0xf]
        %v4063 = vld [vmem:[%s4054 + $0x2] sm:$0xf]
        %v4064 = vld [vmem:[%s4054 + $0xa] sm:$0xf]
        %v4065 = vld [vmem:[%s4054 + $0x12] sm:$0xf]
        %v4066 = vld [vmem:[%s4054 + $0x1a] sm:$0xf]
        %4071 = vst [vmem:[#allocation1] ss:$2 sm:$0xff] %v4030
        %s4072 = scalar_lea.vmem [#allocation1], 1
        %4073 = vst [vmem:[%s4072] ss:$2 sm:$0xff] %v4031
        %s4074 = scalar_lea.vmem [#allocation1], 16
        %4075 = vst [vmem:[%s4074] ss:$2 sm:$0xff] %v4032
        %s4076 = scalar_lea.vmem [#allocation1], 17
        %4077 = vst [vmem:[%s4076] ss:$2 sm:$0xff] %v4033
        %v4078 = vld.sshfl [vmem:[#allocation1] sm:$0xff pattern:$0x75316420]
        %v4079 = vld.sshfl [vmem:[#allocation1 + $0x10] sm:$0xff pattern:$0x75316420]
        %4086 = vst [vmem:[#allocation1] ss:$2 sm:$0xff] %v4034
        %s4087 = scalar_lea.vmem [#allocation1], 1
        %4088 = vst [vmem:[%s4087] ss:$2 sm:$0xff] %v4035
        %s4089 = scalar_lea.vmem [#allocation1], 16
        %4090 = vst [vmem:[%s4089] ss:$2 sm:$0xff] %v4036
        %s4091 = scalar_lea.vmem [#allocation1], 17
        %4092 = vst [vmem:[%s4091] ss:$2 sm:$0xff] %v4037
        %v4093 = vld.sshfl [vmem:[#allocation1] sm:$0xff pattern:$0x75316420]
        %v4094 = vld.sshfl [vmem:[#allocation1 + $0x10] sm:$0xff pattern:$0x75316420]
        %4101 = vst [vmem:[#allocation1] ss:$2 sm:$0xff] %v4038
        %s4102 = scalar_lea.vmem [#allocation1], 1
        %4103 = vst [vmem:[%s4102] ss:$2 sm:$0xff] %v4039
        %s4104 = scalar_lea.vmem [#allocation1], 16
        %4105 = vst [vmem:[%s4104] ss:$2 sm:$0xff] %v4040
        %s4106 = scalar_lea.vmem [#allocation1], 17
        %4107 = vst [vmem:[%s4106] ss:$2 sm:$0xff] %v4041
        %v4108 = vld.sshfl [vmem:[#allocation1] sm:$0xff pattern:$0x75316420]
        %v4109 = vld.sshfl [vmem:[#allocation1 + $0x10] sm:$0xff pattern:$0x75316420]
        %4116 = vst [vmem:[#allocation1] ss:$2 sm:$0xff] %v4042
        %s4117 = scalar_lea.vmem [#allocation1], 1
        %4118 = vst [vmem:[%s4117] ss:$2 sm:$0xff] %v4043
        %s4119 = scalar_lea.vmem [#allocation1], 16
        %4120 = vst [vmem:[%s4119] ss:$2 sm:$0xff] %v4044
        %s4121 = scalar_lea.vmem [#allocation1], 17
        %4122 = vst [vmem:[%s4121] ss:$2 sm:$0xff] %v4045
        %v4123 = vld.sshfl [vmem:[#allocation1] sm:$0xff pattern:$0x75316420]
        %v4124 = vld.sshfl [vmem:[#allocation1 + $0x10] sm:$0xff pattern:$0x75316420]
        %4131 = vst [vmem:[#allocation1] ss:$2 sm:$0xff] %v4046
        %s4132 = scalar_lea.vmem [#allocation1], 1
        %4133 = vst [vmem:[%s4132] ss:$2 sm:$0xff] %v4047
        %s4134 = scalar_lea.vmem [#allocation1], 16
        %4135 = vst [vmem:[%s4134] ss:$2 sm:$0xff] %v4048
        %s4136 = scalar_lea.vmem [#allocation1], 17
        %4137 = vst [vmem:[%s4136] ss:$2 sm:$0xff] %v4049
        %v4138 = vld.sshfl [vmem:[#allocation1] sm:$0xff pattern:$0x75316420]
        %v4139 = vld.sshfl [vmem:[#allocation1 + $0x10] sm:$0xff pattern:$0x75316420]
        %4146 = vst [vmem:[#allocation1] ss:$2 sm:$0xff] %v4050
        %s4147 = scalar_lea.vmem [#allocation1], 1
        %4148 = vst [vmem:[%s4147] ss:$2 sm:$0xff] %v4051
        %s4149 = scalar_lea.vmem [#allocation1], 16
        %4150 = vst [vmem:[%s4149] ss:$2 sm:$0xff] %v4052
        %s4151 = scalar_lea.vmem [#allocation1], 17
        %4152 = vst [vmem:[%s4151] ss:$2 sm:$0xff] %v4053
        %v4153 = vld.sshfl [vmem:[#allocation1] sm:$0xff pattern:$0x75316420]
        %v4154 = vld.sshfl [vmem:[#allocation1 + $0x10] sm:$0xff pattern:$0x75316420]
        %4161 = vst [vmem:[#allocation1] ss:$2 sm:$0xff] %v4055
        %s4162 = scalar_lea.vmem [#allocation1], 1
        %4163 = vst [vmem:[%s4162] ss:$2 sm:$0xff] %v4056
        %s4164 = scalar_lea.vmem [#allocation1], 16
        %4165 = vst [vmem:[%s4164] ss:$2 sm:$0xff] %v4057
        %s4166 = scalar_lea.vmem [#allocation1], 17
        %4167 = vst [vmem:[%s4166] ss:$2 sm:$0xff] %v4058
        %v4168 = vld.sshfl [vmem:[#allocation1] sm:$0xff pattern:$0x75316420]
        %v4169 = vld.sshfl [vmem:[#allocation1 + $0x10] sm:$0xff pattern:$0x75316420]
        %4176 = vst [vmem:[#allocation1] ss:$2 sm:$0xff] %v4059
        %s4177 = scalar_lea.vmem [#allocation1], 1
        %4178 = vst [vmem:[%s4177] ss:$2 sm:$0xff] %v4060
        %s4179 = scalar_lea.vmem [#allocation1], 16
        %4180 = vst [vmem:[%s4179] ss:$2 sm:$0xff] %v4061
        %s4181 = scalar_lea.vmem [#allocation1], 17
        %4182 = vst [vmem:[%s4181] ss:$2 sm:$0xff] %v4062
        %v4183 = vld.sshfl [vmem:[#allocation1] sm:$0xff pattern:$0x75316420]
        %v4184 = vld.sshfl [vmem:[#allocation1 + $0x10] sm:$0xff pattern:$0x75316420]
        %4191 = vst [vmem:[#allocation1] ss:$2 sm:$0xff] %v4063
        %s4192 = scalar_lea.vmem [#allocation1], 1
        %4193 = vst [vmem:[%s4192] ss:$2 sm:$0xff] %v4064
        %s4194 = scalar_lea.vmem [#allocation1], 16
        %4195 = vst [vmem:[%s4194] ss:$2 sm:$0xff] %v4065
        %s4196 = scalar_lea.vmem [#allocation1], 17
        %4197 = vst [vmem:[%s4196] ss:$2 sm:$0xff] %v4066
        %v4198 = vld.sshfl [vmem:[#allocation1] sm:$0xff pattern:$0x75316420]
        %v4199 = vld.sshfl [vmem:[#allocation1 + $0x10] sm:$0xff pattern:$0x75316420]
        %v4202 = vpack.c.bf16 %v4079, %v4078
        %v4203 = vpack.c.bf16 %v4094, %v4093
        %v4204 = vpack.c.bf16 %v4109, %v4108
        %v4205 = vpack.c.bf16 %v4124, %v4123
        %v4206 = vpack.c.bf16 %v4139, %v4138
        %v4207 = vpack.c.bf16 %v4154, %v4153
        %v4208 = vpack.c.bf16 %v4169, %v4168
        %v4209 = vpack.c.bf16 %v4184, %v4183
        %v4210 = vpack.c.bf16 %v4199, %v4198
        %v4211 = vld [vmem:[#allocation15] sm:$0xff]
        %v4212 = vld [vmem:[#allocation15 + $0x8] sm:$0xff]
        %v4213 = vld [vmem:[#allocation15 + $0x10] sm:$0xff]
        %v4214 = vld [vmem:[#allocation15 + $0x18] sm:$0xff]
        %v4215 = vld [vmem:[#allocation15 + $0x20] sm:$0xff]
        %v4216 = vld [vmem:[#allocation15 + $0x28] sm:$0xff]
        %v4217 = vld [vmem:[#allocation15 + $0x30] sm:$0xff]
        %v4218 = vld [vmem:[#allocation15 + $0x38] sm:$0xff]
        %v4219 = vld [vmem:[#allocation15 + $0x40] sm:$0xff]
        %v4220 = vld [vmem:[#allocation15 + $0x48] sm:$0xff]
        %v4221 = vld [vmem:[#allocation15 + $0x50] sm:$0xff]
        %v4222 = vld [vmem:[#allocation15 + $0x58] sm:$0xff]
        %v4223 = vld [vmem:[#allocation15 + $0x60] sm:$0xff]
        %v4224 = vld [vmem:[#allocation15 + $0x68] sm:$0xff]
        %v4225 = vld [vmem:[#allocation15 + $0x70] sm:$0xff]
        %v4226 = vld [vmem:[#allocation15 + $0x78] sm:$0xff]
        %v4227 = vld [vmem:[#allocation15 + $0x80] sm:$0xff]
        %v4228 = vld [vmem:[#allocation15 + $0x88] sm:$0xff]
        %v4229 = vld [vmem:[#allocation15 + $0x90] sm:$0xff]
        %v4230 = vld [vmem:[#allocation15 + $0x98] sm:$0xff]
        %v4231 = vld [vmem:[#allocation15 + $0xa0] sm:$0xff]
        %v4232 = vld [vmem:[#allocation15 + $0xa8] sm:$0xff]
        %v4233 = vld [vmem:[#allocation15 + $0xb0] sm:$0xff]
        %v4234 = vld [vmem:[#allocation15 + $0xb8] sm:$0xff]
        %v4235 = vld [vmem:[#allocation15 + $0xc0] sm:$0xff]
        %v4236 = vld [vmem:[#allocation15 + $0xc8] sm:$0xff]
        %v4237 = vld [vmem:[#allocation15 + $0xd0] sm:$0xff]
        %v4238 = vld [vmem:[#allocation15 + $0xd8] sm:$0xff]
        %v4239 = vld [vmem:[#allocation15 + $0xe0] sm:$0xff]
        %v4240 = vld [vmem:[#allocation15 + $0xe8] sm:$0xff]
        %v4241 = vld [vmem:[#allocation15 + $0xf0] sm:$0xff]
        %v4242 = vld [vmem:[#allocation15 + $0xf8] sm:$0xff]
        %v4243 = vld [vmem:[#allocation15 + $0x100] sm:$0xff]
        %v4244 = vld [vmem:[#allocation15 + $0x108] sm:$0xff]
        %v4245 = vld [vmem:[#allocation15 + $0x110] sm:$0xff]
        %v4246 = vld [vmem:[#allocation15 + $0x118] sm:$0xff]
        %v4247 = vld [vmem:[#allocation15 + $0x120] sm:$0xff]
        %v4248 = vld [vmem:[#allocation15 + $0x128] sm:$0xff]
        %v4249 = vld [vmem:[#allocation15 + $0x130] sm:$0xff]
        %v4250 = vld [vmem:[#allocation15 + $0x138] sm:$0xff]
        %v4251 = vld [vmem:[#allocation15 + $0x140] sm:$0xff]
        %v4252 = vld [vmem:[#allocation15 + $0x148] sm:$0xff]
        %v4253 = vld [vmem:[#allocation15 + $0x150] sm:$0xff]
        %v4254 = vld [vmem:[#allocation15 + $0x158] sm:$0xff]
        %v4255 = vld [vmem:[#allocation15 + $0x160] sm:$0xff]
        %v4256 = vld [vmem:[#allocation15 + $0x168] sm:$0xff]
        %v4257 = vld [vmem:[#allocation15 + $0x170] sm:$0xff]
        %v4258 = vld [vmem:[#allocation15 + $0x178] sm:$0xff]
        %v4259 = vld [vmem:[#allocation15 + $0x180] sm:$0xff]
        %v4260 = vld [vmem:[#allocation15 + $0x188] sm:$0xff]
        %v4261 = vld [vmem:[#allocation15 + $0x190] sm:$0xff]
        %v4262 = vld [vmem:[#allocation15 + $0x198] sm:$0xff]
        %v4263 = vld [vmem:[#allocation15 + $0x1a0] sm:$0xff]
        %v4264 = vld [vmem:[#allocation15 + $0x1a8] sm:$0xff]
        %v4265 = vld [vmem:[#allocation15 + $0x1b0] sm:$0xff]
        %v4266 = vld [vmem:[#allocation15 + $0x1b8] sm:$0xff]
        %v4267 = vld [vmem:[#allocation15 + $0x1c0] sm:$0xff]
        %v4268 = vld [vmem:[#allocation15 + $0x1c8] sm:$0xff]
        %v4269 = vld [vmem:[#allocation15 + $0x1d0] sm:$0xff]
        %v4270 = vld [vmem:[#allocation15 + $0x1d8] sm:$0xff]
        %v4271 = vld [vmem:[#allocation15 + $0x1e0] sm:$0xff]
        %v4272 = vld [vmem:[#allocation15 + $0x1e8] sm:$0xff]
        %v4273 = vld [vmem:[#allocation15 + $0x1f0] sm:$0xff]
        %v4274 = vld [vmem:[#allocation15 + $0x1f8] sm:$0xff]
        %v4275 = vld [vmem:[#allocation15 + $0x200] sm:$0xff]
        %v4276 = vld [vmem:[#allocation15 + $0x208] sm:$0xff]
        %v4277 = vld [vmem:[#allocation15 + $0x210] sm:$0xff]
        %v4278 = vld [vmem:[#allocation15 + $0x218] sm:$0xff]
        %v4279 = vld [vmem:[#allocation15 + $0x220] sm:$0xff]
        %v4280 = vld [vmem:[#allocation15 + $0x228] sm:$0xff]
        %v4281 = vld [vmem:[#allocation15 + $0x230] sm:$0xff]
        %v4282 = vld [vmem:[#allocation15 + $0x238] sm:$0xff]
        %v4283 = vld [vmem:[#allocation15 + $0x240] sm:$0xff]
        %v4284 = vld [vmem:[#allocation15 + $0x248] sm:$0xff]
        %v4285 = vld [vmem:[#allocation15 + $0x250] sm:$0xff]
        %v4286 = vld [vmem:[#allocation15 + $0x258] sm:$0xff]
        %v4287 = vld [vmem:[#allocation15 + $0x260] sm:$0xff]
        %v4288 = vld [vmem:[#allocation15 + $0x268] sm:$0xff]
        %v4289 = vld [vmem:[#allocation15 + $0x270] sm:$0xff]
        %v4290 = vld [vmem:[#allocation15 + $0x278] sm:$0xff]
        %v4291 = vld [vmem:[#allocation15 + $0x280] sm:$0xff]
        %v4292 = vld [vmem:[#allocation15 + $0x288] sm:$0xff]
        %v4293 = vld [vmem:[#allocation15 + $0x290] sm:$0xff]
        %v4294 = vld [vmem:[#allocation15 + $0x298] sm:$0xff]
        %v4295 = vld [vmem:[#allocation15 + $0x2a0] sm:$0xff]
        %v4296 = vld [vmem:[#allocation15 + $0x2a8] sm:$0xff]
        %v4297 = vld [vmem:[#allocation15 + $0x2b0] sm:$0xff]
        %v4298 = vld [vmem:[#allocation15 + $0x2b8] sm:$0xff]
        %v4299 = vld [vmem:[#allocation15 + $0x2c0] sm:$0xff]
        %v4300 = vld [vmem:[#allocation15 + $0x2c8] sm:$0xff]
        %v4301 = vld [vmem:[#allocation15 + $0x2d0] sm:$0xff]
        %v4302 = vld [vmem:[#allocation15 + $0x2d8] sm:$0xff]
        %v4303 = vld [vmem:[#allocation15 + $0x2e0] sm:$0xff]
        %v4304 = vld [vmem:[#allocation15 + $0x2e8] sm:$0xff]
        %v4305 = vld [vmem:[#allocation15 + $0x2f0] sm:$0xff]
        %v4306 = vld [vmem:[#allocation15 + $0x2f8] sm:$0xff]
        %v4307 = vld [vmem:[#allocation15 + $0x300] sm:$0xff]
        %v4308 = vld [vmem:[#allocation15 + $0x308] sm:$0xff]
        %v4309 = vld [vmem:[#allocation15 + $0x310] sm:$0xff]
        %v4310 = vld [vmem:[#allocation15 + $0x318] sm:$0xff]
        %v4311 = vld [vmem:[#allocation15 + $0x320] sm:$0xff]
        %v4312 = vld [vmem:[#allocation15 + $0x328] sm:$0xff]
        %v4313 = vld [vmem:[#allocation15 + $0x330] sm:$0xff]
        %v4314 = vld [vmem:[#allocation15 + $0x338] sm:$0xff]
        %v4315 = vld [vmem:[#allocation15 + $0x340] sm:$0xff]
        %v4316 = vld [vmem:[#allocation15 + $0x348] sm:$0xff]
        %v4317 = vld [vmem:[#allocation15 + $0x350] sm:$0xff]
        %v4318 = vld [vmem:[#allocation15 + $0x358] sm:$0xff]
        %v4319 = vld [vmem:[#allocation15 + $0x360] sm:$0xff]
        %v4320 = vld [vmem:[#allocation15 + $0x368] sm:$0xff]
        %v4321 = vld [vmem:[#allocation15 + $0x370] sm:$0xff]
        %v4322 = vld [vmem:[#allocation15 + $0x378] sm:$0xff]
        %v4323 = vld [vmem:[#allocation15 + $0x380] sm:$0xff]
        %v4324 = vld [vmem:[#allocation15 + $0x388] sm:$0xff]
        %v4325 = vld [vmem:[#allocation15 + $0x390] sm:$0xff]
        %v4326 = vld [vmem:[#allocation15 + $0x398] sm:$0xff]
        %v4327 = vld [vmem:[#allocation15 + $0x3a0] sm:$0xff]
        %v4328 = vld [vmem:[#allocation15 + $0x3a8] sm:$0xff]
        %v4329 = vld [vmem:[#allocation15 + $0x3b0] sm:$0xff]
        %v4330 = vld [vmem:[#allocation15 + $0x3b8] sm:$0xff]
        %v4331 = vld [vmem:[#allocation15 + $0x3c0] sm:$0xff]
        %v4332 = vld [vmem:[#allocation15 + $0x3c8] sm:$0xff]
        %v4333 = vld [vmem:[#allocation15 + $0x3d0] sm:$0xff]
        %v4334 = vld [vmem:[#allocation15 + $0x3d8] sm:$0xff]
        %v4335 = vld [vmem:[#allocation15 + $0x3e0] sm:$0xff]
        %v4336 = vld [vmem:[#allocation15 + $0x3e8] sm:$0xff]
        %v4337 = vld [vmem:[#allocation15 + $0x3f0] sm:$0xff]
        %v4338 = vld [vmem:[#allocation15 + $0x3f8] sm:$0xff]
        %v4339 = vld [vmem:[#allocation15 + $0x400] sm:$0xff]
        %v4340 = vld [vmem:[#allocation15 + $0x408] sm:$0xff]
        %v4341 = vld [vmem:[#allocation15 + $0x410] sm:$0xff]
        %v4342 = vld [vmem:[#allocation15 + $0x418] sm:$0xff]
        %v4343 = vld [vmem:[#allocation15 + $0x420] sm:$0xff]
        %v4344 = vld [vmem:[#allocation15 + $0x428] sm:$0xff]
        %v4345 = vld [vmem:[#allocation15 + $0x430] sm:$0xff]
        %v4346 = vld [vmem:[#allocation15 + $0x438] sm:$0xff]
        %v4347 = vld [vmem:[#allocation15 + $0x440] sm:$0xff]
        %v4348 = vld [vmem:[#allocation15 + $0x448] sm:$0xff]
        %v4349 = vld [vmem:[#allocation15 + $0x450] sm:$0xff]
        %v4350 = vld [vmem:[#allocation15 + $0x458] sm:$0xff]
        %v4351 = vld [vmem:[#allocation15 + $0x460] sm:$0xff]
        %v4352 = vld [vmem:[#allocation15 + $0x468] sm:$0xff]
        %v4353 = vld [vmem:[#allocation15 + $0x470] sm:$0xff]
        %v4354 = vld [vmem:[#allocation15 + $0x478] sm:$0xff]
        %v4499 = vunpack.c.l.b16 %v4211
        %v4500 = vunpack.c.h.b16 %v4211
        %v4501 = vunpack.c.l.b16 %v4212
        %v4502 = vunpack.c.h.b16 %v4212
        %v4503 = vunpack.c.l.b16 %v4213
        %v4504 = vunpack.c.h.b16 %v4213
        %v4505 = vunpack.c.l.b16 %v4214
        %v4506 = vunpack.c.h.b16 %v4214
        %v4507 = vunpack.c.l.b16 %v4215
        %v4508 = vunpack.c.h.b16 %v4215
        %v4509 = vunpack.c.l.b16 %v4216
        %v4510 = vunpack.c.h.b16 %v4216
        %v4511 = vunpack.c.l.b16 %v4217
        %v4512 = vunpack.c.h.b16 %v4217
        %v4513 = vunpack.c.l.b16 %v4218
        %v4514 = vunpack.c.h.b16 %v4218
        %v4515 = vunpack.c.l.b16 %v4219
        %v4516 = vunpack.c.h.b16 %v4219
        %v4517 = vunpack.c.l.b16 %v4220
        %v4518 = vunpack.c.h.b16 %v4220
        %v4519 = vunpack.c.l.b16 %v4221
        %v4520 = vunpack.c.h.b16 %v4221
        %v4521 = vunpack.c.l.b16 %v4222
        %v4522 = vunpack.c.h.b16 %v4222
        %v4523 = vunpack.c.l.b16 %v4223
        %v4524 = vunpack.c.h.b16 %v4223
        %v4525 = vunpack.c.l.b16 %v4224
        %v4526 = vunpack.c.h.b16 %v4224
        %v4527 = vunpack.c.l.b16 %v4225
        %v4528 = vunpack.c.h.b16 %v4225
        %v4529 = vunpack.c.l.b16 %v4226
        %v4530 = vunpack.c.h.b16 %v4226
        %v4531 = vunpack.c.l.b16 %v4227
        %v4532 = vunpack.c.h.b16 %v4227
        %v4533 = vunpack.c.l.b16 %v4228
        %v4534 = vunpack.c.h.b16 %v4228
        %v4535 = vunpack.c.l.b16 %v4229
        %v4536 = vunpack.c.h.b16 %v4229
        %v4537 = vunpack.c.l.b16 %v4230
        %v4538 = vunpack.c.h.b16 %v4230
        %v4539 = vunpack.c.l.b16 %v4231
        %v4540 = vunpack.c.h.b16 %v4231
        %v4541 = vunpack.c.l.b16 %v4232
        %v4542 = vunpack.c.h.b16 %v4232
        %v4543 = vunpack.c.l.b16 %v4233
        %v4544 = vunpack.c.h.b16 %v4233
        %v4545 = vunpack.c.l.b16 %v4234
        %v4546 = vunpack.c.h.b16 %v4234
        %v4547 = vunpack.c.l.b16 %v4235
        %v4548 = vunpack.c.h.b16 %v4235
        %v4549 = vunpack.c.l.b16 %v4236
        %v4550 = vunpack.c.h.b16 %v4236
        %v4551 = vunpack.c.l.b16 %v4237
        %v4552 = vunpack.c.h.b16 %v4237
        %v4553 = vunpack.c.l.b16 %v4238
        %v4554 = vunpack.c.h.b16 %v4238
        %v4555 = vunpack.c.l.b16 %v4239
        %v4556 = vunpack.c.h.b16 %v4239
        %v4557 = vunpack.c.l.b16 %v4240
        %v4558 = vunpack.c.h.b16 %v4240
        %v4559 = vunpack.c.l.b16 %v4241
        %v4560 = vunpack.c.h.b16 %v4241
        %v4561 = vunpack.c.l.b16 %v4242
        %v4562 = vunpack.c.h.b16 %v4242
        %v4563 = vunpack.c.l.b16 %v4243
        %v4564 = vunpack.c.h.b16 %v4243
        %v4565 = vunpack.c.l.b16 %v4244
        %v4566 = vunpack.c.h.b16 %v4244
        %v4567 = vunpack.c.l.b16 %v4245
        %v4568 = vunpack.c.h.b16 %v4245
        %v4569 = vunpack.c.l.b16 %v4246
        %v4570 = vunpack.c.h.b16 %v4246
        %v4571 = vunpack.c.l.b16 %v4247
        %v4572 = vunpack.c.h.b16 %v4247
        %v4573 = vunpack.c.l.b16 %v4248
        %v4574 = vunpack.c.h.b16 %v4248
        %v4575 = vunpack.c.l.b16 %v4249
        %v4576 = vunpack.c.h.b16 %v4249
        %v4577 = vunpack.c.l.b16 %v4250
        %v4578 = vunpack.c.h.b16 %v4250
        %v4579 = vunpack.c.l.b16 %v4251
        %v4580 = vunpack.c.h.b16 %v4251
        %v4581 = vunpack.c.l.b16 %v4252
        %v4582 = vunpack.c.h.b16 %v4252
        %v4583 = vunpack.c.l.b16 %v4253
        %v4584 = vunpack.c.h.b16 %v4253
        %v4585 = vunpack.c.l.b16 %v4254
        %v4586 = vunpack.c.h.b16 %v4254
        %v4587 = vunpack.c.l.b16 %v4255
        %v4588 = vunpack.c.h.b16 %v4255
        %v4589 = vunpack.c.l.b16 %v4256
        %v4590 = vunpack.c.h.b16 %v4256
        %v4591 = vunpack.c.l.b16 %v4257
        %v4592 = vunpack.c.h.b16 %v4257
        %v4593 = vunpack.c.l.b16 %v4258
        %v4594 = vunpack.c.h.b16 %v4258
        %v4595 = vunpack.c.l.b16 %v4259
        %v4596 = vunpack.c.h.b16 %v4259
        %v4597 = vunpack.c.l.b16 %v4260
        %v4598 = vunpack.c.h.b16 %v4260
        %v4599 = vunpack.c.l.b16 %v4261
        %v4600 = vunpack.c.h.b16 %v4261
        %v4601 = vunpack.c.l.b16 %v4262
        %v4602 = vunpack.c.h.b16 %v4262
        %v4603 = vunpack.c.l.b16 %v4263
        %v4604 = vunpack.c.h.b16 %v4263
        %v4605 = vunpack.c.l.b16 %v4264
        %v4606 = vunpack.c.h.b16 %v4264
        %v4607 = vunpack.c.l.b16 %v4265
        %v4608 = vunpack.c.h.b16 %v4265
        %v4609 = vunpack.c.l.b16 %v4266
        %v4610 = vunpack.c.h.b16 %v4266
        %v4611 = vunpack.c.l.b16 %v4267
        %v4612 = vunpack.c.h.b16 %v4267
        %v4613 = vunpack.c.l.b16 %v4268
        %v4614 = vunpack.c.h.b16 %v4268
        %v4615 = vunpack.c.l.b16 %v4269
        %v4616 = vunpack.c.h.b16 %v4269
        %v4617 = vunpack.c.l.b16 %v4270
        %v4618 = vunpack.c.h.b16 %v4270
        %v4619 = vunpack.c.l.b16 %v4271
        %v4620 = vunpack.c.h.b16 %v4271
        %v4621 = vunpack.c.l.b16 %v4272
        %v4622 = vunpack.c.h.b16 %v4272
        %v4623 = vunpack.c.l.b16 %v4273
        %v4624 = vunpack.c.h.b16 %v4273
        %v4625 = vunpack.c.l.b16 %v4274
        %v4626 = vunpack.c.h.b16 %v4274
        %v4627 = vunpack.c.l.b16 %v4275
        %v4628 = vunpack.c.h.b16 %v4275
        %v4629 = vunpack.c.l.b16 %v4276
        %v4630 = vunpack.c.h.b16 %v4276
        %v4631 = vunpack.c.l.b16 %v4277
        %v4632 = vunpack.c.h.b16 %v4277
        %v4633 = vunpack.c.l.b16 %v4278
        %v4634 = vunpack.c.h.b16 %v4278
        %v4635 = vunpack.c.l.b16 %v4279
        %v4636 = vunpack.c.h.b16 %v4279
        %v4637 = vunpack.c.l.b16 %v4280
        %v4638 = vunpack.c.h.b16 %v4280
        %v4639 = vunpack.c.l.b16 %v4281
        %v4640 = vunpack.c.h.b16 %v4281
        %v4641 = vunpack.c.l.b16 %v4282
        %v4642 = vunpack.c.h.b16 %v4282
        %v4643 = vunpack.c.l.b16 %v4283
        %v4644 = vunpack.c.h.b16 %v4283
        %v4645 = vunpack.c.l.b16 %v4284
        %v4646 = vunpack.c.h.b16 %v4284
        %v4647 = vunpack.c.l.b16 %v4285
        %v4648 = vunpack.c.h.b16 %v4285
        %v4649 = vunpack.c.l.b16 %v4286
        %v4650 = vunpack.c.h.b16 %v4286
        %v4651 = vunpack.c.l.b16 %v4287
        %v4652 = vunpack.c.h.b16 %v4287
        %v4653 = vunpack.c.l.b16 %v4288
        %v4654 = vunpack.c.h.b16 %v4288
        %v4655 = vunpack.c.l.b16 %v4289
        %v4656 = vunpack.c.h.b16 %v4289
        %v4657 = vunpack.c.l.b16 %v4290
        %v4658 = vunpack.c.h.b16 %v4290
        %v4659 = vunpack.c.l.b16 %v4291
        %v4660 = vunpack.c.h.b16 %v4291
        %v4661 = vunpack.c.l.b16 %v4292
        %v4662 = vunpack.c.h.b16 %v4292
        %v4663 = vunpack.c.l.b16 %v4293
        %v4664 = vunpack.c.h.b16 %v4293
        %v4665 = vunpack.c.l.b16 %v4294
        %v4666 = vunpack.c.h.b16 %v4294
        %v4667 = vunpack.c.l.b16 %v4295
        %v4668 = vunpack.c.h.b16 %v4295
        %v4669 = vunpack.c.l.b16 %v4296
        %v4670 = vunpack.c.h.b16 %v4296
        %v4671 = vunpack.c.l.b16 %v4297
        %v4672 = vunpack.c.h.b16 %v4297
        %v4673 = vunpack.c.l.b16 %v4298
        %v4674 = vunpack.c.h.b16 %v4298
        %v4675 = vunpack.c.l.b16 %v4299
        %v4676 = vunpack.c.h.b16 %v4299
        %v4677 = vunpack.c.l.b16 %v4300
        %v4678 = vunpack.c.h.b16 %v4300
        %v4679 = vunpack.c.l.b16 %v4301
        %v4680 = vunpack.c.h.b16 %v4301
        %v4681 = vunpack.c.l.b16 %v4302
        %v4682 = vunpack.c.h.b16 %v4302
        %v4683 = vunpack.c.l.b16 %v4303
        %v4684 = vunpack.c.h.b16 %v4303
        %v4685 = vunpack.c.l.b16 %v4304
        %v4686 = vunpack.c.h.b16 %v4304
        %v4687 = vunpack.c.l.b16 %v4305
        %v4688 = vunpack.c.h.b16 %v4305
        %v4689 = vunpack.c.l.b16 %v4306
        %v4690 = vunpack.c.h.b16 %v4306
        %v4691 = vunpack.c.l.b16 %v4307
        %v4692 = vunpack.c.h.b16 %v4307
        %v4693 = vunpack.c.l.b16 %v4308
        %v4694 = vunpack.c.h.b16 %v4308
        %v4695 = vunpack.c.l.b16 %v4309
        %v4696 = vunpack.c.h.b16 %v4309
        %v4697 = vunpack.c.l.b16 %v4310
        %v4698 = vunpack.c.h.b16 %v4310
        %v4699 = vunpack.c.l.b16 %v4311
        %v4700 = vunpack.c.h.b16 %v4311
        %v4701 = vunpack.c.l.b16 %v4312
        %v4702 = vunpack.c.h.b16 %v4312
        %v4703 = vunpack.c.l.b16 %v4313
        %v4704 = vunpack.c.h.b16 %v4313
        %v4705 = vunpack.c.l.b16 %v4314
        %v4706 = vunpack.c.h.b16 %v4314
        %v4707 = vunpack.c.l.b16 %v4315
        %v4708 = vunpack.c.h.b16 %v4315
        %v4709 = vunpack.c.l.b16 %v4316
        %v4710 = vunpack.c.h.b16 %v4316
        %v4711 = vunpack.c.l.b16 %v4317
        %v4712 = vunpack.c.h.b16 %v4317
        %v4713 = vunpack.c.l.b16 %v4318
        %v4714 = vunpack.c.h.b16 %v4318
        %v4715 = vunpack.c.l.b16 %v4319
        %v4716 = vunpack.c.h.b16 %v4319
        %v4717 = vunpack.c.l.b16 %v4320
        %v4718 = vunpack.c.h.b16 %v4320
        %v4719 = vunpack.c.l.b16 %v4321
        %v4720 = vunpack.c.h.b16 %v4321
        %v4721 = vunpack.c.l.b16 %v4322
        %v4722 = vunpack.c.h.b16 %v4322
        %v4723 = vunpack.c.l.b16 %v4323
        %v4724 = vunpack.c.h.b16 %v4323
        %v4725 = vunpack.c.l.b16 %v4324
        %v4726 = vunpack.c.h.b16 %v4324
        %v4727 = vunpack.c.l.b16 %v4325
        %v4728 = vunpack.c.h.b16 %v4325
        %v4729 = vunpack.c.l.b16 %v4326
        %v4730 = vunpack.c.h.b16 %v4326
        %v4731 = vunpack.c.l.b16 %v4327
        %v4732 = vunpack.c.h.b16 %v4327
        %v4733 = vunpack.c.l.b16 %v4328
        %v4734 = vunpack.c.h.b16 %v4328
        %v4735 = vunpack.c.l.b16 %v4329
        %v4736 = vunpack.c.h.b16 %v4329
        %v4737 = vunpack.c.l.b16 %v4330
        %v4738 = vunpack.c.h.b16 %v4330
        %v4739 = vunpack.c.l.b16 %v4331
        %v4740 = vunpack.c.h.b16 %v4331
        %v4741 = vunpack.c.l.b16 %v4332
        %v4742 = vunpack.c.h.b16 %v4332
        %v4743 = vunpack.c.l.b16 %v4333
        %v4744 = vunpack.c.h.b16 %v4333
        %v4745 = vunpack.c.l.b16 %v4334
        %v4746 = vunpack.c.h.b16 %v4334
        %v4747 = vunpack.c.l.b16 %v4335
        %v4748 = vunpack.c.h.b16 %v4335
        %v4749 = vunpack.c.l.b16 %v4336
        %v4750 = vunpack.c.h.b16 %v4336
        %v4751 = vunpack.c.l.b16 %v4337
        %v4752 = vunpack.c.h.b16 %v4337
        %v4753 = vunpack.c.l.b16 %v4338
        %v4754 = vunpack.c.h.b16 %v4338
        %v4755 = vunpack.c.l.b16 %v4339
        %v4756 = vunpack.c.h.b16 %v4339
        %v4757 = vunpack.c.l.b16 %v4340
        %v4758 = vunpack.c.h.b16 %v4340
        %v4759 = vunpack.c.l.b16 %v4341
        %v4760 = vunpack.c.h.b16 %v4341
        %v4761 = vunpack.c.l.b16 %v4342
        %v4762 = vunpack.c.h.b16 %v4342
        %v4763 = vunpack.c.l.b16 %v4343
        %v4764 = vunpack.c.h.b16 %v4343
        %v4765 = vunpack.c.l.b16 %v4344
        %v4766 = vunpack.c.h.b16 %v4344
        %v4767 = vunpack.c.l.b16 %v4345
        %v4768 = vunpack.c.h.b16 %v4345
        %v4769 = vunpack.c.l.b16 %v4346
        %v4770 = vunpack.c.h.b16 %v4346
        %v4771 = vunpack.c.l.b16 %v4347
        %v4772 = vunpack.c.h.b16 %v4347
        %v4773 = vunpack.c.l.b16 %v4348
        %v4774 = vunpack.c.h.b16 %v4348
        %v4775 = vunpack.c.l.b16 %v4349
        %v4776 = vunpack.c.h.b16 %v4349
        %v4777 = vunpack.c.l.b16 %v4350
        %v4778 = vunpack.c.h.b16 %v4350
        %v4779 = vunpack.c.l.b16 %v4351
        %v4780 = vunpack.c.h.b16 %v4351
        %v4781 = vunpack.c.l.b16 %v4352
        %v4782 = vunpack.c.h.b16 %v4352
        %v4783 = vunpack.c.l.b16 %v4353
        %v4784 = vunpack.c.h.b16 %v4353
        %v4785 = vunpack.c.l.b16 %v4354
        %v4786 = vunpack.c.h.b16 %v4354
        %v4787 = vpack.c.b16 %v4501, %v4499
        %v4788 = vpack.c.b16 %v4502, %v4500
        %v4789 = vpack.c.b16 %v4505, %v4503
        %v4790 = vpack.c.b16 %v4506, %v4504
        %v4791 = vpack.c.b16 %v4509, %v4507
        %v4792 = vpack.c.b16 %v4510, %v4508
        %v4793 = vpack.c.b16 %v4513, %v4511
        %v4794 = vpack.c.b16 %v4514, %v4512
        %v4795 = vpack.c.b16 %v4517, %v4515
        %v4796 = vpack.c.b16 %v4518, %v4516
        %v4797 = vpack.c.b16 %v4521, %v4519
        %v4798 = vpack.c.b16 %v4522, %v4520
        %v4799 = vpack.c.b16 %v4525, %v4523
        %v4800 = vpack.c.b16 %v4526, %v4524
        %v4801 = vpack.c.b16 %v4529, %v4527
        %v4802 = vpack.c.b16 %v4530, %v4528
        %v4803 = vpack.c.b16 %v4533, %v4531
        %v4804 = vpack.c.b16 %v4534, %v4532
        %v4805 = vpack.c.b16 %v4537, %v4535
        %v4806 = vpack.c.b16 %v4538, %v4536
        %v4807 = vpack.c.b16 %v4541, %v4539
        %v4808 = vpack.c.b16 %v4542, %v4540
        %v4809 = vpack.c.b16 %v4545, %v4543
        %v4810 = vpack.c.b16 %v4546, %v4544
        %v4811 = vpack.c.b16 %v4549, %v4547
        %v4812 = vpack.c.b16 %v4550, %v4548
        %v4813 = vpack.c.b16 %v4553, %v4551
        %v4814 = vpack.c.b16 %v4554, %v4552
        %v4815 = vpack.c.b16 %v4557, %v4555
        %v4816 = vpack.c.b16 %v4558, %v4556
        %v4817 = vpack.c.b16 %v4561, %v4559
        %v4818 = vpack.c.b16 %v4562, %v4560
        %v4819 = vpack.c.b16 %v4565, %v4563
        %v4820 = vpack.c.b16 %v4566, %v4564
        %v4821 = vpack.c.b16 %v4569, %v4567
        %v4822 = vpack.c.b16 %v4570, %v4568
        %v4823 = vpack.c.b16 %v4573, %v4571
        %v4824 = vpack.c.b16 %v4574, %v4572
        %v4825 = vpack.c.b16 %v4577, %v4575
        %v4826 = vpack.c.b16 %v4578, %v4576
        %v4827 = vpack.c.b16 %v4581, %v4579
        %v4828 = vpack.c.b16 %v4582, %v4580
        %v4829 = vpack.c.b16 %v4585, %v4583
        %v4830 = vpack.c.b16 %v4586, %v4584
        %v4831 = vpack.c.b16 %v4589, %v4587
        %v4832 = vpack.c.b16 %v4590, %v4588
        %v4833 = vpack.c.b16 %v4593, %v4591
        %v4834 = vpack.c.b16 %v4594, %v4592
        %v4835 = vpack.c.b16 %v4597, %v4595
        %v4836 = vpack.c.b16 %v4598, %v4596
        %v4837 = vpack.c.b16 %v4601, %v4599
        %v4838 = vpack.c.b16 %v4602, %v4600
        %v4839 = vpack.c.b16 %v4605, %v4603
        %v4840 = vpack.c.b16 %v4606, %v4604
        %v4841 = vpack.c.b16 %v4609, %v4607
        %v4842 = vpack.c.b16 %v4610, %v4608
        %v4843 = vpack.c.b16 %v4613, %v4611
        %v4844 = vpack.c.b16 %v4614, %v4612
        %v4845 = vpack.c.b16 %v4617, %v4615
        %v4846 = vpack.c.b16 %v4618, %v4616
        %v4847 = vpack.c.b16 %v4621, %v4619
        %v4848 = vpack.c.b16 %v4622, %v4620
        %v4849 = vpack.c.b16 %v4625, %v4623
        %v4850 = vpack.c.b16 %v4626, %v4624
        %v4851 = vpack.c.b16 %v4629, %v4627
        %v4852 = vpack.c.b16 %v4630, %v4628
        %v4853 = vpack.c.b16 %v4633, %v4631
        %v4854 = vpack.c.b16 %v4634, %v4632
        %v4855 = vpack.c.b16 %v4637, %v4635
        %v4856 = vpack.c.b16 %v4638, %v4636
        %v4857 = vpack.c.b16 %v4641, %v4639
        %v4858 = vpack.c.b16 %v4642, %v4640
        %v4859 = vpack.c.b16 %v4645, %v4643
        %v4860 = vpack.c.b16 %v4646, %v4644
        %v4861 = vpack.c.b16 %v4649, %v4647
        %v4862 = vpack.c.b16 %v4650, %v4648
        %v4863 = vpack.c.b16 %v4653, %v4651
        %v4864 = vpack.c.b16 %v4654, %v4652
        %v4865 = vpack.c.b16 %v4657, %v4655
        %v4866 = vpack.c.b16 %v4658, %v4656
        %v4867 = vpack.c.b16 %v4661, %v4659
        %v4868 = vpack.c.b16 %v4662, %v4660
        %v4869 = vpack.c.b16 %v4665, %v4663
        %v4870 = vpack.c.b16 %v4666, %v4664
        %v4871 = vpack.c.b16 %v4669, %v4667
        %v4872 = vpack.c.b16 %v4670, %v4668
        %v4873 = vpack.c.b16 %v4673, %v4671
        %v4874 = vpack.c.b16 %v4674, %v4672
        %v4875 = vpack.c.b16 %v4677, %v4675
        %v4876 = vpack.c.b16 %v4678, %v4676
        %v4877 = vpack.c.b16 %v4681, %v4679
        %v4878 = vpack.c.b16 %v4682, %v4680
        %v4879 = vpack.c.b16 %v4685, %v4683
        %v4880 = vpack.c.b16 %v4686, %v4684
        %v4881 = vpack.c.b16 %v4689, %v4687
        %v4882 = vpack.c.b16 %v4690, %v4688
        %v4883 = vpack.c.b16 %v4693, %v4691
        %v4884 = vpack.c.b16 %v4694, %v4692
        %v4885 = vpack.c.b16 %v4697, %v4695
        %v4886 = vpack.c.b16 %v4698, %v4696
        %v4887 = vpack.c.b16 %v4701, %v4699
        %v4888 = vpack.c.b16 %v4702, %v4700
        %v4889 = vpack.c.b16 %v4705, %v4703
        %v4890 = vpack.c.b16 %v4706, %v4704
        %v4891 = vpack.c.b16 %v4709, %v4707
        %v4892 = vpack.c.b16 %v4710, %v4708
        %v4893 = vpack.c.b16 %v4713, %v4711
        %v4894 = vpack.c.b16 %v4714, %v4712
        %v4895 = vpack.c.b16 %v4717, %v4715
        %v4896 = vpack.c.b16 %v4718, %v4716
        %v4897 = vpack.c.b16 %v4721, %v4719
        %v4898 = vpack.c.b16 %v4722, %v4720
        %v4899 = vpack.c.b16 %v4725, %v4723
        %v4900 = vpack.c.b16 %v4726, %v4724
        %v4901 = vpack.c.b16 %v4729, %v4727
        %v4902 = vpack.c.b16 %v4730, %v4728
        %v4903 = vpack.c.b16 %v4733, %v4731
        %v4904 = vpack.c.b16 %v4734, %v4732
        %v4905 = vpack.c.b16 %v4737, %v4735
        %v4906 = vpack.c.b16 %v4738, %v4736
        %v4907 = vpack.c.b16 %v4741, %v4739
        %v4908 = vpack.c.b16 %v4742, %v4740
        %v4909 = vpack.c.b16 %v4745, %v4743
        %v4910 = vpack.c.b16 %v4746, %v4744
        %v4911 = vpack.c.b16 %v4749, %v4747
        %v4912 = vpack.c.b16 %v4750, %v4748
        %v4913 = vpack.c.b16 %v4753, %v4751
        %v4914 = vpack.c.b16 %v4754, %v4752
        %v4915 = vpack.c.b16 %v4757, %v4755
        %v4916 = vpack.c.b16 %v4758, %v4756
        %v4917 = vpack.c.b16 %v4761, %v4759
        %v4918 = vpack.c.b16 %v4762, %v4760
        %v4919 = vpack.c.b16 %v4765, %v4763
        %v4920 = vpack.c.b16 %v4766, %v4764
        %v4921 = vpack.c.b16 %v4769, %v4767
        %v4922 = vpack.c.b16 %v4770, %v4768
        %v4923 = vpack.c.b16 %v4773, %v4771
        %v4924 = vpack.c.b16 %v4774, %v4772
        %v4925 = vpack.c.b16 %v4777, %v4775
        %v4926 = vpack.c.b16 %v4778, %v4776
        %v4927 = vpack.c.b16 %v4781, %v4779
        %v4928 = vpack.c.b16 %v4782, %v4780
        %v4929 = vpack.c.b16 %v4785, %v4783
        %v4930 = vpack.c.b16 %v4786, %v4784
        %5075 = vmatpush.bf16.msra.mxu0 %v4801
        %5076 = vmatpush.bf16.msra.mxu0 %v4799
        %5077 = vmatpush.bf16.msra.mxu0 %v4797
        %5078 = vmatpush.bf16.msra.mxu0 %v4795
        %5079 = vmatpush.bf16.msra.mxu0 %v4793
        %5080 = vmatpush.bf16.msra.mxu0 %v4791
        %5081 = vmatpush.bf16.msra.mxu0 %v4789
        %5082 = vmatpush.bf16.msra.mxu0 %v4787
        %5083 = vmatmul.bf16.gmra.mxu0 %v4202
        %v5084 = vpop.f32.mrf.mxu0
        %v5085 = vadd.f32 0.0, %v5084
        %v5086 = vpop.f32.mrf.mxu0
        %v5087 = vadd.f32 0.0, %v5086
        %5088 = vdwg.mxu0
        %5089 = vmatpush.bf16.msra.mxu0 %v4817
        %5090 = vmatpush.bf16.msra.mxu0 %v4815
        %5091 = vmatpush.bf16.msra.mxu0 %v4813
        %5092 = vmatpush.bf16.msra.mxu0 %v4811
        %5093 = vmatpush.bf16.msra.mxu0 %v4809
        %5094 = vmatpush.bf16.msra.mxu0 %v4807
        %5095 = vmatpush.bf16.msra.mxu0 %v4805
        %5096 = vmatpush.bf16.msra.mxu0 %v4803
        %5097 = vmatmul.bf16.gmra.mxu0 %v4203
        %v5098 = vpop.f32.mrf.mxu0
        %v5099 = vadd.f32 %v5085, %v5098
        %v5100 = vpop.f32.mrf.mxu0
        %v5101 = vadd.f32 %v5087, %v5100
        %5102 = vdwg.mxu0
        %5103 = vmatpush.bf16.msra.mxu0 %v4833
        %5104 = vmatpush.bf16.msra.mxu0 %v4831
        %5105 = vmatpush.bf16.msra.mxu0 %v4829
        %5106 = vmatpush.bf16.msra.mxu0 %v4827
        %5107 = vmatpush.bf16.msra.mxu0 %v4825
        %5108 = vmatpush.bf16.msra.mxu0 %v4823
        %5109 = vmatpush.bf16.msra.mxu0 %v4821
        %5110 = vmatpush.bf16.msra.mxu0 %v4819
        %5111 = vmatmul.bf16.gmra.mxu0 %v4204
        %v5112 = vpop.f32.mrf.mxu0
        %v5113 = vadd.f32 %v5099, %v5112
        %v5114 = vpop.f32.mrf.mxu0
        %v5115 = vadd.f32 %v5101, %v5114
        %5116 = vdwg.mxu0
        %5117 = vmatpush.bf16.msra.mxu0 %v4849
        %5118 = vmatpush.bf16.msra.mxu0 %v4847
        %5119 = vmatpush.bf16.msra.mxu0 %v4845
        %5120 = vmatpush.bf16.msra.mxu0 %v4843
        %5121 = vmatpush.bf16.msra.mxu0 %v4841
        %5122 = vmatpush.bf16.msra.mxu0 %v4839
        %5123 = vmatpush.bf16.msra.mxu0 %v4837
        %5124 = vmatpush.bf16.msra.mxu0 %v4835
        %5125 = vmatmul.bf16.gmra.mxu0 %v4205
        %v5126 = vpop.f32.mrf.mxu0
        %v5127 = vadd.f32 %v5113, %v5126
        %v5128 = vpop.f32.mrf.mxu0
        %v5129 = vadd.f32 %v5115, %v5128
        %5130 = vdwg.mxu0
        %5131 = vmatpush.bf16.msra.mxu0 %v4865
        %5132 = vmatpush.bf16.msra.mxu0 %v4863
        %5133 = vmatpush.bf16.msra.mxu0 %v4861
        %5134 = vmatpush.bf16.msra.mxu0 %v4859
        %5135 = vmatpush.bf16.msra.mxu0 %v4857
        %5136 = vmatpush.bf16.msra.mxu0 %v4855
        %5137 = vmatpush.bf16.msra.mxu0 %v4853
        %5138 = vmatpush.bf16.msra.mxu0 %v4851
        %5139 = vmatmul.bf16.gmra.mxu0 %v4206
        %v5140 = vpop.f32.mrf.mxu0
        %v5141 = vadd.f32 %v5127, %v5140
        %v5142 = vpop.f32.mrf.mxu0
        %v5143 = vadd.f32 %v5129, %v5142
        %5144 = vdwg.mxu0
        %5145 = vmatpush.bf16.msra.mxu0 %v4881
        %5146 = vmatpush.bf16.msra.mxu0 %v4879
        %5147 = vmatpush.bf16.msra.mxu0 %v4877
        %5148 = vmatpush.bf16.msra.mxu0 %v4875
        %5149 = vmatpush.bf16.msra.mxu0 %v4873
        %5150 = vmatpush.bf16.msra.mxu0 %v4871
        %5151 = vmatpush.bf16.msra.mxu0 %v4869
        %5152 = vmatpush.bf16.msra.mxu0 %v4867
        %5153 = vmatmul.bf16.gmra.mxu0 %v4207
        %v5154 = vpop.f32.mrf.mxu0
        %v5155 = vadd.f32 %v5141, %v5154
        %v5156 = vpop.f32.mrf.mxu0
        %v5157 = vadd.f32 %v5143, %v5156
        %5158 = vdwg.mxu0
        %5159 = vmatpush.bf16.msra.mxu0 %v4897
        %5160 = vmatpush.bf16.msra.mxu0 %v4895
        %5161 = vmatpush.bf16.msra.mxu0 %v4893
        %5162 = vmatpush.bf16.msra.mxu0 %v4891
        %5163 = vmatpush.bf16.msra.mxu0 %v4889
        %5164 = vmatpush.bf16.msra.mxu0 %v4887
        %5165 = vmatpush.bf16.msra.mxu0 %v4885
        %5166 = vmatpush.bf16.msra.mxu0 %v4883
        %5167 = vmatmul.bf16.gmra.mxu0 %v4208
        %v5168 = vpop.f32.mrf.mxu0
        %v5169 = vadd.f32 %v5155, %v5168
        %v5170 = vpop.f32.mrf.mxu0
        %v5171 = vadd.f32 %v5157, %v5170
        %5172 = vdwg.mxu0
        %5173 = vmatpush.bf16.msra.mxu0 %v4913
        %5174 = vmatpush.bf16.msra.mxu0 %v4911
        %5175 = vmatpush.bf16.msra.mxu0 %v4909
        %5176 = vmatpush.bf16.msra.mxu0 %v4907
        %5177 = vmatpush.bf16.msra.mxu0 %v4905
        %5178 = vmatpush.bf16.msra.mxu0 %v4903
        %5179 = vmatpush.bf16.msra.mxu0 %v4901
        %5180 = vmatpush.bf16.msra.mxu0 %v4899
        %5181 = vmatmul.bf16.gmra.mxu0 %v4209
        %v5182 = vpop.f32.mrf.mxu0
        %v5183 = vadd.f32 %v5169, %v5182
        %v5184 = vpop.f32.mrf.mxu0
        %v5185 = vadd.f32 %v5171, %v5184
        %5186 = vdwg.mxu0
        %5187 = vmatpush.bf16.msra.mxu0 %v4929
        %5188 = vmatpush.bf16.msra.mxu0 %v4927
        %5189 = vmatpush.bf16.msra.mxu0 %v4925
        %5190 = vmatpush.bf16.msra.mxu0 %v4923
        %5191 = vmatpush.bf16.msra.mxu0 %v4921
        %5192 = vmatpush.bf16.msra.mxu0 %v4919
        %5193 = vmatpush.bf16.msra.mxu0 %v4917
        %5194 = vmatpush.bf16.msra.mxu0 %v4915
        %5195 = vmatmul.bf16.gmra.mxu0 %v4210
        %v5196 = vpop.f32.mrf.mxu0
        %v5197 = vadd.f32 %v5183, %v5196
        %v5198 = vpop.f32.mrf.mxu0
        %v5199 = vadd.f32 %v5185, %v5198
        %5200 = vdwg.mxu0
        %5201 = vmatpush.bf16.msra.mxu0 %v4802
        %5202 = vmatpush.bf16.msra.mxu0 %v4800
        %5203 = vmatpush.bf16.msra.mxu0 %v4798
        %5204 = vmatpush.bf16.msra.mxu0 %v4796
        %5205 = vmatpush.bf16.msra.mxu0 %v4794
        %5206 = vmatpush.bf16.msra.mxu0 %v4792
        %5207 = vmatpush.bf16.msra.mxu0 %v4790
        %5208 = vmatpush.bf16.msra.mxu0 %v4788
        %5209 = vmatmul.bf16.gmra.mxu0 %v4202
        %v5210 = vpop.f32.mrf.mxu0
        %v5211 = vadd.f32 0.0, %v5210
        %v5212 = vpop.f32.mrf.mxu0
        %v5213 = vadd.f32 0.0, %v5212
        %5214 = vdwg.mxu0
        %5215 = vmatpush.bf16.msra.mxu0 %v4818
        %5216 = vmatpush.bf16.msra.mxu0 %v4816
        %5217 = vmatpush.bf16.msra.mxu0 %v4814
        %5218 = vmatpush.bf16.msra.mxu0 %v4812
        %5219 = vmatpush.bf16.msra.mxu0 %v4810
        %5220 = vmatpush.bf16.msra.mxu0 %v4808
        %5221 = vmatpush.bf16.msra.mxu0 %v4806
        %5222 = vmatpush.bf16.msra.mxu0 %v4804
        %5223 = vmatmul.bf16.gmra.mxu0 %v4203
        %v5224 = vpop.f32.mrf.mxu0
        %v5225 = vadd.f32 %v5211, %v5224
        %v5226 = vpop.f32.mrf.mxu0
        %v5227 = vadd.f32 %v5213, %v5226
        %5228 = vdwg.mxu0
        %5229 = vmatpush.bf16.msra.mxu0 %v4834
        %5230 = vmatpush.bf16.msra.mxu0 %v4832
        %5231 = vmatpush.bf16.msra.mxu0 %v4830
        %5232 = vmatpush.bf16.msra.mxu0 %v4828
        %5233 = vmatpush.bf16.msra.mxu0 %v4826
        %5234 = vmatpush.bf16.msra.mxu0 %v4824
        %5235 = vmatpush.bf16.msra.mxu0 %v4822
        %5236 = vmatpush.bf16.msra.mxu0 %v4820
        %5237 = vmatmul.bf16.gmra.mxu0 %v4204
        %v5238 = vpop.f32.mrf.mxu0
        %v5239 = vadd.f32 %v5225, %v5238
        %v5240 = vpop.f32.mrf.mxu0
        %v5241 = vadd.f32 %v5227, %v5240
        %5242 = vdwg.mxu0
        %5243 = vmatpush.bf16.msra.mxu0 %v4850
        %5244 = vmatpush.bf16.msra.mxu0 %v4848
        %5245 = vmatpush.bf16.msra.mxu0 %v4846
        %5246 = vmatpush.bf16.msra.mxu0 %v4844
        %5247 = vmatpush.bf16.msra.mxu0 %v4842
        %5248 = vmatpush.bf16.msra.mxu0 %v4840
        %5249 = vmatpush.bf16.msra.mxu0 %v4838
        %5250 = vmatpush.bf16.msra.mxu0 %v4836
        %5251 = vmatmul.bf16.gmra.mxu0 %v4205
        %v5252 = vpop.f32.mrf.mxu0
        %v5253 = vadd.f32 %v5239, %v5252
        %v5254 = vpop.f32.mrf.mxu0
        %v5255 = vadd.f32 %v5241, %v5254
        %5256 = vdwg.mxu0
        %5257 = vmatpush.bf16.msra.mxu0 %v4866
        %5258 = vmatpush.bf16.msra.mxu0 %v4864
        %5259 = vmatpush.bf16.msra.mxu0 %v4862
        %5260 = vmatpush.bf16.msra.mxu0 %v4860
        %5261 = vmatpush.bf16.msra.mxu0 %v4858
        %5262 = vmatpush.bf16.msra.mxu0 %v4856
        %5263 = vmatpush.bf16.msra.mxu0 %v4854
        %5264 = vmatpush.bf16.msra.mxu0 %v4852
        %5265 = vmatmul.bf16.gmra.mxu0 %v4206
        %v5266 = vpop.f32.mrf.mxu0
        %v5267 = vadd.f32 %v5253, %v5266
        %v5268 = vpop.f32.mrf.mxu0
        %v5269 = vadd.f32 %v5255, %v5268
        %5270 = vdwg.mxu0
        %5271 = vmatpush.bf16.msra.mxu0 %v4882
        %5272 = vmatpush.bf16.msra.mxu0 %v4880
        %5273 = vmatpush.bf16.msra.mxu0 %v4878
        %5274 = vmatpush.bf16.msra.mxu0 %v4876
        %5275 = vmatpush.bf16.msra.mxu0 %v4874
        %5276 = vmatpush.bf16.msra.mxu0 %v4872
        %5277 = vmatpush.bf16.msra.mxu0 %v4870
        %5278 = vmatpush.bf16.msra.mxu0 %v4868
        %5279 = vmatmul.bf16.gmra.mxu0 %v4207
        %v5280 = vpop.f32.mrf.mxu0
        %v5281 = vadd.f32 %v5267, %v5280
        %v5282 = vpop.f32.mrf.mxu0
        %v5283 = vadd.f32 %v5269, %v5282
        %5284 = vdwg.mxu0
        %5285 = vmatpush.bf16.msra.mxu0 %v4898
        %5286 = vmatpush.bf16.msra.mxu0 %v4896
        %5287 = vmatpush.bf16.msra.mxu0 %v4894
        %5288 = vmatpush.bf16.msra.mxu0 %v4892
        %5289 = vmatpush.bf16.msra.mxu0 %v4890
        %5290 = vmatpush.bf16.msra.mxu0 %v4888
        %5291 = vmatpush.bf16.msra.mxu0 %v4886
        %5292 = vmatpush.bf16.msra.mxu0 %v4884
        %5293 = vmatmul.bf16.gmra.mxu0 %v4208
        %v5294 = vpop.f32.mrf.mxu0
        %v5295 = vadd.f32 %v5281, %v5294
        %v5296 = vpop.f32.mrf.mxu0
        %v5297 = vadd.f32 %v5283, %v5296
        %5298 = vdwg.mxu0
        %5299 = vmatpush.bf16.msra.mxu0 %v4914
        %5300 = vmatpush.bf16.msra.mxu0 %v4912
        %5301 = vmatpush.bf16.msra.mxu0 %v4910
        %5302 = vmatpush.bf16.msra.mxu0 %v4908
        %5303 = vmatpush.bf16.msra.mxu0 %v4906
        %5304 = vmatpush.bf16.msra.mxu0 %v4904
        %5305 = vmatpush.bf16.msra.mxu0 %v4902
        %5306 = vmatpush.bf16.msra.mxu0 %v4900
        %5307 = vmatmul.bf16.gmra.mxu0 %v4209
        %v5308 = vpop.f32.mrf.mxu0
        %v5309 = vadd.f32 %v5295, %v5308
        %v5310 = vpop.f32.mrf.mxu0
        %v5311 = vadd.f32 %v5297, %v5310
        %5312 = vdwg.mxu0
        %5313 = vmatpush.bf16.msra.mxu0 %v4930
        %5314 = vmatpush.bf16.msra.mxu0 %v4928
        %5315 = vmatpush.bf16.msra.mxu0 %v4926
        %5316 = vmatpush.bf16.msra.mxu0 %v4924
        %5317 = vmatpush.bf16.msra.mxu0 %v4922
        %5318 = vmatpush.bf16.msra.mxu0 %v4920
        %5319 = vmatpush.bf16.msra.mxu0 %v4918
        %5320 = vmatpush.bf16.msra.mxu0 %v4916
        %5321 = vmatmul.bf16.gmra.mxu0 %v4210
        %v5322 = vpop.f32.mrf.mxu0
        %v5323 = vadd.f32 %v5309, %v5322
        %v5324 = vpop.f32.mrf.mxu0
        %v5325 = vadd.f32 %v5311, %v5324
        %5326 = vdwg.mxu0
        %v5327 = vld [vmem:[#allocation16] sm:$0x3]
        %v5329 = vperm.slane %v5327, 0
        %v5330 = vperm.slane %v5327, 1
        %v5333 = vmul.f32 %v5197, %v5329
        %v5334 = vmul.f32 %v5323, %v5330
        %v5335 = vmul.f32 %v5199, %v5329
        %v5336 = vmul.f32 %v5325, %v5330
        %v5337 = vld [vmem:[#allocation18] sm:$0x3]
        %v5339 = vperm.slane %v5337, 0
        %v5340 = vperm.slane %v5337, 1
        %v5343 = vadd.f32 %v5333, %v5339
        %v5344 = vadd.f32 %v5334, %v5340
        %v5345 = vadd.f32 %v5335, %v5339
        %v5346 = vadd.f32 %v5336, %v5340
        %v5347 = vmax.f32 %v5343, 0.0
        %v5348 = vmax.f32 %v5344, 0.0
        %v5349 = vmax.f32 %v5345, 0.0
        %v5350 = vmax.f32 %v5346, 0.0
        %v5355 = vrot.slane %v5348, 4
        %v5356 = vrot.slane %v5350, 4
        %vm5357 = vcmask 1043456
        %v5358 = vsel %vm5357, %v5347, %v5355
        %v5359 = vsel %vm5357, %v5355, %v5347
        %v5360 = vrot.slane %v5359, 4
        %v5361 = vsel %vm5357, %v5349, %v5356
        %v5362 = vsel %vm5357, %v5356, %v5349
        %v5363 = vrot.slane %v5362, 4
        %v5369 = vunpack.c.l.s4 1935823168
        %v5370 = vunpack.c.0.s8 %v5369
        %v5371 = vperm.slane %v5358, %v5370
        %v5373 = vunpack.c.l.s4 1935823168
        %v5374 = vunpack.c.0.s8 %v5373
        %v5375 = vperm.slane %v5360, %v5374
        %v5377 = vunpack.c.l.s4 1935823168
        %v5378 = vunpack.c.0.s8 %v5377
        %v5379 = vperm.slane %v5361, %v5378
        %v5381 = vunpack.c.l.s4 1935823168
        %v5382 = vunpack.c.0.s8 %v5381
        %v5383 = vperm.slane %v5363, %v5382
        %v5388 = vperm.slane %v5371, 0
        %v5389 = vperm.slane %v5371, 1
        %v5390 = vperm.slane %v5371, 2
        %v5391 = vperm.slane %v5371, 3
        %v5392 = vperm.slane %v5371, 4
        %v5393 = vperm.slane %v5371, 5
        %v5394 = vperm.slane %v5371, 6
        %v5395 = vperm.slane %v5371, 7
        %v5396 = vperm.slane %v5375, 0
        %v5397 = vperm.slane %v5375, 1
        %v5398 = vperm.slane %v5375, 2
        %v5399 = vperm.slane %v5375, 3
        %v5400 = vperm.slane %v5375, 4
        %v5401 = vperm.slane %v5375, 5
        %v5402 = vperm.slane %v5375, 6
        %v5403 = vperm.slane %v5375, 7
        %v5404 = vperm.slane %v5379, 0
        %v5405 = vperm.slane %v5379, 1
        %v5406 = vperm.slane %v5379, 2
        %v5407 = vperm.slane %v5379, 3
        %v5408 = vperm.slane %v5379, 4
        %v5409 = vperm.slane %v5379, 5
        %v5410 = vperm.slane %v5379, 6
        %v5411 = vperm.slane %v5379, 7
        %v5412 = vperm.slane %v5383, 0
        %v5413 = vperm.slane %v5383, 1
        %v5414 = vperm.slane %v5383, 2
        %v5415 = vperm.slane %v5383, 3
        %v5416 = vperm.slane %v5383, 4
        %v5417 = vperm.slane %v5383, 5
        %v5418 = vperm.slane %v5383, 6
        %v5419 = vperm.slane %v5383, 7
        %v5452 = vpack.c.bf16 %v5388, %v5388
        %v5453 = vpack.c.bf16 %v5389, %v5389
        %v5454 = vpack.c.bf16 %v5390, %v5390
        %v5455 = vpack.c.bf16 %v5391, %v5391
        %v5456 = vpack.c.bf16 %v5392, %v5392
        %v5457 = vpack.c.bf16 %v5393, %v5393
        %v5458 = vpack.c.bf16 %v5394, %v5394
        %v5459 = vpack.c.bf16 %v5395, %v5395
        %v5460 = vpack.c.bf16 %v5396, %v5396
        %v5461 = vpack.c.bf16 %v5397, %v5397
        %v5462 = vpack.c.bf16 %v5398, %v5398
        %v5463 = vpack.c.bf16 %v5399, %v5399
        %v5464 = vpack.c.bf16 %v5400, %v5400
        %v5465 = vpack.c.bf16 %v5401, %v5401
        %v5466 = vpack.c.bf16 %v5402, %v5402
        %v5467 = vpack.c.bf16 %v5403, %v5403
        %v5468 = vpack.c.bf16 %v5404, %v5404
        %v5469 = vpack.c.bf16 %v5405, %v5405
        %v5470 = vpack.c.bf16 %v5406, %v5406
        %v5471 = vpack.c.bf16 %v5407, %v5407
        %v5472 = vpack.c.bf16 %v5408, %v5408
        %v5473 = vpack.c.bf16 %v5409, %v5409
        %v5474 = vpack.c.bf16 %v5410, %v5410
        %v5475 = vpack.c.bf16 %v5411, %v5411
        %v5476 = vpack.c.bf16 %v5412, %v5412
        %v5477 = vpack.c.bf16 %v5413, %v5413
        %v5478 = vpack.c.bf16 %v5414, %v5414
        %v5479 = vpack.c.bf16 %v5415, %v5415
        %v5480 = vpack.c.bf16 %v5416, %v5416
        %v5481 = vpack.c.bf16 %v5417, %v5417
        %v5482 = vpack.c.bf16 %v5418, %v5418
        %v5483 = vpack.c.bf16 %v5419, %v5419
        %v5484 = vld [vmem:[#allocation19] sm:$0xff]
        %v5485 = vld [vmem:[#allocation19 + $0x8] sm:$0xff]
        %v5486 = vld [vmem:[#allocation19 + $0x10] sm:$0xff]
        %v5487 = vld [vmem:[#allocation19 + $0x18] sm:$0xff]
        %v5488 = vld [vmem:[#allocation19 + $0x20] sm:$0xff]
        %v5489 = vld [vmem:[#allocation19 + $0x28] sm:$0xff]
        %v5490 = vld [vmem:[#allocation19 + $0x30] sm:$0xff]
        %v5491 = vld [vmem:[#allocation19 + $0x38] sm:$0xff]
        %v5492 = vld [vmem:[#allocation19 + $0x40] sm:$0xff]
        %v5493 = vld [vmem:[#allocation19 + $0x48] sm:$0xff]
        %v5494 = vld [vmem:[#allocation19 + $0x50] sm:$0xff]
        %v5495 = vld [vmem:[#allocation19 + $0x58] sm:$0xff]
        %v5496 = vld [vmem:[#allocation19 + $0x60] sm:$0xff]
        %v5497 = vld [vmem:[#allocation19 + $0x68] sm:$0xff]
        %v5498 = vld [vmem:[#allocation19 + $0x70] sm:$0xff]
        %v5499 = vld [vmem:[#allocation19 + $0x78] sm:$0xff]
        %v5500 = vld [vmem:[#allocation19 + $0x80] sm:$0xff]
        %v5501 = vld [vmem:[#allocation19 + $0x88] sm:$0xff]
        %v5502 = vld [vmem:[#allocation19 + $0x90] sm:$0xff]
        %v5503 = vld [vmem:[#allocation19 + $0x98] sm:$0xff]
        %v5504 = vld [vmem:[#allocation19 + $0xa0] sm:$0xff]
        %v5505 = vld [vmem:[#allocation19 + $0xa8] sm:$0xff]
        %v5506 = vld [vmem:[#allocation19 + $0xb0] sm:$0xff]
        %v5507 = vld [vmem:[#allocation19 + $0xb8] sm:$0xff]
        %v5508 = vld [vmem:[#allocation19 + $0xc0] sm:$0xff]
        %v5509 = vld [vmem:[#allocation19 + $0xc8] sm:$0xff]
        %v5510 = vld [vmem:[#allocation19 + $0xd0] sm:$0xff]
        %v5511 = vld [vmem:[#allocation19 + $0xd8] sm:$0xff]
        %v5512 = vld [vmem:[#allocation19 + $0xe0] sm:$0xff]
        %v5513 = vld [vmem:[#allocation19 + $0xe8] sm:$0xff]
        %v5514 = vld [vmem:[#allocation19 + $0xf0] sm:$0xff]
        %v5515 = vld [vmem:[#allocation19 + $0xf8] sm:$0xff]
        %v5516 = vld [vmem:[#allocation19 + $0x100] sm:$0xff]
        %v5517 = vld [vmem:[#allocation19 + $0x108] sm:$0xff]
        %v5518 = vld [vmem:[#allocation19 + $0x110] sm:$0xff]
        %v5519 = vld [vmem:[#allocation19 + $0x118] sm:$0xff]
        %v5520 = vld [vmem:[#allocation19 + $0x120] sm:$0xff]
        %v5521 = vld [vmem:[#allocation19 + $0x128] sm:$0xff]
        %v5522 = vld [vmem:[#allocation19 + $0x130] sm:$0xff]
        %v5523 = vld [vmem:[#allocation19 + $0x138] sm:$0xff]
        %v5524 = vld [vmem:[#allocation19 + $0x140] sm:$0xff]
        %v5525 = vld [vmem:[#allocation19 + $0x148] sm:$0xff]
        %v5526 = vld [vmem:[#allocation19 + $0x150] sm:$0xff]
        %v5527 = vld [vmem:[#allocation19 + $0x158] sm:$0xff]
        %v5528 = vld [vmem:[#allocation19 + $0x160] sm:$0xff]
        %v5529 = vld [vmem:[#allocation19 + $0x168] sm:$0xff]
        %v5530 = vld [vmem:[#allocation19 + $0x170] sm:$0xff]
        %v5531 = vld [vmem:[#allocation19 + $0x178] sm:$0xff]
        %v5532 = vld [vmem:[#allocation19 + $0x180] sm:$0xff]
        %v5533 = vld [vmem:[#allocation19 + $0x188] sm:$0xff]
        %v5534 = vld [vmem:[#allocation19 + $0x190] sm:$0xff]
        %v5535 = vld [vmem:[#allocation19 + $0x198] sm:$0xff]
        %v5536 = vld [vmem:[#allocation19 + $0x1a0] sm:$0xff]
        %v5537 = vld [vmem:[#allocation19 + $0x1a8] sm:$0xff]
        %v5538 = vld [vmem:[#allocation19 + $0x1b0] sm:$0xff]
        %v5539 = vld [vmem:[#allocation19 + $0x1b8] sm:$0xff]
        %v5540 = vld [vmem:[#allocation19 + $0x1c0] sm:$0xff]
        %v5541 = vld [vmem:[#allocation19 + $0x1c8] sm:$0xff]
        %v5542 = vld [vmem:[#allocation19 + $0x1d0] sm:$0xff]
        %v5543 = vld [vmem:[#allocation19 + $0x1d8] sm:$0xff]
        %v5544 = vld [vmem:[#allocation19 + $0x1e0] sm:$0xff]
        %v5545 = vld [vmem:[#allocation19 + $0x1e8] sm:$0xff]
        %v5546 = vld [vmem:[#allocation19 + $0x1f0] sm:$0xff]
        %v5547 = vld [vmem:[#allocation19 + $0x1f8] sm:$0xff]
        %v5548 = vld [vmem:[#allocation19 + $0x200] sm:$0xff]
        %v5549 = vld [vmem:[#allocation19 + $0x208] sm:$0xff]
        %v5550 = vld [vmem:[#allocation19 + $0x210] sm:$0xff]
        %v5551 = vld [vmem:[#allocation19 + $0x218] sm:$0xff]
        %v5552 = vld [vmem:[#allocation19 + $0x220] sm:$0xff]
        %v5553 = vld [vmem:[#allocation19 + $0x228] sm:$0xff]
        %v5554 = vld [vmem:[#allocation19 + $0x230] sm:$0xff]
        %v5555 = vld [vmem:[#allocation19 + $0x238] sm:$0xff]
        %v5556 = vld [vmem:[#allocation19 + $0x240] sm:$0xff]
        %v5557 = vld [vmem:[#allocation19 + $0x248] sm:$0xff]
        %v5558 = vld [vmem:[#allocation19 + $0x250] sm:$0xff]
        %v5559 = vld [vmem:[#allocation19 + $0x258] sm:$0xff]
        %v5560 = vld [vmem:[#allocation19 + $0x260] sm:$0xff]
        %v5561 = vld [vmem:[#allocation19 + $0x268] sm:$0xff]
        %v5562 = vld [vmem:[#allocation19 + $0x270] sm:$0xff]
        %v5563 = vld [vmem:[#allocation19 + $0x278] sm:$0xff]
        %v5564 = vld [vmem:[#allocation19 + $0x280] sm:$0xff]
        %v5565 = vld [vmem:[#allocation19 + $0x288] sm:$0xff]
        %v5566 = vld [vmem:[#allocation19 + $0x290] sm:$0xff]
        %v5567 = vld [vmem:[#allocation19 + $0x298] sm:$0xff]
        %v5568 = vld [vmem:[#allocation19 + $0x2a0] sm:$0xff]
        %v5569 = vld [vmem:[#allocation19 + $0x2a8] sm:$0xff]
        %v5570 = vld [vmem:[#allocation19 + $0x2b0] sm:$0xff]
        %v5571 = vld [vmem:[#allocation19 + $0x2b8] sm:$0xff]
        %v5572 = vld [vmem:[#allocation19 + $0x2c0] sm:$0xff]
        %v5573 = vld [vmem:[#allocation19 + $0x2c8] sm:$0xff]
        %v5574 = vld [vmem:[#allocation19 + $0x2d0] sm:$0xff]
        %v5575 = vld [vmem:[#allocation19 + $0x2d8] sm:$0xff]
        %v5576 = vld [vmem:[#allocation19 + $0x2e0] sm:$0xff]
        %v5577 = vld [vmem:[#allocation19 + $0x2e8] sm:$0xff]
        %v5578 = vld [vmem:[#allocation19 + $0x2f0] sm:$0xff]
        %v5579 = vld [vmem:[#allocation19 + $0x2f8] sm:$0xff]
        %v5580 = vld [vmem:[#allocation19 + $0x300] sm:$0xff]
        %v5581 = vld [vmem:[#allocation19 + $0x308] sm:$0xff]
        %v5582 = vld [vmem:[#allocation19 + $0x310] sm:$0xff]
        %v5583 = vld [vmem:[#allocation19 + $0x318] sm:$0xff]
        %v5584 = vld [vmem:[#allocation19 + $0x320] sm:$0xff]
        %v5585 = vld [vmem:[#allocation19 + $0x328] sm:$0xff]
        %v5586 = vld [vmem:[#allocation19 + $0x330] sm:$0xff]
        %v5587 = vld [vmem:[#allocation19 + $0x338] sm:$0xff]
        %v5588 = vld [vmem:[#allocation19 + $0x340] sm:$0xff]
        %v5589 = vld [vmem:[#allocation19 + $0x348] sm:$0xff]
        %v5590 = vld [vmem:[#allocation19 + $0x350] sm:$0xff]
        %v5591 = vld [vmem:[#allocation19 + $0x358] sm:$0xff]
        %v5592 = vld [vmem:[#allocation19 + $0x360] sm:$0xff]
        %v5593 = vld [vmem:[#allocation19 + $0x368] sm:$0xff]
        %v5594 = vld [vmem:[#allocation19 + $0x370] sm:$0xff]
        %v5595 = vld [vmem:[#allocation19 + $0x378] sm:$0xff]
        %v5596 = vld [vmem:[#allocation19 + $0x380] sm:$0xff]
        %v5597 = vld [vmem:[#allocation19 + $0x388] sm:$0xff]
        %v5598 = vld [vmem:[#allocation19 + $0x390] sm:$0xff]
        %v5599 = vld [vmem:[#allocation19 + $0x398] sm:$0xff]
        %v5600 = vld [vmem:[#allocation19 + $0x3a0] sm:$0xff]
        %v5601 = vld [vmem:[#allocation19 + $0x3a8] sm:$0xff]
        %v5602 = vld [vmem:[#allocation19 + $0x3b0] sm:$0xff]
        %v5603 = vld [vmem:[#allocation19 + $0x3b8] sm:$0xff]
        %v5604 = vld [vmem:[#allocation19 + $0x3c0] sm:$0xff]
        %v5605 = vld [vmem:[#allocation19 + $0x3c8] sm:$0xff]
        %v5606 = vld [vmem:[#allocation19 + $0x3d0] sm:$0xff]
        %v5607 = vld [vmem:[#allocation19 + $0x3d8] sm:$0xff]
        %v5608 = vld [vmem:[#allocation19 + $0x3e0] sm:$0xff]
        %v5609 = vld [vmem:[#allocation19 + $0x3e8] sm:$0xff]
        %v5610 = vld [vmem:[#allocation19 + $0x3f0] sm:$0xff]
        %v5611 = vld [vmem:[#allocation19 + $0x3f8] sm:$0xff]
        %v5612 = vld [vmem:[#allocation19 + $0x400] sm:$0xff]
        %v5613 = vld [vmem:[#allocation19 + $0x408] sm:$0xff]
        %v5614 = vld [vmem:[#allocation19 + $0x410] sm:$0xff]
        %v5615 = vld [vmem:[#allocation19 + $0x418] sm:$0xff]
        %v5616 = vld [vmem:[#allocation19 + $0x420] sm:$0xff]
        %v5617 = vld [vmem:[#allocation19 + $0x428] sm:$0xff]
        %v5618 = vld [vmem:[#allocation19 + $0x430] sm:$0xff]
        %v5619 = vld [vmem:[#allocation19 + $0x438] sm:$0xff]
        %v5620 = vld [vmem:[#allocation19 + $0x440] sm:$0xff]
        %v5621 = vld [vmem:[#allocation19 + $0x448] sm:$0xff]
        %v5622 = vld [vmem:[#allocation19 + $0x450] sm:$0xff]
        %v5623 = vld [vmem:[#allocation19 + $0x458] sm:$0xff]
        %v5624 = vld [vmem:[#allocation19 + $0x460] sm:$0xff]
        %v5625 = vld [vmem:[#allocation19 + $0x468] sm:$0xff]
        %v5626 = vld [vmem:[#allocation19 + $0x470] sm:$0xff]
        %v5627 = vld [vmem:[#allocation19 + $0x478] sm:$0xff]
        %v5628 = vld [vmem:[#allocation19 + $0x480] sm:$0xff]
        %v5629 = vld [vmem:[#allocation19 + $0x488] sm:$0xff]
        %v5630 = vld [vmem:[#allocation19 + $0x490] sm:$0xff]
        %v5631 = vld [vmem:[#allocation19 + $0x498] sm:$0xff]
        %v5632 = vld [vmem:[#allocation19 + $0x4a0] sm:$0xff]
        %v5633 = vld [vmem:[#allocation19 + $0x4a8] sm:$0xff]
        %v5634 = vld [vmem:[#allocation19 + $0x4b0] sm:$0xff]
        %v5635 = vld [vmem:[#allocation19 + $0x4b8] sm:$0xff]
        %v5636 = vld [vmem:[#allocation19 + $0x4c0] sm:$0xff]
        %v5637 = vld [vmem:[#allocation19 + $0x4c8] sm:$0xff]
        %v5638 = vld [vmem:[#allocation19 + $0x4d0] sm:$0xff]
        %v5639 = vld [vmem:[#allocation19 + $0x4d8] sm:$0xff]
        %v5640 = vld [vmem:[#allocation19 + $0x4e0] sm:$0xff]
        %v5641 = vld [vmem:[#allocation19 + $0x4e8] sm:$0xff]
        %v5642 = vld [vmem:[#allocation19 + $0x4f0] sm:$0xff]
        %v5643 = vld [vmem:[#allocation19 + $0x4f8] sm:$0xff]
        %v5644 = vld [vmem:[#allocation19 + $0x500] sm:$0xff]
        %v5645 = vld [vmem:[#allocation19 + $0x508] sm:$0xff]
        %v5646 = vld [vmem:[#allocation19 + $0x510] sm:$0xff]
        %v5647 = vld [vmem:[#allocation19 + $0x518] sm:$0xff]
        %v5648 = vld [vmem:[#allocation19 + $0x520] sm:$0xff]
        %v5649 = vld [vmem:[#allocation19 + $0x528] sm:$0xff]
        %v5650 = vld [vmem:[#allocation19 + $0x530] sm:$0xff]
        %v5651 = vld [vmem:[#allocation19 + $0x538] sm:$0xff]
        %v5652 = vld [vmem:[#allocation19 + $0x540] sm:$0xff]
        %v5653 = vld [vmem:[#allocation19 + $0x548] sm:$0xff]
        %v5654 = vld [vmem:[#allocation19 + $0x550] sm:$0xff]
        %v5655 = vld [vmem:[#allocation19 + $0x558] sm:$0xff]
        %v5656 = vld [vmem:[#allocation19 + $0x560] sm:$0xff]
        %v5657 = vld [vmem:[#allocation19 + $0x568] sm:$0xff]
        %v5658 = vld [vmem:[#allocation19 + $0x570] sm:$0xff]
        %v5659 = vld [vmem:[#allocation19 + $0x578] sm:$0xff]
        %v5660 = vld [vmem:[#allocation19 + $0x580] sm:$0xff]
        %v5661 = vld [vmem:[#allocation19 + $0x588] sm:$0xff]
        %v5662 = vld [vmem:[#allocation19 + $0x590] sm:$0xff]
        %v5663 = vld [vmem:[#allocation19 + $0x598] sm:$0xff]
        %v5664 = vld [vmem:[#allocation19 + $0x5a0] sm:$0xff]
        %v5665 = vld [vmem:[#allocation19 + $0x5a8] sm:$0xff]
        %v5666 = vld [vmem:[#allocation19 + $0x5b0] sm:$0xff]
        %v5667 = vld [vmem:[#allocation19 + $0x5b8] sm:$0xff]
        %v5668 = vld [vmem:[#allocation19 + $0x5c0] sm:$0xff]
        %v5669 = vld [vmem:[#allocation19 + $0x5c8] sm:$0xff]
        %v5670 = vld [vmem:[#allocation19 + $0x5d0] sm:$0xff]
        %v5671 = vld [vmem:[#allocation19 + $0x5d8] sm:$0xff]
        %v5672 = vld [vmem:[#allocation19 + $0x5e0] sm:$0xff]
        %v5673 = vld [vmem:[#allocation19 + $0x5e8] sm:$0xff]
        %v5674 = vld [vmem:[#allocation19 + $0x5f0] sm:$0xff]
        %v5675 = vld [vmem:[#allocation19 + $0x5f8] sm:$0xff]
        %v5676 = vld [vmem:[#allocation19 + $0x600] sm:$0xff]
        %v5677 = vld [vmem:[#allocation19 + $0x608] sm:$0xff]
        %v5678 = vld [vmem:[#allocation19 + $0x610] sm:$0xff]
        %v5679 = vld [vmem:[#allocation19 + $0x618] sm:$0xff]
        %v5680 = vld [vmem:[#allocation19 + $0x620] sm:$0xff]
        %v5681 = vld [vmem:[#allocation19 + $0x628] sm:$0xff]
        %v5682 = vld [vmem:[#allocation19 + $0x630] sm:$0xff]
        %v5683 = vld [vmem:[#allocation19 + $0x638] sm:$0xff]
        %v5684 = vld [vmem:[#allocation19 + $0x640] sm:$0xff]
        %v5685 = vld [vmem:[#allocation19 + $0x648] sm:$0xff]
        %v5686 = vld [vmem:[#allocation19 + $0x650] sm:$0xff]
        %v5687 = vld [vmem:[#allocation19 + $0x658] sm:$0xff]
        %v5688 = vld [vmem:[#allocation19 + $0x660] sm:$0xff]
        %v5689 = vld [vmem:[#allocation19 + $0x668] sm:$0xff]
        %v5690 = vld [vmem:[#allocation19 + $0x670] sm:$0xff]
        %v5691 = vld [vmem:[#allocation19 + $0x678] sm:$0xff]
        %v5692 = vld [vmem:[#allocation19 + $0x680] sm:$0xff]
        %v5693 = vld [vmem:[#allocation19 + $0x688] sm:$0xff]
        %v5694 = vld [vmem:[#allocation19 + $0x690] sm:$0xff]
        %v5695 = vld [vmem:[#allocation19 + $0x698] sm:$0xff]
        %v5696 = vld [vmem:[#allocation19 + $0x6a0] sm:$0xff]
        %v5697 = vld [vmem:[#allocation19 + $0x6a8] sm:$0xff]
        %v5698 = vld [vmem:[#allocation19 + $0x6b0] sm:$0xff]
        %v5699 = vld [vmem:[#allocation19 + $0x6b8] sm:$0xff]
        %v5700 = vld [vmem:[#allocation19 + $0x6c0] sm:$0xff]
        %v5701 = vld [vmem:[#allocation19 + $0x6c8] sm:$0xff]
        %v5702 = vld [vmem:[#allocation19 + $0x6d0] sm:$0xff]
        %v5703 = vld [vmem:[#allocation19 + $0x6d8] sm:$0xff]
        %v5704 = vld [vmem:[#allocation19 + $0x6e0] sm:$0xff]
        %v5705 = vld [vmem:[#allocation19 + $0x6e8] sm:$0xff]
        %v5706 = vld [vmem:[#allocation19 + $0x6f0] sm:$0xff]
        %v5707 = vld [vmem:[#allocation19 + $0x6f8] sm:$0xff]
        %v5708 = vld [vmem:[#allocation19 + $0x700] sm:$0xff]
        %v5709 = vld [vmem:[#allocation19 + $0x708] sm:$0xff]
        %v5710 = vld [vmem:[#allocation19 + $0x710] sm:$0xff]
        %v5711 = vld [vmem:[#allocation19 + $0x718] sm:$0xff]
        %v5712 = vld [vmem:[#allocation19 + $0x720] sm:$0xff]
        %v5713 = vld [vmem:[#allocation19 + $0x728] sm:$0xff]
        %v5714 = vld [vmem:[#allocation19 + $0x730] sm:$0xff]
        %v5715 = vld [vmem:[#allocation19 + $0x738] sm:$0xff]
        %v5716 = vld [vmem:[#allocation19 + $0x740] sm:$0xff]
        %v5717 = vld [vmem:[#allocation19 + $0x748] sm:$0xff]
        %v5718 = vld [vmem:[#allocation19 + $0x750] sm:$0xff]
        %v5719 = vld [vmem:[#allocation19 + $0x758] sm:$0xff]
        %v5720 = vld [vmem:[#allocation19 + $0x760] sm:$0xff]
        %v5721 = vld [vmem:[#allocation19 + $0x768] sm:$0xff]
        %v5722 = vld [vmem:[#allocation19 + $0x770] sm:$0xff]
        %v5723 = vld [vmem:[#allocation19 + $0x778] sm:$0xff]
        %v5724 = vld [vmem:[#allocation19 + $0x780] sm:$0xff]
        %v5725 = vld [vmem:[#allocation19 + $0x788] sm:$0xff]
        %v5726 = vld [vmem:[#allocation19 + $0x790] sm:$0xff]
        %v5727 = vld [vmem:[#allocation19 + $0x798] sm:$0xff]
        %v5728 = vld [vmem:[#allocation19 + $0x7a0] sm:$0xff]
        %v5729 = vld [vmem:[#allocation19 + $0x7a8] sm:$0xff]
        %v5730 = vld [vmem:[#allocation19 + $0x7b0] sm:$0xff]
        %v5731 = vld [vmem:[#allocation19 + $0x7b8] sm:$0xff]
        %v5732 = vld [vmem:[#allocation19 + $0x7c0] sm:$0xff]
        %v5733 = vld [vmem:[#allocation19 + $0x7c8] sm:$0xff]
        %v5734 = vld [vmem:[#allocation19 + $0x7d0] sm:$0xff]
        %v5735 = vld [vmem:[#allocation19 + $0x7d8] sm:$0xff]
        %v5736 = vld [vmem:[#allocation19 + $0x7e0] sm:$0xff]
        %v5737 = vld [vmem:[#allocation19 + $0x7e8] sm:$0xff]
        %v5738 = vld [vmem:[#allocation19 + $0x7f0] sm:$0xff]
        %v5739 = vld [vmem:[#allocation19 + $0x7f8] sm:$0xff]
        %v5740 = vld [vmem:[#allocation19 + $0x800] sm:$0xff]
        %v5741 = vld [vmem:[#allocation19 + $0x808] sm:$0xff]
        %v5742 = vld [vmem:[#allocation19 + $0x810] sm:$0xff]
        %v5743 = vld [vmem:[#allocation19 + $0x818] sm:$0xff]
        %v5744 = vld [vmem:[#allocation19 + $0x820] sm:$0xff]
        %v5745 = vld [vmem:[#allocation19 + $0x828] sm:$0xff]
        %v5746 = vld [vmem:[#allocation19 + $0x830] sm:$0xff]
        %v5747 = vld [vmem:[#allocation19 + $0x838] sm:$0xff]
        %v5748 = vld [vmem:[#allocation19 + $0x840] sm:$0xff]
        %v5749 = vld [vmem:[#allocation19 + $0x848] sm:$0xff]
        %v5750 = vld [vmem:[#allocation19 + $0x850] sm:$0xff]
        %v5751 = vld [vmem:[#allocation19 + $0x858] sm:$0xff]
        %v5752 = vld [vmem:[#allocation19 + $0x860] sm:$0xff]
        %v5753 = vld [vmem:[#allocation19 + $0x868] sm:$0xff]
        %v5754 = vld [vmem:[#allocation19 + $0x870] sm:$0xff]
        %v5755 = vld [vmem:[#allocation19 + $0x878] sm:$0xff]
        %v5756 = vld [vmem:[#allocation19 + $0x880] sm:$0xff]
        %v5757 = vld [vmem:[#allocation19 + $0x888] sm:$0xff]
        %v5758 = vld [vmem:[#allocation19 + $0x890] sm:$0xff]
        %v5759 = vld [vmem:[#allocation19 + $0x898] sm:$0xff]
        %v5760 = vld [vmem:[#allocation19 + $0x8a0] sm:$0xff]
        %v5761 = vld [vmem:[#allocation19 + $0x8a8] sm:$0xff]
        %v5762 = vld [vmem:[#allocation19 + $0x8b0] sm:$0xff]
        %v5763 = vld [vmem:[#allocation19 + $0x8b8] sm:$0xff]
        %v5764 = vld [vmem:[#allocation19 + $0x8c0] sm:$0xff]
        %v5765 = vld [vmem:[#allocation19 + $0x8c8] sm:$0xff]
        %v5766 = vld [vmem:[#allocation19 + $0x8d0] sm:$0xff]
        %v5767 = vld [vmem:[#allocation19 + $0x8d8] sm:$0xff]
        %v5768 = vld [vmem:[#allocation19 + $0x8e0] sm:$0xff]
        %v5769 = vld [vmem:[#allocation19 + $0x8e8] sm:$0xff]
        %v5770 = vld [vmem:[#allocation19 + $0x8f0] sm:$0xff]
        %v5771 = vld [vmem:[#allocation19 + $0x8f8] sm:$0xff]
        %v5772 = vld [vmem:[#allocation19 + $0x900] sm:$0xff]
        %v5773 = vld [vmem:[#allocation19 + $0x908] sm:$0xff]
        %v5774 = vld [vmem:[#allocation19 + $0x910] sm:$0xff]
        %v5775 = vld [vmem:[#allocation19 + $0x918] sm:$0xff]
        %v5776 = vld [vmem:[#allocation19 + $0x920] sm:$0xff]
        %v5777 = vld [vmem:[#allocation19 + $0x928] sm:$0xff]
        %v5778 = vld [vmem:[#allocation19 + $0x930] sm:$0xff]
        %v5779 = vld [vmem:[#allocation19 + $0x938] sm:$0xff]
        %v5780 = vld [vmem:[#allocation19 + $0x940] sm:$0xff]
        %v5781 = vld [vmem:[#allocation19 + $0x948] sm:$0xff]
        %v5782 = vld [vmem:[#allocation19 + $0x950] sm:$0xff]
        %v5783 = vld [vmem:[#allocation19 + $0x958] sm:$0xff]
        %v5784 = vld [vmem:[#allocation19 + $0x960] sm:$0xff]
        %v5785 = vld [vmem:[#allocation19 + $0x968] sm:$0xff]
        %v5786 = vld [vmem:[#allocation19 + $0x970] sm:$0xff]
        %v5787 = vld [vmem:[#allocation19 + $0x978] sm:$0xff]
        %v5788 = vld [vmem:[#allocation19 + $0x980] sm:$0xff]
        %v5789 = vld [vmem:[#allocation19 + $0x988] sm:$0xff]
        %v5790 = vld [vmem:[#allocation19 + $0x990] sm:$0xff]
        %v5791 = vld [vmem:[#allocation19 + $0x998] sm:$0xff]
        %v5792 = vld [vmem:[#allocation19 + $0x9a0] sm:$0xff]
        %v5793 = vld [vmem:[#allocation19 + $0x9a8] sm:$0xff]
        %v5794 = vld [vmem:[#allocation19 + $0x9b0] sm:$0xff]
        %v5795 = vld [vmem:[#allocation19 + $0x9b8] sm:$0xff]
        %v5796 = vld [vmem:[#allocation19 + $0x9c0] sm:$0xff]
        %v5797 = vld [vmem:[#allocation19 + $0x9c8] sm:$0xff]
        %v5798 = vld [vmem:[#allocation19 + $0x9d0] sm:$0xff]
        %v5799 = vld [vmem:[#allocation19 + $0x9d8] sm:$0xff]
        %v5800 = vld [vmem:[#allocation19 + $0x9e0] sm:$0xff]
        %v5801 = vld [vmem:[#allocation19 + $0x9e8] sm:$0xff]
        %v5802 = vld [vmem:[#allocation19 + $0x9f0] sm:$0xff]
        %v5803 = vld [vmem:[#allocation19 + $0x9f8] sm:$0xff]
        %v5804 = vld [vmem:[#allocation19 + $0xa00] sm:$0xff]
        %v5805 = vld [vmem:[#allocation19 + $0xa08] sm:$0xff]
        %v5806 = vld [vmem:[#allocation19 + $0xa10] sm:$0xff]
        %v5807 = vld [vmem:[#allocation19 + $0xa18] sm:$0xff]
        %v5808 = vld [vmem:[#allocation19 + $0xa20] sm:$0xff]
        %v5809 = vld [vmem:[#allocation19 + $0xa28] sm:$0xff]
        %v5810 = vld [vmem:[#allocation19 + $0xa30] sm:$0xff]
        %v5811 = vld [vmem:[#allocation19 + $0xa38] sm:$0xff]
        %v5812 = vld [vmem:[#allocation19 + $0xa40] sm:$0xff]
        %v5813 = vld [vmem:[#allocation19 + $0xa48] sm:$0xff]
        %v5814 = vld [vmem:[#allocation19 + $0xa50] sm:$0xff]
        %v5815 = vld [vmem:[#allocation19 + $0xa58] sm:$0xff]
        %v5816 = vld [vmem:[#allocation19 + $0xa60] sm:$0xff]
        %v5817 = vld [vmem:[#allocation19 + $0xa68] sm:$0xff]
        %v5818 = vld [vmem:[#allocation19 + $0xa70] sm:$0xff]
        %v5819 = vld [vmem:[#allocation19 + $0xa78] sm:$0xff]
        %v5820 = vld [vmem:[#allocation19 + $0xa80] sm:$0xff]
        %v5821 = vld [vmem:[#allocation19 + $0xa88] sm:$0xff]
        %v5822 = vld [vmem:[#allocation19 + $0xa90] sm:$0xff]
        %v5823 = vld [vmem:[#allocation19 + $0xa98] sm:$0xff]
        %v5824 = vld [vmem:[#allocation19 + $0xaa0] sm:$0xff]
        %v5825 = vld [vmem:[#allocation19 + $0xaa8] sm:$0xff]
        %v5826 = vld [vmem:[#allocation19 + $0xab0] sm:$0xff]
        %v5827 = vld [vmem:[#allocation19 + $0xab8] sm:$0xff]
        %v5828 = vld [vmem:[#allocation19 + $0xac0] sm:$0xff]
        %v5829 = vld [vmem:[#allocation19 + $0xac8] sm:$0xff]
        %v5830 = vld [vmem:[#allocation19 + $0xad0] sm:$0xff]
        %v5831 = vld [vmem:[#allocation19 + $0xad8] sm:$0xff]
        %v5832 = vld [vmem:[#allocation19 + $0xae0] sm:$0xff]
        %v5833 = vld [vmem:[#allocation19 + $0xae8] sm:$0xff]
        %v5834 = vld [vmem:[#allocation19 + $0xaf0] sm:$0xff]
        %v5835 = vld [vmem:[#allocation19 + $0xaf8] sm:$0xff]
        %v5836 = vld [vmem:[#allocation19 + $0xb00] sm:$0xff]
        %v5837 = vld [vmem:[#allocation19 + $0xb08] sm:$0xff]
        %v5838 = vld [vmem:[#allocation19 + $0xb10] sm:$0xff]
        %v5839 = vld [vmem:[#allocation19 + $0xb18] sm:$0xff]
        %v5840 = vld [vmem:[#allocation19 + $0xb20] sm:$0xff]
        %v5841 = vld [vmem:[#allocation19 + $0xb28] sm:$0xff]
        %v5842 = vld [vmem:[#allocation19 + $0xb30] sm:$0xff]
        %v5843 = vld [vmem:[#allocation19 + $0xb38] sm:$0xff]
        %v5844 = vld [vmem:[#allocation19 + $0xb40] sm:$0xff]
        %v5845 = vld [vmem:[#allocation19 + $0xb48] sm:$0xff]
        %v5846 = vld [vmem:[#allocation19 + $0xb50] sm:$0xff]
        %v5847 = vld [vmem:[#allocation19 + $0xb58] sm:$0xff]
        %v5848 = vld [vmem:[#allocation19 + $0xb60] sm:$0xff]
        %v5849 = vld [vmem:[#allocation19 + $0xb68] sm:$0xff]
        %v5850 = vld [vmem:[#allocation19 + $0xb70] sm:$0xff]
        %v5851 = vld [vmem:[#allocation19 + $0xb78] sm:$0xff]
        %v5852 = vld [vmem:[#allocation19 + $0xb80] sm:$0xff]
        %v5853 = vld [vmem:[#allocation19 + $0xb88] sm:$0xff]
        %v5854 = vld [vmem:[#allocation19 + $0xb90] sm:$0xff]
        %v5855 = vld [vmem:[#allocation19 + $0xb98] sm:$0xff]
        %v5856 = vld [vmem:[#allocation19 + $0xba0] sm:$0xff]
        %v5857 = vld [vmem:[#allocation19 + $0xba8] sm:$0xff]
        %v5858 = vld [vmem:[#allocation19 + $0xbb0] sm:$0xff]
        %v5859 = vld [vmem:[#allocation19 + $0xbb8] sm:$0xff]
        %v5860 = vld [vmem:[#allocation19 + $0xbc0] sm:$0xff]
        %v5861 = vld [vmem:[#allocation19 + $0xbc8] sm:$0xff]
        %v5862 = vld [vmem:[#allocation19 + $0xbd0] sm:$0xff]
        %v5863 = vld [vmem:[#allocation19 + $0xbd8] sm:$0xff]
        %v5864 = vld [vmem:[#allocation19 + $0xbe0] sm:$0xff]
        %v5865 = vld [vmem:[#allocation19 + $0xbe8] sm:$0xff]
        %v5866 = vld [vmem:[#allocation19 + $0xbf0] sm:$0xff]
        %v5867 = vld [vmem:[#allocation19 + $0xbf8] sm:$0xff]
        %v5868 = vld [vmem:[#allocation19 + $0xc00] sm:$0xff]
        %v5869 = vld [vmem:[#allocation19 + $0xc08] sm:$0xff]
        %v5870 = vld [vmem:[#allocation19 + $0xc10] sm:$0xff]
        %v5871 = vld [vmem:[#allocation19 + $0xc18] sm:$0xff]
        %v5872 = vld [vmem:[#allocation19 + $0xc20] sm:$0xff]
        %v5873 = vld [vmem:[#allocation19 + $0xc28] sm:$0xff]
        %v5874 = vld [vmem:[#allocation19 + $0xc30] sm:$0xff]
        %v5875 = vld [vmem:[#allocation19 + $0xc38] sm:$0xff]
        %v5876 = vld [vmem:[#allocation19 + $0xc40] sm:$0xff]
        %v5877 = vld [vmem:[#allocation19 + $0xc48] sm:$0xff]
        %v5878 = vld [vmem:[#allocation19 + $0xc50] sm:$0xff]
        %v5879 = vld [vmem:[#allocation19 + $0xc58] sm:$0xff]
        %v5880 = vld [vmem:[#allocation19 + $0xc60] sm:$0xff]
        %v5881 = vld [vmem:[#allocation19 + $0xc68] sm:$0xff]
        %v5882 = vld [vmem:[#allocation19 + $0xc70] sm:$0xff]
        %v5883 = vld [vmem:[#allocation19 + $0xc78] sm:$0xff]
        %v5884 = vld [vmem:[#allocation19 + $0xc80] sm:$0xff]
        %v5885 = vld [vmem:[#allocation19 + $0xc88] sm:$0xff]
        %v5886 = vld [vmem:[#allocation19 + $0xc90] sm:$0xff]
        %v5887 = vld [vmem:[#allocation19 + $0xc98] sm:$0xff]
        %v5888 = vld [vmem:[#allocation19 + $0xca0] sm:$0xff]
        %v5889 = vld [vmem:[#allocation19 + $0xca8] sm:$0xff]
        %v5890 = vld [vmem:[#allocation19 + $0xcb0] sm:$0xff]
        %v5891 = vld [vmem:[#allocation19 + $0xcb8] sm:$0xff]
        %v5892 = vld [vmem:[#allocation19 + $0xcc0] sm:$0xff]
        %v5893 = vld [vmem:[#allocation19 + $0xcc8] sm:$0xff]
        %v5894 = vld [vmem:[#allocation19 + $0xcd0] sm:$0xff]
        %v5895 = vld [vmem:[#allocation19 + $0xcd8] sm:$0xff]
        %v5896 = vld [vmem:[#allocation19 + $0xce0] sm:$0xff]
        %v5897 = vld [vmem:[#allocation19 + $0xce8] sm:$0xff]
        %v5898 = vld [vmem:[#allocation19 + $0xcf0] sm:$0xff]
        %v5899 = vld [vmem:[#allocation19 + $0xcf8] sm:$0xff]
        %v5900 = vld [vmem:[#allocation19 + $0xd00] sm:$0xff]
        %v5901 = vld [vmem:[#allocation19 + $0xd08] sm:$0xff]
        %v5902 = vld [vmem:[#allocation19 + $0xd10] sm:$0xff]
        %v5903 = vld [vmem:[#allocation19 + $0xd18] sm:$0xff]
        %v5904 = vld [vmem:[#allocation19 + $0xd20] sm:$0xff]
        %v5905 = vld [vmem:[#allocation19 + $0xd28] sm:$0xff]
        %v5906 = vld [vmem:[#allocation19 + $0xd30] sm:$0xff]
        %v5907 = vld [vmem:[#allocation19 + $0xd38] sm:$0xff]
        %v5908 = vld [vmem:[#allocation19 + $0xd40] sm:$0xff]
        %v5909 = vld [vmem:[#allocation19 + $0xd48] sm:$0xff]
        %v5910 = vld [vmem:[#allocation19 + $0xd50] sm:$0xff]
        %v5911 = vld [vmem:[#allocation19 + $0xd58] sm:$0xff]
        %v5912 = vld [vmem:[#allocation19 + $0xd60] sm:$0xff]
        %v5913 = vld [vmem:[#allocation19 + $0xd68] sm:$0xff]
        %v5914 = vld [vmem:[#allocation19 + $0xd70] sm:$0xff]
        %v5915 = vld [vmem:[#allocation19 + $0xd78] sm:$0xff]
        %v5916 = vld [vmem:[#allocation19 + $0xd80] sm:$0xff]
        %v5917 = vld [vmem:[#allocation19 + $0xd88] sm:$0xff]
        %v5918 = vld [vmem:[#allocation19 + $0xd90] sm:$0xff]
        %v5919 = vld [vmem:[#allocation19 + $0xd98] sm:$0xff]
        %v5920 = vld [vmem:[#allocation19 + $0xda0] sm:$0xff]
        %v5921 = vld [vmem:[#allocation19 + $0xda8] sm:$0xff]
        %v5922 = vld [vmem:[#allocation19 + $0xdb0] sm:$0xff]
        %v5923 = vld [vmem:[#allocation19 + $0xdb8] sm:$0xff]
        %v5924 = vld [vmem:[#allocation19 + $0xdc0] sm:$0xff]
        %v5925 = vld [vmem:[#allocation19 + $0xdc8] sm:$0xff]
        %v5926 = vld [vmem:[#allocation19 + $0xdd0] sm:$0xff]
        %v5927 = vld [vmem:[#allocation19 + $0xdd8] sm:$0xff]
        %v5928 = vld [vmem:[#allocation19 + $0xde0] sm:$0xff]
        %v5929 = vld [vmem:[#allocation19 + $0xde8] sm:$0xff]
        %v5930 = vld [vmem:[#allocation19 + $0xdf0] sm:$0xff]
        %v5931 = vld [vmem:[#allocation19 + $0xdf8] sm:$0xff]
        %v5932 = vld [vmem:[#allocation19 + $0xe00] sm:$0xff]
        %v5933 = vld [vmem:[#allocation19 + $0xe08] sm:$0xff]
        %v5934 = vld [vmem:[#allocation19 + $0xe10] sm:$0xff]
        %v5935 = vld [vmem:[#allocation19 + $0xe18] sm:$0xff]
        %v5936 = vld [vmem:[#allocation19 + $0xe20] sm:$0xff]
        %v5937 = vld [vmem:[#allocation19 + $0xe28] sm:$0xff]
        %v5938 = vld [vmem:[#allocation19 + $0xe30] sm:$0xff]
        %v5939 = vld [vmem:[#allocation19 + $0xe38] sm:$0xff]
        %v5940 = vld [vmem:[#allocation19 + $0xe40] sm:$0xff]
        %v5941 = vld [vmem:[#allocation19 + $0xe48] sm:$0xff]
        %v5942 = vld [vmem:[#allocation19 + $0xe50] sm:$0xff]
        %v5943 = vld [vmem:[#allocation19 + $0xe58] sm:$0xff]
        %v5944 = vld [vmem:[#allocation19 + $0xe60] sm:$0xff]
        %v5945 = vld [vmem:[#allocation19 + $0xe68] sm:$0xff]
        %v5946 = vld [vmem:[#allocation19 + $0xe70] sm:$0xff]
        %v5947 = vld [vmem:[#allocation19 + $0xe78] sm:$0xff]
        %v5948 = vld [vmem:[#allocation19 + $0xe80] sm:$0xff]
        %v5949 = vld [vmem:[#allocation19 + $0xe88] sm:$0xff]
        %v5950 = vld [vmem:[#allocation19 + $0xe90] sm:$0xff]
        %v5951 = vld [vmem:[#allocation19 + $0xe98] sm:$0xff]
        %v5952 = vld [vmem:[#allocation19 + $0xea0] sm:$0xff]
        %v5953 = vld [vmem:[#allocation19 + $0xea8] sm:$0xff]
        %v5954 = vld [vmem:[#allocation19 + $0xeb0] sm:$0xff]
        %v5955 = vld [vmem:[#allocation19 + $0xeb8] sm:$0xff]
        %v5956 = vld [vmem:[#allocation19 + $0xec0] sm:$0xff]
        %v5957 = vld [vmem:[#allocation19 + $0xec8] sm:$0xff]
        %v5958 = vld [vmem:[#allocation19 + $0xed0] sm:$0xff]
        %v5959 = vld [vmem:[#allocation19 + $0xed8] sm:$0xff]
        %v5960 = vld [vmem:[#allocation19 + $0xee0] sm:$0xff]
        %v5961 = vld [vmem:[#allocation19 + $0xee8] sm:$0xff]
        %v5962 = vld [vmem:[#allocation19 + $0xef0] sm:$0xff]
        %v5963 = vld [vmem:[#allocation19 + $0xef8] sm:$0xff]
        %v5964 = vld [vmem:[#allocation19 + $0xf00] sm:$0xff]
        %v5965 = vld [vmem:[#allocation19 + $0xf08] sm:$0xff]
        %v5966 = vld [vmem:[#allocation19 + $0xf10] sm:$0xff]
        %v5967 = vld [vmem:[#allocation19 + $0xf18] sm:$0xff]
        %v5968 = vld [vmem:[#allocation19 + $0xf20] sm:$0xff]
        %v5969 = vld [vmem:[#allocation19 + $0xf28] sm:$0xff]
        %v5970 = vld [vmem:[#allocation19 + $0xf30] sm:$0xff]
        %v5971 = vld [vmem:[#allocation19 + $0xf38] sm:$0xff]
        %v5972 = vld [vmem:[#allocation19 + $0xf40] sm:$0xff]
        %v5973 = vld [vmem:[#allocation19 + $0xf48] sm:$0xff]
        %v5974 = vld [vmem:[#allocation19 + $0xf50] sm:$0xff]
        %v5975 = vld [vmem:[#allocation19 + $0xf58] sm:$0xff]
        %v5976 = vld [vmem:[#allocation19 + $0xf60] sm:$0xff]
        %v5977 = vld [vmem:[#allocation19 + $0xf68] sm:$0xff]
        %v5978 = vld [vmem:[#allocation19 + $0xf70] sm:$0xff]
        %v5979 = vld [vmem:[#allocation19 + $0xf78] sm:$0xff]
        %v5980 = vld [vmem:[#allocation19 + $0xf80] sm:$0xff]
        %v5981 = vld [vmem:[#allocation19 + $0xf88] sm:$0xff]
        %v5982 = vld [vmem:[#allocation19 + $0xf90] sm:$0xff]
        %v5983 = vld [vmem:[#allocation19 + $0xf98] sm:$0xff]
        %v5984 = vld [vmem:[#allocation19 + $0xfa0] sm:$0xff]
        %v5985 = vld [vmem:[#allocation19 + $0xfa8] sm:$0xff]
        %v5986 = vld [vmem:[#allocation19 + $0xfb0] sm:$0xff]
        %v5987 = vld [vmem:[#allocation19 + $0xfb8] sm:$0xff]
        %v5988 = vld [vmem:[#allocation19 + $0xfc0] sm:$0xff]
        %v5989 = vld [vmem:[#allocation19 + $0xfc8] sm:$0xff]
        %v5990 = vld [vmem:[#allocation19 + $0xfd0] sm:$0xff]
        %v5991 = vld [vmem:[#allocation19 + $0xfd8] sm:$0xff]
        %v5992 = vld [vmem:[#allocation19 + $0xfe0] sm:$0xff]
        %v5993 = vld [vmem:[#allocation19 + $0xfe8] sm:$0xff]
        %v5994 = vld [vmem:[#allocation19 + $0xff0] sm:$0xff]
        %v5995 = vld [vmem:[#allocation19 + $0xff8] sm:$0xff]
        %v5996 = vld [vmem:[#allocation21] sm:$0x3]
        %v6509 = vunpack.c.l.b16 %v5484
        %v6510 = vunpack.c.h.b16 %v5484
        %v6511 = vunpack.c.l.b16 %v5485
        %v6512 = vunpack.c.h.b16 %v5485
        %v6513 = vunpack.c.l.b16 %v5486
        %v6514 = vunpack.c.h.b16 %v5486
        %v6515 = vunpack.c.l.b16 %v5487
        %v6516 = vunpack.c.h.b16 %v5487
        %v6517 = vunpack.c.l.b16 %v5488
        %v6518 = vunpack.c.h.b16 %v5488
        %v6519 = vunpack.c.l.b16 %v5489
        %v6520 = vunpack.c.h.b16 %v5489
        %v6521 = vunpack.c.l.b16 %v5490
        %v6522 = vunpack.c.h.b16 %v5490
        %v6523 = vunpack.c.l.b16 %v5491
        %v6524 = vunpack.c.h.b16 %v5491
        %v6525 = vunpack.c.l.b16 %v5492
        %v6526 = vunpack.c.h.b16 %v5492
        %v6527 = vunpack.c.l.b16 %v5493
        %v6528 = vunpack.c.h.b16 %v5493
        %v6529 = vunpack.c.l.b16 %v5494
        %v6530 = vunpack.c.h.b16 %v5494
        %v6531 = vunpack.c.l.b16 %v5495
        %v6532 = vunpack.c.h.b16 %v5495
        %v6533 = vunpack.c.l.b16 %v5496
        %v6534 = vunpack.c.h.b16 %v5496
        %v6535 = vunpack.c.l.b16 %v5497
        %v6536 = vunpack.c.h.b16 %v5497
        %v6537 = vunpack.c.l.b16 %v5498
        %v6538 = vunpack.c.h.b16 %v5498
        %v6539 = vunpack.c.l.b16 %v5499
        %v6540 = vunpack.c.h.b16 %v5499
        %v6541 = vunpack.c.l.b16 %v5500
        %v6542 = vunpack.c.h.b16 %v5500
        %v6543 = vunpack.c.l.b16 %v5501
        %v6544 = vunpack.c.h.b16 %v5501
        %v6545 = vunpack.c.l.b16 %v5502
        %v6546 = vunpack.c.h.b16 %v5502
        %v6547 = vunpack.c.l.b16 %v5503
        %v6548 = vunpack.c.h.b16 %v5503
        %v6549 = vunpack.c.l.b16 %v5504
        %v6550 = vunpack.c.h.b16 %v5504
        %v6551 = vunpack.c.l.b16 %v5505
        %v6552 = vunpack.c.h.b16 %v5505
        %v6553 = vunpack.c.l.b16 %v5506
        %v6554 = vunpack.c.h.b16 %v5506
        %v6555 = vunpack.c.l.b16 %v5507
        %v6556 = vunpack.c.h.b16 %v5507
        %v6557 = vunpack.c.l.b16 %v5508
        %v6558 = vunpack.c.h.b16 %v5508
        %v6559 = vunpack.c.l.b16 %v5509
        %v6560 = vunpack.c.h.b16 %v5509
        %v6561 = vunpack.c.l.b16 %v5510
        %v6562 = vunpack.c.h.b16 %v5510
        %v6563 = vunpack.c.l.b16 %v5511
        %v6564 = vunpack.c.h.b16 %v5511
        %v6565 = vunpack.c.l.b16 %v5512
        %v6566 = vunpack.c.h.b16 %v5512
        %v6567 = vunpack.c.l.b16 %v5513
        %v6568 = vunpack.c.h.b16 %v5513
        %v6569 = vunpack.c.l.b16 %v5514
        %v6570 = vunpack.c.h.b16 %v5514
        %v6571 = vunpack.c.l.b16 %v5515
        %v6572 = vunpack.c.h.b16 %v5515
        %v6573 = vunpack.c.l.b16 %v5516
        %v6574 = vunpack.c.h.b16 %v5516
        %v6575 = vunpack.c.l.b16 %v5517
        %v6576 = vunpack.c.h.b16 %v5517
        %v6577 = vunpack.c.l.b16 %v5518
        %v6578 = vunpack.c.h.b16 %v5518
        %v6579 = vunpack.c.l.b16 %v5519
        %v6580 = vunpack.c.h.b16 %v5519
        %v6581 = vunpack.c.l.b16 %v5520
        %v6582 = vunpack.c.h.b16 %v5520
        %v6583 = vunpack.c.l.b16 %v5521
        %v6584 = vunpack.c.h.b16 %v5521
        %v6585 = vunpack.c.l.b16 %v5522
        %v6586 = vunpack.c.h.b16 %v5522
        %v6587 = vunpack.c.l.b16 %v5523
        %v6588 = vunpack.c.h.b16 %v5523
        %v6589 = vunpack.c.l.b16 %v5524
        %v6590 = vunpack.c.h.b16 %v5524
        %v6591 = vunpack.c.l.b16 %v5525
        %v6592 = vunpack.c.h.b16 %v5525
        %v6593 = vunpack.c.l.b16 %v5526
        %v6594 = vunpack.c.h.b16 %v5526
        %v6595 = vunpack.c.l.b16 %v5527
        %v6596 = vunpack.c.h.b16 %v5527
        %v6597 = vunpack.c.l.b16 %v5528
        %v6598 = vunpack.c.h.b16 %v5528
        %v6599 = vunpack.c.l.b16 %v5529
        %v6600 = vunpack.c.h.b16 %v5529
        %v6601 = vunpack.c.l.b16 %v5530
        %v6602 = vunpack.c.h.b16 %v5530
        %v6603 = vunpack.c.l.b16 %v5531
        %v6604 = vunpack.c.h.b16 %v5531
        %v6605 = vunpack.c.l.b16 %v5532
        %v6606 = vunpack.c.h.b16 %v5532
        %v6607 = vunpack.c.l.b16 %v5533
        %v6608 = vunpack.c.h.b16 %v5533
        %v6609 = vunpack.c.l.b16 %v5534
        %v6610 = vunpack.c.h.b16 %v5534
        %v6611 = vunpack.c.l.b16 %v5535
        %v6612 = vunpack.c.h.b16 %v5535
        %v6613 = vunpack.c.l.b16 %v5536
        %v6614 = vunpack.c.h.b16 %v5536
        %v6615 = vunpack.c.l.b16 %v5537
        %v6616 = vunpack.c.h.b16 %v5537
        %v6617 = vunpack.c.l.b16 %v5538
        %v6618 = vunpack.c.h.b16 %v5538
        %v6619 = vunpack.c.l.b16 %v5539
        %v6620 = vunpack.c.h.b16 %v5539
        %v6621 = vunpack.c.l.b16 %v5540
        %v6622 = vunpack.c.h.b16 %v5540
        %v6623 = vunpack.c.l.b16 %v5541
        %v6624 = vunpack.c.h.b16 %v5541
        %v6625 = vunpack.c.l.b16 %v5542
        %v6626 = vunpack.c.h.b16 %v5542
        %v6627 = vunpack.c.l.b16 %v5543
        %v6628 = vunpack.c.h.b16 %v5543
        %v6629 = vunpack.c.l.b16 %v5544
        %v6630 = vunpack.c.h.b16 %v5544
        %v6631 = vunpack.c.l.b16 %v5545
        %v6632 = vunpack.c.h.b16 %v5545
        %v6633 = vunpack.c.l.b16 %v5546
        %v6634 = vunpack.c.h.b16 %v5546
        %v6635 = vunpack.c.l.b16 %v5547
        %v6636 = vunpack.c.h.b16 %v5547
        %v6637 = vunpack.c.l.b16 %v5548
        %v6638 = vunpack.c.h.b16 %v5548
        %v6639 = vunpack.c.l.b16 %v5549
        %v6640 = vunpack.c.h.b16 %v5549
        %v6641 = vunpack.c.l.b16 %v5550
        %v6642 = vunpack.c.h.b16 %v5550
        %v6643 = vunpack.c.l.b16 %v5551
        %v6644 = vunpack.c.h.b16 %v5551
        %v6645 = vunpack.c.l.b16 %v5552
        %v6646 = vunpack.c.h.b16 %v5552
        %v6647 = vunpack.c.l.b16 %v5553
        %v6648 = vunpack.c.h.b16 %v5553
        %v6649 = vunpack.c.l.b16 %v5554
        %v6650 = vunpack.c.h.b16 %v5554
        %v6651 = vunpack.c.l.b16 %v5555
        %v6652 = vunpack.c.h.b16 %v5555
        %v6653 = vunpack.c.l.b16 %v5556
        %v6654 = vunpack.c.h.b16 %v5556
        %v6655 = vunpack.c.l.b16 %v5557
        %v6656 = vunpack.c.h.b16 %v5557
        %v6657 = vunpack.c.l.b16 %v5558
        %v6658 = vunpack.c.h.b16 %v5558
        %v6659 = vunpack.c.l.b16 %v5559
        %v6660 = vunpack.c.h.b16 %v5559
        %v6661 = vunpack.c.l.b16 %v5560
        %v6662 = vunpack.c.h.b16 %v5560
        %v6663 = vunpack.c.l.b16 %v5561
        %v6664 = vunpack.c.h.b16 %v5561
        %v6665 = vunpack.c.l.b16 %v5562
        %v6666 = vunpack.c.h.b16 %v5562
        %v6667 = vunpack.c.l.b16 %v5563
        %v6668 = vunpack.c.h.b16 %v5563
        %v6669 = vunpack.c.l.b16 %v5564
        %v6670 = vunpack.c.h.b16 %v5564
        %v6671 = vunpack.c.l.b16 %v5565
        %v6672 = vunpack.c.h.b16 %v5565
        %v6673 = vunpack.c.l.b16 %v5566
        %v6674 = vunpack.c.h.b16 %v5566
        %v6675 = vunpack.c.l.b16 %v5567
        %v6676 = vunpack.c.h.b16 %v5567
        %v6677 = vunpack.c.l.b16 %v5568
        %v6678 = vunpack.c.h.b16 %v5568
        %v6679 = vunpack.c.l.b16 %v5569
        %v6680 = vunpack.c.h.b16 %v5569
        %v6681 = vunpack.c.l.b16 %v5570
        %v6682 = vunpack.c.h.b16 %v5570
        %v6683 = vunpack.c.l.b16 %v5571
        %v6684 = vunpack.c.h.b16 %v5571
        %v6685 = vunpack.c.l.b16 %v5572
        %v6686 = vunpack.c.h.b16 %v5572
        %v6687 = vunpack.c.l.b16 %v5573
        %v6688 = vunpack.c.h.b16 %v5573
        %v6689 = vunpack.c.l.b16 %v5574
        %v6690 = vunpack.c.h.b16 %v5574
        %v6691 = vunpack.c.l.b16 %v5575
        %v6692 = vunpack.c.h.b16 %v5575
        %v6693 = vunpack.c.l.b16 %v5576
        %v6694 = vunpack.c.h.b16 %v5576
        %v6695 = vunpack.c.l.b16 %v5577
        %v6696 = vunpack.c.h.b16 %v5577
        %v6697 = vunpack.c.l.b16 %v5578
        %v6698 = vunpack.c.h.b16 %v5578
        %v6699 = vunpack.c.l.b16 %v5579
        %v6700 = vunpack.c.h.b16 %v5579
        %v6701 = vunpack.c.l.b16 %v5580
        %v6702 = vunpack.c.h.b16 %v5580
        %v6703 = vunpack.c.l.b16 %v5581
        %v6704 = vunpack.c.h.b16 %v5581
        %v6705 = vunpack.c.l.b16 %v5582
        %v6706 = vunpack.c.h.b16 %v5582
        %v6707 = vunpack.c.l.b16 %v5583
        %v6708 = vunpack.c.h.b16 %v5583
        %v6709 = vunpack.c.l.b16 %v5584
        %v6710 = vunpack.c.h.b16 %v5584
        %v6711 = vunpack.c.l.b16 %v5585
        %v6712 = vunpack.c.h.b16 %v5585
        %v6713 = vunpack.c.l.b16 %v5586
        %v6714 = vunpack.c.h.b16 %v5586
        %v6715 = vunpack.c.l.b16 %v5587
        %v6716 = vunpack.c.h.b16 %v5587
        %v6717 = vunpack.c.l.b16 %v5588
        %v6718 = vunpack.c.h.b16 %v5588
        %v6719 = vunpack.c.l.b16 %v5589
        %v6720 = vunpack.c.h.b16 %v5589
        %v6721 = vunpack.c.l.b16 %v5590
        %v6722 = vunpack.c.h.b16 %v5590
        %v6723 = vunpack.c.l.b16 %v5591
        %v6724 = vunpack.c.h.b16 %v5591
        %v6725 = vunpack.c.l.b16 %v5592
        %v6726 = vunpack.c.h.b16 %v5592
        %v6727 = vunpack.c.l.b16 %v5593
        %v6728 = vunpack.c.h.b16 %v5593
        %v6729 = vunpack.c.l.b16 %v5594
        %v6730 = vunpack.c.h.b16 %v5594
        %v6731 = vunpack.c.l.b16 %v5595
        %v6732 = vunpack.c.h.b16 %v5595
        %v6733 = vunpack.c.l.b16 %v5596
        %v6734 = vunpack.c.h.b16 %v5596
        %v6735 = vunpack.c.l.b16 %v5597
        %v6736 = vunpack.c.h.b16 %v5597
        %v6737 = vunpack.c.l.b16 %v5598
        %v6738 = vunpack.c.h.b16 %v5598
        %v6739 = vunpack.c.l.b16 %v5599
        %v6740 = vunpack.c.h.b16 %v5599
        %v6741 = vunpack.c.l.b16 %v5600
        %v6742 = vunpack.c.h.b16 %v5600
        %v6743 = vunpack.c.l.b16 %v5601
        %v6744 = vunpack.c.h.b16 %v5601
        %v6745 = vunpack.c.l.b16 %v5602
        %v6746 = vunpack.c.h.b16 %v5602
        %v6747 = vunpack.c.l.b16 %v5603
        %v6748 = vunpack.c.h.b16 %v5603
        %v6749 = vunpack.c.l.b16 %v5604
        %v6750 = vunpack.c.h.b16 %v5604
        %v6751 = vunpack.c.l.b16 %v5605
        %v6752 = vunpack.c.h.b16 %v5605
        %v6753 = vunpack.c.l.b16 %v5606
        %v6754 = vunpack.c.h.b16 %v5606
        %v6755 = vunpack.c.l.b16 %v5607
        %v6756 = vunpack.c.h.b16 %v5607
        %v6757 = vunpack.c.l.b16 %v5608
        %v6758 = vunpack.c.h.b16 %v5608
        %v6759 = vunpack.c.l.b16 %v5609
        %v6760 = vunpack.c.h.b16 %v5609
        %v6761 = vunpack.c.l.b16 %v5610
        %v6762 = vunpack.c.h.b16 %v5610
        %v6763 = vunpack.c.l.b16 %v5611
        %v6764 = vunpack.c.h.b16 %v5611
        %v6765 = vunpack.c.l.b16 %v5612
        %v6766 = vunpack.c.h.b16 %v5612
        %v6767 = vunpack.c.l.b16 %v5613
        %v6768 = vunpack.c.h.b16 %v5613
        %v6769 = vunpack.c.l.b16 %v5614
        %v6770 = vunpack.c.h.b16 %v5614
        %v6771 = vunpack.c.l.b16 %v5615
        %v6772 = vunpack.c.h.b16 %v5615
        %v6773 = vunpack.c.l.b16 %v5616
        %v6774 = vunpack.c.h.b16 %v5616
        %v6775 = vunpack.c.l.b16 %v5617
        %v6776 = vunpack.c.h.b16 %v5617
        %v6777 = vunpack.c.l.b16 %v5618
        %v6778 = vunpack.c.h.b16 %v5618
        %v6779 = vunpack.c.l.b16 %v5619
        %v6780 = vunpack.c.h.b16 %v5619
        %v6781 = vunpack.c.l.b16 %v5620
        %v6782 = vunpack.c.h.b16 %v5620
        %v6783 = vunpack.c.l.b16 %v5621
        %v6784 = vunpack.c.h.b16 %v5621
        %v6785 = vunpack.c.l.b16 %v5622
        %v6786 = vunpack.c.h.b16 %v5622
        %v6787 = vunpack.c.l.b16 %v5623
        %v6788 = vunpack.c.h.b16 %v5623
        %v6789 = vunpack.c.l.b16 %v5624
        %v6790 = vunpack.c.h.b16 %v5624
        %v6791 = vunpack.c.l.b16 %v5625
        %v6792 = vunpack.c.h.b16 %v5625
        %v6793 = vunpack.c.l.b16 %v5626
        %v6794 = vunpack.c.h.b16 %v5626
        %v6795 = vunpack.c.l.b16 %v5627
        %v6796 = vunpack.c.h.b16 %v5627
        %v6797 = vunpack.c.l.b16 %v5628
        %v6798 = vunpack.c.h.b16 %v5628
        %v6799 = vunpack.c.l.b16 %v5629
        %v6800 = vunpack.c.h.b16 %v5629
        %v6801 = vunpack.c.l.b16 %v5630
        %v6802 = vunpack.c.h.b16 %v5630
        %v6803 = vunpack.c.l.b16 %v5631
        %v6804 = vunpack.c.h.b16 %v5631
        %v6805 = vunpack.c.l.b16 %v5632
        %v6806 = vunpack.c.h.b16 %v5632
        %v6807 = vunpack.c.l.b16 %v5633
        %v6808 = vunpack.c.h.b16 %v5633
        %v6809 = vunpack.c.l.b16 %v5634
        %v6810 = vunpack.c.h.b16 %v5634
        %v6811 = vunpack.c.l.b16 %v5635
        %v6812 = vunpack.c.h.b16 %v5635
        %v6813 = vunpack.c.l.b16 %v5636
        %v6814 = vunpack.c.h.b16 %v5636
        %v6815 = vunpack.c.l.b16 %v5637
        %v6816 = vunpack.c.h.b16 %v5637
        %v6817 = vunpack.c.l.b16 %v5638
        %v6818 = vunpack.c.h.b16 %v5638
        %v6819 = vunpack.c.l.b16 %v5639
        %v6820 = vunpack.c.h.b16 %v5639
        %v6821 = vunpack.c.l.b16 %v5640
        %v6822 = vunpack.c.h.b16 %v5640
        %v6823 = vunpack.c.l.b16 %v5641
        %v6824 = vunpack.c.h.b16 %v5641
        %v6825 = vunpack.c.l.b16 %v5642
        %v6826 = vunpack.c.h.b16 %v5642
        %v6827 = vunpack.c.l.b16 %v5643
        %v6828 = vunpack.c.h.b16 %v5643
        %v6829 = vunpack.c.l.b16 %v5644
        %v6830 = vunpack.c.h.b16 %v5644
        %v6831 = vunpack.c.l.b16 %v5645
        %v6832 = vunpack.c.h.b16 %v5645
        %v6833 = vunpack.c.l.b16 %v5646
        %v6834 = vunpack.c.h.b16 %v5646
        %v6835 = vunpack.c.l.b16 %v5647
        %v6836 = vunpack.c.h.b16 %v5647
        %v6837 = vunpack.c.l.b16 %v5648
        %v6838 = vunpack.c.h.b16 %v5648
        %v6839 = vunpack.c.l.b16 %v5649
        %v6840 = vunpack.c.h.b16 %v5649
        %v6841 = vunpack.c.l.b16 %v5650
        %v6842 = vunpack.c.h.b16 %v5650
        %v6843 = vunpack.c.l.b16 %v5651
        %v6844 = vunpack.c.h.b16 %v5651
        %v6845 = vunpack.c.l.b16 %v5652
        %v6846 = vunpack.c.h.b16 %v5652
        %v6847 = vunpack.c.l.b16 %v5653
        %v6848 = vunpack.c.h.b16 %v5653
        %v6849 = vunpack.c.l.b16 %v5654
        %v6850 = vunpack.c.h.b16 %v5654
        %v6851 = vunpack.c.l.b16 %v5655
        %v6852 = vunpack.c.h.b16 %v5655
        %v6853 = vunpack.c.l.b16 %v5656
        %v6854 = vunpack.c.h.b16 %v5656
        %v6855 = vunpack.c.l.b16 %v5657
        %v6856 = vunpack.c.h.b16 %v5657
        %v6857 = vunpack.c.l.b16 %v5658
        %v6858 = vunpack.c.h.b16 %v5658
        %v6859 = vunpack.c.l.b16 %v5659
        %v6860 = vunpack.c.h.b16 %v5659
        %v6861 = vunpack.c.l.b16 %v5660
        %v6862 = vunpack.c.h.b16 %v5660
        %v6863 = vunpack.c.l.b16 %v5661
        %v6864 = vunpack.c.h.b16 %v5661
        %v6865 = vunpack.c.l.b16 %v5662
        %v6866 = vunpack.c.h.b16 %v5662
        %v6867 = vunpack.c.l.b16 %v5663
        %v6868 = vunpack.c.h.b16 %v5663
        %v6869 = vunpack.c.l.b16 %v5664
        %v6870 = vunpack.c.h.b16 %v5664
        %v6871 = vunpack.c.l.b16 %v5665
        %v6872 = vunpack.c.h.b16 %v5665
        %v6873 = vunpack.c.l.b16 %v5666
        %v6874 = vunpack.c.h.b16 %v5666
        %v6875 = vunpack.c.l.b16 %v5667
        %v6876 = vunpack.c.h.b16 %v5667
        %v6877 = vunpack.c.l.b16 %v5668
        %v6878 = vunpack.c.h.b16 %v5668
        %v6879 = vunpack.c.l.b16 %v5669
        %v6880 = vunpack.c.h.b16 %v5669
        %v6881 = vunpack.c.l.b16 %v5670
        %v6882 = vunpack.c.h.b16 %v5670
        %v6883 = vunpack.c.l.b16 %v5671
        %v6884 = vunpack.c.h.b16 %v5671
        %v6885 = vunpack.c.l.b16 %v5672
        %v6886 = vunpack.c.h.b16 %v5672
        %v6887 = vunpack.c.l.b16 %v5673
        %v6888 = vunpack.c.h.b16 %v5673
        %v6889 = vunpack.c.l.b16 %v5674
        %v6890 = vunpack.c.h.b16 %v5674
        %v6891 = vunpack.c.l.b16 %v5675
        %v6892 = vunpack.c.h.b16 %v5675
        %v6893 = vunpack.c.l.b16 %v5676
        %v6894 = vunpack.c.h.b16 %v5676
        %v6895 = vunpack.c.l.b16 %v5677
        %v6896 = vunpack.c.h.b16 %v5677
        %v6897 = vunpack.c.l.b16 %v5678
        %v6898 = vunpack.c.h.b16 %v5678
        %v6899 = vunpack.c.l.b16 %v5679
        %v6900 = vunpack.c.h.b16 %v5679
        %v6901 = vunpack.c.l.b16 %v5680
        %v6902 = vunpack.c.h.b16 %v5680
        %v6903 = vunpack.c.l.b16 %v5681
        %v6904 = vunpack.c.h.b16 %v5681
        %v6905 = vunpack.c.l.b16 %v5682
        %v6906 = vunpack.c.h.b16 %v5682
        %v6907 = vunpack.c.l.b16 %v5683
        %v6908 = vunpack.c.h.b16 %v5683
        %v6909 = vunpack.c.l.b16 %v5684
        %v6910 = vunpack.c.h.b16 %v5684
        %v6911 = vunpack.c.l.b16 %v5685
        %v6912 = vunpack.c.h.b16 %v5685
        %v6913 = vunpack.c.l.b16 %v5686
        %v6914 = vunpack.c.h.b16 %v5686
        %v6915 = vunpack.c.l.b16 %v5687
        %v6916 = vunpack.c.h.b16 %v5687
        %v6917 = vunpack.c.l.b16 %v5688
        %v6918 = vunpack.c.h.b16 %v5688
        %v6919 = vunpack.c.l.b16 %v5689
        %v6920 = vunpack.c.h.b16 %v5689
        %v6921 = vunpack.c.l.b16 %v5690
        %v6922 = vunpack.c.h.b16 %v5690
        %v6923 = vunpack.c.l.b16 %v5691
        %v6924 = vunpack.c.h.b16 %v5691
        %v6925 = vunpack.c.l.b16 %v5692
        %v6926 = vunpack.c.h.b16 %v5692
        %v6927 = vunpack.c.l.b16 %v5693
        %v6928 = vunpack.c.h.b16 %v5693
        %v6929 = vunpack.c.l.b16 %v5694
        %v6930 = vunpack.c.h.b16 %v5694
        %v6931 = vunpack.c.l.b16 %v5695
        %v6932 = vunpack.c.h.b16 %v5695
        %v6933 = vunpack.c.l.b16 %v5696
        %v6934 = vunpack.c.h.b16 %v5696
        %v6935 = vunpack.c.l.b16 %v5697
        %v6936 = vunpack.c.h.b16 %v5697
        %v6937 = vunpack.c.l.b16 %v5698
        %v6938 = vunpack.c.h.b16 %v5698
        %v6939 = vunpack.c.l.b16 %v5699
        %v6940 = vunpack.c.h.b16 %v5699
        %v6941 = vunpack.c.l.b16 %v5700
        %v6942 = vunpack.c.h.b16 %v5700
        %v6943 = vunpack.c.l.b16 %v5701
        %v6944 = vunpack.c.h.b16 %v5701
        %v6945 = vunpack.c.l.b16 %v5702
        %v6946 = vunpack.c.h.b16 %v5702
        %v6947 = vunpack.c.l.b16 %v5703
        %v6948 = vunpack.c.h.b16 %v5703
        %v6949 = vunpack.c.l.b16 %v5704
        %v6950 = vunpack.c.h.b16 %v5704
        %v6951 = vunpack.c.l.b16 %v5705
        %v6952 = vunpack.c.h.b16 %v5705
        %v6953 = vunpack.c.l.b16 %v5706
        %v6954 = vunpack.c.h.b16 %v5706
        %v6955 = vunpack.c.l.b16 %v5707
        %v6956 = vunpack.c.h.b16 %v5707
        %v6957 = vunpack.c.l.b16 %v5708
        %v6958 = vunpack.c.h.b16 %v5708
        %v6959 = vunpack.c.l.b16 %v5709
        %v6960 = vunpack.c.h.b16 %v5709
        %v6961 = vunpack.c.l.b16 %v5710
        %v6962 = vunpack.c.h.b16 %v5710
        %v6963 = vunpack.c.l.b16 %v5711
        %v6964 = vunpack.c.h.b16 %v5711
        %v6965 = vunpack.c.l.b16 %v5712
        %v6966 = vunpack.c.h.b16 %v5712
        %v6967 = vunpack.c.l.b16 %v5713
        %v6968 = vunpack.c.h.b16 %v5713
        %v6969 = vunpack.c.l.b16 %v5714
        %v6970 = vunpack.c.h.b16 %v5714
        %v6971 = vunpack.c.l.b16 %v5715
        %v6972 = vunpack.c.h.b16 %v5715
        %v6973 = vunpack.c.l.b16 %v5716
        %v6974 = vunpack.c.h.b16 %v5716
        %v6975 = vunpack.c.l.b16 %v5717
        %v6976 = vunpack.c.h.b16 %v5717
        %v6977 = vunpack.c.l.b16 %v5718
        %v6978 = vunpack.c.h.b16 %v5718
        %v6979 = vunpack.c.l.b16 %v5719
        %v6980 = vunpack.c.h.b16 %v5719
        %v6981 = vunpack.c.l.b16 %v5720
        %v6982 = vunpack.c.h.b16 %v5720
        %v6983 = vunpack.c.l.b16 %v5721
        %v6984 = vunpack.c.h.b16 %v5721
        %v6985 = vunpack.c.l.b16 %v5722
        %v6986 = vunpack.c.h.b16 %v5722
        %v6987 = vunpack.c.l.b16 %v5723
        %v6988 = vunpack.c.h.b16 %v5723
        %v6989 = vunpack.c.l.b16 %v5724
        %v6990 = vunpack.c.h.b16 %v5724
        %v6991 = vunpack.c.l.b16 %v5725
        %v6992 = vunpack.c.h.b16 %v5725
        %v6993 = vunpack.c.l.b16 %v5726
        %v6994 = vunpack.c.h.b16 %v5726
        %v6995 = vunpack.c.l.b16 %v5727
        %v6996 = vunpack.c.h.b16 %v5727
        %v6997 = vunpack.c.l.b16 %v5728
        %v6998 = vunpack.c.h.b16 %v5728
        %v6999 = vunpack.c.l.b16 %v5729
        %v7000 = vunpack.c.h.b16 %v5729
        %v7001 = vunpack.c.l.b16 %v5730
        %v7002 = vunpack.c.h.b16 %v5730
        %v7003 = vunpack.c.l.b16 %v5731
        %v7004 = vunpack.c.h.b16 %v5731
        %v7005 = vunpack.c.l.b16 %v5732
        %v7006 = vunpack.c.h.b16 %v5732
        %v7007 = vunpack.c.l.b16 %v5733
        %v7008 = vunpack.c.h.b16 %v5733
        %v7009 = vunpack.c.l.b16 %v5734
        %v7010 = vunpack.c.h.b16 %v5734
        %v7011 = vunpack.c.l.b16 %v5735
        %v7012 = vunpack.c.h.b16 %v5735
        %v7013 = vunpack.c.l.b16 %v5736
        %v7014 = vunpack.c.h.b16 %v5736
        %v7015 = vunpack.c.l.b16 %v5737
        %v7016 = vunpack.c.h.b16 %v5737
        %v7017 = vunpack.c.l.b16 %v5738
        %v7018 = vunpack.c.h.b16 %v5738
        %v7019 = vunpack.c.l.b16 %v5739
        %v7020 = vunpack.c.h.b16 %v5739
        %v7021 = vunpack.c.l.b16 %v5740
        %v7022 = vunpack.c.h.b16 %v5740
        %v7023 = vunpack.c.l.b16 %v5741
        %v7024 = vunpack.c.h.b16 %v5741
        %v7025 = vunpack.c.l.b16 %v5742
        %v7026 = vunpack.c.h.b16 %v5742
        %v7027 = vunpack.c.l.b16 %v5743
        %v7028 = vunpack.c.h.b16 %v5743
        %v7029 = vunpack.c.l.b16 %v5744
        %v7030 = vunpack.c.h.b16 %v5744
        %v7031 = vunpack.c.l.b16 %v5745
        %v7032 = vunpack.c.h.b16 %v5745
        %v7033 = vunpack.c.l.b16 %v5746
        %v7034 = vunpack.c.h.b16 %v5746
        %v7035 = vunpack.c.l.b16 %v5747
        %v7036 = vunpack.c.h.b16 %v5747
        %v7037 = vunpack.c.l.b16 %v5748
        %v7038 = vunpack.c.h.b16 %v5748
        %v7039 = vunpack.c.l.b16 %v5749
        %v7040 = vunpack.c.h.b16 %v5749
        %v7041 = vunpack.c.l.b16 %v5750
        %v7042 = vunpack.c.h.b16 %v5750
        %v7043 = vunpack.c.l.b16 %v5751
        %v7044 = vunpack.c.h.b16 %v5751
        %v7045 = vunpack.c.l.b16 %v5752
        %v7046 = vunpack.c.h.b16 %v5752
        %v7047 = vunpack.c.l.b16 %v5753
        %v7048 = vunpack.c.h.b16 %v5753
        %v7049 = vunpack.c.l.b16 %v5754
        %v7050 = vunpack.c.h.b16 %v5754
        %v7051 = vunpack.c.l.b16 %v5755
        %v7052 = vunpack.c.h.b16 %v5755
        %v7053 = vunpack.c.l.b16 %v5756
        %v7054 = vunpack.c.h.b16 %v5756
        %v7055 = vunpack.c.l.b16 %v5757
        %v7056 = vunpack.c.h.b16 %v5757
        %v7057 = vunpack.c.l.b16 %v5758
        %v7058 = vunpack.c.h.b16 %v5758
        %v7059 = vunpack.c.l.b16 %v5759
        %v7060 = vunpack.c.h.b16 %v5759
        %v7061 = vunpack.c.l.b16 %v5760
        %v7062 = vunpack.c.h.b16 %v5760
        %v7063 = vunpack.c.l.b16 %v5761
        %v7064 = vunpack.c.h.b16 %v5761
        %v7065 = vunpack.c.l.b16 %v5762
        %v7066 = vunpack.c.h.b16 %v5762
        %v7067 = vunpack.c.l.b16 %v5763
        %v7068 = vunpack.c.h.b16 %v5763
        %v7069 = vunpack.c.l.b16 %v5764
        %v7070 = vunpack.c.h.b16 %v5764
        %v7071 = vunpack.c.l.b16 %v5765
        %v7072 = vunpack.c.h.b16 %v5765
        %v7073 = vunpack.c.l.b16 %v5766
        %v7074 = vunpack.c.h.b16 %v5766
        %v7075 = vunpack.c.l.b16 %v5767
        %v7076 = vunpack.c.h.b16 %v5767
        %v7077 = vunpack.c.l.b16 %v5768
        %v7078 = vunpack.c.h.b16 %v5768
        %v7079 = vunpack.c.l.b16 %v5769
        %v7080 = vunpack.c.h.b16 %v5769
        %v7081 = vunpack.c.l.b16 %v5770
        %v7082 = vunpack.c.h.b16 %v5770
        %v7083 = vunpack.c.l.b16 %v5771
        %v7084 = vunpack.c.h.b16 %v5771
        %v7085 = vunpack.c.l.b16 %v5772
        %v7086 = vunpack.c.h.b16 %v5772
        %v7087 = vunpack.c.l.b16 %v5773
        %v7088 = vunpack.c.h.b16 %v5773
        %v7089 = vunpack.c.l.b16 %v5774
        %v7090 = vunpack.c.h.b16 %v5774
        %v7091 = vunpack.c.l.b16 %v5775
        %v7092 = vunpack.c.h.b16 %v5775
        %v7093 = vunpack.c.l.b16 %v5776
        %v7094 = vunpack.c.h.b16 %v5776
        %v7095 = vunpack.c.l.b16 %v5777
        %v7096 = vunpack.c.h.b16 %v5777
        %v7097 = vunpack.c.l.b16 %v5778
        %v7098 = vunpack.c.h.b16 %v5778
        %v7099 = vunpack.c.l.b16 %v5779
        %v7100 = vunpack.c.h.b16 %v5779
        %v7101 = vunpack.c.l.b16 %v5780
        %v7102 = vunpack.c.h.b16 %v5780
        %v7103 = vunpack.c.l.b16 %v5781
        %v7104 = vunpack.c.h.b16 %v5781
        %v7105 = vunpack.c.l.b16 %v5782
        %v7106 = vunpack.c.h.b16 %v5782
        %v7107 = vunpack.c.l.b16 %v5783
        %v7108 = vunpack.c.h.b16 %v5783
        %v7109 = vunpack.c.l.b16 %v5784
        %v7110 = vunpack.c.h.b16 %v5784
        %v7111 = vunpack.c.l.b16 %v5785
        %v7112 = vunpack.c.h.b16 %v5785
        %v7113 = vunpack.c.l.b16 %v5786
        %v7114 = vunpack.c.h.b16 %v5786
        %v7115 = vunpack.c.l.b16 %v5787
        %v7116 = vunpack.c.h.b16 %v5787
        %v7117 = vunpack.c.l.b16 %v5788
        %v7118 = vunpack.c.h.b16 %v5788
        %v7119 = vunpack.c.l.b16 %v5789
        %v7120 = vunpack.c.h.b16 %v5789
        %v7121 = vunpack.c.l.b16 %v5790
        %v7122 = vunpack.c.h.b16 %v5790
        %v7123 = vunpack.c.l.b16 %v5791
        %v7124 = vunpack.c.h.b16 %v5791
        %v7125 = vunpack.c.l.b16 %v5792
        %v7126 = vunpack.c.h.b16 %v5792
        %v7127 = vunpack.c.l.b16 %v5793
        %v7128 = vunpack.c.h.b16 %v5793
        %v7129 = vunpack.c.l.b16 %v5794
        %v7130 = vunpack.c.h.b16 %v5794
        %v7131 = vunpack.c.l.b16 %v5795
        %v7132 = vunpack.c.h.b16 %v5795
        %v7133 = vunpack.c.l.b16 %v5796
        %v7134 = vunpack.c.h.b16 %v5796
        %v7135 = vunpack.c.l.b16 %v5797
        %v7136 = vunpack.c.h.b16 %v5797
        %v7137 = vunpack.c.l.b16 %v5798
        %v7138 = vunpack.c.h.b16 %v5798
        %v7139 = vunpack.c.l.b16 %v5799
        %v7140 = vunpack.c.h.b16 %v5799
        %v7141 = vunpack.c.l.b16 %v5800
        %v7142 = vunpack.c.h.b16 %v5800
        %v7143 = vunpack.c.l.b16 %v5801
        %v7144 = vunpack.c.h.b16 %v5801
        %v7145 = vunpack.c.l.b16 %v5802
        %v7146 = vunpack.c.h.b16 %v5802
        %v7147 = vunpack.c.l.b16 %v5803
        %v7148 = vunpack.c.h.b16 %v5803
        %v7149 = vunpack.c.l.b16 %v5804
        %v7150 = vunpack.c.h.b16 %v5804
        %v7151 = vunpack.c.l.b16 %v5805
        %v7152 = vunpack.c.h.b16 %v5805
        %v7153 = vunpack.c.l.b16 %v5806
        %v7154 = vunpack.c.h.b16 %v5806
        %v7155 = vunpack.c.l.b16 %v5807
        %v7156 = vunpack.c.h.b16 %v5807
        %v7157 = vunpack.c.l.b16 %v5808
        %v7158 = vunpack.c.h.b16 %v5808
        %v7159 = vunpack.c.l.b16 %v5809
        %v7160 = vunpack.c.h.b16 %v5809
        %v7161 = vunpack.c.l.b16 %v5810
        %v7162 = vunpack.c.h.b16 %v5810
        %v7163 = vunpack.c.l.b16 %v5811
        %v7164 = vunpack.c.h.b16 %v5811
        %v7165 = vunpack.c.l.b16 %v5812
        %v7166 = vunpack.c.h.b16 %v5812
        %v7167 = vunpack.c.l.b16 %v5813
        %v7168 = vunpack.c.h.b16 %v5813
        %v7169 = vunpack.c.l.b16 %v5814
        %v7170 = vunpack.c.h.b16 %v5814
        %v7171 = vunpack.c.l.b16 %v5815
        %v7172 = vunpack.c.h.b16 %v5815
        %v7173 = vunpack.c.l.b16 %v5816
        %v7174 = vunpack.c.h.b16 %v5816
        %v7175 = vunpack.c.l.b16 %v5817
        %v7176 = vunpack.c.h.b16 %v5817
        %v7177 = vunpack.c.l.b16 %v5818
        %v7178 = vunpack.c.h.b16 %v5818
        %v7179 = vunpack.c.l.b16 %v5819
        %v7180 = vunpack.c.h.b16 %v5819
        %v7181 = vunpack.c.l.b16 %v5820
        %v7182 = vunpack.c.h.b16 %v5820
        %v7183 = vunpack.c.l.b16 %v5821
        %v7184 = vunpack.c.h.b16 %v5821
        %v7185 = vunpack.c.l.b16 %v5822
        %v7186 = vunpack.c.h.b16 %v5822
        %v7187 = vunpack.c.l.b16 %v5823
        %v7188 = vunpack.c.h.b16 %v5823
        %v7189 = vunpack.c.l.b16 %v5824
        %v7190 = vunpack.c.h.b16 %v5824
        %v7191 = vunpack.c.l.b16 %v5825
        %v7192 = vunpack.c.h.b16 %v5825
        %v7193 = vunpack.c.l.b16 %v5826
        %v7194 = vunpack.c.h.b16 %v5826
        %v7195 = vunpack.c.l.b16 %v5827
        %v7196 = vunpack.c.h.b16 %v5827
        %v7197 = vunpack.c.l.b16 %v5828
        %v7198 = vunpack.c.h.b16 %v5828
        %v7199 = vunpack.c.l.b16 %v5829
        %v7200 = vunpack.c.h.b16 %v5829
        %v7201 = vunpack.c.l.b16 %v5830
        %v7202 = vunpack.c.h.b16 %v5830
        %v7203 = vunpack.c.l.b16 %v5831
        %v7204 = vunpack.c.h.b16 %v5831
        %v7205 = vunpack.c.l.b16 %v5832
        %v7206 = vunpack.c.h.b16 %v5832
        %v7207 = vunpack.c.l.b16 %v5833
        %v7208 = vunpack.c.h.b16 %v5833
        %v7209 = vunpack.c.l.b16 %v5834
        %v7210 = vunpack.c.h.b16 %v5834
        %v7211 = vunpack.c.l.b16 %v5835
        %v7212 = vunpack.c.h.b16 %v5835
        %v7213 = vunpack.c.l.b16 %v5836
        %v7214 = vunpack.c.h.b16 %v5836
        %v7215 = vunpack.c.l.b16 %v5837
        %v7216 = vunpack.c.h.b16 %v5837
        %v7217 = vunpack.c.l.b16 %v5838
        %v7218 = vunpack.c.h.b16 %v5838
        %v7219 = vunpack.c.l.b16 %v5839
        %v7220 = vunpack.c.h.b16 %v5839
        %v7221 = vunpack.c.l.b16 %v5840
        %v7222 = vunpack.c.h.b16 %v5840
        %v7223 = vunpack.c.l.b16 %v5841
        %v7224 = vunpack.c.h.b16 %v5841
        %v7225 = vunpack.c.l.b16 %v5842
        %v7226 = vunpack.c.h.b16 %v5842
        %v7227 = vunpack.c.l.b16 %v5843
        %v7228 = vunpack.c.h.b16 %v5843
        %v7229 = vunpack.c.l.b16 %v5844
        %v7230 = vunpack.c.h.b16 %v5844
        %v7231 = vunpack.c.l.b16 %v5845
        %v7232 = vunpack.c.h.b16 %v5845
        %v7233 = vunpack.c.l.b16 %v5846
        %v7234 = vunpack.c.h.b16 %v5846
        %v7235 = vunpack.c.l.b16 %v5847
        %v7236 = vunpack.c.h.b16 %v5847
        %v7237 = vunpack.c.l.b16 %v5848
        %v7238 = vunpack.c.h.b16 %v5848
        %v7239 = vunpack.c.l.b16 %v5849
        %v7240 = vunpack.c.h.b16 %v5849
        %v7241 = vunpack.c.l.b16 %v5850
        %v7242 = vunpack.c.h.b16 %v5850
        %v7243 = vunpack.c.l.b16 %v5851
        %v7244 = vunpack.c.h.b16 %v5851
        %v7245 = vunpack.c.l.b16 %v5852
        %v7246 = vunpack.c.h.b16 %v5852
        %v7247 = vunpack.c.l.b16 %v5853
        %v7248 = vunpack.c.h.b16 %v5853
        %v7249 = vunpack.c.l.b16 %v5854
        %v7250 = vunpack.c.h.b16 %v5854
        %v7251 = vunpack.c.l.b16 %v5855
        %v7252 = vunpack.c.h.b16 %v5855
        %v7253 = vunpack.c.l.b16 %v5856
        %v7254 = vunpack.c.h.b16 %v5856
        %v7255 = vunpack.c.l.b16 %v5857
        %v7256 = vunpack.c.h.b16 %v5857
        %v7257 = vunpack.c.l.b16 %v5858
        %v7258 = vunpack.c.h.b16 %v5858
        %v7259 = vunpack.c.l.b16 %v5859
        %v7260 = vunpack.c.h.b16 %v5859
        %v7261 = vunpack.c.l.b16 %v5860
        %v7262 = vunpack.c.h.b16 %v5860
        %v7263 = vunpack.c.l.b16 %v5861
        %v7264 = vunpack.c.h.b16 %v5861
        %v7265 = vunpack.c.l.b16 %v5862
        %v7266 = vunpack.c.h.b16 %v5862
        %v7267 = vunpack.c.l.b16 %v5863
        %v7268 = vunpack.c.h.b16 %v5863
        %v7269 = vunpack.c.l.b16 %v5864
        %v7270 = vunpack.c.h.b16 %v5864
        %v7271 = vunpack.c.l.b16 %v5865
        %v7272 = vunpack.c.h.b16 %v5865
        %v7273 = vunpack.c.l.b16 %v5866
        %v7274 = vunpack.c.h.b16 %v5866
        %v7275 = vunpack.c.l.b16 %v5867
        %v7276 = vunpack.c.h.b16 %v5867
        %v7277 = vunpack.c.l.b16 %v5868
        %v7278 = vunpack.c.h.b16 %v5868
        %v7279 = vunpack.c.l.b16 %v5869
        %v7280 = vunpack.c.h.b16 %v5869
        %v7281 = vunpack.c.l.b16 %v5870
        %v7282 = vunpack.c.h.b16 %v5870
        %v7283 = vunpack.c.l.b16 %v5871
        %v7284 = vunpack.c.h.b16 %v5871
        %v7285 = vunpack.c.l.b16 %v5872
        %v7286 = vunpack.c.h.b16 %v5872
        %v7287 = vunpack.c.l.b16 %v5873
        %v7288 = vunpack.c.h.b16 %v5873
        %v7289 = vunpack.c.l.b16 %v5874
        %v7290 = vunpack.c.h.b16 %v5874
        %v7291 = vunpack.c.l.b16 %v5875
        %v7292 = vunpack.c.h.b16 %v5875
        %v7293 = vunpack.c.l.b16 %v5876
        %v7294 = vunpack.c.h.b16 %v5876
        %v7295 = vunpack.c.l.b16 %v5877
        %v7296 = vunpack.c.h.b16 %v5877
        %v7297 = vunpack.c.l.b16 %v5878
        %v7298 = vunpack.c.h.b16 %v5878
        %v7299 = vunpack.c.l.b16 %v5879
        %v7300 = vunpack.c.h.b16 %v5879
        %v7301 = vunpack.c.l.b16 %v5880
        %v7302 = vunpack.c.h.b16 %v5880
        %v7303 = vunpack.c.l.b16 %v5881
        %v7304 = vunpack.c.h.b16 %v5881
        %v7305 = vunpack.c.l.b16 %v5882
        %v7306 = vunpack.c.h.b16 %v5882
        %v7307 = vunpack.c.l.b16 %v5883
        %v7308 = vunpack.c.h.b16 %v5883
        %v7309 = vunpack.c.l.b16 %v5884
        %v7310 = vunpack.c.h.b16 %v5884
        %v7311 = vunpack.c.l.b16 %v5885
        %v7312 = vunpack.c.h.b16 %v5885
        %v7313 = vunpack.c.l.b16 %v5886
        %v7314 = vunpack.c.h.b16 %v5886
        %v7315 = vunpack.c.l.b16 %v5887
        %v7316 = vunpack.c.h.b16 %v5887
        %v7317 = vunpack.c.l.b16 %v5888
        %v7318 = vunpack.c.h.b16 %v5888
        %v7319 = vunpack.c.l.b16 %v5889
        %v7320 = vunpack.c.h.b16 %v5889
        %v7321 = vunpack.c.l.b16 %v5890
        %v7322 = vunpack.c.h.b16 %v5890
        %v7323 = vunpack.c.l.b16 %v5891
        %v7324 = vunpack.c.h.b16 %v5891
        %v7325 = vunpack.c.l.b16 %v5892
        %v7326 = vunpack.c.h.b16 %v5892
        %v7327 = vunpack.c.l.b16 %v5893
        %v7328 = vunpack.c.h.b16 %v5893
        %v7329 = vunpack.c.l.b16 %v5894
        %v7330 = vunpack.c.h.b16 %v5894
        %v7331 = vunpack.c.l.b16 %v5895
        %v7332 = vunpack.c.h.b16 %v5895
        %v7333 = vunpack.c.l.b16 %v5896
        %v7334 = vunpack.c.h.b16 %v5896
        %v7335 = vunpack.c.l.b16 %v5897
        %v7336 = vunpack.c.h.b16 %v5897
        %v7337 = vunpack.c.l.b16 %v5898
        %v7338 = vunpack.c.h.b16 %v5898
        %v7339 = vunpack.c.l.b16 %v5899
        %v7340 = vunpack.c.h.b16 %v5899
        %v7341 = vunpack.c.l.b16 %v5900
        %v7342 = vunpack.c.h.b16 %v5900
        %v7343 = vunpack.c.l.b16 %v5901
        %v7344 = vunpack.c.h.b16 %v5901
        %v7345 = vunpack.c.l.b16 %v5902
        %v7346 = vunpack.c.h.b16 %v5902
        %v7347 = vunpack.c.l.b16 %v5903
        %v7348 = vunpack.c.h.b16 %v5903
        %v7349 = vunpack.c.l.b16 %v5904
        %v7350 = vunpack.c.h.b16 %v5904
        %v7351 = vunpack.c.l.b16 %v5905
        %v7352 = vunpack.c.h.b16 %v5905
        %v7353 = vunpack.c.l.b16 %v5906
        %v7354 = vunpack.c.h.b16 %v5906
        %v7355 = vunpack.c.l.b16 %v5907
        %v7356 = vunpack.c.h.b16 %v5907
        %v7357 = vunpack.c.l.b16 %v5908
        %v7358 = vunpack.c.h.b16 %v5908
        %v7359 = vunpack.c.l.b16 %v5909
        %v7360 = vunpack.c.h.b16 %v5909
        %v7361 = vunpack.c.l.b16 %v5910
        %v7362 = vunpack.c.h.b16 %v5910
        %v7363 = vunpack.c.l.b16 %v5911
        %v7364 = vunpack.c.h.b16 %v5911
        %v7365 = vunpack.c.l.b16 %v5912
        %v7366 = vunpack.c.h.b16 %v5912
        %v7367 = vunpack.c.l.b16 %v5913
        %v7368 = vunpack.c.h.b16 %v5913
        %v7369 = vunpack.c.l.b16 %v5914
        %v7370 = vunpack.c.h.b16 %v5914
        %v7371 = vunpack.c.l.b16 %v5915
        %v7372 = vunpack.c.h.b16 %v5915
        %v7373 = vunpack.c.l.b16 %v5916
        %v7374 = vunpack.c.h.b16 %v5916
        %v7375 = vunpack.c.l.b16 %v5917
        %v7376 = vunpack.c.h.b16 %v5917
        %v7377 = vunpack.c.l.b16 %v5918
        %v7378 = vunpack.c.h.b16 %v5918
        %v7379 = vunpack.c.l.b16 %v5919
        %v7380 = vunpack.c.h.b16 %v5919
        %v7381 = vunpack.c.l.b16 %v5920
        %v7382 = vunpack.c.h.b16 %v5920
        %v7383 = vunpack.c.l.b16 %v5921
        %v7384 = vunpack.c.h.b16 %v5921
        %v7385 = vunpack.c.l.b16 %v5922
        %v7386 = vunpack.c.h.b16 %v5922
        %v7387 = vunpack.c.l.b16 %v5923
        %v7388 = vunpack.c.h.b16 %v5923
        %v7389 = vunpack.c.l.b16 %v5924
        %v7390 = vunpack.c.h.b16 %v5924
        %v7391 = vunpack.c.l.b16 %v5925
        %v7392 = vunpack.c.h.b16 %v5925
        %v7393 = vunpack.c.l.b16 %v5926
        %v7394 = vunpack.c.h.b16 %v5926
        %v7395 = vunpack.c.l.b16 %v5927
        %v7396 = vunpack.c.h.b16 %v5927
        %v7397 = vunpack.c.l.b16 %v5928
        %v7398 = vunpack.c.h.b16 %v5928
        %v7399 = vunpack.c.l.b16 %v5929
        %v7400 = vunpack.c.h.b16 %v5929
        %v7401 = vunpack.c.l.b16 %v5930
        %v7402 = vunpack.c.h.b16 %v5930
        %v7403 = vunpack.c.l.b16 %v5931
        %v7404 = vunpack.c.h.b16 %v5931
        %v7405 = vunpack.c.l.b16 %v5932
        %v7406 = vunpack.c.h.b16 %v5932
        %v7407 = vunpack.c.l.b16 %v5933
        %v7408 = vunpack.c.h.b16 %v5933
        %v7409 = vunpack.c.l.b16 %v5934
        %v7410 = vunpack.c.h.b16 %v5934
        %v7411 = vunpack.c.l.b16 %v5935
        %v7412 = vunpack.c.h.b16 %v5935
        %v7413 = vunpack.c.l.b16 %v5936
        %v7414 = vunpack.c.h.b16 %v5936
        %v7415 = vunpack.c.l.b16 %v5937
        %v7416 = vunpack.c.h.b16 %v5937
        %v7417 = vunpack.c.l.b16 %v5938
        %v7418 = vunpack.c.h.b16 %v5938
        %v7419 = vunpack.c.l.b16 %v5939
        %v7420 = vunpack.c.h.b16 %v5939
        %v7421 = vunpack.c.l.b16 %v5940
        %v7422 = vunpack.c.h.b16 %v5940
        %v7423 = vunpack.c.l.b16 %v5941
        %v7424 = vunpack.c.h.b16 %v5941
        %v7425 = vunpack.c.l.b16 %v5942
        %v7426 = vunpack.c.h.b16 %v5942
        %v7427 = vunpack.c.l.b16 %v5943
        %v7428 = vunpack.c.h.b16 %v5943
        %v7429 = vunpack.c.l.b16 %v5944
        %v7430 = vunpack.c.h.b16 %v5944
        %v7431 = vunpack.c.l.b16 %v5945
        %v7432 = vunpack.c.h.b16 %v5945
        %v7433 = vunpack.c.l.b16 %v5946
        %v7434 = vunpack.c.h.b16 %v5946
        %v7435 = vunpack.c.l.b16 %v5947
        %v7436 = vunpack.c.h.b16 %v5947
        %v7437 = vunpack.c.l.b16 %v5948
        %v7438 = vunpack.c.h.b16 %v5948
        %v7439 = vunpack.c.l.b16 %v5949
        %v7440 = vunpack.c.h.b16 %v5949
        %v7441 = vunpack.c.l.b16 %v5950
        %v7442 = vunpack.c.h.b16 %v5950
        %v7443 = vunpack.c.l.b16 %v5951
        %v7444 = vunpack.c.h.b16 %v5951
        %v7445 = vunpack.c.l.b16 %v5952
        %v7446 = vunpack.c.h.b16 %v5952
        %v7447 = vunpack.c.l.b16 %v5953
        %v7448 = vunpack.c.h.b16 %v5953
        %v7449 = vunpack.c.l.b16 %v5954
        %v7450 = vunpack.c.h.b16 %v5954
        %v7451 = vunpack.c.l.b16 %v5955
        %v7452 = vunpack.c.h.b16 %v5955
        %v7453 = vunpack.c.l.b16 %v5956
        %v7454 = vunpack.c.h.b16 %v5956
        %v7455 = vunpack.c.l.b16 %v5957
        %v7456 = vunpack.c.h.b16 %v5957
        %v7457 = vunpack.c.l.b16 %v5958
        %v7458 = vunpack.c.h.b16 %v5958
        %v7459 = vunpack.c.l.b16 %v5959
        %v7460 = vunpack.c.h.b16 %v5959
        %v7461 = vunpack.c.l.b16 %v5960
        %v7462 = vunpack.c.h.b16 %v5960
        %v7463 = vunpack.c.l.b16 %v5961
        %v7464 = vunpack.c.h.b16 %v5961
        %v7465 = vunpack.c.l.b16 %v5962
        %v7466 = vunpack.c.h.b16 %v5962
        %v7467 = vunpack.c.l.b16 %v5963
        %v7468 = vunpack.c.h.b16 %v5963
        %v7469 = vunpack.c.l.b16 %v5964
        %v7470 = vunpack.c.h.b16 %v5964
        %v7471 = vunpack.c.l.b16 %v5965
        %v7472 = vunpack.c.h.b16 %v5965
        %v7473 = vunpack.c.l.b16 %v5966
        %v7474 = vunpack.c.h.b16 %v5966
        %v7475 = vunpack.c.l.b16 %v5967
        %v7476 = vunpack.c.h.b16 %v5967
        %v7477 = vunpack.c.l.b16 %v5968
        %v7478 = vunpack.c.h.b16 %v5968
        %v7479 = vunpack.c.l.b16 %v5969
        %v7480 = vunpack.c.h.b16 %v5969
        %v7481 = vunpack.c.l.b16 %v5970
        %v7482 = vunpack.c.h.b16 %v5970
        %v7483 = vunpack.c.l.b16 %v5971
        %v7484 = vunpack.c.h.b16 %v5971
        %v7485 = vunpack.c.l.b16 %v5972
        %v7486 = vunpack.c.h.b16 %v5972
        %v7487 = vunpack.c.l.b16 %v5973
        %v7488 = vunpack.c.h.b16 %v5973
        %v7489 = vunpack.c.l.b16 %v5974
        %v7490 = vunpack.c.h.b16 %v5974
        %v7491 = vunpack.c.l.b16 %v5975
        %v7492 = vunpack.c.h.b16 %v5975
        %v7493 = vunpack.c.l.b16 %v5976
        %v7494 = vunpack.c.h.b16 %v5976
        %v7495 = vunpack.c.l.b16 %v5977
        %v7496 = vunpack.c.h.b16 %v5977
        %v7497 = vunpack.c.l.b16 %v5978
        %v7498 = vunpack.c.h.b16 %v5978
        %v7499 = vunpack.c.l.b16 %v5979
        %v7500 = vunpack.c.h.b16 %v5979
        %v7501 = vunpack.c.l.b16 %v5980
        %v7502 = vunpack.c.h.b16 %v5980
        %v7503 = vunpack.c.l.b16 %v5981
        %v7504 = vunpack.c.h.b16 %v5981
        %v7505 = vunpack.c.l.b16 %v5982
        %v7506 = vunpack.c.h.b16 %v5982
        %v7507 = vunpack.c.l.b16 %v5983
        %v7508 = vunpack.c.h.b16 %v5983
        %v7509 = vunpack.c.l.b16 %v5984
        %v7510 = vunpack.c.h.b16 %v5984
        %v7511 = vunpack.c.l.b16 %v5985
        %v7512 = vunpack.c.h.b16 %v5985
        %v7513 = vunpack.c.l.b16 %v5986
        %v7514 = vunpack.c.h.b16 %v5986
        %v7515 = vunpack.c.l.b16 %v5987
        %v7516 = vunpack.c.h.b16 %v5987
        %v7517 = vunpack.c.l.b16 %v5988
        %v7518 = vunpack.c.h.b16 %v5988
        %v7519 = vunpack.c.l.b16 %v5989
        %v7520 = vunpack.c.h.b16 %v5989
        %v7521 = vunpack.c.l.b16 %v5990
        %v7522 = vunpack.c.h.b16 %v5990
        %v7523 = vunpack.c.l.b16 %v5991
        %v7524 = vunpack.c.h.b16 %v5991
        %v7525 = vunpack.c.l.b16 %v5992
        %v7526 = vunpack.c.h.b16 %v5992
        %v7527 = vunpack.c.l.b16 %v5993
        %v7528 = vunpack.c.h.b16 %v5993
        %v7529 = vunpack.c.l.b16 %v5994
        %v7530 = vunpack.c.h.b16 %v5994
        %v7531 = vunpack.c.l.b16 %v5995
        %v7532 = vunpack.c.h.b16 %v5995
        %v7533 = vpack.c.b16 %v6511, %v6509
        %v7534 = vpack.c.b16 %v6512, %v6510
        %v7535 = vpack.c.b16 %v6515, %v6513
        %v7536 = vpack.c.b16 %v6516, %v6514
        %v7537 = vpack.c.b16 %v6519, %v6517
        %v7538 = vpack.c.b16 %v6520, %v6518
        %v7539 = vpack.c.b16 %v6523, %v6521
        %v7540 = vpack.c.b16 %v6524, %v6522
        %v7541 = vpack.c.b16 %v6527, %v6525
        %v7542 = vpack.c.b16 %v6528, %v6526
        %v7543 = vpack.c.b16 %v6531, %v6529
        %v7544 = vpack.c.b16 %v6532, %v6530
        %v7545 = vpack.c.b16 %v6535, %v6533
        %v7546 = vpack.c.b16 %v6536, %v6534
        %v7547 = vpack.c.b16 %v6539, %v6537
        %v7548 = vpack.c.b16 %v6540, %v6538
        %v7549 = vpack.c.b16 %v6543, %v6541
        %v7550 = vpack.c.b16 %v6544, %v6542
        %v7551 = vpack.c.b16 %v6547, %v6545
        %v7552 = vpack.c.b16 %v6548, %v6546
        %v7553 = vpack.c.b16 %v6551, %v6549
        %v7554 = vpack.c.b16 %v6552, %v6550
        %v7555 = vpack.c.b16 %v6555, %v6553
        %v7556 = vpack.c.b16 %v6556, %v6554
        %v7557 = vpack.c.b16 %v6559, %v6557
        %v7558 = vpack.c.b16 %v6560, %v6558
        %v7559 = vpack.c.b16 %v6563, %v6561
        %v7560 = vpack.c.b16 %v6564, %v6562
        %v7561 = vpack.c.b16 %v6567, %v6565
        %v7562 = vpack.c.b16 %v6568, %v6566
        %v7563 = vpack.c.b16 %v6571, %v6569
        %v7564 = vpack.c.b16 %v6572, %v6570
        %v7565 = vpack.c.b16 %v6575, %v6573
        %v7566 = vpack.c.b16 %v6576, %v6574
        %v7567 = vpack.c.b16 %v6579, %v6577
        %v7568 = vpack.c.b16 %v6580, %v6578
        %v7569 = vpack.c.b16 %v6583, %v6581
        %v7570 = vpack.c.b16 %v6584, %v6582
        %v7571 = vpack.c.b16 %v6587, %v6585
        %v7572 = vpack.c.b16 %v6588, %v6586
        %v7573 = vpack.c.b16 %v6591, %v6589
        %v7574 = vpack.c.b16 %v6592, %v6590
        %v7575 = vpack.c.b16 %v6595, %v6593
        %v7576 = vpack.c.b16 %v6596, %v6594
        %v7577 = vpack.c.b16 %v6599, %v6597
        %v7578 = vpack.c.b16 %v6600, %v6598
        %v7579 = vpack.c.b16 %v6603, %v6601
        %v7580 = vpack.c.b16 %v6604, %v6602
        %v7581 = vpack.c.b16 %v6607, %v6605
        %v7582 = vpack.c.b16 %v6608, %v6606
        %v7583 = vpack.c.b16 %v6611, %v6609
        %v7584 = vpack.c.b16 %v6612, %v6610
        %v7585 = vpack.c.b16 %v6615, %v6613
        %v7586 = vpack.c.b16 %v6616, %v6614
        %v7587 = vpack.c.b16 %v6619, %v6617
        %v7588 = vpack.c.b16 %v6620, %v6618
        %v7589 = vpack.c.b16 %v6623, %v6621
        %v7590 = vpack.c.b16 %v6624, %v6622
        %v7591 = vpack.c.b16 %v6627, %v6625
        %v7592 = vpack.c.b16 %v6628, %v6626
        %v7593 = vpack.c.b16 %v6631, %v6629
        %v7594 = vpack.c.b16 %v6632, %v6630
        %v7595 = vpack.c.b16 %v6635, %v6633
        %v7596 = vpack.c.b16 %v6636, %v6634
        %v7597 = vpack.c.b16 %v6639, %v6637
        %v7598 = vpack.c.b16 %v6640, %v6638
        %v7599 = vpack.c.b16 %v6643, %v6641
        %v7600 = vpack.c.b16 %v6644, %v6642
        %v7601 = vpack.c.b16 %v6647, %v6645
        %v7602 = vpack.c.b16 %v6648, %v6646
        %v7603 = vpack.c.b16 %v6651, %v6649
        %v7604 = vpack.c.b16 %v6652, %v6650
        %v7605 = vpack.c.b16 %v6655, %v6653
        %v7606 = vpack.c.b16 %v6656, %v6654
        %v7607 = vpack.c.b16 %v6659, %v6657
        %v7608 = vpack.c.b16 %v6660, %v6658
        %v7609 = vpack.c.b16 %v6663, %v6661
        %v7610 = vpack.c.b16 %v6664, %v6662
        %v7611 = vpack.c.b16 %v6667, %v6665
        %v7612 = vpack.c.b16 %v6668, %v6666
        %v7613 = vpack.c.b16 %v6671, %v6669
        %v7614 = vpack.c.b16 %v6672, %v6670
        %v7615 = vpack.c.b16 %v6675, %v6673
        %v7616 = vpack.c.b16 %v6676, %v6674
        %v7617 = vpack.c.b16 %v6679, %v6677
        %v7618 = vpack.c.b16 %v6680, %v6678
        %v7619 = vpack.c.b16 %v6683, %v6681
        %v7620 = vpack.c.b16 %v6684, %v6682
        %v7621 = vpack.c.b16 %v6687, %v6685
        %v7622 = vpack.c.b16 %v6688, %v6686
        %v7623 = vpack.c.b16 %v6691, %v6689
        %v7624 = vpack.c.b16 %v6692, %v6690
        %v7625 = vpack.c.b16 %v6695, %v6693
        %v7626 = vpack.c.b16 %v6696, %v6694
        %v7627 = vpack.c.b16 %v6699, %v6697
        %v7628 = vpack.c.b16 %v6700, %v6698
        %v7629 = vpack.c.b16 %v6703, %v6701
        %v7630 = vpack.c.b16 %v6704, %v6702
        %v7631 = vpack.c.b16 %v6707, %v6705
        %v7632 = vpack.c.b16 %v6708, %v6706
        %v7633 = vpack.c.b16 %v6711, %v6709
        %v7634 = vpack.c.b16 %v6712, %v6710
        %v7635 = vpack.c.b16 %v6715, %v6713
        %v7636 = vpack.c.b16 %v6716, %v6714
        %v7637 = vpack.c.b16 %v6719, %v6717
        %v7638 = vpack.c.b16 %v6720, %v6718
        %v7639 = vpack.c.b16 %v6723, %v6721
        %v7640 = vpack.c.b16 %v6724, %v6722
        %v7641 = vpack.c.b16 %v6727, %v6725
        %v7642 = vpack.c.b16 %v6728, %v6726
        %v7643 = vpack.c.b16 %v6731, %v6729
        %v7644 = vpack.c.b16 %v6732, %v6730
        %v7645 = vpack.c.b16 %v6735, %v6733
        %v7646 = vpack.c.b16 %v6736, %v6734
        %v7647 = vpack.c.b16 %v6739, %v6737
        %v7648 = vpack.c.b16 %v6740, %v6738
        %v7649 = vpack.c.b16 %v6743, %v6741
        %v7650 = vpack.c.b16 %v6744, %v6742
        %v7651 = vpack.c.b16 %v6747, %v6745
        %v7652 = vpack.c.b16 %v6748, %v6746
        %v7653 = vpack.c.b16 %v6751, %v6749
        %v7654 = vpack.c.b16 %v6752, %v6750
        %v7655 = vpack.c.b16 %v6755, %v6753
        %v7656 = vpack.c.b16 %v6756, %v6754
        %v7657 = vpack.c.b16 %v6759, %v6757
        %v7658 = vpack.c.b16 %v6760, %v6758
        %v7659 = vpack.c.b16 %v6763, %v6761
        %v7660 = vpack.c.b16 %v6764, %v6762
        %v7661 = vpack.c.b16 %v6767, %v6765
        %v7662 = vpack.c.b16 %v6768, %v6766
        %v7663 = vpack.c.b16 %v6771, %v6769
        %v7664 = vpack.c.b16 %v6772, %v6770
        %v7665 = vpack.c.b16 %v6775, %v6773
        %v7666 = vpack.c.b16 %v6776, %v6774
        %v7667 = vpack.c.b16 %v6779, %v6777
        %v7668 = vpack.c.b16 %v6780, %v6778
        %v7669 = vpack.c.b16 %v6783, %v6781
        %v7670 = vpack.c.b16 %v6784, %v6782
        %v7671 = vpack.c.b16 %v6787, %v6785
        %v7672 = vpack.c.b16 %v6788, %v6786
        %v7673 = vpack.c.b16 %v6791, %v6789
        %v7674 = vpack.c.b16 %v6792, %v6790
        %v7675 = vpack.c.b16 %v6795, %v6793
        %v7676 = vpack.c.b16 %v6796, %v6794
        %v7677 = vpack.c.b16 %v6799, %v6797
        %v7678 = vpack.c.b16 %v6800, %v6798
        %v7679 = vpack.c.b16 %v6803, %v6801
        %v7680 = vpack.c.b16 %v6804, %v6802
        %v7681 = vpack.c.b16 %v6807, %v6805
        %v7682 = vpack.c.b16 %v6808, %v6806
        %v7683 = vpack.c.b16 %v6811, %v6809
        %v7684 = vpack.c.b16 %v6812, %v6810
        %v7685 = vpack.c.b16 %v6815, %v6813
        %v7686 = vpack.c.b16 %v6816, %v6814
        %v7687 = vpack.c.b16 %v6819, %v6817
        %v7688 = vpack.c.b16 %v6820, %v6818
        %v7689 = vpack.c.b16 %v6823, %v6821
        %v7690 = vpack.c.b16 %v6824, %v6822
        %v7691 = vpack.c.b16 %v6827, %v6825
        %v7692 = vpack.c.b16 %v6828, %v6826
        %v7693 = vpack.c.b16 %v6831, %v6829
        %v7694 = vpack.c.b16 %v6832, %v6830
        %v7695 = vpack.c.b16 %v6835, %v6833
        %v7696 = vpack.c.b16 %v6836, %v6834
        %v7697 = vpack.c.b16 %v6839, %v6837
        %v7698 = vpack.c.b16 %v6840, %v6838
        %v7699 = vpack.c.b16 %v6843, %v6841
        %v7700 = vpack.c.b16 %v6844, %v6842
        %v7701 = vpack.c.b16 %v6847, %v6845
        %v7702 = vpack.c.b16 %v6848, %v6846
        %v7703 = vpack.c.b16 %v6851, %v6849
        %v7704 = vpack.c.b16 %v6852, %v6850
        %v7705 = vpack.c.b16 %v6855, %v6853
        %v7706 = vpack.c.b16 %v6856, %v6854
        %v7707 = vpack.c.b16 %v6859, %v6857
        %v7708 = vpack.c.b16 %v6860, %v6858
        %v7709 = vpack.c.b16 %v6863, %v6861
        %v7710 = vpack.c.b16 %v6864, %v6862
        %v7711 = vpack.c.b16 %v6867, %v6865
        %v7712 = vpack.c.b16 %v6868, %v6866
        %v7713 = vpack.c.b16 %v6871, %v6869
        %v7714 = vpack.c.b16 %v6872, %v6870
        %v7715 = vpack.c.b16 %v6875, %v6873
        %v7716 = vpack.c.b16 %v6876, %v6874
        %v7717 = vpack.c.b16 %v6879, %v6877
        %v7718 = vpack.c.b16 %v6880, %v6878
        %v7719 = vpack.c.b16 %v6883, %v6881
        %v7720 = vpack.c.b16 %v6884, %v6882
        %v7721 = vpack.c.b16 %v6887, %v6885
        %v7722 = vpack.c.b16 %v6888, %v6886
        %v7723 = vpack.c.b16 %v6891, %v6889
        %v7724 = vpack.c.b16 %v6892, %v6890
        %v7725 = vpack.c.b16 %v6895, %v6893
        %v7726 = vpack.c.b16 %v6896, %v6894
        %v7727 = vpack.c.b16 %v6899, %v6897
        %v7728 = vpack.c.b16 %v6900, %v6898
        %v7729 = vpack.c.b16 %v6903, %v6901
        %v7730 = vpack.c.b16 %v6904, %v6902
        %v7731 = vpack.c.b16 %v6907, %v6905
        %v7732 = vpack.c.b16 %v6908, %v6906
        %v7733 = vpack.c.b16 %v6911, %v6909
        %v7734 = vpack.c.b16 %v6912, %v6910
        %v7735 = vpack.c.b16 %v6915, %v6913
        %v7736 = vpack.c.b16 %v6916, %v6914
        %v7737 = vpack.c.b16 %v6919, %v6917
        %v7738 = vpack.c.b16 %v6920, %v6918
        %v7739 = vpack.c.b16 %v6923, %v6921
        %v7740 = vpack.c.b16 %v6924, %v6922
        %v7741 = vpack.c.b16 %v6927, %v6925
        %v7742 = vpack.c.b16 %v6928, %v6926
        %v7743 = vpack.c.b16 %v6931, %v6929
        %v7744 = vpack.c.b16 %v6932, %v6930
        %v7745 = vpack.c.b16 %v6935, %v6933
        %v7746 = vpack.c.b16 %v6936, %v6934
        %v7747 = vpack.c.b16 %v6939, %v6937
        %v7748 = vpack.c.b16 %v6940, %v6938
        %v7749 = vpack.c.b16 %v6943, %v6941
        %v7750 = vpack.c.b16 %v6944, %v6942
        %v7751 = vpack.c.b16 %v6947, %v6945
        %v7752 = vpack.c.b16 %v6948, %v6946
        %v7753 = vpack.c.b16 %v6951, %v6949
        %v7754 = vpack.c.b16 %v6952, %v6950
        %v7755 = vpack.c.b16 %v6955, %v6953
        %v7756 = vpack.c.b16 %v6956, %v6954
        %v7757 = vpack.c.b16 %v6959, %v6957
        %v7758 = vpack.c.b16 %v6960, %v6958
        %v7759 = vpack.c.b16 %v6963, %v6961
        %v7760 = vpack.c.b16 %v6964, %v6962
        %v7761 = vpack.c.b16 %v6967, %v6965
        %v7762 = vpack.c.b16 %v6968, %v6966
        %v7763 = vpack.c.b16 %v6971, %v6969
        %v7764 = vpack.c.b16 %v6972, %v6970
        %v7765 = vpack.c.b16 %v6975, %v6973
        %v7766 = vpack.c.b16 %v6976, %v6974
        %v7767 = vpack.c.b16 %v6979, %v6977
        %v7768 = vpack.c.b16 %v6980, %v6978
        %v7769 = vpack.c.b16 %v6983, %v6981
        %v7770 = vpack.c.b16 %v6984, %v6982
        %v7771 = vpack.c.b16 %v6987, %v6985
        %v7772 = vpack.c.b16 %v6988, %v6986
        %v7773 = vpack.c.b16 %v6991, %v6989
        %v7774 = vpack.c.b16 %v6992, %v6990
        %v7775 = vpack.c.b16 %v6995, %v6993
        %v7776 = vpack.c.b16 %v6996, %v6994
        %v7777 = vpack.c.b16 %v6999, %v6997
        %v7778 = vpack.c.b16 %v7000, %v6998
        %v7779 = vpack.c.b16 %v7003, %v7001
        %v7780 = vpack.c.b16 %v7004, %v7002
        %v7781 = vpack.c.b16 %v7007, %v7005
        %v7782 = vpack.c.b16 %v7008, %v7006
        %v7783 = vpack.c.b16 %v7011, %v7009
        %v7784 = vpack.c.b16 %v7012, %v7010
        %v7785 = vpack.c.b16 %v7015, %v7013
        %v7786 = vpack.c.b16 %v7016, %v7014
        %v7787 = vpack.c.b16 %v7019, %v7017
        %v7788 = vpack.c.b16 %v7020, %v7018
        %v7789 = vpack.c.b16 %v7023, %v7021
        %v7790 = vpack.c.b16 %v7024, %v7022
        %v7791 = vpack.c.b16 %v7027, %v7025
        %v7792 = vpack.c.b16 %v7028, %v7026
        %v7793 = vpack.c.b16 %v7031, %v7029
        %v7794 = vpack.c.b16 %v7032, %v7030
        %v7795 = vpack.c.b16 %v7035, %v7033
        %v7796 = vpack.c.b16 %v7036, %v7034
        %v7797 = vpack.c.b16 %v7039, %v7037
        %v7798 = vpack.c.b16 %v7040, %v7038
        %v7799 = vpack.c.b16 %v7043, %v7041
        %v7800 = vpack.c.b16 %v7044, %v7042
        %v7801 = vpack.c.b16 %v7047, %v7045
        %v7802 = vpack.c.b16 %v7048, %v7046
        %v7803 = vpack.c.b16 %v7051, %v7049
        %v7804 = vpack.c.b16 %v7052, %v7050
        %v7805 = vpack.c.b16 %v7055, %v7053
        %v7806 = vpack.c.b16 %v7056, %v7054
        %v7807 = vpack.c.b16 %v7059, %v7057
        %v7808 = vpack.c.b16 %v7060, %v7058
        %v7809 = vpack.c.b16 %v7063, %v7061
        %v7810 = vpack.c.b16 %v7064, %v7062
        %v7811 = vpack.c.b16 %v7067, %v7065
        %v7812 = vpack.c.b16 %v7068, %v7066
        %v7813 = vpack.c.b16 %v7071, %v7069
        %v7814 = vpack.c.b16 %v7072, %v7070
        %v7815 = vpack.c.b16 %v7075, %v7073
        %v7816 = vpack.c.b16 %v7076, %v7074
        %v7817 = vpack.c.b16 %v7079, %v7077
        %v7818 = vpack.c.b16 %v7080, %v7078
        %v7819 = vpack.c.b16 %v7083, %v7081
        %v7820 = vpack.c.b16 %v7084, %v7082
        %v7821 = vpack.c.b16 %v7087, %v7085
        %v7822 = vpack.c.b16 %v7088, %v7086
        %v7823 = vpack.c.b16 %v7091, %v7089
        %v7824 = vpack.c.b16 %v7092, %v7090
        %v7825 = vpack.c.b16 %v7095, %v7093
        %v7826 = vpack.c.b16 %v7096, %v7094
        %v7827 = vpack.c.b16 %v7099, %v7097
        %v7828 = vpack.c.b16 %v7100, %v7098
        %v7829 = vpack.c.b16 %v7103, %v7101
        %v7830 = vpack.c.b16 %v7104, %v7102
        %v7831 = vpack.c.b16 %v7107, %v7105
        %v7832 = vpack.c.b16 %v7108, %v7106
        %v7833 = vpack.c.b16 %v7111, %v7109
        %v7834 = vpack.c.b16 %v7112, %v7110
        %v7835 = vpack.c.b16 %v7115, %v7113
        %v7836 = vpack.c.b16 %v7116, %v7114
        %v7837 = vpack.c.b16 %v7119, %v7117
        %v7838 = vpack.c.b16 %v7120, %v7118
        %v7839 = vpack.c.b16 %v7123, %v7121
        %v7840 = vpack.c.b16 %v7124, %v7122
        %v7841 = vpack.c.b16 %v7127, %v7125
        %v7842 = vpack.c.b16 %v7128, %v7126
        %v7843 = vpack.c.b16 %v7131, %v7129
        %v7844 = vpack.c.b16 %v7132, %v7130
        %v7845 = vpack.c.b16 %v7135, %v7133
        %v7846 = vpack.c.b16 %v7136, %v7134
        %v7847 = vpack.c.b16 %v7139, %v7137
        %v7848 = vpack.c.b16 %v7140, %v7138
        %v7849 = vpack.c.b16 %v7143, %v7141
        %v7850 = vpack.c.b16 %v7144, %v7142
        %v7851 = vpack.c.b16 %v7147, %v7145
        %v7852 = vpack.c.b16 %v7148, %v7146
        %v7853 = vpack.c.b16 %v7151, %v7149
        %v7854 = vpack.c.b16 %v7152, %v7150
        %v7855 = vpack.c.b16 %v7155, %v7153
        %v7856 = vpack.c.b16 %v7156, %v7154
        %v7857 = vpack.c.b16 %v7159, %v7157
        %v7858 = vpack.c.b16 %v7160, %v7158
        %v7859 = vpack.c.b16 %v7163, %v7161
        %v7860 = vpack.c.b16 %v7164, %v7162
        %v7861 = vpack.c.b16 %v7167, %v7165
        %v7862 = vpack.c.b16 %v7168, %v7166
        %v7863 = vpack.c.b16 %v7171, %v7169
        %v7864 = vpack.c.b16 %v7172, %v7170
        %v7865 = vpack.c.b16 %v7175, %v7173
        %v7866 = vpack.c.b16 %v7176, %v7174
        %v7867 = vpack.c.b16 %v7179, %v7177
        %v7868 = vpack.c.b16 %v7180, %v7178
        %v7869 = vpack.c.b16 %v7183, %v7181
        %v7870 = vpack.c.b16 %v7184, %v7182
        %v7871 = vpack.c.b16 %v7187, %v7185
        %v7872 = vpack.c.b16 %v7188, %v7186
        %v7873 = vpack.c.b16 %v7191, %v7189
        %v7874 = vpack.c.b16 %v7192, %v7190
        %v7875 = vpack.c.b16 %v7195, %v7193
        %v7876 = vpack.c.b16 %v7196, %v7194
        %v7877 = vpack.c.b16 %v7199, %v7197
        %v7878 = vpack.c.b16 %v7200, %v7198
        %v7879 = vpack.c.b16 %v7203, %v7201
        %v7880 = vpack.c.b16 %v7204, %v7202
        %v7881 = vpack.c.b16 %v7207, %v7205
        %v7882 = vpack.c.b16 %v7208, %v7206
        %v7883 = vpack.c.b16 %v7211, %v7209
        %v7884 = vpack.c.b16 %v7212, %v7210
        %v7885 = vpack.c.b16 %v7215, %v7213
        %v7886 = vpack.c.b16 %v7216, %v7214
        %v7887 = vpack.c.b16 %v7219, %v7217
        %v7888 = vpack.c.b16 %v7220, %v7218
        %v7889 = vpack.c.b16 %v7223, %v7221
        %v7890 = vpack.c.b16 %v7224, %v7222
        %v7891 = vpack.c.b16 %v7227, %v7225
        %v7892 = vpack.c.b16 %v7228, %v7226
        %v7893 = vpack.c.b16 %v7231, %v7229
        %v7894 = vpack.c.b16 %v7232, %v7230
        %v7895 = vpack.c.b16 %v7235, %v7233
        %v7896 = vpack.c.b16 %v7236, %v7234
        %v7897 = vpack.c.b16 %v7239, %v7237
        %v7898 = vpack.c.b16 %v7240, %v7238
        %v7899 = vpack.c.b16 %v7243, %v7241
        %v7900 = vpack.c.b16 %v7244, %v7242
        %v7901 = vpack.c.b16 %v7247, %v7245
        %v7902 = vpack.c.b16 %v7248, %v7246
        %v7903 = vpack.c.b16 %v7251, %v7249
        %v7904 = vpack.c.b16 %v7252, %v7250
        %v7905 = vpack.c.b16 %v7255, %v7253
        %v7906 = vpack.c.b16 %v7256, %v7254
        %v7907 = vpack.c.b16 %v7259, %v7257
        %v7908 = vpack.c.b16 %v7260, %v7258
        %v7909 = vpack.c.b16 %v7263, %v7261
        %v7910 = vpack.c.b16 %v7264, %v7262
        %v7911 = vpack.c.b16 %v7267, %v7265
        %v7912 = vpack.c.b16 %v7268, %v7266
        %v7913 = vpack.c.b16 %v7271, %v7269
        %v7914 = vpack.c.b16 %v7272, %v7270
        %v7915 = vpack.c.b16 %v7275, %v7273
        %v7916 = vpack.c.b16 %v7276, %v7274
        %v7917 = vpack.c.b16 %v7279, %v7277
        %v7918 = vpack.c.b16 %v7280, %v7278
        %v7919 = vpack.c.b16 %v7283, %v7281
        %v7920 = vpack.c.b16 %v7284, %v7282
        %v7921 = vpack.c.b16 %v7287, %v7285
        %v7922 = vpack.c.b16 %v7288, %v7286
        %v7923 = vpack.c.b16 %v7291, %v7289
        %v7924 = vpack.c.b16 %v7292, %v7290
        %v7925 = vpack.c.b16 %v7295, %v7293
        %v7926 = vpack.c.b16 %v7296, %v7294
        %v7927 = vpack.c.b16 %v7299, %v7297
        %v7928 = vpack.c.b16 %v7300, %v7298
        %v7929 = vpack.c.b16 %v7303, %v7301
        %v7930 = vpack.c.b16 %v7304, %v7302
        %v7931 = vpack.c.b16 %v7307, %v7305
        %v7932 = vpack.c.b16 %v7308, %v7306
        %v7933 = vpack.c.b16 %v7311, %v7309
        %v7934 = vpack.c.b16 %v7312, %v7310
        %v7935 = vpack.c.b16 %v7315, %v7313
        %v7936 = vpack.c.b16 %v7316, %v7314
        %v7937 = vpack.c.b16 %v7319, %v7317
        %v7938 = vpack.c.b16 %v7320, %v7318
        %v7939 = vpack.c.b16 %v7323, %v7321
        %v7940 = vpack.c.b16 %v7324, %v7322
        %v7941 = vpack.c.b16 %v7327, %v7325
        %v7942 = vpack.c.b16 %v7328, %v7326
        %v7943 = vpack.c.b16 %v7331, %v7329
        %v7944 = vpack.c.b16 %v7332, %v7330
        %v7945 = vpack.c.b16 %v7335, %v7333
        %v7946 = vpack.c.b16 %v7336, %v7334
        %v7947 = vpack.c.b16 %v7339, %v7337
        %v7948 = vpack.c.b16 %v7340, %v7338
        %v7949 = vpack.c.b16 %v7343, %v7341
        %v7950 = vpack.c.b16 %v7344, %v7342
        %v7951 = vpack.c.b16 %v7347, %v7345
        %v7952 = vpack.c.b16 %v7348, %v7346
        %v7953 = vpack.c.b16 %v7351, %v7349
        %v7954 = vpack.c.b16 %v7352, %v7350
        %v7955 = vpack.c.b16 %v7355, %v7353
        %v7956 = vpack.c.b16 %v7356, %v7354
        %v7957 = vpack.c.b16 %v7359, %v7357
        %v7958 = vpack.c.b16 %v7360, %v7358
        %v7959 = vpack.c.b16 %v7363, %v7361
        %v7960 = vpack.c.b16 %v7364, %v7362
        %v7961 = vpack.c.b16 %v7367, %v7365
        %v7962 = vpack.c.b16 %v7368, %v7366
        %v7963 = vpack.c.b16 %v7371, %v7369
        %v7964 = vpack.c.b16 %v7372, %v7370
        %v7965 = vpack.c.b16 %v7375, %v7373
        %v7966 = vpack.c.b16 %v7376, %v7374
        %v7967 = vpack.c.b16 %v7379, %v7377
        %v7968 = vpack.c.b16 %v7380, %v7378
        %v7969 = vpack.c.b16 %v7383, %v7381
        %v7970 = vpack.c.b16 %v7384, %v7382
        %v7971 = vpack.c.b16 %v7387, %v7385
        %v7972 = vpack.c.b16 %v7388, %v7386
        %v7973 = vpack.c.b16 %v7391, %v7389
        %v7974 = vpack.c.b16 %v7392, %v7390
        %v7975 = vpack.c.b16 %v7395, %v7393
        %v7976 = vpack.c.b16 %v7396, %v7394
        %v7977 = vpack.c.b16 %v7399, %v7397
        %v7978 = vpack.c.b16 %v7400, %v7398
        %v7979 = vpack.c.b16 %v7403, %v7401
        %v7980 = vpack.c.b16 %v7404, %v7402
        %v7981 = vpack.c.b16 %v7407, %v7405
        %v7982 = vpack.c.b16 %v7408, %v7406
        %v7983 = vpack.c.b16 %v7411, %v7409
        %v7984 = vpack.c.b16 %v7412, %v7410
        %v7985 = vpack.c.b16 %v7415, %v7413
        %v7986 = vpack.c.b16 %v7416, %v7414
        %v7987 = vpack.c.b16 %v7419, %v7417
        %v7988 = vpack.c.b16 %v7420, %v7418
        %v7989 = vpack.c.b16 %v7423, %v7421
        %v7990 = vpack.c.b16 %v7424, %v7422
        %v7991 = vpack.c.b16 %v7427, %v7425
        %v7992 = vpack.c.b16 %v7428, %v7426
        %v7993 = vpack.c.b16 %v7431, %v7429
        %v7994 = vpack.c.b16 %v7432, %v7430
        %v7995 = vpack.c.b16 %v7435, %v7433
        %v7996 = vpack.c.b16 %v7436, %v7434
        %v7997 = vpack.c.b16 %v7439, %v7437
        %v7998 = vpack.c.b16 %v7440, %v7438
        %v7999 = vpack.c.b16 %v7443, %v7441
        %v8000 = vpack.c.b16 %v7444, %v7442
        %v8001 = vpack.c.b16 %v7447, %v7445
        %v8002 = vpack.c.b16 %v7448, %v7446
        %v8003 = vpack.c.b16 %v7451, %v7449
        %v8004 = vpack.c.b16 %v7452, %v7450
        %v8005 = vpack.c.b16 %v7455, %v7453
        %v8006 = vpack.c.b16 %v7456, %v7454
        %v8007 = vpack.c.b16 %v7459, %v7457
        %v8008 = vpack.c.b16 %v7460, %v7458
        %v8009 = vpack.c.b16 %v7463, %v7461
        %v8010 = vpack.c.b16 %v7464, %v7462
        %v8011 = vpack.c.b16 %v7467, %v7465
        %v8012 = vpack.c.b16 %v7468, %v7466
        %v8013 = vpack.c.b16 %v7471, %v7469
        %v8014 = vpack.c.b16 %v7472, %v7470
        %v8015 = vpack.c.b16 %v7475, %v7473
        %v8016 = vpack.c.b16 %v7476, %v7474
        %v8017 = vpack.c.b16 %v7479, %v7477
        %v8018 = vpack.c.b16 %v7480, %v7478
        %v8019 = vpack.c.b16 %v7483, %v7481
        %v8020 = vpack.c.b16 %v7484, %v7482
        %v8021 = vpack.c.b16 %v7487, %v7485
        %v8022 = vpack.c.b16 %v7488, %v7486
        %v8023 = vpack.c.b16 %v7491, %v7489
        %v8024 = vpack.c.b16 %v7492, %v7490
        %v8025 = vpack.c.b16 %v7495, %v7493
        %v8026 = vpack.c.b16 %v7496, %v7494
        %v8027 = vpack.c.b16 %v7499, %v7497
        %v8028 = vpack.c.b16 %v7500, %v7498
        %v8029 = vpack.c.b16 %v7503, %v7501
        %v8030 = vpack.c.b16 %v7504, %v7502
        %v8031 = vpack.c.b16 %v7507, %v7505
        %v8032 = vpack.c.b16 %v7508, %v7506
        %v8033 = vpack.c.b16 %v7511, %v7509
        %v8034 = vpack.c.b16 %v7512, %v7510
        %v8035 = vpack.c.b16 %v7515, %v7513
        %v8036 = vpack.c.b16 %v7516, %v7514
        %v8037 = vpack.c.b16 %v7519, %v7517
        %v8038 = vpack.c.b16 %v7520, %v7518
        %v8039 = vpack.c.b16 %v7523, %v7521
        %v8040 = vpack.c.b16 %v7524, %v7522
        %v8041 = vpack.c.b16 %v7527, %v7525
        %v8042 = vpack.c.b16 %v7528, %v7526
        %v8043 = vpack.c.b16 %v7531, %v7529
        %v8044 = vpack.c.b16 %v7532, %v7530
        %v8558 = vperm.slane %v5996, 0
        %v8559 = vperm.slane %v5996, 1
        %8562 = vmatpush.bf16.msra.mxu0 %v7547
        %8563 = vmatpush.bf16.msra.mxu0 %v7545
        %8564 = vmatpush.bf16.msra.mxu0 %v7543
        %8565 = vmatpush.bf16.msra.mxu0 %v7541
        %8566 = vmatpush.bf16.msra.mxu0 %v7539
        %8567 = vmatpush.bf16.msra.mxu0 %v7537
        %8568 = vmatpush.bf16.msra.mxu0 %v7535
        %8569 = vmatpush.bf16.msra.mxu0 %v7533
        %8570 = vmatmul.bf16.gmra.mxu0 %v5452
        %v8571 = vpop.f32.mrf.mxu0
        %v8572 = vadd.f32 %v8558, %v8571
        %v8573 = vpop.f32.mrf.mxu0
        %8574 = vdwg.mxu0
        %8575 = vmatpush.bf16.msra.mxu0 %v7563
        %8576 = vmatpush.bf16.msra.mxu0 %v7561
        %8577 = vmatpush.bf16.msra.mxu0 %v7559
        %8578 = vmatpush.bf16.msra.mxu0 %v7557
        %8579 = vmatpush.bf16.msra.mxu0 %v7555
        %8580 = vmatpush.bf16.msra.mxu0 %v7553
        %8581 = vmatpush.bf16.msra.mxu0 %v7551
        %8582 = vmatpush.bf16.msra.mxu0 %v7549
        %8583 = vmatmul.bf16.gmra.mxu0 %v5453
        %v8584 = vpop.f32.mrf.mxu0
        %v8585 = vadd.f32 %v8572, %v8584
        %v8586 = vpop.f32.mrf.mxu0
        %8587 = vdwg.mxu0
        %8588 = vmatpush.bf16.msra.mxu0 %v7579
        %8589 = vmatpush.bf16.msra.mxu0 %v7577
        %8590 = vmatpush.bf16.msra.mxu0 %v7575
        %8591 = vmatpush.bf16.msra.mxu0 %v7573
        %8592 = vmatpush.bf16.msra.mxu0 %v7571
        %8593 = vmatpush.bf16.msra.mxu0 %v7569
        %8594 = vmatpush.bf16.msra.mxu0 %v7567
        %8595 = vmatpush.bf16.msra.mxu0 %v7565
        %8596 = vmatmul.bf16.gmra.mxu0 %v5454
        %v8597 = vpop.f32.mrf.mxu0
        %v8598 = vadd.f32 %v8585, %v8597
        %v8599 = vpop.f32.mrf.mxu0
        %8600 = vdwg.mxu0
        %8601 = vmatpush.bf16.msra.mxu0 %v7595
        %8602 = vmatpush.bf16.msra.mxu0 %v7593
        %8603 = vmatpush.bf16.msra.mxu0 %v7591
        %8604 = vmatpush.bf16.msra.mxu0 %v7589
        %8605 = vmatpush.bf16.msra.mxu0 %v7587
        %8606 = vmatpush.bf16.msra.mxu0 %v7585
        %8607 = vmatpush.bf16.msra.mxu0 %v7583
        %8608 = vmatpush.bf16.msra.mxu0 %v7581
        %8609 = vmatmul.bf16.gmra.mxu0 %v5455
        %v8610 = vpop.f32.mrf.mxu0
        %v8611 = vadd.f32 %v8598, %v8610
        %v8612 = vpop.f32.mrf.mxu0
        %8613 = vdwg.mxu0
        %8614 = vmatpush.bf16.msra.mxu0 %v7611
        %8615 = vmatpush.bf16.msra.mxu0 %v7609
        %8616 = vmatpush.bf16.msra.mxu0 %v7607
        %8617 = vmatpush.bf16.msra.mxu0 %v7605
        %8618 = vmatpush.bf16.msra.mxu0 %v7603
        %8619 = vmatpush.bf16.msra.mxu0 %v7601
        %8620 = vmatpush.bf16.msra.mxu0 %v7599
        %8621 = vmatpush.bf16.msra.mxu0 %v7597
        %8622 = vmatmul.bf16.gmra.mxu0 %v5456
        %v8623 = vpop.f32.mrf.mxu0
        %v8624 = vadd.f32 %v8611, %v8623
        %v8625 = vpop.f32.mrf.mxu0
        %8626 = vdwg.mxu0
        %8627 = vmatpush.bf16.msra.mxu0 %v7627
        %8628 = vmatpush.bf16.msra.mxu0 %v7625
        %8629 = vmatpush.bf16.msra.mxu0 %v7623
        %8630 = vmatpush.bf16.msra.mxu0 %v7621
        %8631 = vmatpush.bf16.msra.mxu0 %v7619
        %8632 = vmatpush.bf16.msra.mxu0 %v7617
        %8633 = vmatpush.bf16.msra.mxu0 %v7615
        %8634 = vmatpush.bf16.msra.mxu0 %v7613
        %8635 = vmatmul.bf16.gmra.mxu0 %v5457
        %v8636 = vpop.f32.mrf.mxu0
        %v8637 = vadd.f32 %v8624, %v8636
        %v8638 = vpop.f32.mrf.mxu0
        %8639 = vdwg.mxu0
        %8640 = vmatpush.bf16.msra.mxu0 %v7643
        %8641 = vmatpush.bf16.msra.mxu0 %v7641
        %8642 = vmatpush.bf16.msra.mxu0 %v7639
        %8643 = vmatpush.bf16.msra.mxu0 %v7637
        %8644 = vmatpush.bf16.msra.mxu0 %v7635
        %8645 = vmatpush.bf16.msra.mxu0 %v7633
        %8646 = vmatpush.bf16.msra.mxu0 %v7631
        %8647 = vmatpush.bf16.msra.mxu0 %v7629
        %8648 = vmatmul.bf16.gmra.mxu0 %v5458
        %v8649 = vpop.f32.mrf.mxu0
        %v8650 = vadd.f32 %v8637, %v8649
        %v8651 = vpop.f32.mrf.mxu0
        %8652 = vdwg.mxu0
        %8653 = vmatpush.bf16.msra.mxu0 %v7659
        %8654 = vmatpush.bf16.msra.mxu0 %v7657
        %8655 = vmatpush.bf16.msra.mxu0 %v7655
        %8656 = vmatpush.bf16.msra.mxu0 %v7653
        %8657 = vmatpush.bf16.msra.mxu0 %v7651
        %8658 = vmatpush.bf16.msra.mxu0 %v7649
        %8659 = vmatpush.bf16.msra.mxu0 %v7647
        %8660 = vmatpush.bf16.msra.mxu0 %v7645
        %8661 = vmatmul.bf16.gmra.mxu0 %v5459
        %v8662 = vpop.f32.mrf.mxu0
        %v8663 = vadd.f32 %v8650, %v8662
        %v8664 = vpop.f32.mrf.mxu0
        %8665 = vdwg.mxu0
        %8666 = vmatpush.bf16.msra.mxu0 %v7675
        %8667 = vmatpush.bf16.msra.mxu0 %v7673
        %8668 = vmatpush.bf16.msra.mxu0 %v7671
        %8669 = vmatpush.bf16.msra.mxu0 %v7669
        %8670 = vmatpush.bf16.msra.mxu0 %v7667
        %8671 = vmatpush.bf16.msra.mxu0 %v7665
        %8672 = vmatpush.bf16.msra.mxu0 %v7663
        %8673 = vmatpush.bf16.msra.mxu0 %v7661
        %8674 = vmatmul.bf16.gmra.mxu0 %v5460
        %v8675 = vpop.f32.mrf.mxu0
        %v8676 = vadd.f32 %v8663, %v8675
        %v8677 = vpop.f32.mrf.mxu0
        %8678 = vdwg.mxu0
        %8679 = vmatpush.bf16.msra.mxu0 %v7691
        %8680 = vmatpush.bf16.msra.mxu0 %v7689
        %8681 = vmatpush.bf16.msra.mxu0 %v7687
        %8682 = vmatpush.bf16.msra.mxu0 %v7685
        %8683 = vmatpush.bf16.msra.mxu0 %v7683
        %8684 = vmatpush.bf16.msra.mxu0 %v7681
        %8685 = vmatpush.bf16.msra.mxu0 %v7679
        %8686 = vmatpush.bf16.msra.mxu0 %v7677
        %8687 = vmatmul.bf16.gmra.mxu0 %v5461
        %v8688 = vpop.f32.mrf.mxu0
        %v8689 = vadd.f32 %v8676, %v8688
        %v8690 = vpop.f32.mrf.mxu0
        %8691 = vdwg.mxu0
        %8692 = vmatpush.bf16.msra.mxu0 %v7707
        %8693 = vmatpush.bf16.msra.mxu0 %v7705
        %8694 = vmatpush.bf16.msra.mxu0 %v7703
        %8695 = vmatpush.bf16.msra.mxu0 %v7701
        %8696 = vmatpush.bf16.msra.mxu0 %v7699
        %8697 = vmatpush.bf16.msra.mxu0 %v7697
        %8698 = vmatpush.bf16.msra.mxu0 %v7695
        %8699 = vmatpush.bf16.msra.mxu0 %v7693
        %8700 = vmatmul.bf16.gmra.mxu0 %v5462
        %v8701 = vpop.f32.mrf.mxu0
        %v8702 = vadd.f32 %v8689, %v8701
        %v8703 = vpop.f32.mrf.mxu0
        %8704 = vdwg.mxu0
        %8705 = vmatpush.bf16.msra.mxu0 %v7723
        %8706 = vmatpush.bf16.msra.mxu0 %v7721
        %8707 = vmatpush.bf16.msra.mxu0 %v7719
        %8708 = vmatpush.bf16.msra.mxu0 %v7717
        %8709 = vmatpush.bf16.msra.mxu0 %v7715
        %8710 = vmatpush.bf16.msra.mxu0 %v7713
        %8711 = vmatpush.bf16.msra.mxu0 %v7711
        %8712 = vmatpush.bf16.msra.mxu0 %v7709
        %8713 = vmatmul.bf16.gmra.mxu0 %v5463
        %v8714 = vpop.f32.mrf.mxu0
        %v8715 = vadd.f32 %v8702, %v8714
        %v8716 = vpop.f32.mrf.mxu0
        %8717 = vdwg.mxu0
        %8718 = vmatpush.bf16.msra.mxu0 %v7739
        %8719 = vmatpush.bf16.msra.mxu0 %v7737
        %8720 = vmatpush.bf16.msra.mxu0 %v7735
        %8721 = vmatpush.bf16.msra.mxu0 %v7733
        %8722 = vmatpush.bf16.msra.mxu0 %v7731
        %8723 = vmatpush.bf16.msra.mxu0 %v7729
        %8724 = vmatpush.bf16.msra.mxu0 %v7727
        %8725 = vmatpush.bf16.msra.mxu0 %v7725
        %8726 = vmatmul.bf16.gmra.mxu0 %v5464
        %v8727 = vpop.f32.mrf.mxu0
        %v8728 = vadd.f32 %v8715, %v8727
        %v8729 = vpop.f32.mrf.mxu0
        %8730 = vdwg.mxu0
        %8731 = vmatpush.bf16.msra.mxu0 %v7755
        %8732 = vmatpush.bf16.msra.mxu0 %v7753
        %8733 = vmatpush.bf16.msra.mxu0 %v7751
        %8734 = vmatpush.bf16.msra.mxu0 %v7749
        %8735 = vmatpush.bf16.msra.mxu0 %v7747
        %8736 = vmatpush.bf16.msra.mxu0 %v7745
        %8737 = vmatpush.bf16.msra.mxu0 %v7743
        %8738 = vmatpush.bf16.msra.mxu0 %v7741
        %8739 = vmatmul.bf16.gmra.mxu0 %v5465
        %v8740 = vpop.f32.mrf.mxu0
        %v8741 = vadd.f32 %v8728, %v8740
        %v8742 = vpop.f32.mrf.mxu0
        %8743 = vdwg.mxu0
        %8744 = vmatpush.bf16.msra.mxu0 %v7771
        %8745 = vmatpush.bf16.msra.mxu0 %v7769
        %8746 = vmatpush.bf16.msra.mxu0 %v7767
        %8747 = vmatpush.bf16.msra.mxu0 %v7765
        %8748 = vmatpush.bf16.msra.mxu0 %v7763
        %8749 = vmatpush.bf16.msra.mxu0 %v7761
        %8750 = vmatpush.bf16.msra.mxu0 %v7759
        %8751 = vmatpush.bf16.msra.mxu0 %v7757
        %8752 = vmatmul.bf16.gmra.mxu0 %v5466
        %v8753 = vpop.f32.mrf.mxu0
        %v8754 = vadd.f32 %v8741, %v8753
        %v8755 = vpop.f32.mrf.mxu0
        %8756 = vdwg.mxu0
        %8757 = vmatpush.bf16.msra.mxu0 %v7787
        %8758 = vmatpush.bf16.msra.mxu0 %v7785
        %8759 = vmatpush.bf16.msra.mxu0 %v7783
        %8760 = vmatpush.bf16.msra.mxu0 %v7781
        %8761 = vmatpush.bf16.msra.mxu0 %v7779
        %8762 = vmatpush.bf16.msra.mxu0 %v7777
        %8763 = vmatpush.bf16.msra.mxu0 %v7775
        %8764 = vmatpush.bf16.msra.mxu0 %v7773
        %8765 = vmatmul.bf16.gmra.mxu0 %v5467
        %v8766 = vpop.f32.mrf.mxu0
        %v8767 = vadd.f32 %v8754, %v8766
        %v8768 = vpop.f32.mrf.mxu0
        %8769 = vdwg.mxu0
        %8770 = vmatpush.bf16.msra.mxu0 %v7803
        %8771 = vmatpush.bf16.msra.mxu0 %v7801
        %8772 = vmatpush.bf16.msra.mxu0 %v7799
        %8773 = vmatpush.bf16.msra.mxu0 %v7797
        %8774 = vmatpush.bf16.msra.mxu0 %v7795
        %8775 = vmatpush.bf16.msra.mxu0 %v7793
        %8776 = vmatpush.bf16.msra.mxu0 %v7791
        %8777 = vmatpush.bf16.msra.mxu0 %v7789
        %8778 = vmatmul.bf16.gmra.mxu0 %v5468
        %v8779 = vpop.f32.mrf.mxu0
        %v8780 = vadd.f32 %v8767, %v8779
        %v8781 = vpop.f32.mrf.mxu0
        %8782 = vdwg.mxu0
        %8783 = vmatpush.bf16.msra.mxu0 %v7819
        %8784 = vmatpush.bf16.msra.mxu0 %v7817
        %8785 = vmatpush.bf16.msra.mxu0 %v7815
        %8786 = vmatpush.bf16.msra.mxu0 %v7813
        %8787 = vmatpush.bf16.msra.mxu0 %v7811
        %8788 = vmatpush.bf16.msra.mxu0 %v7809
        %8789 = vmatpush.bf16.msra.mxu0 %v7807
        %8790 = vmatpush.bf16.msra.mxu0 %v7805
        %8791 = vmatmul.bf16.gmra.mxu0 %v5469
        %v8792 = vpop.f32.mrf.mxu0
        %v8793 = vadd.f32 %v8780, %v8792
        %v8794 = vpop.f32.mrf.mxu0
        %8795 = vdwg.mxu0
        %8796 = vmatpush.bf16.msra.mxu0 %v7835
        %8797 = vmatpush.bf16.msra.mxu0 %v7833
        %8798 = vmatpush.bf16.msra.mxu0 %v7831
        %8799 = vmatpush.bf16.msra.mxu0 %v7829
        %8800 = vmatpush.bf16.msra.mxu0 %v7827
        %8801 = vmatpush.bf16.msra.mxu0 %v7825
        %8802 = vmatpush.bf16.msra.mxu0 %v7823
        %8803 = vmatpush.bf16.msra.mxu0 %v7821
        %8804 = vmatmul.bf16.gmra.mxu0 %v5470
        %v8805 = vpop.f32.mrf.mxu0
        %v8806 = vadd.f32 %v8793, %v8805
        %v8807 = vpop.f32.mrf.mxu0
        %8808 = vdwg.mxu0
        %8809 = vmatpush.bf16.msra.mxu0 %v7851
        %8810 = vmatpush.bf16.msra.mxu0 %v7849
        %8811 = vmatpush.bf16.msra.mxu0 %v7847
        %8812 = vmatpush.bf16.msra.mxu0 %v7845
        %8813 = vmatpush.bf16.msra.mxu0 %v7843
        %8814 = vmatpush.bf16.msra.mxu0 %v7841
        %8815 = vmatpush.bf16.msra.mxu0 %v7839
        %8816 = vmatpush.bf16.msra.mxu0 %v7837
        %8817 = vmatmul.bf16.gmra.mxu0 %v5471
        %v8818 = vpop.f32.mrf.mxu0
        %v8819 = vadd.f32 %v8806, %v8818
        %v8820 = vpop.f32.mrf.mxu0
        %8821 = vdwg.mxu0
        %8822 = vmatpush.bf16.msra.mxu0 %v7867
        %8823 = vmatpush.bf16.msra.mxu0 %v7865
        %8824 = vmatpush.bf16.msra.mxu0 %v7863
        %8825 = vmatpush.bf16.msra.mxu0 %v7861
        %8826 = vmatpush.bf16.msra.mxu0 %v7859
        %8827 = vmatpush.bf16.msra.mxu0 %v7857
        %8828 = vmatpush.bf16.msra.mxu0 %v7855
        %8829 = vmatpush.bf16.msra.mxu0 %v7853
        %8830 = vmatmul.bf16.gmra.mxu0 %v5472
        %v8831 = vpop.f32.mrf.mxu0
        %v8832 = vadd.f32 %v8819, %v8831
        %v8833 = vpop.f32.mrf.mxu0
        %8834 = vdwg.mxu0
        %8835 = vmatpush.bf16.msra.mxu0 %v7883
        %8836 = vmatpush.bf16.msra.mxu0 %v7881
        %8837 = vmatpush.bf16.msra.mxu0 %v7879
        %8838 = vmatpush.bf16.msra.mxu0 %v7877
        %8839 = vmatpush.bf16.msra.mxu0 %v7875
        %8840 = vmatpush.bf16.msra.mxu0 %v7873
        %8841 = vmatpush.bf16.msra.mxu0 %v7871
        %8842 = vmatpush.bf16.msra.mxu0 %v7869
        %8843 = vmatmul.bf16.gmra.mxu0 %v5473
        %v8844 = vpop.f32.mrf.mxu0
        %v8845 = vadd.f32 %v8832, %v8844
        %v8846 = vpop.f32.mrf.mxu0
        %8847 = vdwg.mxu0
        %8848 = vmatpush.bf16.msra.mxu0 %v7899
        %8849 = vmatpush.bf16.msra.mxu0 %v7897
        %8850 = vmatpush.bf16.msra.mxu0 %v7895
        %8851 = vmatpush.bf16.msra.mxu0 %v7893
        %8852 = vmatpush.bf16.msra.mxu0 %v7891
        %8853 = vmatpush.bf16.msra.mxu0 %v7889
        %8854 = vmatpush.bf16.msra.mxu0 %v7887
        %8855 = vmatpush.bf16.msra.mxu0 %v7885
        %8856 = vmatmul.bf16.gmra.mxu0 %v5474
        %v8857 = vpop.f32.mrf.mxu0
        %v8858 = vadd.f32 %v8845, %v8857
        %v8859 = vpop.f32.mrf.mxu0
        %8860 = vdwg.mxu0
        %8861 = vmatpush.bf16.msra.mxu0 %v7915
        %8862 = vmatpush.bf16.msra.mxu0 %v7913
        %8863 = vmatpush.bf16.msra.mxu0 %v7911
        %8864 = vmatpush.bf16.msra.mxu0 %v7909
        %8865 = vmatpush.bf16.msra.mxu0 %v7907
        %8866 = vmatpush.bf16.msra.mxu0 %v7905
        %8867 = vmatpush.bf16.msra.mxu0 %v7903
        %8868 = vmatpush.bf16.msra.mxu0 %v7901
        %8869 = vmatmul.bf16.gmra.mxu0 %v5475
        %v8870 = vpop.f32.mrf.mxu0
        %v8871 = vadd.f32 %v8858, %v8870
        %v8872 = vpop.f32.mrf.mxu0
        %8873 = vdwg.mxu0
        %8874 = vmatpush.bf16.msra.mxu0 %v7931
        %8875 = vmatpush.bf16.msra.mxu0 %v7929
        %8876 = vmatpush.bf16.msra.mxu0 %v7927
        %8877 = vmatpush.bf16.msra.mxu0 %v7925
        %8878 = vmatpush.bf16.msra.mxu0 %v7923
        %8879 = vmatpush.bf16.msra.mxu0 %v7921
        %8880 = vmatpush.bf16.msra.mxu0 %v7919
        %8881 = vmatpush.bf16.msra.mxu0 %v7917
        %8882 = vmatmul.bf16.gmra.mxu0 %v5476
        %v8883 = vpop.f32.mrf.mxu0
        %v8884 = vadd.f32 %v8871, %v8883
        %v8885 = vpop.f32.mrf.mxu0
        %8886 = vdwg.mxu0
        %8887 = vmatpush.bf16.msra.mxu0 %v7947
        %8888 = vmatpush.bf16.msra.mxu0 %v7945
        %8889 = vmatpush.bf16.msra.mxu0 %v7943
        %8890 = vmatpush.bf16.msra.mxu0 %v7941
        %8891 = vmatpush.bf16.msra.mxu0 %v7939
        %8892 = vmatpush.bf16.msra.mxu0 %v7937
        %8893 = vmatpush.bf16.msra.mxu0 %v7935
        %8894 = vmatpush.bf16.msra.mxu0 %v7933
        %8895 = vmatmul.bf16.gmra.mxu0 %v5477
        %v8896 = vpop.f32.mrf.mxu0
        %v8897 = vadd.f32 %v8884, %v8896
        %v8898 = vpop.f32.mrf.mxu0
        %8899 = vdwg.mxu0
        %8900 = vmatpush.bf16.msra.mxu0 %v7963
        %8901 = vmatpush.bf16.msra.mxu0 %v7961
        %8902 = vmatpush.bf16.msra.mxu0 %v7959
        %8903 = vmatpush.bf16.msra.mxu0 %v7957
        %8904 = vmatpush.bf16.msra.mxu0 %v7955
        %8905 = vmatpush.bf16.msra.mxu0 %v7953
        %8906 = vmatpush.bf16.msra.mxu0 %v7951
        %8907 = vmatpush.bf16.msra.mxu0 %v7949
        %8908 = vmatmul.bf16.gmra.mxu0 %v5478
        %v8909 = vpop.f32.mrf.mxu0
        %v8910 = vadd.f32 %v8897, %v8909
        %v8911 = vpop.f32.mrf.mxu0
        %8912 = vdwg.mxu0
        %8913 = vmatpush.bf16.msra.mxu0 %v7979
        %8914 = vmatpush.bf16.msra.mxu0 %v7977
        %8915 = vmatpush.bf16.msra.mxu0 %v7975
        %8916 = vmatpush.bf16.msra.mxu0 %v7973
        %8917 = vmatpush.bf16.msra.mxu0 %v7971
        %8918 = vmatpush.bf16.msra.mxu0 %v7969
        %8919 = vmatpush.bf16.msra.mxu0 %v7967
        %8920 = vmatpush.bf16.msra.mxu0 %v7965
        %8921 = vmatmul.bf16.gmra.mxu0 %v5479
        %v8922 = vpop.f32.mrf.mxu0
        %v8923 = vadd.f32 %v8910, %v8922
        %v8924 = vpop.f32.mrf.mxu0
        %8925 = vdwg.mxu0
        %8926 = vmatpush.bf16.msra.mxu0 %v7995
        %8927 = vmatpush.bf16.msra.mxu0 %v7993
        %8928 = vmatpush.bf16.msra.mxu0 %v7991
        %8929 = vmatpush.bf16.msra.mxu0 %v7989
        %8930 = vmatpush.bf16.msra.mxu0 %v7987
        %8931 = vmatpush.bf16.msra.mxu0 %v7985
        %8932 = vmatpush.bf16.msra.mxu0 %v7983
        %8933 = vmatpush.bf16.msra.mxu0 %v7981
        %8934 = vmatmul.bf16.gmra.mxu0 %v5480
        %v8935 = vpop.f32.mrf.mxu0
        %v8936 = vadd.f32 %v8923, %v8935
        %v8937 = vpop.f32.mrf.mxu0
        %8938 = vdwg.mxu0
        %8939 = vmatpush.bf16.msra.mxu0 %v8011
        %8940 = vmatpush.bf16.msra.mxu0 %v8009
        %8941 = vmatpush.bf16.msra.mxu0 %v8007
        %8942 = vmatpush.bf16.msra.mxu0 %v8005
        %8943 = vmatpush.bf16.msra.mxu0 %v8003
        %8944 = vmatpush.bf16.msra.mxu0 %v8001
        %8945 = vmatpush.bf16.msra.mxu0 %v7999
        %8946 = vmatpush.bf16.msra.mxu0 %v7997
        %8947 = vmatmul.bf16.gmra.mxu0 %v5481
        %v8948 = vpop.f32.mrf.mxu0
        %v8949 = vadd.f32 %v8936, %v8948
        %v8950 = vpop.f32.mrf.mxu0
        %8951 = vdwg.mxu0
        %8952 = vmatpush.bf16.msra.mxu0 %v8027
        %8953 = vmatpush.bf16.msra.mxu0 %v8025
        %8954 = vmatpush.bf16.msra.mxu0 %v8023
        %8955 = vmatpush.bf16.msra.mxu0 %v8021
        %8956 = vmatpush.bf16.msra.mxu0 %v8019
        %8957 = vmatpush.bf16.msra.mxu0 %v8017
        %8958 = vmatpush.bf16.msra.mxu0 %v8015
        %8959 = vmatpush.bf16.msra.mxu0 %v8013
        %8960 = vmatmul.bf16.gmra.mxu0 %v5482
        %v8961 = vpop.f32.mrf.mxu0
        %v8962 = vadd.f32 %v8949, %v8961
        %v8963 = vpop.f32.mrf.mxu0
        %8964 = vdwg.mxu0
        %8965 = vmatpush.bf16.msra.mxu0 %v8043
        %8966 = vmatpush.bf16.msra.mxu0 %v8041
        %8967 = vmatpush.bf16.msra.mxu0 %v8039
        %8968 = vmatpush.bf16.msra.mxu0 %v8037
        %8969 = vmatpush.bf16.msra.mxu0 %v8035
        %8970 = vmatpush.bf16.msra.mxu0 %v8033
        %8971 = vmatpush.bf16.msra.mxu0 %v8031
        %8972 = vmatpush.bf16.msra.mxu0 %v8029
        %8973 = vmatmul.bf16.gmra.mxu0 %v5483
        %v8974 = vpop.f32.mrf.mxu0
        %v8975 = vadd.f32 %v8962, %v8974
        %v8976 = vpop.f32.mrf.mxu0
        %8977 = vdwg.mxu0
        %8978 = vmatpush.bf16.msra.mxu0 %v7548
        %8979 = vmatpush.bf16.msra.mxu0 %v7546
        %8980 = vmatpush.bf16.msra.mxu0 %v7544
        %8981 = vmatpush.bf16.msra.mxu0 %v7542
        %8982 = vmatpush.bf16.msra.mxu0 %v7540
        %8983 = vmatpush.bf16.msra.mxu0 %v7538
        %8984 = vmatpush.bf16.msra.mxu0 %v7536
        %8985 = vmatpush.bf16.msra.mxu0 %v7534
        %8986 = vmatmul.bf16.gmra.mxu0 %v5452
        %v8987 = vpop.f32.mrf.mxu0
        %v8988 = vadd.f32 %v8559, %v8987
        %v8989 = vpop.f32.mrf.mxu0
        %8990 = vdwg.mxu0
        %8991 = vmatpush.bf16.msra.mxu0 %v7564
        %8992 = vmatpush.bf16.msra.mxu0 %v7562
        %8993 = vmatpush.bf16.msra.mxu0 %v7560
        %8994 = vmatpush.bf16.msra.mxu0 %v7558
        %8995 = vmatpush.bf16.msra.mxu0 %v7556
        %8996 = vmatpush.bf16.msra.mxu0 %v7554
        %8997 = vmatpush.bf16.msra.mxu0 %v7552
        %8998 = vmatpush.bf16.msra.mxu0 %v7550
        %8999 = vmatmul.bf16.gmra.mxu0 %v5453
        %v9000 = vpop.f32.mrf.mxu0
        %v9001 = vadd.f32 %v8988, %v9000
        %v9002 = vpop.f32.mrf.mxu0
        %9003 = vdwg.mxu0
        %9004 = vmatpush.bf16.msra.mxu0 %v7580
        %9005 = vmatpush.bf16.msra.mxu0 %v7578
        %9006 = vmatpush.bf16.msra.mxu0 %v7576
        %9007 = vmatpush.bf16.msra.mxu0 %v7574
        %9008 = vmatpush.bf16.msra.mxu0 %v7572
        %9009 = vmatpush.bf16.msra.mxu0 %v7570
        %9010 = vmatpush.bf16.msra.mxu0 %v7568
        %9011 = vmatpush.bf16.msra.mxu0 %v7566
        %9012 = vmatmul.bf16.gmra.mxu0 %v5454
        %v9013 = vpop.f32.mrf.mxu0
        %v9014 = vadd.f32 %v9001, %v9013
        %v9015 = vpop.f32.mrf.mxu0
        %9016 = vdwg.mxu0
        %9017 = vmatpush.bf16.msra.mxu0 %v7596
        %9018 = vmatpush.bf16.msra.mxu0 %v7594
        %9019 = vmatpush.bf16.msra.mxu0 %v7592
        %9020 = vmatpush.bf16.msra.mxu0 %v7590
        %9021 = vmatpush.bf16.msra.mxu0 %v7588
        %9022 = vmatpush.bf16.msra.mxu0 %v7586
        %9023 = vmatpush.bf16.msra.mxu0 %v7584
        %9024 = vmatpush.bf16.msra.mxu0 %v7582
        %9025 = vmatmul.bf16.gmra.mxu0 %v5455
        %v9026 = vpop.f32.mrf.mxu0
        %v9027 = vadd.f32 %v9014, %v9026
        %v9028 = vpop.f32.mrf.mxu0
        %9029 = vdwg.mxu0
        %9030 = vmatpush.bf16.msra.mxu0 %v7612
        %9031 = vmatpush.bf16.msra.mxu0 %v7610
        %9032 = vmatpush.bf16.msra.mxu0 %v7608
        %9033 = vmatpush.bf16.msra.mxu0 %v7606
        %9034 = vmatpush.bf16.msra.mxu0 %v7604
        %9035 = vmatpush.bf16.msra.mxu0 %v7602
        %9036 = vmatpush.bf16.msra.mxu0 %v7600
        %9037 = vmatpush.bf16.msra.mxu0 %v7598
        %9038 = vmatmul.bf16.gmra.mxu0 %v5456
        %v9039 = vpop.f32.mrf.mxu0
        %v9040 = vadd.f32 %v9027, %v9039
        %v9041 = vpop.f32.mrf.mxu0
        %9042 = vdwg.mxu0
        %9043 = vmatpush.bf16.msra.mxu0 %v7628
        %9044 = vmatpush.bf16.msra.mxu0 %v7626
        %9045 = vmatpush.bf16.msra.mxu0 %v7624
        %9046 = vmatpush.bf16.msra.mxu0 %v7622
        %9047 = vmatpush.bf16.msra.mxu0 %v7620
        %9048 = vmatpush.bf16.msra.mxu0 %v7618
        %9049 = vmatpush.bf16.msra.mxu0 %v7616
        %9050 = vmatpush.bf16.msra.mxu0 %v7614
        %9051 = vmatmul.bf16.gmra.mxu0 %v5457
        %v9052 = vpop.f32.mrf.mxu0
        %v9053 = vadd.f32 %v9040, %v9052
        %v9054 = vpop.f32.mrf.mxu0
        %9055 = vdwg.mxu0
        %9056 = vmatpush.bf16.msra.mxu0 %v7644
        %9057 = vmatpush.bf16.msra.mxu0 %v7642
        %9058 = vmatpush.bf16.msra.mxu0 %v7640
        %9059 = vmatpush.bf16.msra.mxu0 %v7638
        %9060 = vmatpush.bf16.msra.mxu0 %v7636
        %9061 = vmatpush.bf16.msra.mxu0 %v7634
        %9062 = vmatpush.bf16.msra.mxu0 %v7632
        %9063 = vmatpush.bf16.msra.mxu0 %v7630
        %9064 = vmatmul.bf16.gmra.mxu0 %v5458
        %v9065 = vpop.f32.mrf.mxu0
        %v9066 = vadd.f32 %v9053, %v9065
        %v9067 = vpop.f32.mrf.mxu0
        %9068 = vdwg.mxu0
        %9069 = vmatpush.bf16.msra.mxu0 %v7660
        %9070 = vmatpush.bf16.msra.mxu0 %v7658
        %9071 = vmatpush.bf16.msra.mxu0 %v7656
        %9072 = vmatpush.bf16.msra.mxu0 %v7654
        %9073 = vmatpush.bf16.msra.mxu0 %v7652
        %9074 = vmatpush.bf16.msra.mxu0 %v7650
        %9075 = vmatpush.bf16.msra.mxu0 %v7648
        %9076 = vmatpush.bf16.msra.mxu0 %v7646
        %9077 = vmatmul.bf16.gmra.mxu0 %v5459
        %v9078 = vpop.f32.mrf.mxu0
        %v9079 = vadd.f32 %v9066, %v9078
        %v9080 = vpop.f32.mrf.mxu0
        %9081 = vdwg.mxu0
        %9082 = vmatpush.bf16.msra.mxu0 %v7676
        %9083 = vmatpush.bf16.msra.mxu0 %v7674
        %9084 = vmatpush.bf16.msra.mxu0 %v7672
        %9085 = vmatpush.bf16.msra.mxu0 %v7670
        %9086 = vmatpush.bf16.msra.mxu0 %v7668
        %9087 = vmatpush.bf16.msra.mxu0 %v7666
        %9088 = vmatpush.bf16.msra.mxu0 %v7664
        %9089 = vmatpush.bf16.msra.mxu0 %v7662
        %9090 = vmatmul.bf16.gmra.mxu0 %v5460
        %v9091 = vpop.f32.mrf.mxu0
        %v9092 = vadd.f32 %v9079, %v9091
        %v9093 = vpop.f32.mrf.mxu0
        %9094 = vdwg.mxu0
        %9095 = vmatpush.bf16.msra.mxu0 %v7692
        %9096 = vmatpush.bf16.msra.mxu0 %v7690
        %9097 = vmatpush.bf16.msra.mxu0 %v7688
        %9098 = vmatpush.bf16.msra.mxu0 %v7686
        %9099 = vmatpush.bf16.msra.mxu0 %v7684
        %9100 = vmatpush.bf16.msra.mxu0 %v7682
        %9101 = vmatpush.bf16.msra.mxu0 %v7680
        %9102 = vmatpush.bf16.msra.mxu0 %v7678
        %9103 = vmatmul.bf16.gmra.mxu0 %v5461
        %v9104 = vpop.f32.mrf.mxu0
        %v9105 = vadd.f32 %v9092, %v9104
        %v9106 = vpop.f32.mrf.mxu0
        %9107 = vdwg.mxu0
        %9108 = vmatpush.bf16.msra.mxu0 %v7708
        %9109 = vmatpush.bf16.msra.mxu0 %v7706
        %9110 = vmatpush.bf16.msra.mxu0 %v7704
        %9111 = vmatpush.bf16.msra.mxu0 %v7702
        %9112 = vmatpush.bf16.msra.mxu0 %v7700
        %9113 = vmatpush.bf16.msra.mxu0 %v7698
        %9114 = vmatpush.bf16.msra.mxu0 %v7696
        %9115 = vmatpush.bf16.msra.mxu0 %v7694
        %9116 = vmatmul.bf16.gmra.mxu0 %v5462
        %v9117 = vpop.f32.mrf.mxu0
        %v9118 = vadd.f32 %v9105, %v9117
        %v9119 = vpop.f32.mrf.mxu0
        %9120 = vdwg.mxu0
        %9121 = vmatpush.bf16.msra.mxu0 %v7724
        %9122 = vmatpush.bf16.msra.mxu0 %v7722
        %9123 = vmatpush.bf16.msra.mxu0 %v7720
        %9124 = vmatpush.bf16.msra.mxu0 %v7718
        %9125 = vmatpush.bf16.msra.mxu0 %v7716
        %9126 = vmatpush.bf16.msra.mxu0 %v7714
        %9127 = vmatpush.bf16.msra.mxu0 %v7712
        %9128 = vmatpush.bf16.msra.mxu0 %v7710
        %9129 = vmatmul.bf16.gmra.mxu0 %v5463
        %v9130 = vpop.f32.mrf.mxu0
        %v9131 = vadd.f32 %v9118, %v9130
        %v9132 = vpop.f32.mrf.mxu0
        %9133 = vdwg.mxu0
        %9134 = vmatpush.bf16.msra.mxu0 %v7740
        %9135 = vmatpush.bf16.msra.mxu0 %v7738
        %9136 = vmatpush.bf16.msra.mxu0 %v7736
        %9137 = vmatpush.bf16.msra.mxu0 %v7734
        %9138 = vmatpush.bf16.msra.mxu0 %v7732
        %9139 = vmatpush.bf16.msra.mxu0 %v7730
        %9140 = vmatpush.bf16.msra.mxu0 %v7728
        %9141 = vmatpush.bf16.msra.mxu0 %v7726
        %9142 = vmatmul.bf16.gmra.mxu0 %v5464
        %v9143 = vpop.f32.mrf.mxu0
        %v9144 = vadd.f32 %v9131, %v9143
        %v9145 = vpop.f32.mrf.mxu0
        %9146 = vdwg.mxu0
        %9147 = vmatpush.bf16.msra.mxu0 %v7756
        %9148 = vmatpush.bf16.msra.mxu0 %v7754
        %9149 = vmatpush.bf16.msra.mxu0 %v7752
        %9150 = vmatpush.bf16.msra.mxu0 %v7750
        %9151 = vmatpush.bf16.msra.mxu0 %v7748
        %9152 = vmatpush.bf16.msra.mxu0 %v7746
        %9153 = vmatpush.bf16.msra.mxu0 %v7744
        %9154 = vmatpush.bf16.msra.mxu0 %v7742
        %9155 = vmatmul.bf16.gmra.mxu0 %v5465
        %v9156 = vpop.f32.mrf.mxu0
        %v9157 = vadd.f32 %v9144, %v9156
        %v9158 = vpop.f32.mrf.mxu0
        %9159 = vdwg.mxu0
        %9160 = vmatpush.bf16.msra.mxu0 %v7772
        %9161 = vmatpush.bf16.msra.mxu0 %v7770
        %9162 = vmatpush.bf16.msra.mxu0 %v7768
        %9163 = vmatpush.bf16.msra.mxu0 %v7766
        %9164 = vmatpush.bf16.msra.mxu0 %v7764
        %9165 = vmatpush.bf16.msra.mxu0 %v7762
        %9166 = vmatpush.bf16.msra.mxu0 %v7760
        %9167 = vmatpush.bf16.msra.mxu0 %v7758
        %9168 = vmatmul.bf16.gmra.mxu0 %v5466
        %v9169 = vpop.f32.mrf.mxu0
        %v9170 = vadd.f32 %v9157, %v9169
        %v9171 = vpop.f32.mrf.mxu0
        %9172 = vdwg.mxu0
        %9173 = vmatpush.bf16.msra.mxu0 %v7788
        %9174 = vmatpush.bf16.msra.mxu0 %v7786
        %9175 = vmatpush.bf16.msra.mxu0 %v7784
        %9176 = vmatpush.bf16.msra.mxu0 %v7782
        %9177 = vmatpush.bf16.msra.mxu0 %v7780
        %9178 = vmatpush.bf16.msra.mxu0 %v7778
        %9179 = vmatpush.bf16.msra.mxu0 %v7776
        %9180 = vmatpush.bf16.msra.mxu0 %v7774
        %9181 = vmatmul.bf16.gmra.mxu0 %v5467
        %v9182 = vpop.f32.mrf.mxu0
        %v9183 = vadd.f32 %v9170, %v9182
        %v9184 = vpop.f32.mrf.mxu0
        %9185 = vdwg.mxu0
        %9186 = vmatpush.bf16.msra.mxu0 %v7804
        %9187 = vmatpush.bf16.msra.mxu0 %v7802
        %9188 = vmatpush.bf16.msra.mxu0 %v7800
        %9189 = vmatpush.bf16.msra.mxu0 %v7798
        %9190 = vmatpush.bf16.msra.mxu0 %v7796
        %9191 = vmatpush.bf16.msra.mxu0 %v7794
        %9192 = vmatpush.bf16.msra.mxu0 %v7792
        %9193 = vmatpush.bf16.msra.mxu0 %v7790
        %9194 = vmatmul.bf16.gmra.mxu0 %v5468
        %v9195 = vpop.f32.mrf.mxu0
        %v9196 = vadd.f32 %v9183, %v9195
        %v9197 = vpop.f32.mrf.mxu0
        %9198 = vdwg.mxu0
        %9199 = vmatpush.bf16.msra.mxu0 %v7820
        %9200 = vmatpush.bf16.msra.mxu0 %v7818
        %9201 = vmatpush.bf16.msra.mxu0 %v7816
        %9202 = vmatpush.bf16.msra.mxu0 %v7814
        %9203 = vmatpush.bf16.msra.mxu0 %v7812
        %9204 = vmatpush.bf16.msra.mxu0 %v7810
        %9205 = vmatpush.bf16.msra.mxu0 %v7808
        %9206 = vmatpush.bf16.msra.mxu0 %v7806
        %9207 = vmatmul.bf16.gmra.mxu0 %v5469
        %v9208 = vpop.f32.mrf.mxu0
        %v9209 = vadd.f32 %v9196, %v9208
        %v9210 = vpop.f32.mrf.mxu0
        %9211 = vdwg.mxu0
        %9212 = vmatpush.bf16.msra.mxu0 %v7836
        %9213 = vmatpush.bf16.msra.mxu0 %v7834
        %9214 = vmatpush.bf16.msra.mxu0 %v7832
        %9215 = vmatpush.bf16.msra.mxu0 %v7830
        %9216 = vmatpush.bf16.msra.mxu0 %v7828
        %9217 = vmatpush.bf16.msra.mxu0 %v7826
        %9218 = vmatpush.bf16.msra.mxu0 %v7824
        %9219 = vmatpush.bf16.msra.mxu0 %v7822
        %9220 = vmatmul.bf16.gmra.mxu0 %v5470
        %v9221 = vpop.f32.mrf.mxu0
        %v9222 = vadd.f32 %v9209, %v9221
        %v9223 = vpop.f32.mrf.mxu0
        %9224 = vdwg.mxu0
        %9225 = vmatpush.bf16.msra.mxu0 %v7852
        %9226 = vmatpush.bf16.msra.mxu0 %v7850
        %9227 = vmatpush.bf16.msra.mxu0 %v7848
        %9228 = vmatpush.bf16.msra.mxu0 %v7846
        %9229 = vmatpush.bf16.msra.mxu0 %v7844
        %9230 = vmatpush.bf16.msra.mxu0 %v7842
        %9231 = vmatpush.bf16.msra.mxu0 %v7840
        %9232 = vmatpush.bf16.msra.mxu0 %v7838
        %9233 = vmatmul.bf16.gmra.mxu0 %v5471
        %v9234 = vpop.f32.mrf.mxu0
        %v9235 = vadd.f32 %v9222, %v9234
        %v9236 = vpop.f32.mrf.mxu0
        %9237 = vdwg.mxu0
        %9238 = vmatpush.bf16.msra.mxu0 %v7868
        %9239 = vmatpush.bf16.msra.mxu0 %v7866
        %9240 = vmatpush.bf16.msra.mxu0 %v7864
        %9241 = vmatpush.bf16.msra.mxu0 %v7862
        %9242 = vmatpush.bf16.msra.mxu0 %v7860
        %9243 = vmatpush.bf16.msra.mxu0 %v7858
        %9244 = vmatpush.bf16.msra.mxu0 %v7856
        %9245 = vmatpush.bf16.msra.mxu0 %v7854
        %9246 = vmatmul.bf16.gmra.mxu0 %v5472
        %v9247 = vpop.f32.mrf.mxu0
        %v9248 = vadd.f32 %v9235, %v9247
        %v9249 = vpop.f32.mrf.mxu0
        %9250 = vdwg.mxu0
        %9251 = vmatpush.bf16.msra.mxu0 %v7884
        %9252 = vmatpush.bf16.msra.mxu0 %v7882
        %9253 = vmatpush.bf16.msra.mxu0 %v7880
        %9254 = vmatpush.bf16.msra.mxu0 %v7878
        %9255 = vmatpush.bf16.msra.mxu0 %v7876
        %9256 = vmatpush.bf16.msra.mxu0 %v7874
        %9257 = vmatpush.bf16.msra.mxu0 %v7872
        %9258 = vmatpush.bf16.msra.mxu0 %v7870
        %9259 = vmatmul.bf16.gmra.mxu0 %v5473
        %v9260 = vpop.f32.mrf.mxu0
        %v9261 = vadd.f32 %v9248, %v9260
        %v9262 = vpop.f32.mrf.mxu0
        %9263 = vdwg.mxu0
        %9264 = vmatpush.bf16.msra.mxu0 %v7900
        %9265 = vmatpush.bf16.msra.mxu0 %v7898
        %9266 = vmatpush.bf16.msra.mxu0 %v7896
        %9267 = vmatpush.bf16.msra.mxu0 %v7894
        %9268 = vmatpush.bf16.msra.mxu0 %v7892
        %9269 = vmatpush.bf16.msra.mxu0 %v7890
        %9270 = vmatpush.bf16.msra.mxu0 %v7888
        %9271 = vmatpush.bf16.msra.mxu0 %v7886
        %9272 = vmatmul.bf16.gmra.mxu0 %v5474
        %v9273 = vpop.f32.mrf.mxu0
        %v9274 = vadd.f32 %v9261, %v9273
        %v9275 = vpop.f32.mrf.mxu0
        %9276 = vdwg.mxu0
        %9277 = vmatpush.bf16.msra.mxu0 %v7916
        %9278 = vmatpush.bf16.msra.mxu0 %v7914
        %9279 = vmatpush.bf16.msra.mxu0 %v7912
        %9280 = vmatpush.bf16.msra.mxu0 %v7910
        %9281 = vmatpush.bf16.msra.mxu0 %v7908
        %9282 = vmatpush.bf16.msra.mxu0 %v7906
        %9283 = vmatpush.bf16.msra.mxu0 %v7904
        %9284 = vmatpush.bf16.msra.mxu0 %v7902
        %9285 = vmatmul.bf16.gmra.mxu0 %v5475
        %v9286 = vpop.f32.mrf.mxu0
        %v9287 = vadd.f32 %v9274, %v9286
        %v9288 = vpop.f32.mrf.mxu0
        %9289 = vdwg.mxu0
        %9290 = vmatpush.bf16.msra.mxu0 %v7932
        %9291 = vmatpush.bf16.msra.mxu0 %v7930
        %9292 = vmatpush.bf16.msra.mxu0 %v7928
        %9293 = vmatpush.bf16.msra.mxu0 %v7926
        %9294 = vmatpush.bf16.msra.mxu0 %v7924
        %9295 = vmatpush.bf16.msra.mxu0 %v7922
        %9296 = vmatpush.bf16.msra.mxu0 %v7920
        %9297 = vmatpush.bf16.msra.mxu0 %v7918
        %9298 = vmatmul.bf16.gmra.mxu0 %v5476
        %v9299 = vpop.f32.mrf.mxu0
        %v9300 = vadd.f32 %v9287, %v9299
        %v9301 = vpop.f32.mrf.mxu0
        %9302 = vdwg.mxu0
        %9303 = vmatpush.bf16.msra.mxu0 %v7948
        %9304 = vmatpush.bf16.msra.mxu0 %v7946
        %9305 = vmatpush.bf16.msra.mxu0 %v7944
        %9306 = vmatpush.bf16.msra.mxu0 %v7942
        %9307 = vmatpush.bf16.msra.mxu0 %v7940
        %9308 = vmatpush.bf16.msra.mxu0 %v7938
        %9309 = vmatpush.bf16.msra.mxu0 %v7936
        %9310 = vmatpush.bf16.msra.mxu0 %v7934
        %9311 = vmatmul.bf16.gmra.mxu0 %v5477
        %v9312 = vpop.f32.mrf.mxu0
        %v9313 = vadd.f32 %v9300, %v9312
        %v9314 = vpop.f32.mrf.mxu0
        %9315 = vdwg.mxu0
        %9316 = vmatpush.bf16.msra.mxu0 %v7964
        %9317 = vmatpush.bf16.msra.mxu0 %v7962
        %9318 = vmatpush.bf16.msra.mxu0 %v7960
        %9319 = vmatpush.bf16.msra.mxu0 %v7958
        %9320 = vmatpush.bf16.msra.mxu0 %v7956
        %9321 = vmatpush.bf16.msra.mxu0 %v7954
        %9322 = vmatpush.bf16.msra.mxu0 %v7952
        %9323 = vmatpush.bf16.msra.mxu0 %v7950
        %9324 = vmatmul.bf16.gmra.mxu0 %v5478
        %v9325 = vpop.f32.mrf.mxu0
        %v9326 = vadd.f32 %v9313, %v9325
        %v9327 = vpop.f32.mrf.mxu0
        %9328 = vdwg.mxu0
        %9329 = vmatpush.bf16.msra.mxu0 %v7980
        %9330 = vmatpush.bf16.msra.mxu0 %v7978
        %9331 = vmatpush.bf16.msra.mxu0 %v7976
        %9332 = vmatpush.bf16.msra.mxu0 %v7974
        %9333 = vmatpush.bf16.msra.mxu0 %v7972
        %9334 = vmatpush.bf16.msra.mxu0 %v7970
        %9335 = vmatpush.bf16.msra.mxu0 %v7968
        %9336 = vmatpush.bf16.msra.mxu0 %v7966
        %9337 = vmatmul.bf16.gmra.mxu0 %v5479
        %v9338 = vpop.f32.mrf.mxu0
        %v9339 = vadd.f32 %v9326, %v9338
        %v9340 = vpop.f32.mrf.mxu0
        %9341 = vdwg.mxu0
        %9342 = vmatpush.bf16.msra.mxu0 %v7996
        %9343 = vmatpush.bf16.msra.mxu0 %v7994
        %9344 = vmatpush.bf16.msra.mxu0 %v7992
        %9345 = vmatpush.bf16.msra.mxu0 %v7990
        %9346 = vmatpush.bf16.msra.mxu0 %v7988
        %9347 = vmatpush.bf16.msra.mxu0 %v7986
        %9348 = vmatpush.bf16.msra.mxu0 %v7984
        %9349 = vmatpush.bf16.msra.mxu0 %v7982
        %9350 = vmatmul.bf16.gmra.mxu0 %v5480
        %v9351 = vpop.f32.mrf.mxu0
        %v9352 = vadd.f32 %v9339, %v9351
        %v9353 = vpop.f32.mrf.mxu0
        %9354 = vdwg.mxu0
        %9355 = vmatpush.bf16.msra.mxu0 %v8012
        %9356 = vmatpush.bf16.msra.mxu0 %v8010
        %9357 = vmatpush.bf16.msra.mxu0 %v8008
        %9358 = vmatpush.bf16.msra.mxu0 %v8006
        %9359 = vmatpush.bf16.msra.mxu0 %v8004
        %9360 = vmatpush.bf16.msra.mxu0 %v8002
        %9361 = vmatpush.bf16.msra.mxu0 %v8000
        %9362 = vmatpush.bf16.msra.mxu0 %v7998
        %9363 = vmatmul.bf16.gmra.mxu0 %v5481
        %v9364 = vpop.f32.mrf.mxu0
        %v9365 = vadd.f32 %v9352, %v9364
        %v9366 = vpop.f32.mrf.mxu0
        %9367 = vdwg.mxu0
        %9368 = vmatpush.bf16.msra.mxu0 %v8028
        %9369 = vmatpush.bf16.msra.mxu0 %v8026
        %9370 = vmatpush.bf16.msra.mxu0 %v8024
        %9371 = vmatpush.bf16.msra.mxu0 %v8022
        %9372 = vmatpush.bf16.msra.mxu0 %v8020
        %9373 = vmatpush.bf16.msra.mxu0 %v8018
        %9374 = vmatpush.bf16.msra.mxu0 %v8016
        %9375 = vmatpush.bf16.msra.mxu0 %v8014
        %9376 = vmatmul.bf16.gmra.mxu0 %v5482
        %v9377 = vpop.f32.mrf.mxu0
        %v9378 = vadd.f32 %v9365, %v9377
        %v9379 = vpop.f32.mrf.mxu0
        %9380 = vdwg.mxu0
        %9381 = vmatpush.bf16.msra.mxu0 %v8044
        %9382 = vmatpush.bf16.msra.mxu0 %v8042
        %9383 = vmatpush.bf16.msra.mxu0 %v8040
        %9384 = vmatpush.bf16.msra.mxu0 %v8038
        %9385 = vmatpush.bf16.msra.mxu0 %v8036
        %9386 = vmatpush.bf16.msra.mxu0 %v8034
        %9387 = vmatpush.bf16.msra.mxu0 %v8032
        %9388 = vmatpush.bf16.msra.mxu0 %v8030
        %9389 = vmatmul.bf16.gmra.mxu0 %v5483
        %v9390 = vpop.f32.mrf.mxu0
        %v9391 = vadd.f32 %v9378, %v9390
        %v9392 = vpop.f32.mrf.mxu0
        %9393 = vdwg.mxu0
        %v9394 = vmax.f32 %v8975, 0.0
        %v9395 = vmax.f32 %v9391, 0.0
        %v9396 = vpack.c.bf16 %v9394, %v9394
        %v9397 = vpack.c.bf16 %v9395, %v9395
        %v9398 = vld [vmem:[#allocation22] sm:$0xf]
        %v9399 = vld [vmem:[#allocation22 + $0x4] sm:$0xf]
        %v9400 = vld [vmem:[#allocation22 + $0x8] sm:$0xf]
        %v9401 = vld [vmem:[#allocation22 + $0xc] sm:$0xf]
        %v9402 = vld [vmem:[#allocation22 + $0x10] sm:$0xf]
        %v9403 = vld [vmem:[#allocation22 + $0x14] sm:$0xf]
        %v9404 = vld [vmem:[#allocation22 + $0x18] sm:$0xf]
        %v9405 = vld [vmem:[#allocation22 + $0x1c] sm:$0xf]
        %v9406 = vld [vmem:[#allocation22 + $0x20] sm:$0xf]
        %v9407 = vld [vmem:[#allocation22 + $0x24] sm:$0xf]
        %v9408 = vld [vmem:[#allocation22 + $0x28] sm:$0xf]
        %v9409 = vld [vmem:[#allocation22 + $0x2c] sm:$0xf]
        %v9410 = vld [vmem:[#allocation22 + $0x30] sm:$0xf]
        %v9411 = vld [vmem:[#allocation22 + $0x34] sm:$0xf]
        %v9412 = vld [vmem:[#allocation22 + $0x38] sm:$0xf]
        %v9413 = vld [vmem:[#allocation22 + $0x3c] sm:$0xf]
        %v9414 = vld [vmem:[#allocation22 + $0x40] sm:$0xf]
        %v9415 = vld [vmem:[#allocation22 + $0x44] sm:$0xf]
        %v9416 = vld [vmem:[#allocation22 + $0x48] sm:$0xf]
        %v9417 = vld [vmem:[#allocation22 + $0x4c] sm:$0xf]
        %v9418 = vld [vmem:[#allocation22 + $0x50] sm:$0xf]
        %v9419 = vld [vmem:[#allocation22 + $0x54] sm:$0xf]
        %v9420 = vld [vmem:[#allocation22 + $0x58] sm:$0xf]
        %v9421 = vld [vmem:[#allocation22 + $0x5c] sm:$0xf]
        %v9422 = vld [vmem:[#allocation22 + $0x60] sm:$0xf]
        %v9423 = vld [vmem:[#allocation22 + $0x64] sm:$0xf]
        %v9424 = vld [vmem:[#allocation22 + $0x68] sm:$0xf]
        %v9425 = vld [vmem:[#allocation22 + $0x6c] sm:$0xf]
        %v9426 = vld [vmem:[#allocation22 + $0x70] sm:$0xf]
        %v9427 = vld [vmem:[#allocation22 + $0x74] sm:$0xf]
        %v9428 = vld [vmem:[#allocation22 + $0x78] sm:$0xf]
        %v9429 = vld [vmem:[#allocation22 + $0x7c] sm:$0xf]
        %v9430 = vld [vmem:[#allocation24] sm:$0x1]
        %v9463 = vunpack.c.l.b16 %v9398
        %v9464 = vunpack.c.l.b16 %v9399
        %v9465 = vunpack.c.l.b16 %v9400
        %v9466 = vunpack.c.l.b16 %v9401
        %v9467 = vunpack.c.l.b16 %v9402
        %v9468 = vunpack.c.l.b16 %v9403
        %v9469 = vunpack.c.l.b16 %v9404
        %v9470 = vunpack.c.l.b16 %v9405
        %v9471 = vunpack.c.l.b16 %v9406
        %v9472 = vunpack.c.l.b16 %v9407
        %v9473 = vunpack.c.l.b16 %v9408
        %v9474 = vunpack.c.l.b16 %v9409
        %v9475 = vunpack.c.l.b16 %v9410
        %v9476 = vunpack.c.l.b16 %v9411
        %v9477 = vunpack.c.l.b16 %v9412
        %v9478 = vunpack.c.l.b16 %v9413
        %v9479 = vunpack.c.l.b16 %v9414
        %v9480 = vunpack.c.l.b16 %v9415
        %v9481 = vunpack.c.l.b16 %v9416
        %v9482 = vunpack.c.l.b16 %v9417
        %v9483 = vunpack.c.l.b16 %v9418
        %v9484 = vunpack.c.l.b16 %v9419
        %v9485 = vunpack.c.l.b16 %v9420
        %v9486 = vunpack.c.l.b16 %v9421
        %v9487 = vunpack.c.l.b16 %v9422
        %v9488 = vunpack.c.l.b16 %v9423
        %v9489 = vunpack.c.l.b16 %v9424
        %v9490 = vunpack.c.l.b16 %v9425
        %v9491 = vunpack.c.l.b16 %v9426
        %v9492 = vunpack.c.l.b16 %v9427
        %v9493 = vunpack.c.l.b16 %v9428
        %v9494 = vunpack.c.l.b16 %v9429
        %v9495 = vpack.c.b16 %v9464, %v9463
        %v9496 = vpack.c.b16 %v9466, %v9465
        %v9497 = vpack.c.b16 %v9468, %v9467
        %v9498 = vpack.c.b16 %v9470, %v9469
        %v9499 = vpack.c.b16 %v9472, %v9471
        %v9500 = vpack.c.b16 %v9474, %v9473
        %v9501 = vpack.c.b16 %v9476, %v9475
        %v9502 = vpack.c.b16 %v9478, %v9477
        %v9503 = vpack.c.b16 %v9480, %v9479
        %v9504 = vpack.c.b16 %v9482, %v9481
        %v9505 = vpack.c.b16 %v9484, %v9483
        %v9506 = vpack.c.b16 %v9486, %v9485
        %v9507 = vpack.c.b16 %v9488, %v9487
        %v9508 = vpack.c.b16 %v9490, %v9489
        %v9509 = vpack.c.b16 %v9492, %v9491
        %v9510 = vpack.c.b16 %v9494, %v9493
        %9527 = vmatpush.bf16.msra.mxu0 %v9502
        %9528 = vmatpush.bf16.msra.mxu0 %v9501
        %9529 = vmatpush.bf16.msra.mxu0 %v9500
        %9530 = vmatpush.bf16.msra.mxu0 %v9499
        %9531 = vmatpush.bf16.msra.mxu0 %v9498
        %9532 = vmatpush.bf16.msra.mxu0 %v9497
        %9533 = vmatpush.bf16.msra.mxu0 %v9496
        %9534 = vmatpush.bf16.msra.mxu0 %v9495
        %9535 = vmatmul.bf16.gmra.mxu0 %v9396
        %v9536 = vpop.f32.mrf.mxu0
        %v9537 = vadd.f32 %v9430, %v9536
        %v9538 = vpop.f32.mrf.mxu0
        %9539 = vdwg.mxu0
        %9540 = vmatpush.bf16.msra.mxu0 %v9510
        %9541 = vmatpush.bf16.msra.mxu0 %v9509
        %9542 = vmatpush.bf16.msra.mxu0 %v9508
        %9543 = vmatpush.bf16.msra.mxu0 %v9507
        %9544 = vmatpush.bf16.msra.mxu0 %v9506
        %9545 = vmatpush.bf16.msra.mxu0 %v9505
        %9546 = vmatpush.bf16.msra.mxu0 %v9504
        %9547 = vmatpush.bf16.msra.mxu0 %v9503
        %9548 = vmatmul.bf16.gmra.mxu0 %v9397
        %v9549 = vpop.f32.mrf.mxu0
        %v9550 = vadd.f32 %v9537, %v9549
        %v9551 = vpop.f32.mrf.mxu0
        %9552 = vdwg.mxu0
        %9553 = vst [vmem:[%s658] sm:$0x1] %v9550
        %s9554 = sand.u32 %s342, 1
        %s9555 = scalar_lea.sflag [#allocation6], %s9554
        %s9556 = sand.u32 %s342, 1
        %s9557 = scalar_lea.vmem [#allocation25], %s9556
        // Predicated region
        $region129: #{tpu_custom_call.1} parent=75 // pred_check
          %p9558 = pneg %p352
        $region130: #{tpu_custom_call.1} parent=75 // pred_check_branch
          %9560 = sbr.rel (%p9558) target = $region132
        $region131: #{tpu_custom_call.1} parent=75 // pred_region
          %9562 = vsyncadd %s9555, 0
          %s9563 = scalar_lea.hbm %s14, %s35
          %s9565 = sshll.u32 %s9557, 4
          %s9566 = int_to_ptr.vmem [resolvable:$true] %s9565
          %s9567 = sshll.u32 %s9563, 4
          %s9568 = int_to_ptr.hbm [resolvable:$true] %s9567
          %9570 = dma.vmem_to_hbm [thread:$0]  %s9566, 16, %s9568, %s9555
        $region132: #{tpu_custom_call.1} parent=75 // pred_fallthru
          _
      $region76: #{tpu_custom_call.1} parent=5 // pred_fallthru
        _
      %p9571 = scmp.le.s32.totalorder 2, %s30
      // Predicated region
      $region133: #{tpu_custom_call.1} parent=5 // pred_check
        %p9572 = pneg %p9571
      $region134: #{tpu_custom_call.1} parent=5 // pred_check_branch
        %9574 = sbr.rel (%p9572) target = $region136
      $region135: #{tpu_custom_call.1} parent=5 // pred_region
        %s9575 = ssub.s32 %s30, 2
        // Predicated region
        $region137: #{tpu_custom_call.1} parent=135 // pred_check
          %p9576 = pneg %p358
        $region138: #{tpu_custom_call.1} parent=135 // pred_check_branch
          %9578 = sbr.rel (%p9576) target = $region140
        $region139: #{tpu_custom_call.1} parent=135 // pred_region
          %s9579 = sand.u32 %s343, 1
          %s9580 = scalar_lea.sflag [#allocation6], %s9579
          %s9581 = sand.u32 %s343, 1
          %s9582 = scalar_lea.vmem [#allocation25], %s9581
          %9584 = dma.done %s9580, 16
        $region140: #{tpu_custom_call.1} parent=135 // pred_fallthru
          _
      $region136: #{tpu_custom_call.1} parent=5 // pred_fallthru
        _
    $region6: #{tpu_custom_call.1} parent=1 // loop_footer
      %s34 = sadd.s32 1, %s30
    $region7: #{tpu_custom_call.1} parent=1 // loop_footer_branch
      %29 = sbr.rel target = $region3
    $region8: #{tpu_custom_call.1} parent=1 // loop_exit
      _
    %9585 = vsyncpa [#allocation5], 1
    %s9586 = scalar_lea.sflag [#allocation5], 1
    %9587 = vsyncpa %s9586, 1
    %9588 = vsyncpa [#allocation8], 1
    %9589 = vsyncpa [#allocation11], 1
    %9590 = vsyncpa [#allocation14], 1
    %9591 = vsyncpa [#allocation17], 1
    %9592 = vsyncpa [#allocation20], 1
    %9593 = vsyncpa [#allocation23], 1
    %9594 = vsyncpa [#allocation6], 1
    %s9595 = scalar_lea.sflag [#allocation6], 1
    %9596 = vsyncpa %s9595, 1

</llo_original>
